<compile_context>
chip_gen: v7x
topology: tpu7x:2x2x1
jax: 0.10.0
libtpu: 0.0.40
codegen_flags: <defaults>
</compile_context>

<pallas_src>
import functools

import jax
import jax.numpy as jnp
import numpy as np
from jax.experimental import pallas as pl
from jax.experimental.pallas import tpu as pltpu

EPS = 1e-5            # nn.InstanceNorm2d default eps
LRELU_SLOPE = 0.2     # nn.LeakyReLU(0.2)


# ----------------------------------------------------------------------------
# Fused Pallas kernel
# ----------------------------------------------------------------------------
def _fused_kernel(x_ref, wb1, b1, wb2, b2, r2, wb3, b3, r3, wb4, b4, r4,
                  fcw, fcb, o_ref, s1, s2, s3, *, dims):
    """Processes one sample (the grid is over the batch).

    x_ref : (1, 2, H/2+1, (W+2)*C_in) f32  padded input, H-parity split, (W,C) folded in lanes
    wb_l  : (4, (W_l+2)*Cin_l, Wout_l*Cout_l) bf16  banded conv weights (one slab per dy)
    b_l   : (1, Wout_l*Cout_l) f32          conv bias tiled across the folded W dimension
    r_l   : (Wout_l*Cout_l, ...) f32        per-channel averaging matrix for InstanceNorm
    fcw   : (1, 128) f32 ; fcb : (1, 1) f32 final Linear(128, 1)
    o_ref : (1, 1, 1) f32
    s1..s3: VMEM scratch holding the padded feature maps of layers 1..3 (f32).
    """
    f32 = jnp.float32

    # Zero scratch once per sample: only the interior is rewritten below, the border
    # stays zero and provides the conv zero-padding for the next layer.
    s1[...] = jnp.zeros_like(s1)
    s2[...] = jnp.zeros_like(s2)
    s3[...] = jnp.zeros_like(s3)

    def conv_block(read_tap, wb_ref, b_ref, r_ref, ho, wo, cout):
        # 4 matmuls, one per kernel row dy; the dx taps and the stride-2 W subsampling
        # are folded into the banded weight, so each tap read is a contiguous slice.
        acc = jnp.zeros((ho, wo * cout), f32)
        for dy in range(4):
            tap = read_tap(dy, ho).astype(jnp.bfloat16)            # (ho, K) bf16
            acc = acc + jnp.dot(tap, wb_ref[dy],
                                preferred_element_type=f32)        # (ho, wo*cout) f32
        y = acc + b_ref[...]
        if r_ref is not None:
            # InstanceNorm2d (affine=False): per-(sample, channel) spatial stats,
            # biased variance, single pass: var = E[y^2] - E[y]^2.  R averages the
            # per-channel sums and broadcasts them back onto the folded (w, c) lanes.
            rs = jnp.sum(y, axis=0, keepdims=True)                 # (1, wo*cout)
            rss = jnp.sum(y * y, axis=0, keepdims=True)
            mean_b = jnp.dot(rs, r_ref[...], preferred_element_type=f32)
            ey2_b = jnp.dot(rss, r_ref[...], preferred_element_type=f32)
            var_b = ey2_b - mean_b * mean_b
            y = (y - mean_b) * jax.lax.rsqrt(var_b + EPS)
        return jnp.where(y >= 0, y, LRELU_SLOPE * y)               # LeakyReLU(0.2)

    def store_padded(s_ref, y, ho, wo, cout):
        # Output row i goes to padded row r = i+1 of the next layer's parity-split
        # scratch; the W padding is a static lane offset of `cout`.
        for i in range(ho):
            r = i + 1
            s_ref[r % 2, r // 2:r // 2 + 1, cout:cout + wo * cout] = y[i:i + 1, :]

    def tap_x(dy, ho):
        return x_ref[0, dy % 2, dy // 2:dy // 2 + ho, :]

    def tap_s(s_ref):
        return lambda dy, ho: s_ref[dy % 2, dy // 2:dy // 2 + ho, :]

    (ho1, wo1, c1), (ho2, wo2, c2), (ho3, wo3, c3), (ho4, wo4, c4) = dims

    y = conv_block(tap_x, wb1, b1, None, ho1, wo1, c1)
    store_padded(s1, y, ho1, wo1, c1)
    y = conv_block(tap_s(s1), wb2, b2, r2, ho2, wo2, c2)
    store_padded(s2, y, ho2, wo2, c2)
    y = conv_block(tap_s(s2), wb3, b3, r3, ho3, wo3, c3)
    store_padded(s3, y, ho3, wo3, c3)
    y = conv_block(tap_s(s3), wb4, b4, r4, ho4, wo4, c4)            # (ho4, wo4*c4)

    # AdaptiveAvgPool2d((1,1)) + Flatten + Linear(c4, 1), done as VPU reductions.
    rs = jnp.sum(y, axis=0, keepdims=True)                          # (1, wo4*c4)
    pooled = rs[:, 0:c4]
    for j in range(1, wo4):
        pooled = pooled + rs[:, j * c4:(j + 1) * c4]
    pooled = pooled * (1.0 / (ho4 * wo4))                           # (1, c4)
    logit = jnp.sum(pooled * fcw[...], axis=-1, keepdims=True) + fcb[...]
    o_ref[0] = logit


# ----------------------------------------------------------------------------
# pallas_call wrapper
# ----------------------------------------------------------------------------
def _run_fused(params, x0):
    n = x0.shape[0]
    dims = params["dims"]

    # Padded feature-map scratch for layers 1..3: (parity, Ho/2+1, (Wo+2)*Cout), f32.
    scratch_shapes = [
        pltpu.VMEM((2, dims[l][0] // 2 + 1, (dims[l][1] + 2) * dims[l][2]), jnp.float32)
        for l in range(3)
    ]

    operands = (x0,
                params["wb"][0], params["b"][0],
                params["wb"][1], params["b"][1], params["r"][1],
                params["wb"][2], params["b"][2], params["r"][2],
                params["wb"][3], params["b"][3], params["r"][3],
                params["fc_w"], params["fc_b"])

    def batched_spec(arr):
        blk = (1,) + tuple(arr.shape[1:])
        zeros = (0,) * (arr.ndim - 1)
        return pl.BlockSpec(blk, lambda i, _z=zeros: (i,) + _z)

    def resident_spec(arr):  # constant index_map -> stays resident across grid steps
        zeros = (0,) * arr.ndim
        return pl.BlockSpec(arr.shape, lambda i, _z=zeros: _z)

    in_specs = [batched_spec(x0)] + [resident_spec(a) for a in operands[1:]]

    out = pl.pallas_call(
        functools.partial(_fused_kernel, dims=dims),
        out_shape=jax.ShapeDtypeStruct((n, 1, 1), jnp.float32),
        grid_spec=pltpu.PrefetchScalarGridSpec(
            num_scalar_prefetch=0,
            grid=(n,),
            in_specs=in_specs,
            out_specs=pl.BlockSpec((1, 1, 1), lambda i: (i, 0, 0)),
            scratch_shapes=scratch_shapes),
        compiler_params=pltpu.CompilerParams(
            dimension_semantics=("parallel",)),
    )(*operands)
    return out.reshape(n, 1)


# ----------------------------------------------------------------------------
# Parameter packing (host-side, init time)
# ----------------------------------------------------------------------------
def _banded_conv_weight(w_oihw, w_out):
    """(C_out, C_in, 4, 4) torch conv weight -> (4, (2*w_out+2)*C_in, w_out*C_out) bf16.

    Multiplying a padded input row (W-major, channel-minor lanes) by slab dy applies
    the 4 dx taps and the stride-2 W subsampling of kernel row dy in one MXU pass.
    """
    c_out, c_in, kh, kw = w_oihw.shape
    w_pad = 2 * w_out + 2
    place = np.zeros((kw, w_pad, w_out), np.float32)
    for dx in range(kw):
        for j in range(w_out):
            place[dx, 2 * j + dx, j] = 1.0
    wt = jnp.transpose(w_oihw, (2, 3, 1, 0))                     # (kh, kw, C_in, C_out)
    wb = jnp.einsum('xwj,yxio->ywijo', jnp.asarray(place), wt)   # (kh, w_pad, C_in, w_out, C_out)
    return wb.reshape(kh, w_pad * c_in, w_out * c_out).astype(jnp.bfloat16)


def _instance_norm_matrix(ho, wo, c):
    """(wo*c, wo*c): right-multiplying a per-lane spatial row-sum by it yields the
    per-channel spatial mean broadcast back onto the folded (w, c) lane layout."""
    r = np.tile(np.eye(c, dtype=np.float32), (wo, wo)) / float(ho * wo)
    return jnp.asarray(r)


def init_params(key, in_channels=5, height=32, width=32):
    """Deterministic synthetic parameters, pre-packed for the fused kernel.
    NOTE: packed weights are specialized to a fixed input resolution."""
    assert height % 16 == 0 and width % 16 == 0, "need four stride-2 halvings"
    cfg = [(in_channels, 16, False), (16, 32, True), (32, 64, True), (64, 128, True)]
    params = {"wb": [], "b": [], "r": [None] * 4, "dims": None,
              "H": height, "W": width, "C_in": in_channels}
    dims = []
    h, w = height, width
    for li, (cin, cout, norm) in enumerate(cfg):
        ho, wo = h // 2, w // 2
        key, kw_, kb_ = jax.random.split(key, 3)
        w_oihw = jax.random.normal(kw_, (cout, cin, 4, 4), jnp.float32) * 0.05
        b_vec = jax.random.normal(kb_, (cout,), jnp.float32) * 0.05
        params["wb"].append(_banded_conv_weight(w_oihw, wo))
        params["b"].append(jnp.tile(b_vec, wo).reshape(1, wo * cout))
        if norm:
            params["r"][li] = _instance_norm_matrix(ho, wo, cout)
        dims.append((ho, wo, cout))
        h, w = ho, wo
    key, kw_, kb_ = jax.random.split(key, 3)
    params["fc_w"] = jax.random.normal(kw_, (1, 128), jnp.float32) * 0.05   # Linear(128,1).weight
    params["fc_b"] = (jax.random.normal(kb_, (1,), jnp.float32) * 0.05).reshape(1, 1)
    params["dims"] = tuple(dims)
    return params


# ----------------------------------------------------------------------------
# Forward pass
# ----------------------------------------------------------------------------
def _prep_input(x_nhwc):
    """(N, H, W, C) -> (N, 2, (H+2)//2, (W+2)*C): zero-pad by 1, split padded rows by
    parity, fold (W, C) into the lane dimension (W-major, channel-minor)."""
    n, h, w, c = x_nhwc.shape
    xp = jnp.pad(x_nhwc, ((0, 0), (1, 1), (1, 1), (0, 0)))
    xr = xp.reshape(n, (h + 2) // 2, 2, w + 2, c)
    xr = jnp.transpose(xr, (0, 2, 1, 3, 4))
    return xr.reshape(n, 2, (h + 2) // 2, (w + 2) * c).astype(jnp.float32)


def patch_evaluator_forward(params, img, img_A, img_B, include_image=True):
    # TODO(synk): the bicubic F.interpolate(align_corners=True) resize branch is not
    # implemented; callers must pass img with the same spatial size as img_A.
    if include_image:
        x = jnp.concatenate([img, img_A, img_B], axis=1)    # NCHW channel concat
    else:
        x = jnp.concatenate([img_A, img_B], axis=1)
    x = jnp.transpose(x, (0, 2, 3, 1)).astype(jnp.float32)  # -> NHWC
    n, h, w, c = x.shape
    assert (h, w, c) == (params["H"], params["W"], params["C_in"]), \
        "packed params are specialized to a fixed input geometry"
    return _run_fused(params, _prep_input(x))


# ----------------------------------------------------------------------------
if __name__ == "__main__":
    key = jax.random.PRNGKey(0)
    kp, k1, k2, k3 = jax.random.split(key, 4)

    params = init_params(kp, in_channels=5, height=32, width=32)

    # img (1 ch) + img_A (2 ch) + img_B (2 ch) -> 5 input channels, 32x32 spatial
    img = jax.random.normal(k1, (2, 1, 32, 32), jnp.float32)
    img_A = jax.random.normal(k2, (2, 2, 32, 32), jnp.float32)
    img_B = jax.random.normal(k3, (2, 2, 32, 32), jnp.float32)

    out = patch_evaluator_forward(params, img, img_A, img_B, include_image=True)
    out = jax.block_until_ready(out)
    assert out.shape == (2, 1) and out.dtype == jnp.float32
    assert bool(jnp.all(jnp.isfinite(out)))
    print("KERNEL_OK")
</pallas_src>

<mosaic_0001>
module attributes {stable_mosaic.version = 11 : i64} {
  func.func @_fused_kernel(%arg0: i32, %arg1: memref<1x2x17x170xf32, #tpu.memory_space<vmem>>, %arg2: memref<4x170x256xbf16, #tpu.memory_space<vmem>>, %arg3: memref<1x256xf32, #tpu.memory_space<vmem>>, %arg4: memref<4x288x256xbf16, #tpu.memory_space<vmem>>, %arg5: memref<1x256xf32, #tpu.memory_space<vmem>>, %arg6: memref<256x256xf32, #tpu.memory_space<vmem>>, %arg7: memref<4x320x256xbf16, #tpu.memory_space<vmem>>, %arg8: memref<1x256xf32, #tpu.memory_space<vmem>>, %arg9: memref<256x256xf32, #tpu.memory_space<vmem>>, %arg10: memref<4x384x256xbf16, #tpu.memory_space<vmem>>, %arg11: memref<1x256xf32, #tpu.memory_space<vmem>>, %arg12: memref<256x256xf32, #tpu.memory_space<vmem>>, %arg13: memref<1x128xf32, #tpu.memory_space<vmem>>, %arg14: memref<1x1xf32, #tpu.memory_space<vmem>>, %arg15: memref<1x1x1xf32, #tpu.memory_space<vmem>>, %arg16: memref<2x9x288xf32, #tpu.memory_space<vmem>>, %arg17: memref<2x5x320xf32, #tpu.memory_space<vmem>>, %arg18: memref<2x3x384xf32, #tpu.memory_space<vmem>>) attributes {dimension_semantics = [#tpu.dimension_semantics<parallel>], iteration_bounds = array<i64: 2>, scalar_prefetch = 0 : i64, scratch_operands = 3 : i64, tpu.core_type = #tpu.core_type<tc>, window_params = [{transform_indices = @transform_0, window_bounds = array<i64: 1, 2, 17, 170>}, {pipeline_mode = #tpu.pipeline_mode<synchronous>, transform_indices = @transform_1, window_bounds = array<i64: 4, 170, 256>}, {pipeline_mode = #tpu.pipeline_mode<synchronous>, transform_indices = @transform_2, window_bounds = array<i64: 1, 256>}, {pipeline_mode = #tpu.pipeline_mode<synchronous>, transform_indices = @transform_3, window_bounds = array<i64: 4, 288, 256>}, {pipeline_mode = #tpu.pipeline_mode<synchronous>, transform_indices = @transform_4, window_bounds = array<i64: 1, 256>}, {pipeline_mode = #tpu.pipeline_mode<synchronous>, transform_indices = @transform_5, window_bounds = array<i64: 256, 256>}, {pipeline_mode = #tpu.pipeline_mode<synchronous>, transform_indices = @transform_6, window_bounds = array<i64: 4, 320, 256>}, {pipeline_mode = #tpu.pipeline_mode<synchronous>, transform_indices = @transform_7, window_bounds = array<i64: 1, 256>}, {pipeline_mode = #tpu.pipeline_mode<synchronous>, transform_indices = @transform_8, window_bounds = array<i64: 256, 256>}, {pipeline_mode = #tpu.pipeline_mode<synchronous>, transform_indices = @transform_9, window_bounds = array<i64: 4, 384, 256>}, {pipeline_mode = #tpu.pipeline_mode<synchronous>, transform_indices = @transform_10, window_bounds = array<i64: 1, 256>}, {pipeline_mode = #tpu.pipeline_mode<synchronous>, transform_indices = @transform_11, window_bounds = array<i64: 256, 256>}, {pipeline_mode = #tpu.pipeline_mode<synchronous>, transform_indices = @transform_12, window_bounds = array<i64: 1, 128>}, {pipeline_mode = #tpu.pipeline_mode<synchronous>, transform_indices = @transform_13, window_bounds = array<i64: 1, 1>}, {transform_indices = @transform_14, window_bounds = array<i64: 1, 1, 1>}]} {
    %cst = arith.constant 0.000000e+00 : f32
    %0 = vector.broadcast %cst : f32 to vector<2x9x288xf32>
    %c0 = arith.constant 0 : index
    %c0_0 = arith.constant 0 : index
    %c0_1 = arith.constant 0 : index
    %1 = vector.load %arg16[%c0, %c0_0, %c0_1] : memref<2x9x288xf32, #tpu.memory_space<vmem>>, vector<2x9x288xf32>
    tpu.vector_store %arg16[%c0, %c0_0, %c0_1], %0 {strides = array<i32>} : memref<2x9x288xf32, #tpu.memory_space<vmem>>, vector<2x9x288xf32>,
    %cst_2 = arith.constant 0.000000e+00 : f32
    %2 = vector.broadcast %cst_2 : f32 to vector<2x5x320xf32>
    %c0_3 = arith.constant 0 : index
    %c0_4 = arith.constant 0 : index
    %c0_5 = arith.constant 0 : index
    %3 = vector.load %arg17[%c0_3, %c0_4, %c0_5] : memref<2x5x320xf32, #tpu.memory_space<vmem>>, vector<2x5x320xf32>
    tpu.vector_store %arg17[%c0_3, %c0_4, %c0_5], %2 {strides = array<i32>} : memref<2x5x320xf32, #tpu.memory_space<vmem>>, vector<2x5x320xf32>,
    %cst_6 = arith.constant 0.000000e+00 : f32
    %4 = vector.broadcast %cst_6 : f32 to vector<2x3x384xf32>
    %c0_7 = arith.constant 0 : index
    %c0_8 = arith.constant 0 : index
    %c0_9 = arith.constant 0 : index
    %5 = vector.load %arg18[%c0_7, %c0_8, %c0_9] : memref<2x3x384xf32, #tpu.memory_space<vmem>>, vector<2x3x384xf32>
    tpu.vector_store %arg18[%c0_7, %c0_8, %c0_9], %4 {strides = array<i32>} : memref<2x3x384xf32, #tpu.memory_space<vmem>>, vector<2x3x384xf32>,
    %cst_10 = arith.constant 0.000000e+00 : f32
    %6 = vector.broadcast %cst_10 : f32 to vector<16x256xf32>
    %c0_11 = arith.constant 0 : index
    %c0_12 = arith.constant 0 : index
    %c0_13 = arith.constant 0 : index
    %c0_14 = arith.constant 0 : index
    %7 = vector.load %arg1[%c0_11, %c0_12, %c0_13, %c0_14] : memref<1x2x17x170xf32, #tpu.memory_space<vmem>>, vector<1x1x16x170xf32>
    %8 = vector.shape_cast %7 : vector<1x1x16x170xf32> to vector<16x170xf32>
    %9 = arith.truncf %8 : vector<16x170xf32> to vector<16x170xbf16>
    %c0_15 = arith.constant 0 : index
    %c0_16 = arith.constant 0 : index
    %c0_17 = arith.constant 0 : index
    %10 = vector.load %arg2[%c0_15, %c0_16, %c0_17] : memref<4x170x256xbf16, #tpu.memory_space<vmem>>, vector<1x170x256xbf16>
    %11 = vector.shape_cast %10 : vector<1x170x256xbf16> to vector<170x256xbf16>
    %cst_18 = arith.constant dense<0.000000e+00> : vector<16x256xf32>
    %12 = tpu.matmul %9, %11, %cst_18 {dimension_numbers = #tpu.dot_dimension_numbers<[1], [0], [0], [1], [0, 0, 1, 1], [], []>} : vector<16x170xbf16>, vector<170x256xbf16>, vector<16x256xf32> -> vector<16x256xf32>
    %13 = arith.addf %6, %12 : vector<16x256xf32>
    %c0_19 = arith.constant 0 : index
    %c1 = arith.constant 1 : index
    %c0_20 = arith.constant 0 : index
    %c0_21 = arith.constant 0 : index
    %14 = vector.load %arg1[%c0_19, %c1, %c0_20, %c0_21] : memref<1x2x17x170xf32, #tpu.memory_space<vmem>>, vector<1x1x16x170xf32>
    %15 = vector.shape_cast %14 : vector<1x1x16x170xf32> to vector<16x170xf32>
    %16 = arith.truncf %15 : vector<16x170xf32> to vector<16x170xbf16>
    %c1_22 = arith.constant 1 : index
    %c0_23 = arith.constant 0 : index
    %c0_24 = arith.constant 0 : index
    %17 = vector.load %arg2[%c1_22, %c0_23, %c0_24] : memref<4x170x256xbf16, #tpu.memory_space<vmem>>, vector<1x170x256xbf16>
    %18 = vector.shape_cast %17 : vector<1x170x256xbf16> to vector<170x256xbf16>
    %cst_25 = arith.constant dense<0.000000e+00> : vector<16x256xf32>
    %19 = tpu.matmul %16, %18, %cst_25 {dimension_numbers = #tpu.dot_dimension_numbers<[1], [0], [0], [1], [0, 0, 1, 1], [], []>} : vector<16x170xbf16>, vector<170x256xbf16>, vector<16x256xf32> -> vector<16x256xf32>
    %20 = arith.addf %13, %19 : vector<16x256xf32>
    %c0_26 = arith.constant 0 : index
    %c0_27 = arith.constant 0 : index
    %c1_28 = arith.constant 1 : index
    %c0_29 = arith.constant 0 : index
    %21 = vector.load %arg1[%c0_26, %c0_27, %c1_28, %c0_29] : memref<1x2x17x170xf32, #tpu.memory_space<vmem>>, vector<1x1x16x170xf32>
    %22 = vector.shape_cast %21 : vector<1x1x16x170xf32> to vector<16x170xf32>
    %23 = arith.truncf %22 : vector<16x170xf32> to vector<16x170xbf16>
    %c2 = arith.constant 2 : index
    %c0_30 = arith.constant 0 : index
    %c0_31 = arith.constant 0 : index
    %24 = vector.load %arg2[%c2, %c0_30, %c0_31] : memref<4x170x256xbf16, #tpu.memory_space<vmem>>, vector<1x170x256xbf16>
    %25 = vector.shape_cast %24 : vector<1x170x256xbf16> to vector<170x256xbf16>
    %cst_32 = arith.constant dense<0.000000e+00> : vector<16x256xf32>
    %26 = tpu.matmul %23, %25, %cst_32 {dimension_numbers = #tpu.dot_dimension_numbers<[1], [0], [0], [1], [0, 0, 1, 1], [], []>} : vector<16x170xbf16>, vector<170x256xbf16>, vector<16x256xf32> -> vector<16x256xf32>
    %27 = arith.addf %20, %26 : vector<16x256xf32>
    %c0_33 = arith.constant 0 : index
    %c1_34 = arith.constant 1 : index
    %c1_35 = arith.constant 1 : index
    %c0_36 = arith.constant 0 : index
    %28 = vector.load %arg1[%c0_33, %c1_34, %c1_35, %c0_36] : memref<1x2x17x170xf32, #tpu.memory_space<vmem>>, vector<1x1x16x170xf32>
    %29 = vector.shape_cast %28 : vector<1x1x16x170xf32> to vector<16x170xf32>
    %30 = arith.truncf %29 : vector<16x170xf32> to vector<16x170xbf16>
    %c3 = arith.constant 3 : index
    %c0_37 = arith.constant 0 : index
    %c0_38 = arith.constant 0 : index
    %31 = vector.load %arg2[%c3, %c0_37, %c0_38] : memref<4x170x256xbf16, #tpu.memory_space<vmem>>, vector<1x170x256xbf16>
    %32 = vector.shape_cast %31 : vector<1x170x256xbf16> to vector<170x256xbf16>
    %cst_39 = arith.constant dense<0.000000e+00> : vector<16x256xf32>
    %33 = tpu.matmul %30, %32, %cst_39 {dimension_numbers = #tpu.dot_dimension_numbers<[1], [0], [0], [1], [0, 0, 1, 1], [], []>} : vector<16x170xbf16>, vector<170x256xbf16>, vector<16x256xf32> -> vector<16x256xf32>
    %34 = arith.addf %27, %33 : vector<16x256xf32>
    %c0_40 = arith.constant 0 : index
    %c0_41 = arith.constant 0 : index
    %35 = vector.load %arg3[%c0_40, %c0_41] : memref<1x256xf32, #tpu.memory_space<vmem>>, vector<1x256xf32>
    %36 = vector.broadcast %35 : vector<1x256xf32> to vector<16x256xf32>
    %37 = arith.addf %34, %36 : vector<16x256xf32>
    %cst_42 = arith.constant 0.000000e+00 : f32
    %38 = vector.broadcast %cst_42 : f32 to vector<16x256xf32>
    %39 = arith.cmpf oge, %37, %38 : vector<16x256xf32>
    %cst_43 = arith.constant 2.000000e-01 : f32
    %40 = vector.broadcast %cst_43 : f32 to vector<16x256xf32>
    %41 = arith.mulf %40, %37 : vector<16x256xf32>
    %42 = arith.select %39, %37, %41 : vector<16x256xi1>, vector<16x256xf32>
    %43 = vector.extract_strided_slice %42 {offsets = [0, 0], sizes = [1, 256], strides = [1, 1]} : vector<16x256xf32> to vector<1x256xf32>
    %c1_44 = arith.constant 1 : index
    %c0_45 = arith.constant 0 : index
    %c16 = arith.constant 16 : index
    %44 = vector.load %arg16[%c1_44, %c0_45, %c16] : memref<2x9x288xf32, #tpu.memory_space<vmem>>, vector<1x1x256xf32>
    %45 = vector.shape_cast %44 : vector<1x1x256xf32> to vector<1x256xf32>
    %46 = vector.shape_cast %43 : vector<1x256xf32> to vector<1x1x256xf32>
    tpu.vector_store %arg16[%c1_44, %c0_45, %c16], %46 {strides = array<i32>} : memref<2x9x288xf32, #tpu.memory_space<vmem>>, vector<1x1x256xf32>,
    %47 = vector.extract_strided_slice %42 {offsets = [1, 0], sizes = [1, 256], strides = [1, 1]} : vector<16x256xf32> to vector<1x256xf32>
    %c0_46 = arith.constant 0 : index
    %c1_47 = arith.constant 1 : index
    %c16_48 = arith.constant 16 : index
    %48 = vector.load %arg16[%c0_46, %c1_47, %c16_48] : memref<2x9x288xf32, #tpu.memory_space<vmem>>, vector<1x1x256xf32>
    %49 = vector.shape_cast %48 : vector<1x1x256xf32> to vector<1x256xf32>
    %50 = vector.shape_cast %47 : vector<1x256xf32> to vector<1x1x256xf32>
    tpu.vector_store %arg16[%c0_46, %c1_47, %c16_48], %50 {strides = array<i32>} : memref<2x9x288xf32, #tpu.memory_space<vmem>>, vector<1x1x256xf32>,
    %51 = vector.extract_strided_slice %42 {offsets = [2, 0], sizes = [1, 256], strides = [1, 1]} : vector<16x256xf32> to vector<1x256xf32>
    %c1_49 = arith.constant 1 : index
    %c1_50 = arith.constant 1 : index
    %c16_51 = arith.constant 16 : index
    %52 = vector.load %arg16[%c1_49, %c1_50, %c16_51] : memref<2x9x288xf32, #tpu.memory_space<vmem>>, vector<1x1x256xf32>
    %53 = vector.shape_cast %52 : vector<1x1x256xf32> to vector<1x256xf32>
    %54 = vector.shape_cast %51 : vector<1x256xf32> to vector<1x1x256xf32>
    tpu.vector_store %arg16[%c1_49, %c1_50, %c16_51], %54 {strides = array<i32>} : memref<2x9x288xf32, #tpu.memory_space<vmem>>, vector<1x1x256xf32>,
    %55 = vector.extract_strided_slice %42 {offsets = [3, 0], sizes = [1, 256], strides = [1, 1]} : vector<16x256xf32> to vector<1x256xf32>
    %c0_52 = arith.constant 0 : index
    %c2_53 = arith.constant 2 : index
    %c16_54 = arith.constant 16 : index
    %56 = vector.load %arg16[%c0_52, %c2_53, %c16_54] : memref<2x9x288xf32, #tpu.memory_space<vmem>>, vector<1x1x256xf32>
    %57 = vector.shape_cast %56 : vector<1x1x256xf32> to vector<1x256xf32>
    %58 = vector.shape_cast %55 : vector<1x256xf32> to vector<1x1x256xf32>
    tpu.vector_store %arg16[%c0_52, %c2_53, %c16_54], %58 {strides = array<i32>} : memref<2x9x288xf32, #tpu.memory_space<vmem>>, vector<1x1x256xf32>,
    %59 = vector.extract_strided_slice %42 {offsets = [4, 0], sizes = [1, 256], strides = [1, 1]} : vector<16x256xf32> to vector<1x256xf32>
    %c1_55 = arith.constant 1 : index
    %c2_56 = arith.constant 2 : index
    %c16_57 = arith.constant 16 : index
    %60 = vector.load %arg16[%c1_55, %c2_56, %c16_57] : memref<2x9x288xf32, #tpu.memory_space<vmem>>, vector<1x1x256xf32>
    %61 = vector.shape_cast %60 : vector<1x1x256xf32> to vector<1x256xf32>
    %62 = vector.shape_cast %59 : vector<1x256xf32> to vector<1x1x256xf32>
    tpu.vector_store %arg16[%c1_55, %c2_56, %c16_57], %62 {strides = array<i32>} : memref<2x9x288xf32, #tpu.memory_space<vmem>>, vector<1x1x256xf32>,
    %63 = vector.extract_strided_slice %42 {offsets = [5, 0], sizes = [1, 256], strides = [1, 1]} : vector<16x256xf32> to vector<1x256xf32>
    %c0_58 = arith.constant 0 : index
    %c3_59 = arith.constant 3 : index
    %c16_60 = arith.constant 16 : index
    %64 = vector.load %arg16[%c0_58, %c3_59, %c16_60] : memref<2x9x288xf32, #tpu.memory_space<vmem>>, vector<1x1x256xf32>
    %65 = vector.shape_cast %64 : vector<1x1x256xf32> to vector<1x256xf32>
    %66 = vector.shape_cast %63 : vector<1x256xf32> to vector<1x1x256xf32>
    tpu.vector_store %arg16[%c0_58, %c3_59, %c16_60], %66 {strides = array<i32>} : memref<2x9x288xf32, #tpu.memory_space<vmem>>, vector<1x1x256xf32>,
    %67 = vector.extract_strided_slice %42 {offsets = [6, 0], sizes = [1, 256], strides = [1, 1]} : vector<16x256xf32> to vector<1x256xf32>
    %c1_61 = arith.constant 1 : index
    %c3_62 = arith.constant 3 : index
    %c16_63 = arith.constant 16 : index
    %68 = vector.load %arg16[%c1_61, %c3_62, %c16_63] : memref<2x9x288xf32, #tpu.memory_space<vmem>>, vector<1x1x256xf32>
    %69 = vector.shape_cast %68 : vector<1x1x256xf32> to vector<1x256xf32>
    %70 = vector.shape_cast %67 : vector<1x256xf32> to vector<1x1x256xf32>
    tpu.vector_store %arg16[%c1_61, %c3_62, %c16_63], %70 {strides = array<i32>} : memref<2x9x288xf32, #tpu.memory_space<vmem>>, vector<1x1x256xf32>,
    %71 = vector.extract_strided_slice %42 {offsets = [7, 0], sizes = [1, 256], strides = [1, 1]} : vector<16x256xf32> to vector<1x256xf32>
    %c0_64 = arith.constant 0 : index
    %c4 = arith.constant 4 : index
    %c16_65 = arith.constant 16 : index
    %72 = vector.load %arg16[%c0_64, %c4, %c16_65] : memref<2x9x288xf32, #tpu.memory_space<vmem>>, vector<1x1x256xf32>
    %73 = vector.shape_cast %72 : vector<1x1x256xf32> to vector<1x256xf32>
    %74 = vector.shape_cast %71 : vector<1x256xf32> to vector<1x1x256xf32>
    tpu.vector_store %arg16[%c0_64, %c4, %c16_65], %74 {strides = array<i32>} : memref<2x9x288xf32, #tpu.memory_space<vmem>>, vector<1x1x256xf32>,
    %75 = vector.extract_strided_slice %42 {offsets = [8, 0], sizes = [1, 256], strides = [1, 1]} : vector<16x256xf32> to vector<1x256xf32>
    %c1_66 = arith.constant 1 : index
    %c4_67 = arith.constant 4 : index
    %c16_68 = arith.constant 16 : index
    %76 = vector.load %arg16[%c1_66, %c4_67, %c16_68] : memref<2x9x288xf32, #tpu.memory_space<vmem>>, vector<1x1x256xf32>
    %77 = vector.shape_cast %76 : vector<1x1x256xf32> to vector<1x256xf32>
    %78 = vector.shape_cast %75 : vector<1x256xf32> to vector<1x1x256xf32>
    tpu.vector_store %arg16[%c1_66, %c4_67, %c16_68], %78 {strides = array<i32>} : memref<2x9x288xf32, #tpu.memory_space<vmem>>, vector<1x1x256xf32>,
    %79 = vector.extract_strided_slice %42 {offsets = [9, 0], sizes = [1, 256], strides = [1, 1]} : vector<16x256xf32> to vector<1x256xf32>
    %c0_69 = arith.constant 0 : index
    %c5 = arith.constant 5 : index
    %c16_70 = arith.constant 16 : index
    %80 = vector.load %arg16[%c0_69, %c5, %c16_70] : memref<2x9x288xf32, #tpu.memory_space<vmem>>, vector<1x1x256xf32>
    %81 = vector.shape_cast %80 : vector<1x1x256xf32> to vector<1x256xf32>
    %82 = vector.shape_cast %79 : vector<1x256xf32> to vector<1x1x256xf32>
    tpu.vector_store %arg16[%c0_69, %c5, %c16_70], %82 {strides = array<i32>} : memref<2x9x288xf32, #tpu.memory_space<vmem>>, vector<1x1x256xf32>,
    %83 = vector.extract_strided_slice %42 {offsets = [10, 0], sizes = [1, 256], strides = [1, 1]} : vector<16x256xf32> to vector<1x256xf32>
    %c1_71 = arith.constant 1 : index
    %c5_72 = arith.constant 5 : index
    %c16_73 = arith.constant 16 : index
    %84 = vector.load %arg16[%c1_71, %c5_72, %c16_73] : memref<2x9x288xf32, #tpu.memory_space<vmem>>, vector<1x1x256xf32>
    %85 = vector.shape_cast %84 : vector<1x1x256xf32> to vector<1x256xf32>
    %86 = vector.shape_cast %83 : vector<1x256xf32> to vector<1x1x256xf32>
    tpu.vector_store %arg16[%c1_71, %c5_72, %c16_73], %86 {strides = array<i32>} : memref<2x9x288xf32, #tpu.memory_space<vmem>>, vector<1x1x256xf32>,
    %87 = vector.extract_strided_slice %42 {offsets = [11, 0], sizes = [1, 256], strides = [1, 1]} : vector<16x256xf32> to vector<1x256xf32>
    %c0_74 = arith.constant 0 : index
    %c6 = arith.constant 6 : index
    %c16_75 = arith.constant 16 : index
    %88 = vector.load %arg16[%c0_74, %c6, %c16_75] : memref<2x9x288xf32, #tpu.memory_space<vmem>>, vector<1x1x256xf32>
    %89 = vector.shape_cast %88 : vector<1x1x256xf32> to vector<1x256xf32>
    %90 = vector.shape_cast %87 : vector<1x256xf32> to vector<1x1x256xf32>
    tpu.vector_store %arg16[%c0_74, %c6, %c16_75], %90 {strides = array<i32>} : memref<2x9x288xf32, #tpu.memory_space<vmem>>, vector<1x1x256xf32>,
    %91 = vector.extract_strided_slice %42 {offsets = [12, 0], sizes = [1, 256], strides = [1, 1]} : vector<16x256xf32> to vector<1x256xf32>
    %c1_76 = arith.constant 1 : index
    %c6_77 = arith.constant 6 : index
    %c16_78 = arith.constant 16 : index
    %92 = vector.load %arg16[%c1_76, %c6_77, %c16_78] : memref<2x9x288xf32, #tpu.memory_space<vmem>>, vector<1x1x256xf32>
    %93 = vector.shape_cast %92 : vector<1x1x256xf32> to vector<1x256xf32>
    %94 = vector.shape_cast %91 : vector<1x256xf32> to vector<1x1x256xf32>
    tpu.vector_store %arg16[%c1_76, %c6_77, %c16_78], %94 {strides = array<i32>} : memref<2x9x288xf32, #tpu.memory_space<vmem>>, vector<1x1x256xf32>,
    %95 = vector.extract_strided_slice %42 {offsets = [13, 0], sizes = [1, 256], strides = [1, 1]} : vector<16x256xf32> to vector<1x256xf32>
    %c0_79 = arith.constant 0 : index
    %c7 = arith.constant 7 : index
    %c16_80 = arith.constant 16 : index
    %96 = vector.load %arg16[%c0_79, %c7, %c16_80] : memref<2x9x288xf32, #tpu.memory_space<vmem>>, vector<1x1x256xf32>
    %97 = vector.shape_cast %96 : vector<1x1x256xf32> to vector<1x256xf32>
    %98 = vector.shape_cast %95 : vector<1x256xf32> to vector<1x1x256xf32>
    tpu.vector_store %arg16[%c0_79, %c7, %c16_80], %98 {strides = array<i32>} : memref<2x9x288xf32, #tpu.memory_space<vmem>>, vector<1x1x256xf32>,
    %99 = vector.extract_strided_slice %42 {offsets = [14, 0], sizes = [1, 256], strides = [1, 1]} : vector<16x256xf32> to vector<1x256xf32>
    %c1_81 = arith.constant 1 : index
    %c7_82 = arith.constant 7 : index
    %c16_83 = arith.constant 16 : index
    %100 = vector.load %arg16[%c1_81, %c7_82, %c16_83] : memref<2x9x288xf32, #tpu.memory_space<vmem>>, vector<1x1x256xf32>
    %101 = vector.shape_cast %100 : vector<1x1x256xf32> to vector<1x256xf32>
    %102 = vector.shape_cast %99 : vector<1x256xf32> to vector<1x1x256xf32>
    tpu.vector_store %arg16[%c1_81, %c7_82, %c16_83], %102 {strides = array<i32>} : memref<2x9x288xf32, #tpu.memory_space<vmem>>, vector<1x1x256xf32>,
    %103 = vector.extract_strided_slice %42 {offsets = [15, 0], sizes = [1, 256], strides = [1, 1]} : vector<16x256xf32> to vector<1x256xf32>
    %c0_84 = arith.constant 0 : index
    %c8 = arith.constant 8 : index
    %c16_85 = arith.constant 16 : index
    %104 = vector.load %arg16[%c0_84, %c8, %c16_85] : memref<2x9x288xf32, #tpu.memory_space<vmem>>, vector<1x1x256xf32>
    %105 = vector.shape_cast %104 : vector<1x1x256xf32> to vector<1x256xf32>
    %106 = vector.shape_cast %103 : vector<1x256xf32> to vector<1x1x256xf32>
    tpu.vector_store %arg16[%c0_84, %c8, %c16_85], %106 {strides = array<i32>} : memref<2x9x288xf32, #tpu.memory_space<vmem>>, vector<1x1x256xf32>,
    %cst_86 = arith.constant 0.000000e+00 : f32
    %107 = vector.broadcast %cst_86 : f32 to vector<8x256xf32>
    %c0_87 = arith.constant 0 : index
    %c0_88 = arith.constant 0 : index
    %c0_89 = arith.constant 0 : index
    %108 = vector.load %arg16[%c0_87, %c0_88, %c0_89] : memref<2x9x288xf32, #tpu.memory_space<vmem>>, vector<1x8x288xf32>
    %109 = vector.shape_cast %108 : vector<1x8x288xf32> to vector<8x288xf32>
    %110 = arith.truncf %109 : vector<8x288xf32> to vector<8x288xbf16>
    %c0_90 = arith.constant 0 : index
    %c0_91 = arith.constant 0 : index
    %c0_92 = arith.constant 0 : index
    %111 = vector.load %arg4[%c0_90, %c0_91, %c0_92] : memref<4x288x256xbf16, #tpu.memory_space<vmem>>, vector<1x288x256xbf16>
    %112 = vector.shape_cast %111 : vector<1x288x256xbf16> to vector<288x256xbf16>
    %cst_93 = arith.constant dense<0.000000e+00> : vector<8x256xf32>
    %113 = tpu.matmul %110, %112, %cst_93 {dimension_numbers = #tpu.dot_dimension_numbers<[1], [0], [0], [1], [0, 0, 1, 1], [], []>} : vector<8x288xbf16>, vector<288x256xbf16>, vector<8x256xf32> -> vector<8x256xf32>
    %114 = arith.addf %107, %113 : vector<8x256xf32>
    %c1_94 = arith.constant 1 : index
    %c0_95 = arith.constant 0 : index
    %c0_96 = arith.constant 0 : index
    %115 = vector.load %arg16[%c1_94, %c0_95, %c0_96] : memref<2x9x288xf32, #tpu.memory_space<vmem>>, vector<1x8x288xf32>
    %116 = vector.shape_cast %115 : vector<1x8x288xf32> to vector<8x288xf32>
    %117 = arith.truncf %116 : vector<8x288xf32> to vector<8x288xbf16>
    %c1_97 = arith.constant 1 : index
    %c0_98 = arith.constant 0 : index
    %c0_99 = arith.constant 0 : index
    %118 = vector.load %arg4[%c1_97, %c0_98, %c0_99] : memref<4x288x256xbf16, #tpu.memory_space<vmem>>, vector<1x288x256xbf16>
    %119 = vector.shape_cast %118 : vector<1x288x256xbf16> to vector<288x256xbf16>
    %cst_100 = arith.constant dense<0.000000e+00> : vector<8x256xf32>
    %120 = tpu.matmul %117, %119, %cst_100 {dimension_numbers = #tpu.dot_dimension_numbers<[1], [0], [0], [1], [0, 0, 1, 1], [], []>} : vector<8x288xbf16>, vector<288x256xbf16>, vector<8x256xf32> -> vector<8x256xf32>
    %121 = arith.addf %114, %120 : vector<8x256xf32>
    %c0_101 = arith.constant 0 : index
    %c1_102 = arith.constant 1 : index
    %c0_103 = arith.constant 0 : index
    %122 = vector.load %arg16[%c0_101, %c1_102, %c0_103] : memref<2x9x288xf32, #tpu.memory_space<vmem>>, vector<1x8x288xf32>
    %123 = vector.shape_cast %122 : vector<1x8x288xf32> to vector<8x288xf32>
    %124 = arith.truncf %123 : vector<8x288xf32> to vector<8x288xbf16>
    %c2_104 = arith.constant 2 : index
    %c0_105 = arith.constant 0 : index
    %c0_106 = arith.constant 0 : index
    %125 = vector.load %arg4[%c2_104, %c0_105, %c0_106] : memref<4x288x256xbf16, #tpu.memory_space<vmem>>, vector<1x288x256xbf16>
    %126 = vector.shape_cast %125 : vector<1x288x256xbf16> to vector<288x256xbf16>
    %cst_107 = arith.constant dense<0.000000e+00> : vector<8x256xf32>
    %127 = tpu.matmul %124, %126, %cst_107 {dimension_numbers = #tpu.dot_dimension_numbers<[1], [0], [0], [1], [0, 0, 1, 1], [], []>} : vector<8x288xbf16>, vector<288x256xbf16>, vector<8x256xf32> -> vector<8x256xf32>
    %128 = arith.addf %121, %127 : vector<8x256xf32>
    %c1_108 = arith.constant 1 : index
    %c1_109 = arith.constant 1 : index
    %c0_110 = arith.constant 0 : index
    %129 = vector.load %arg16[%c1_108, %c1_109, %c0_110] : memref<2x9x288xf32, #tpu.memory_space<vmem>>, vector<1x8x288xf32>
    %130 = vector.shape_cast %129 : vector<1x8x288xf32> to vector<8x288xf32>
    %131 = arith.truncf %130 : vector<8x288xf32> to vector<8x288xbf16>
    %c3_111 = arith.constant 3 : index
    %c0_112 = arith.constant 0 : index
    %c0_113 = arith.constant 0 : index
    %132 = vector.load %arg4[%c3_111, %c0_112, %c0_113] : memref<4x288x256xbf16, #tpu.memory_space<vmem>>, vector<1x288x256xbf16>
    %133 = vector.shape_cast %132 : vector<1x288x256xbf16> to vector<288x256xbf16>
    %cst_114 = arith.constant dense<0.000000e+00> : vector<8x256xf32>
    %134 = tpu.matmul %131, %133, %cst_114 {dimension_numbers = #tpu.dot_dimension_numbers<[1], [0], [0], [1], [0, 0, 1, 1], [], []>} : vector<8x288xbf16>, vector<288x256xbf16>, vector<8x256xf32> -> vector<8x256xf32>
    %135 = arith.addf %128, %134 : vector<8x256xf32>
    %c0_115 = arith.constant 0 : index
    %c0_116 = arith.constant 0 : index
    %136 = vector.load %arg5[%c0_115, %c0_116] : memref<1x256xf32, #tpu.memory_space<vmem>>, vector<1x256xf32>
    %137 = vector.broadcast %136 : vector<1x256xf32> to vector<8x256xf32>
    %138 = arith.addf %135, %137 : vector<8x256xf32>
    %cst_117 = arith.constant dense<0.000000e+00> : vector<256xf32>
    %139 = vector.multi_reduction <add>, %138, %cst_117 [0] : vector<8x256xf32> to vector<256xf32>
    %140 = vector.shape_cast %139 : vector<256xf32> to vector<1x256xf32>
    %141 = arith.mulf %138, %138 : vector<8x256xf32>
    %cst_118 = arith.constant dense<0.000000e+00> : vector<256xf32>
    %142 = vector.multi_reduction <add>, %141, %cst_118 [0] : vector<8x256xf32> to vector<256xf32>
    %143 = vector.shape_cast %142 : vector<256xf32> to vector<1x256xf32>
    %c0_119 = arith.constant 0 : index
    %c0_120 = arith.constant 0 : index
    %144 = vector.load %arg6[%c0_119, %c0_120] : memref<256x256xf32, #tpu.memory_space<vmem>>, vector<256x256xf32>
    %cst_121 = arith.constant dense<0.000000e+00> : vector<1x256xf32>
    %145 = tpu.matmul %140, %144, %cst_121 {dimension_numbers = #tpu.dot_dimension_numbers<[1], [0], [0], [1], [0, 0, 1, 1], [], []>} : vector<1x256xf32>, vector<256x256xf32>, vector<1x256xf32> -> vector<1x256xf32>
    %c0_122 = arith.constant 0 : index
    %c0_123 = arith.constant 0 : index
    %146 = vector.load %arg6[%c0_122, %c0_123] : memref<256x256xf32, #tpu.memory_space<vmem>>, vector<256x256xf32>
    %cst_124 = arith.constant dense<0.000000e+00> : vector<1x256xf32>
    %147 = tpu.matmul %143, %146, %cst_124 {dimension_numbers = #tpu.dot_dimension_numbers<[1], [0], [0], [1], [0, 0, 1, 1], [], []>} : vector<1x256xf32>, vector<256x256xf32>, vector<1x256xf32> -> vector<1x256xf32>
    %148 = arith.mulf %145, %145 : vector<1x256xf32>
    %149 = arith.subf %147, %148 : vector<1x256xf32>
    %150 = vector.broadcast %145 : vector<1x256xf32> to vector<8x256xf32>
    %151 = arith.subf %138, %150 : vector<8x256xf32>
    %cst_125 = arith.constant 9.99999974E-6 : f32
    %152 = vector.broadcast %cst_125 : f32 to vector<1x256xf32>
    %153 = arith.addf %149, %152 : vector<1x256xf32>
    %154 = math.rsqrt %153 : vector<1x256xf32>
    %155 = vector.broadcast %154 : vector<1x256xf32> to vector<8x256xf32>
    %156 = arith.mulf %151, %155 : vector<8x256xf32>
    %cst_126 = arith.constant 0.000000e+00 : f32
    %157 = vector.broadcast %cst_126 : f32 to vector<8x256xf32>
    %158 = arith.cmpf oge, %156, %157 : vector<8x256xf32>
    %cst_127 = arith.constant 2.000000e-01 : f32
    %159 = vector.broadcast %cst_127 : f32 to vector<8x256xf32>
    %160 = arith.mulf %159, %156 : vector<8x256xf32>
    %161 = arith.select %158, %156, %160 : vector<8x256xi1>, vector<8x256xf32>
    %162 = vector.extract_strided_slice %161 {offsets = [0, 0], sizes = [1, 256], strides = [1, 1]} : vector<8x256xf32> to vector<1x256xf32>
    %c1_128 = arith.constant 1 : index
    %c0_129 = arith.constant 0 : index
    %c32 = arith.constant 32 : index
    %163 = vector.load %arg17[%c1_128, %c0_129, %c32] : memref<2x5x320xf32, #tpu.memory_space<vmem>>, vector<1x1x256xf32>
    %164 = vector.shape_cast %163 : vector<1x1x256xf32> to vector<1x256xf32>
    %165 = vector.shape_cast %162 : vector<1x256xf32> to vector<1x1x256xf32>
    tpu.vector_store %arg17[%c1_128, %c0_129, %c32], %165 {strides = array<i32>} : memref<2x5x320xf32, #tpu.memory_space<vmem>>, vector<1x1x256xf32>,
    %166 = vector.extract_strided_slice %161 {offsets = [1, 0], sizes = [1, 256], strides = [1, 1]} : vector<8x256xf32> to vector<1x256xf32>
    %c0_130 = arith.constant 0 : index
    %c1_131 = arith.constant 1 : index
    %c32_132 = arith.constant 32 : index
    %167 = vector.load %arg17[%c0_130, %c1_131, %c32_132] : memref<2x5x320xf32, #tpu.memory_space<vmem>>, vector<1x1x256xf32>
    %168 = vector.shape_cast %167 : vector<1x1x256xf32> to vector<1x256xf32>
    %169 = vector.shape_cast %166 : vector<1x256xf32> to vector<1x1x256xf32>
    tpu.vector_store %arg17[%c0_130, %c1_131, %c32_132], %169 {strides = array<i32>} : memref<2x5x320xf32, #tpu.memory_space<vmem>>, vector<1x1x256xf32>,
    %170 = vector.extract_strided_slice %161 {offsets = [2, 0], sizes = [1, 256], strides = [1, 1]} : vector<8x256xf32> to vector<1x256xf32>
    %c1_133 = arith.constant 1 : index
    %c1_134 = arith.constant 1 : index
    %c32_135 = arith.constant 32 : index
    %171 = vector.load %arg17[%c1_133, %c1_134, %c32_135] : memref<2x5x320xf32, #tpu.memory_space<vmem>>, vector<1x1x256xf32>
    %172 = vector.shape_cast %171 : vector<1x1x256xf32> to vector<1x256xf32>
    %173 = vector.shape_cast %170 : vector<1x256xf32> to vector<1x1x256xf32>
    tpu.vector_store %arg17[%c1_133, %c1_134, %c32_135], %173 {strides = array<i32>} : memref<2x5x320xf32, #tpu.memory_space<vmem>>, vector<1x1x256xf32>,
    %174 = vector.extract_strided_slice %161 {offsets = [3, 0], sizes = [1, 256], strides = [1, 1]} : vector<8x256xf32> to vector<1x256xf32>
    %c0_136 = arith.constant 0 : index
    %c2_137 = arith.constant 2 : index
    %c32_138 = arith.constant 32 : index
    %175 = vector.load %arg17[%c0_136, %c2_137, %c32_138] : memref<2x5x320xf32, #tpu.memory_space<vmem>>, vector<1x1x256xf32>
    %176 = vector.shape_cast %175 : vector<1x1x256xf32> to vector<1x256xf32>
    %177 = vector.shape_cast %174 : vector<1x256xf32> to vector<1x1x256xf32>
    tpu.vector_store %arg17[%c0_136, %c2_137, %c32_138], %177 {strides = array<i32>} : memref<2x5x320xf32, #tpu.memory_space<vmem>>, vector<1x1x256xf32>,
    %178 = vector.extract_strided_slice %161 {offsets = [4, 0], sizes = [1, 256], strides = [1, 1]} : vector<8x256xf32> to vector<1x256xf32>
    %c1_139 = arith.constant 1 : index
    %c2_140 = arith.constant 2 : index
    %c32_141 = arith.constant 32 : index
    %179 = vector.load %arg17[%c1_139, %c2_140, %c32_141] : memref<2x5x320xf32, #tpu.memory_space<vmem>>, vector<1x1x256xf32>
    %180 = vector.shape_cast %179 : vector<1x1x256xf32> to vector<1x256xf32>
    %181 = vector.shape_cast %178 : vector<1x256xf32> to vector<1x1x256xf32>
    tpu.vector_store %arg17[%c1_139, %c2_140, %c32_141], %181 {strides = array<i32>} : memref<2x5x320xf32, #tpu.memory_space<vmem>>, vector<1x1x256xf32>,
    %182 = vector.extract_strided_slice %161 {offsets = [5, 0], sizes = [1, 256], strides = [1, 1]} : vector<8x256xf32> to vector<1x256xf32>
    %c0_142 = arith.constant 0 : index
    %c3_143 = arith.constant 3 : index
    %c32_144 = arith.constant 32 : index
    %183 = vector.load %arg17[%c0_142, %c3_143, %c32_144] : memref<2x5x320xf32, #tpu.memory_space<vmem>>, vector<1x1x256xf32>
    %184 = vector.shape_cast %183 : vector<1x1x256xf32> to vector<1x256xf32>
    %185 = vector.shape_cast %182 : vector<1x256xf32> to vector<1x1x256xf32>
    tpu.vector_store %arg17[%c0_142, %c3_143, %c32_144], %185 {strides = array<i32>} : memref<2x5x320xf32, #tpu.memory_space<vmem>>, vector<1x1x256xf32>,
    %186 = vector.extract_strided_slice %161 {offsets = [6, 0], sizes = [1, 256], strides = [1, 1]} : vector<8x256xf32> to vector<1x256xf32>
    %c1_145 = arith.constant 1 : index
    %c3_146 = arith.constant 3 : index
    %c32_147 = arith.constant 32 : index
    %187 = vector.load %arg17[%c1_145, %c3_146, %c32_147] : memref<2x5x320xf32, #tpu.memory_space<vmem>>, vector<1x1x256xf32>
    %188 = vector.shape_cast %187 : vector<1x1x256xf32> to vector<1x256xf32>
    %189 = vector.shape_cast %186 : vector<1x256xf32> to vector<1x1x256xf32>
    tpu.vector_store %arg17[%c1_145, %c3_146, %c32_147], %189 {strides = array<i32>} : memref<2x5x320xf32, #tpu.memory_space<vmem>>, vector<1x1x256xf32>,
    %190 = vector.extract_strided_slice %161 {offsets = [7, 0], sizes = [1, 256], strides = [1, 1]} : vector<8x256xf32> to vector<1x256xf32>
    %c0_148 = arith.constant 0 : index
    %c4_149 = arith.constant 4 : index
    %c32_150 = arith.constant 32 : index
    %191 = vector.load %arg17[%c0_148, %c4_149, %c32_150] : memref<2x5x320xf32, #tpu.memory_space<vmem>>, vector<1x1x256xf32>
    %192 = vector.shape_cast %191 : vector<1x1x256xf32> to vector<1x256xf32>
    %193 = vector.shape_cast %190 : vector<1x256xf32> to vector<1x1x256xf32>
    tpu.vector_store %arg17[%c0_148, %c4_149, %c32_150], %193 {strides = array<i32>} : memref<2x5x320xf32, #tpu.memory_space<vmem>>, vector<1x1x256xf32>,
    %cst_151 = arith.constant 0.000000e+00 : f32
    %194 = vector.broadcast %cst_151 : f32 to vector<4x256xf32>
    %c0_152 = arith.constant 0 : index
    %c0_153 = arith.constant 0 : index
    %c0_154 = arith.constant 0 : index
    %195 = vector.load %arg17[%c0_152, %c0_153, %c0_154] : memref<2x5x320xf32, #tpu.memory_space<vmem>>, vector<1x4x320xf32>
    %196 = vector.shape_cast %195 : vector<1x4x320xf32> to vector<4x320xf32>
    %197 = arith.truncf %196 : vector<4x320xf32> to vector<4x320xbf16>
    %c0_155 = arith.constant 0 : index
    %c0_156 = arith.constant 0 : index
    %c0_157 = arith.constant 0 : index
    %198 = vector.load %arg7[%c0_155, %c0_156, %c0_157] : memref<4x320x256xbf16, #tpu.memory_space<vmem>>, vector<1x320x256xbf16>
    %199 = vector.shape_cast %198 : vector<1x320x256xbf16> to vector<320x256xbf16>
    %cst_158 = arith.constant dense<0.000000e+00> : vector<4x256xf32>
    %200 = tpu.matmul %197, %199, %cst_158 {dimension_numbers = #tpu.dot_dimension_numbers<[1], [0], [0], [1], [0, 0, 1, 1], [], []>} : vector<4x320xbf16>, vector<320x256xbf16>, vector<4x256xf32> -> vector<4x256xf32>
    %201 = arith.addf %194, %200 : vector<4x256xf32>
    %c1_159 = arith.constant 1 : index
    %c0_160 = arith.constant 0 : index
    %c0_161 = arith.constant 0 : index
    %202 = vector.load %arg17[%c1_159, %c0_160, %c0_161] : memref<2x5x320xf32, #tpu.memory_space<vmem>>, vector<1x4x320xf32>
    %203 = vector.shape_cast %202 : vector<1x4x320xf32> to vector<4x320xf32>
    %204 = arith.truncf %203 : vector<4x320xf32> to vector<4x320xbf16>
    %c1_162 = arith.constant 1 : index
    %c0_163 = arith.constant 0 : index
    %c0_164 = arith.constant 0 : index
    %205 = vector.load %arg7[%c1_162, %c0_163, %c0_164] : memref<4x320x256xbf16, #tpu.memory_space<vmem>>, vector<1x320x256xbf16>
    %206 = vector.shape_cast %205 : vector<1x320x256xbf16> to vector<320x256xbf16>
    %cst_165 = arith.constant dense<0.000000e+00> : vector<4x256xf32>
    %207 = tpu.matmul %204, %206, %cst_165 {dimension_numbers = #tpu.dot_dimension_numbers<[1], [0], [0], [1], [0, 0, 1, 1], [], []>} : vector<4x320xbf16>, vector<320x256xbf16>, vector<4x256xf32> -> vector<4x256xf32>
    %208 = arith.addf %201, %207 : vector<4x256xf32>
    %c0_166 = arith.constant 0 : index
    %c1_167 = arith.constant 1 : index
    %c0_168 = arith.constant 0 : index
    %209 = vector.load %arg17[%c0_166, %c1_167, %c0_168] : memref<2x5x320xf32, #tpu.memory_space<vmem>>, vector<1x4x320xf32>
    %210 = vector.shape_cast %209 : vector<1x4x320xf32> to vector<4x320xf32>
    %211 = arith.truncf %210 : vector<4x320xf32> to vector<4x320xbf16>
    %c2_169 = arith.constant 2 : index
    %c0_170 = arith.constant 0 : index
    %c0_171 = arith.constant 0 : index
    %212 = vector.load %arg7[%c2_169, %c0_170, %c0_171] : memref<4x320x256xbf16, #tpu.memory_space<vmem>>, vector<1x320x256xbf16>
    %213 = vector.shape_cast %212 : vector<1x320x256xbf16> to vector<320x256xbf16>
    %cst_172 = arith.constant dense<0.000000e+00> : vector<4x256xf32>
    %214 = tpu.matmul %211, %213, %cst_172 {dimension_numbers = #tpu.dot_dimension_numbers<[1], [0], [0], [1], [0, 0, 1, 1], [], []>} : vector<4x320xbf16>, vector<320x256xbf16>, vector<4x256xf32> -> vector<4x256xf32>
    %215 = arith.addf %208, %214 : vector<4x256xf32>
    %c1_173 = arith.constant 1 : index
    %c1_174 = arith.constant 1 : index
    %c0_175 = arith.constant 0 : index
    %216 = vector.load %arg17[%c1_173, %c1_174, %c0_175] : memref<2x5x320xf32, #tpu.memory_space<vmem>>, vector<1x4x320xf32>
    %217 = vector.shape_cast %216 : vector<1x4x320xf32> to vector<4x320xf32>
    %218 = arith.truncf %217 : vector<4x320xf32> to vector<4x320xbf16>
    %c3_176 = arith.constant 3 : index
    %c0_177 = arith.constant 0 : index
    %c0_178 = arith.constant 0 : index
    %219 = vector.load %arg7[%c3_176, %c0_177, %c0_178] : memref<4x320x256xbf16, #tpu.memory_space<vmem>>, vector<1x320x256xbf16>
    %220 = vector.shape_cast %219 : vector<1x320x256xbf16> to vector<320x256xbf16>
    %cst_179 = arith.constant dense<0.000000e+00> : vector<4x256xf32>
    %221 = tpu.matmul %218, %220, %cst_179 {dimension_numbers = #tpu.dot_dimension_numbers<[1], [0], [0], [1], [0, 0, 1, 1], [], []>} : vector<4x320xbf16>, vector<320x256xbf16>, vector<4x256xf32> -> vector<4x256xf32>
    %222 = arith.addf %215, %221 : vector<4x256xf32>
    %c0_180 = arith.constant 0 : index
    %c0_181 = arith.constant 0 : index
    %223 = vector.load %arg8[%c0_180, %c0_181] : memref<1x256xf32, #tpu.memory_space<vmem>>, vector<1x256xf32>
    %224 = vector.broadcast %223 : vector<1x256xf32> to vector<4x256xf32>
    %225 = arith.addf %222, %224 : vector<4x256xf32>
    %cst_182 = arith.constant dense<0.000000e+00> : vector<256xf32>
    %226 = vector.multi_reduction <add>, %225, %cst_182 [0] : vector<4x256xf32> to vector<256xf32>
    %227 = vector.shape_cast %226 : vector<256xf32> to vector<1x256xf32>
    %228 = arith.mulf %225, %225 : vector<4x256xf32>
    %cst_183 = arith.constant dense<0.000000e+00> : vector<256xf32>
    %229 = vector.multi_reduction <add>, %228, %cst_183 [0] : vector<4x256xf32> to vector<256xf32>
    %230 = vector.shape_cast %229 : vector<256xf32> to vector<1x256xf32>
    %c0_184 = arith.constant 0 : index
    %c0_185 = arith.constant 0 : index
    %231 = vector.load %arg9[%c0_184, %c0_185] : memref<256x256xf32, #tpu.memory_space<vmem>>, vector<256x256xf32>
    %cst_186 = arith.constant dense<0.000000e+00> : vector<1x256xf32>
    %232 = tpu.matmul %227, %231, %cst_186 {dimension_numbers = #tpu.dot_dimension_numbers<[1], [0], [0], [1], [0, 0, 1, 1], [], []>} : vector<1x256xf32>, vector<256x256xf32>, vector<1x256xf32> -> vector<1x256xf32>
    %c0_187 = arith.constant 0 : index
    %c0_188 = arith.constant 0 : index
    %233 = vector.load %arg9[%c0_187, %c0_188] : memref<256x256xf32, #tpu.memory_space<vmem>>, vector<256x256xf32>
    %cst_189 = arith.constant dense<0.000000e+00> : vector<1x256xf32>
    %234 = tpu.matmul %230, %233, %cst_189 {dimension_numbers = #tpu.dot_dimension_numbers<[1], [0], [0], [1], [0, 0, 1, 1], [], []>} : vector<1x256xf32>, vector<256x256xf32>, vector<1x256xf32> -> vector<1x256xf32>
    %235 = arith.mulf %232, %232 : vector<1x256xf32>
    %236 = arith.subf %234, %235 : vector<1x256xf32>
    %237 = vector.broadcast %232 : vector<1x256xf32> to vector<4x256xf32>
    %238 = arith.subf %225, %237 : vector<4x256xf32>
    %cst_190 = arith.constant 9.99999974E-6 : f32
    %239 = vector.broadcast %cst_190 : f32 to vector<1x256xf32>
    %240 = arith.addf %236, %239 : vector<1x256xf32>
    %241 = math.rsqrt %240 : vector<1x256xf32>
    %242 = vector.broadcast %241 : vector<1x256xf32> to vector<4x256xf32>
    %243 = arith.mulf %238, %242 : vector<4x256xf32>
    %cst_191 = arith.constant 0.000000e+00 : f32
    %244 = vector.broadcast %cst_191 : f32 to vector<4x256xf32>
    %245 = arith.cmpf oge, %243, %244 : vector<4x256xf32>
    %cst_192 = arith.constant 2.000000e-01 : f32
    %246 = vector.broadcast %cst_192 : f32 to vector<4x256xf32>
    %247 = arith.mulf %246, %243 : vector<4x256xf32>
    %248 = arith.select %245, %243, %247 : vector<4x256xi1>, vector<4x256xf32>
    %249 = vector.extract_strided_slice %248 {offsets = [0, 0], sizes = [1, 256], strides = [1, 1]} : vector<4x256xf32> to vector<1x256xf32>
    %c1_193 = arith.constant 1 : index
    %c0_194 = arith.constant 0 : index
    %c64 = arith.constant 64 : index
    %250 = vector.load %arg18[%c1_193, %c0_194, %c64] : memref<2x3x384xf32, #tpu.memory_space<vmem>>, vector<1x1x256xf32>
    %251 = vector.shape_cast %250 : vector<1x1x256xf32> to vector<1x256xf32>
    %252 = vector.shape_cast %249 : vector<1x256xf32> to vector<1x1x256xf32>
    tpu.vector_store %arg18[%c1_193, %c0_194, %c64], %252 {strides = array<i32>} : memref<2x3x384xf32, #tpu.memory_space<vmem>>, vector<1x1x256xf32>,
    %253 = vector.extract_strided_slice %248 {offsets = [1, 0], sizes = [1, 256], strides = [1, 1]} : vector<4x256xf32> to vector<1x256xf32>
    %c0_195 = arith.constant 0 : index
    %c1_196 = arith.constant 1 : index
    %c64_197 = arith.constant 64 : index
    %254 = vector.load %arg18[%c0_195, %c1_196, %c64_197] : memref<2x3x384xf32, #tpu.memory_space<vmem>>, vector<1x1x256xf32>
    %255 = vector.shape_cast %254 : vector<1x1x256xf32> to vector<1x256xf32>
    %256 = vector.shape_cast %253 : vector<1x256xf32> to vector<1x1x256xf32>
    tpu.vector_store %arg18[%c0_195, %c1_196, %c64_197], %256 {strides = array<i32>} : memref<2x3x384xf32, #tpu.memory_space<vmem>>, vector<1x1x256xf32>,
    %257 = vector.extract_strided_slice %248 {offsets = [2, 0], sizes = [1, 256], strides = [1, 1]} : vector<4x256xf32> to vector<1x256xf32>
    %c1_198 = arith.constant 1 : index
    %c1_199 = arith.constant 1 : index
    %c64_200 = arith.constant 64 : index
    %258 = vector.load %arg18[%c1_198, %c1_199, %c64_200] : memref<2x3x384xf32, #tpu.memory_space<vmem>>, vector<1x1x256xf32>
    %259 = vector.shape_cast %258 : vector<1x1x256xf32> to vector<1x256xf32>
    %260 = vector.shape_cast %257 : vector<1x256xf32> to vector<1x1x256xf32>
    tpu.vector_store %arg18[%c1_198, %c1_199, %c64_200], %260 {strides = array<i32>} : memref<2x3x384xf32, #tpu.memory_space<vmem>>, vector<1x1x256xf32>,
    %261 = vector.extract_strided_slice %248 {offsets = [3, 0], sizes = [1, 256], strides = [1, 1]} : vector<4x256xf32> to vector<1x256xf32>
    %c0_201 = arith.constant 0 : index
    %c2_202 = arith.constant 2 : index
    %c64_203 = arith.constant 64 : index
    %262 = vector.load %arg18[%c0_201, %c2_202, %c64_203] : memref<2x3x384xf32, #tpu.memory_space<vmem>>, vector<1x1x256xf32>
    %263 = vector.shape_cast %262 : vector<1x1x256xf32> to vector<1x256xf32>
    %264 = vector.shape_cast %261 : vector<1x256xf32> to vector<1x1x256xf32>
    tpu.vector_store %arg18[%c0_201, %c2_202, %c64_203], %264 {strides = array<i32>} : memref<2x3x384xf32, #tpu.memory_space<vmem>>, vector<1x1x256xf32>,
    %cst_204 = arith.constant 0.000000e+00 : f32
    %265 = vector.broadcast %cst_204 : f32 to vector<2x256xf32>
    %c0_205 = arith.constant 0 : index
    %c0_206 = arith.constant 0 : index
    %c0_207 = arith.constant 0 : index
    %266 = vector.load %arg18[%c0_205, %c0_206, %c0_207] : memref<2x3x384xf32, #tpu.memory_space<vmem>>, vector<1x2x384xf32>
    %267 = vector.shape_cast %266 : vector<1x2x384xf32> to vector<2x384xf32>
    %268 = arith.truncf %267 : vector<2x384xf32> to vector<2x384xbf16>
    %c0_208 = arith.constant 0 : index
    %c0_209 = arith.constant 0 : index
    %c0_210 = arith.constant 0 : index
    %269 = vector.load %arg10[%c0_208, %c0_209, %c0_210] : memref<4x384x256xbf16, #tpu.memory_space<vmem>>, vector<1x384x256xbf16>
    %270 = vector.shape_cast %269 : vector<1x384x256xbf16> to vector<384x256xbf16>
    %cst_211 = arith.constant dense<0.000000e+00> : vector<2x256xf32>
    %271 = tpu.matmul %268, %270, %cst_211 {dimension_numbers = #tpu.dot_dimension_numbers<[1], [0], [0], [1], [0, 0, 1, 1], [], []>} : vector<2x384xbf16>, vector<384x256xbf16>, vector<2x256xf32> -> vector<2x256xf32>
    %272 = arith.addf %265, %271 : vector<2x256xf32>
    %c1_212 = arith.constant 1 : index
    %c0_213 = arith.constant 0 : index
    %c0_214 = arith.constant 0 : index
    %273 = vector.load %arg18[%c1_212, %c0_213, %c0_214] : memref<2x3x384xf32, #tpu.memory_space<vmem>>, vector<1x2x384xf32>
    %274 = vector.shape_cast %273 : vector<1x2x384xf32> to vector<2x384xf32>
    %275 = arith.truncf %274 : vector<2x384xf32> to vector<2x384xbf16>
    %c1_215 = arith.constant 1 : index
    %c0_216 = arith.constant 0 : index
    %c0_217 = arith.constant 0 : index
    %276 = vector.load %arg10[%c1_215, %c0_216, %c0_217] : memref<4x384x256xbf16, #tpu.memory_space<vmem>>, vector<1x384x256xbf16>
    %277 = vector.shape_cast %276 : vector<1x384x256xbf16> to vector<384x256xbf16>
    %cst_218 = arith.constant dense<0.000000e+00> : vector<2x256xf32>
    %278 = tpu.matmul %275, %277, %cst_218 {dimension_numbers = #tpu.dot_dimension_numbers<[1], [0], [0], [1], [0, 0, 1, 1], [], []>} : vector<2x384xbf16>, vector<384x256xbf16>, vector<2x256xf32> -> vector<2x256xf32>
    %279 = arith.addf %272, %278 : vector<2x256xf32>
    %c0_219 = arith.constant 0 : index
    %c1_220 = arith.constant 1 : index
    %c0_221 = arith.constant 0 : index
    %280 = vector.load %arg18[%c0_219, %c1_220, %c0_221] : memref<2x3x384xf32, #tpu.memory_space<vmem>>, vector<1x2x384xf32>
    %281 = vector.shape_cast %280 : vector<1x2x384xf32> to vector<2x384xf32>
    %282 = arith.truncf %281 : vector<2x384xf32> to vector<2x384xbf16>
    %c2_222 = arith.constant 2 : index
    %c0_223 = arith.constant 0 : index
    %c0_224 = arith.constant 0 : index
    %283 = vector.load %arg10[%c2_222, %c0_223, %c0_224] : memref<4x384x256xbf16, #tpu.memory_space<vmem>>, vector<1x384x256xbf16>
    %284 = vector.shape_cast %283 : vector<1x384x256xbf16> to vector<384x256xbf16>
    %cst_225 = arith.constant dense<0.000000e+00> : vector<2x256xf32>
    %285 = tpu.matmul %282, %284, %cst_225 {dimension_numbers = #tpu.dot_dimension_numbers<[1], [0], [0], [1], [0, 0, 1, 1], [], []>} : vector<2x384xbf16>, vector<384x256xbf16>, vector<2x256xf32> -> vector<2x256xf32>
    %286 = arith.addf %279, %285 : vector<2x256xf32>
    %c1_226 = arith.constant 1 : index
    %c1_227 = arith.constant 1 : index
    %c0_228 = arith.constant 0 : index
    %287 = vector.load %arg18[%c1_226, %c1_227, %c0_228] : memref<2x3x384xf32, #tpu.memory_space<vmem>>, vector<1x2x384xf32>
    %288 = vector.shape_cast %287 : vector<1x2x384xf32> to vector<2x384xf32>
    %289 = arith.truncf %288 : vector<2x384xf32> to vector<2x384xbf16>
    %c3_229 = arith.constant 3 : index
    %c0_230 = arith.constant 0 : index
    %c0_231 = arith.constant 0 : index
    %290 = vector.load %arg10[%c3_229, %c0_230, %c0_231] : memref<4x384x256xbf16, #tpu.memory_space<vmem>>, vector<1x384x256xbf16>
    %291 = vector.shape_cast %290 : vector<1x384x256xbf16> to vector<384x256xbf16>
    %cst_232 = arith.constant dense<0.000000e+00> : vector<2x256xf32>
    %292 = tpu.matmul %289, %291, %cst_232 {dimension_numbers = #tpu.dot_dimension_numbers<[1], [0], [0], [1], [0, 0, 1, 1], [], []>} : vector<2x384xbf16>, vector<384x256xbf16>, vector<2x256xf32> -> vector<2x256xf32>
    %293 = arith.addf %286, %292 : vector<2x256xf32>
    %c0_233 = arith.constant 0 : index
    %c0_234 = arith.constant 0 : index
    %294 = vector.load %arg11[%c0_233, %c0_234] : memref<1x256xf32, #tpu.memory_space<vmem>>, vector<1x256xf32>
    %295 = vector.broadcast %294 : vector<1x256xf32> to vector<2x256xf32>
    %296 = arith.addf %293, %295 : vector<2x256xf32>
    %cst_235 = arith.constant dense<0.000000e+00> : vector<256xf32>
    %297 = vector.multi_reduction <add>, %296, %cst_235 [0] : vector<2x256xf32> to vector<256xf32>
    %298 = vector.shape_cast %297 : vector<256xf32> to vector<1x256xf32>
    %299 = arith.mulf %296, %296 : vector<2x256xf32>
    %cst_236 = arith.constant dense<0.000000e+00> : vector<256xf32>
    %300 = vector.multi_reduction <add>, %299, %cst_236 [0] : vector<2x256xf32> to vector<256xf32>
    %301 = vector.shape_cast %300 : vector<256xf32> to vector<1x256xf32>
    %c0_237 = arith.constant 0 : index
    %c0_238 = arith.constant 0 : index
    %302 = vector.load %arg12[%c0_237, %c0_238] : memref<256x256xf32, #tpu.memory_space<vmem>>, vector<256x256xf32>
    %cst_239 = arith.constant dense<0.000000e+00> : vector<1x256xf32>
    %303 = tpu.matmul %298, %302, %cst_239 {dimension_numbers = #tpu.dot_dimension_numbers<[1], [0], [0], [1], [0, 0, 1, 1], [], []>} : vector<1x256xf32>, vector<256x256xf32>, vector<1x256xf32> -> vector<1x256xf32>
    %c0_240 = arith.constant 0 : index
    %c0_241 = arith.constant 0 : index
    %304 = vector.load %arg12[%c0_240, %c0_241] : memref<256x256xf32, #tpu.memory_space<vmem>>, vector<256x256xf32>
    %cst_242 = arith.constant dense<0.000000e+00> : vector<1x256xf32>
    %305 = tpu.matmul %301, %304, %cst_242 {dimension_numbers = #tpu.dot_dimension_numbers<[1], [0], [0], [1], [0, 0, 1, 1], [], []>} : vector<1x256xf32>, vector<256x256xf32>, vector<1x256xf32> -> vector<1x256xf32>
    %306 = arith.mulf %303, %303 : vector<1x256xf32>
    %307 = arith.subf %305, %306 : vector<1x256xf32>
    %308 = vector.broadcast %303 : vector<1x256xf32> to vector<2x256xf32>
    %309 = arith.subf %296, %308 : vector<2x256xf32>
    %cst_243 = arith.constant 9.99999974E-6 : f32
    %310 = vector.broadcast %cst_243 : f32 to vector<1x256xf32>
    %311 = arith.addf %307, %310 : vector<1x256xf32>
    %312 = math.rsqrt %311 : vector<1x256xf32>
    %313 = vector.broadcast %312 : vector<1x256xf32> to vector<2x256xf32>
    %314 = arith.mulf %309, %313 : vector<2x256xf32>
    %cst_244 = arith.constant 0.000000e+00 : f32
    %315 = vector.broadcast %cst_244 : f32 to vector<2x256xf32>
    %316 = arith.cmpf oge, %314, %315 : vector<2x256xf32>
    %cst_245 = arith.constant 2.000000e-01 : f32
    %317 = vector.broadcast %cst_245 : f32 to vector<2x256xf32>
    %318 = arith.mulf %317, %314 : vector<2x256xf32>
    %319 = arith.select %316, %314, %318 : vector<2x256xi1>, vector<2x256xf32>
    %cst_246 = arith.constant dense<0.000000e+00> : vector<256xf32>
    %320 = vector.multi_reduction <add>, %319, %cst_246 [0] : vector<2x256xf32> to vector<256xf32>
    %321 = vector.shape_cast %320 : vector<256xf32> to vector<1x256xf32>
    %322 = vector.extract_strided_slice %321 {offsets = [0, 0], sizes = [1, 128], strides = [1, 1]} : vector<1x256xf32> to vector<1x128xf32>
    %323 = vector.extract_strided_slice %321 {offsets = [0, 128], sizes = [1, 128], strides = [1, 1]} : vector<1x256xf32> to vector<1x128xf32>
    %324 = arith.addf %322, %323 : vector<1x128xf32>
    %cst_247 = arith.constant 2.500000e-01 : f32
    %325 = vector.broadcast %cst_247 : f32 to vector<1x128xf32>
    %326 = arith.mulf %324, %325 : vector<1x128xf32>
    %c0_248 = arith.constant 0 : index
    %c0_249 = arith.constant 0 : index
    %327 = vector.load %arg13[%c0_248, %c0_249] : memref<1x128xf32, #tpu.memory_space<vmem>>, vector<1x128xf32>
    %328 = arith.mulf %326, %327 : vector<1x128xf32>
    %cst_250 = arith.constant dense<0.000000e+00> : vector<1xf32>
    %329 = vector.multi_reduction <add>, %328, %cst_250 [1] : vector<1x128xf32> to vector<1xf32>
    %330 = vector.shape_cast %329 : vector<1xf32> to vector<1x1xf32>
    %c0_251 = arith.constant 0 : index
    %c0_252 = arith.constant 0 : index
    %331 = vector.load %arg14[%c0_251, %c0_252] : memref<1x1xf32, #tpu.memory_space<vmem>>, vector<1x1xf32>
    %332 = arith.addf %330, %331 : vector<1x1xf32>
    %c0_253 = arith.constant 0 : index
    %c0_254 = arith.constant 0 : index
    %c0_255 = arith.constant 0 : index
    %333 = vector.load %arg15[%c0_253, %c0_254, %c0_255] : memref<1x1x1xf32, #tpu.memory_space<vmem>>, vector<1x1x1xf32>
    %334 = vector.shape_cast %333 : vector<1x1x1xf32> to vector<1x1xf32>
    %335 = vector.shape_cast %332 : vector<1x1xf32> to vector<1x1x1xf32>
    tpu.vector_store %arg15[%c0_253, %c0_254, %c0_255], %335 {strides = array<i32>} : memref<1x1x1xf32, #tpu.memory_space<vmem>>, vector<1x1x1xf32>,
    return
  }
  func.func @transform_0(%arg0: i32) -> (i32, i32, i32, i32) {
    %c0_i32 = arith.constant 0 : i32
    %c0_i32_0 = arith.constant 0 : i32
    %c0_i32_1 = arith.constant 0 : i32
    %c0_i32_2 = arith.constant 0 : i32
    return %arg0, %c0_i32, %c0_i32_0, %c0_i32_1 : i32, i32, i32, i32
  }
  func.func @transform_1(%arg0: i32) -> (i32, i32, i32) {
    %c0_i32 = arith.constant 0 : i32
    %c0_i32_0 = arith.constant 0 : i32
    %c0_i32_1 = arith.constant 0 : i32
    %c0_i32_2 = arith.constant 0 : i32
    return %c0_i32, %c0_i32_0, %c0_i32_1 : i32, i32, i32
  }
  func.func @transform_2(%arg0: i32) -> (i32, i32) {
    %c0_i32 = arith.constant 0 : i32
    %c0_i32_0 = arith.constant 0 : i32
    %c0_i32_1 = arith.constant 0 : i32
    return %c0_i32, %c0_i32_0 : i32, i32
  }
  func.func @transform_3(%arg0: i32) -> (i32, i32, i32) {
    %c0_i32 = arith.constant 0 : i32
    %c0_i32_0 = arith.constant 0 : i32
    %c0_i32_1 = arith.constant 0 : i32
    %c0_i32_2 = arith.constant 0 : i32
    return %c0_i32, %c0_i32_0, %c0_i32_1 : i32, i32, i32
  }
  func.func @transform_4(%arg0: i32) -> (i32, i32) {
    %c0_i32 = arith.constant 0 : i32
    %c0_i32_0 = arith.constant 0 : i32
    %c0_i32_1 = arith.constant 0 : i32
    return %c0_i32, %c0_i32_0 : i32, i32
  }
  func.func @transform_5(%arg0: i32) -> (i32, i32) {
    %c0_i32 = arith.constant 0 : i32
    %c0_i32_0 = arith.constant 0 : i32
    %c0_i32_1 = arith.constant 0 : i32
    return %c0_i32, %c0_i32_0 : i32, i32
  }
  func.func @transform_6(%arg0: i32) -> (i32, i32, i32) {
    %c0_i32 = arith.constant 0 : i32
    %c0_i32_0 = arith.constant 0 : i32
    %c0_i32_1 = arith.constant 0 : i32
    %c0_i32_2 = arith.constant 0 : i32
    return %c0_i32, %c0_i32_0, %c0_i32_1 : i32, i32, i32
  }
  func.func @transform_7(%arg0: i32) -> (i32, i32) {
    %c0_i32 = arith.constant 0 : i32
    %c0_i32_0 = arith.constant 0 : i32
    %c0_i32_1 = arith.constant 0 : i32
    return %c0_i32, %c0_i32_0 : i32, i32
  }
  func.func @transform_8(%arg0: i32) -> (i32, i32) {
    %c0_i32 = arith.constant 0 : i32
    %c0_i32_0 = arith.constant 0 : i32
    %c0_i32_1 = arith.constant 0 : i32
    return %c0_i32, %c0_i32_0 : i32, i32
  }
  func.func @transform_9(%arg0: i32) -> (i32, i32, i32) {
    %c0_i32 = arith.constant 0 : i32
    %c0_i32_0 = arith.constant 0 : i32
    %c0_i32_1 = arith.constant 0 : i32
    %c0_i32_2 = arith.constant 0 : i32
    return %c0_i32, %c0_i32_0, %c0_i32_1 : i32, i32, i32
  }
  func.func @transform_10(%arg0: i32) -> (i32, i32) {
    %c0_i32 = arith.constant 0 : i32
    %c0_i32_0 = arith.constant 0 : i32
    %c0_i32_1 = arith.constant 0 : i32
    return %c0_i32, %c0_i32_0 : i32, i32
  }
  func.func @transform_11(%arg0: i32) -> (i32, i32) {
    %c0_i32 = arith.constant 0 : i32
    %c0_i32_0 = arith.constant 0 : i32
    %c0_i32_1 = arith.constant 0 : i32
    return %c0_i32, %c0_i32_0 : i32, i32
  }
  func.func @transform_12(%arg0: i32) -> (i32, i32) {
    %c0_i32 = arith.constant 0 : i32
    %c0_i32_0 = arith.constant 0 : i32
    %c0_i32_1 = arith.constant 0 : i32
    return %c0_i32, %c0_i32_0 : i32, i32
  }
  func.func @transform_13(%arg0: i32) -> (i32, i32) {
    %c0_i32 = arith.constant 0 : i32
    %c0_i32_0 = arith.constant 0 : i32
    %c0_i32_1 = arith.constant 0 : i32
    return %c0_i32, %c0_i32_0 : i32, i32
  }
  func.func @transform_14(%arg0: i32) -> (i32, i32, i32) {
    %c0_i32 = arith.constant 0 : i32
    %c0_i32_0 = arith.constant 0 : i32
    %c0_i32_1 = arith.constant 0 : i32
    return %arg0, %c0_i32, %c0_i32_0 : i32, i32, i32
  }
}

</mosaic_0001>

<llo_original>
// kernel: tpu_custom_call.1
$region0: #{tpu_custom_call.1}
  #allocation0 [shape = 'u32[]', space=smem, size = 0x4, offset = 0x4, fixed_abs, tag = 'smem constant byte address 0x4 - core index']
  #allocation1 [shape = 'u32[144,128]{1,0:T(1,128)}', space=vmem, size = 0x12000, scoped, tag = 'internal scratch']
  #allocation2 [shape = 'f32[2,9,288]{2,1,0:T(8,128)}', space=vmem, size = 0xc000, scoped, tag = 'scratch operand']
  #allocation3 [shape = 'f32[2,5,320]{2,1,0:T(8,128)}', space=vmem, size = 0x6000, scoped, tag = 'scratch operand']
  #allocation4 [shape = 'f32[2,3,384]{2,1,0:T(4,128)}', space=vmem, size = 0x3000, scoped, tag = 'scratch operand']
  #allocation5 [shape = 'f32[1,1]{1,0:T(1,128)S(1)}', space=vmem, size = 0x200, scoped, tag = 'scoped memory for tpu_custom_call.1']
  %s0 = inlined_call_operand.vmem [shape: f32[2,2,17,170], index: 0, kind: input, shape index: {}]
  %s1 = inlined_call_operand.vmem [shape: bf16[4,170,256], index: 1, kind: input, shape index: {}]
  %s2 = inlined_call_operand.vmem [shape: f32[1,256], index: 2, kind: input, shape index: {}]
  %s3 = inlined_call_operand.hbm [shape: bf16[4,288,256], index: 3, kind: input, shape index: {}]
  %s4 = inlined_call_operand.vmem [shape: f32[1,256], index: 4, kind: input, shape index: {}]
  %s5 = inlined_call_operand.hbm [shape: f32[256,256], index: 5, kind: input, shape index: {}]
  %s6 = inlined_call_operand.hbm [shape: bf16[4,320,256], index: 6, kind: input, shape index: {}]
  %s7 = inlined_call_operand.vmem [shape: f32[1,256], index: 7, kind: input, shape index: {}]
  %s8 = inlined_call_operand.hbm [shape: f32[256,256], index: 8, kind: input, shape index: {}]
  %s9 = inlined_call_operand.vmem [shape: bf16[4,384,256], index: 9, kind: input, shape index: {}]
  %s10 = inlined_call_operand.vmem [shape: f32[1,256], index: 10, kind: input, shape index: {}]
  %s11 = inlined_call_operand.hbm [shape: f32[256,256], index: 11, kind: input, shape index: {}]
  %s12 = inlined_call_operand.vmem [shape: f32[1,128], index: 12, kind: input, shape index: {}]
  %s13 = inlined_call_operand.<no memory space> [shape: f32[1,1], index: 13, kind: input, shape index: {}]
  %s14 = inlined_call_operand.vmem [shape: f32[2,1,1], index: 14, kind: output, shape index: {}]
  %s15 = sld [smem:[#allocation0]]
  $region109: #{tpu_custom_call.1} parent=0
    _
  %s17 = ssub.s32 1, %s15
  %s18 = scalar_select 0, %s17, %s15
  %v19 = vstv %s13
  %20 = vst [vmem:[#allocation5] sm:$0x1] %v19
  $region1: #{tpu_custom_call.1} parent=0
    #allocation6 [shape = 'u8[589824]{0}', space=vmem, size = 0x90000, scoped, tag = 'input window, operand 3, single buffered']
    #allocation7 [shape = 's32[2]{0}', space=sflag, size = 0x8, scoped, tag = 'scoped memory for tpu_custom_call.1']
    #allocation8 [shape = 'u8[262144]{0}', space=vmem, size = 0x40000, scoped, tag = 'input window, operand 5, single buffered']
    #allocation9 [shape = 's32[1]{0}', space=sflag, size = 0x4, scoped, tag = 'scoped memory for tpu_custom_call.1']
    #allocation10 [shape = 'u8[655360]{0}', space=vmem, size = 0xa0000, scoped, tag = 'input window, operand 6, single buffered']
    #allocation11 [shape = 'u8[262144]{0}', space=vmem, size = 0x40000, scoped, tag = 'input window, operand 8, single buffered']
    #allocation12 [shape = 's32[1]{0}', space=sflag, size = 0x4, scoped, tag = 'scoped memory for tpu_custom_call.1']
    #allocation13 [shape = 'u8[262144]{0}', space=vmem, size = 0x40000, scoped, tag = 'input window, operand 11, single buffered']
    %21 = vsyncpa [#allocation7], 0
    %22 = vsyncpa [#allocation9], 0
    %23 = vsyncpa [#allocation12], 0
    loop: start=0, step=1, limit=4
    $region2: #{tpu_custom_call.1} parent=1 // loop_pre_header
      _
    $region3: #{tpu_custom_call.1} parent=1 // loop_header
      %s25 = sphi 0, %s29
      %p26 = scmp.ge.s32.totalorder %s25, 4
      %s35 = sphi 0, %s37
      %s38 = sphi 0, %s35
      %s39 = sphi 0, %s38
      %s55 = sphi 0, %s39
      %s59 = sphi 0, %s59
      %s61 = sphi 0, %s59
      %s62 = sphi 0, %s61
      %s76 = sphi 0, %s62
      %s80 = sphi 0, %s80
      %s82 = sphi 0, %s80
      %s83 = sphi 0, %s82
      %s97 = sphi 0, %s83
      %s101 = sphi 0, %s101
      %s103 = sphi 0, %s101
      %s104 = sphi 0, %s103
      %s118 = sphi 0, %s104
      %s122 = sphi 0, %s122
      %s124 = sphi 0, %s122
      %s125 = sphi 0, %s124
      %s139 = sphi 0, %s125
      %s143 = sphi 0, %s143
      %s145 = sphi 0, %s143
      %s146 = sphi 0, %s145
      %s160 = sphi 0, %s146
      %s164 = sphi 0, %s164
      %s166 = sphi 0, %s164
      %s167 = sphi 0, %s166
      %s181 = sphi 0, %s167
      %s185 = sphi 0, %s185
      %s187 = sphi 0, %s185
      %s188 = sphi 0, %s187
      %s202 = sphi 0, %s188
      %s206 = sphi 0, %s206
      %s208 = sphi 0, %s206
      %s209 = sphi 0, %s208
      %s223 = sphi 0, %s209
      %s227 = sphi 0, %s227
      %s229 = sphi 0, %s227
      %s230 = sphi 0, %s229
      %s244 = sphi 0, %s230
      %s248 = sphi 0, %s248
      %s250 = sphi 0, %s248
      %s251 = sphi 0, %s250
      %s265 = sphi 0, %s251
      %s269 = sphi 0, %s269
      %s271 = sphi 0, %s269
      %s272 = sphi 0, %s271
      %s286 = sphi 0, %s272
      %s290 = sphi 0, %s290
      %s292 = sphi 0, %s290
      %s293 = sphi 0, %s292
      %s307 = sphi 0, %s293
      %s311 = sphi 0, %s311
      %s313 = sphi 0, %s311
      %s314 = sphi 0, %s313
      %s328 = sphi 0, %s314
      %s334 = sphi 0, %s336
      %s337 = sphi 0, %s334
      %s338 = sphi 0, %s337
      %s354 = sphi 0, %s338
    $region4: #{tpu_custom_call.1} parent=1 // loop_header_branch
      %28 = sbr.rel (%p26) target = $region8
    $region5: #{tpu_custom_call.1} parent=1 // loop_body
      %s30 = ssub.s32 %s25, 1
      %s31 = ssub.s32 %s25, 2
      %s32 = sadd.s32 %s25, 1
      %s33 = ssub.s32 %s25, %s32
      %p34 = scmp.eq.s32.totalorder %s33, 0
      %s36 = sadd.s32 %s35, 1
      %s37 = scalar_select %p34, %s35, %s36
      %p40 = pneg %p34
      %p41 = scmp.eq.s32.totalorder %s25, 1
      %p42 = por %p40, %p41
      %p43 = scmp.ne.s32.totalorder %s35, %s38
      %p44 = scmp.eq.s32.totalorder %s25, 0
      %p45 = por %p43, %p44
      %p46 = scmp.ne.s32.totalorder %s35, %s38
      %p47 = scmp.eq.s32.totalorder %s30, 1
      %p48 = por %p46, %p47
      %p49 = scmp.ne.s32.totalorder %s38, %s39
      %p50 = scmp.eq.s32.totalorder %s30, 0
      %p51 = por %p49, %p50
      %p52 = scmp.ne.s32.totalorder %s38, %s39
      %p53 = scmp.eq.s32.totalorder %s31, 1
      %p54 = por %p52, %p53
      %p56 = scmp.ne.s32.totalorder %s39, %s55
      %p57 = scmp.eq.s32.totalorder %s31, 0
      %p58 = por %p56, %p57
      %s60 = sadd.s32 %s59, 1
      %p63 = scmp.eq.s32.totalorder %s25, 1
      %p64 = scmp.ne.s32.totalorder %s59, %s61
      %p65 = scmp.eq.s32.totalorder %s25, 0
      %p66 = por %p64, %p65
      %p67 = scmp.ne.s32.totalorder %s59, %s61
      %p68 = scmp.eq.s32.totalorder %s30, 1
      %p69 = por %p67, %p68
      %p70 = scmp.ne.s32.totalorder %s61, %s62
      %p71 = scmp.eq.s32.totalorder %s30, 0
      %p72 = por %p70, %p71
      %p73 = scmp.ne.s32.totalorder %s61, %s62
      %p74 = scmp.eq.s32.totalorder %s31, 1
      %p75 = por %p73, %p74
      %p77 = scmp.ne.s32.totalorder %s62, %s76
      %p78 = scmp.eq.s32.totalorder %s31, 0
      %p79 = por %p77, %p78
      %s81 = sadd.s32 %s80, 1
      %p84 = scmp.eq.s32.totalorder %s25, 1
      %p85 = scmp.ne.s32.totalorder %s80, %s82
      %p86 = scmp.eq.s32.totalorder %s25, 0
      %p87 = por %p85, %p86
      %p88 = scmp.ne.s32.totalorder %s80, %s82
      %p89 = scmp.eq.s32.totalorder %s30, 1
      %p90 = por %p88, %p89
      %p91 = scmp.ne.s32.totalorder %s82, %s83
      %p92 = scmp.eq.s32.totalorder %s30, 0
      %p93 = por %p91, %p92
      %p94 = scmp.ne.s32.totalorder %s82, %s83
      %p95 = scmp.eq.s32.totalorder %s31, 1
      %p96 = por %p94, %p95
      %p98 = scmp.ne.s32.totalorder %s83, %s97
      %p99 = scmp.eq.s32.totalorder %s31, 0
      %p100 = por %p98, %p99
      %s102 = sadd.s32 %s101, 1
      %p105 = scmp.eq.s32.totalorder %s25, 1
      %p106 = scmp.ne.s32.totalorder %s101, %s103
      %p107 = scmp.eq.s32.totalorder %s25, 0
      %p108 = por %p106, %p107
      %p109 = scmp.ne.s32.totalorder %s101, %s103
      %p110 = scmp.eq.s32.totalorder %s30, 1
      %p111 = por %p109, %p110
      %p112 = scmp.ne.s32.totalorder %s103, %s104
      %p113 = scmp.eq.s32.totalorder %s30, 0
      %p114 = por %p112, %p113
      %p115 = scmp.ne.s32.totalorder %s103, %s104
      %p116 = scmp.eq.s32.totalorder %s31, 1
      %p117 = por %p115, %p116
      %p119 = scmp.ne.s32.totalorder %s104, %s118
      %p120 = scmp.eq.s32.totalorder %s31, 0
      %p121 = por %p119, %p120
      %s123 = sadd.s32 %s122, 1
      %p126 = scmp.eq.s32.totalorder %s25, 1
      %p127 = scmp.ne.s32.totalorder %s122, %s124
      %p128 = scmp.eq.s32.totalorder %s25, 0
      %p129 = por %p127, %p128
      %p130 = scmp.ne.s32.totalorder %s122, %s124
      %p131 = scmp.eq.s32.totalorder %s30, 1
      %p132 = por %p130, %p131
      %p133 = scmp.ne.s32.totalorder %s124, %s125
      %p134 = scmp.eq.s32.totalorder %s30, 0
      %p135 = por %p133, %p134
      %p136 = scmp.ne.s32.totalorder %s124, %s125
      %p137 = scmp.eq.s32.totalorder %s31, 1
      %p138 = por %p136, %p137
      %p140 = scmp.ne.s32.totalorder %s125, %s139
      %p141 = scmp.eq.s32.totalorder %s31, 0
      %p142 = por %p140, %p141
      %s144 = sadd.s32 %s143, 1
      %p147 = scmp.eq.s32.totalorder %s25, 1
      %p148 = scmp.ne.s32.totalorder %s143, %s145
      %p149 = scmp.eq.s32.totalorder %s25, 0
      %p150 = por %p148, %p149
      %p151 = scmp.ne.s32.totalorder %s143, %s145
      %p152 = scmp.eq.s32.totalorder %s30, 1
      %p153 = por %p151, %p152
      %p154 = scmp.ne.s32.totalorder %s145, %s146
      %p155 = scmp.eq.s32.totalorder %s30, 0
      %p156 = por %p154, %p155
      %p157 = scmp.ne.s32.totalorder %s145, %s146
      %p158 = scmp.eq.s32.totalorder %s31, 1
      %p159 = por %p157, %p158
      %p161 = scmp.ne.s32.totalorder %s146, %s160
      %p162 = scmp.eq.s32.totalorder %s31, 0
      %p163 = por %p161, %p162
      %s165 = sadd.s32 %s164, 1
      %p168 = scmp.eq.s32.totalorder %s25, 1
      %p169 = scmp.ne.s32.totalorder %s164, %s166
      %p170 = scmp.eq.s32.totalorder %s25, 0
      %p171 = por %p169, %p170
      %p172 = scmp.ne.s32.totalorder %s164, %s166
      %p173 = scmp.eq.s32.totalorder %s30, 1
      %p174 = por %p172, %p173
      %p175 = scmp.ne.s32.totalorder %s166, %s167
      %p176 = scmp.eq.s32.totalorder %s30, 0
      %p177 = por %p175, %p176
      %p178 = scmp.ne.s32.totalorder %s166, %s167
      %p179 = scmp.eq.s32.totalorder %s31, 1
      %p180 = por %p178, %p179
      %p182 = scmp.ne.s32.totalorder %s167, %s181
      %p183 = scmp.eq.s32.totalorder %s31, 0
      %p184 = por %p182, %p183
      %s186 = sadd.s32 %s185, 1
      %p189 = scmp.eq.s32.totalorder %s25, 1
      %p190 = scmp.ne.s32.totalorder %s185, %s187
      %p191 = scmp.eq.s32.totalorder %s25, 0
      %p192 = por %p190, %p191
      %p193 = scmp.ne.s32.totalorder %s185, %s187
      %p194 = scmp.eq.s32.totalorder %s30, 1
      %p195 = por %p193, %p194
      %p196 = scmp.ne.s32.totalorder %s187, %s188
      %p197 = scmp.eq.s32.totalorder %s30, 0
      %p198 = por %p196, %p197
      %p199 = scmp.ne.s32.totalorder %s187, %s188
      %p200 = scmp.eq.s32.totalorder %s31, 1
      %p201 = por %p199, %p200
      %p203 = scmp.ne.s32.totalorder %s188, %s202
      %p204 = scmp.eq.s32.totalorder %s31, 0
      %p205 = por %p203, %p204
      %s207 = sadd.s32 %s206, 1
      %p210 = scmp.eq.s32.totalorder %s25, 1
      %p211 = scmp.ne.s32.totalorder %s206, %s208
      %p212 = scmp.eq.s32.totalorder %s25, 0
      %p213 = por %p211, %p212
      %p214 = scmp.ne.s32.totalorder %s206, %s208
      %p215 = scmp.eq.s32.totalorder %s30, 1
      %p216 = por %p214, %p215
      %p217 = scmp.ne.s32.totalorder %s208, %s209
      %p218 = scmp.eq.s32.totalorder %s30, 0
      %p219 = por %p217, %p218
      %p220 = scmp.ne.s32.totalorder %s208, %s209
      %p221 = scmp.eq.s32.totalorder %s31, 1
      %p222 = por %p220, %p221
      %p224 = scmp.ne.s32.totalorder %s209, %s223
      %p225 = scmp.eq.s32.totalorder %s31, 0
      %p226 = por %p224, %p225
      %s228 = sadd.s32 %s227, 1
      %p231 = scmp.eq.s32.totalorder %s25, 1
      %p232 = scmp.ne.s32.totalorder %s227, %s229
      %p233 = scmp.eq.s32.totalorder %s25, 0
      %p234 = por %p232, %p233
      %p235 = scmp.ne.s32.totalorder %s227, %s229
      %p236 = scmp.eq.s32.totalorder %s30, 1
      %p237 = por %p235, %p236
      %p238 = scmp.ne.s32.totalorder %s229, %s230
      %p239 = scmp.eq.s32.totalorder %s30, 0
      %p240 = por %p238, %p239
      %p241 = scmp.ne.s32.totalorder %s229, %s230
      %p242 = scmp.eq.s32.totalorder %s31, 1
      %p243 = por %p241, %p242
      %p245 = scmp.ne.s32.totalorder %s230, %s244
      %p246 = scmp.eq.s32.totalorder %s31, 0
      %p247 = por %p245, %p246
      %s249 = sadd.s32 %s248, 1
      %p252 = scmp.eq.s32.totalorder %s25, 1
      %p253 = scmp.ne.s32.totalorder %s248, %s250
      %p254 = scmp.eq.s32.totalorder %s25, 0
      %p255 = por %p253, %p254
      %p256 = scmp.ne.s32.totalorder %s248, %s250
      %p257 = scmp.eq.s32.totalorder %s30, 1
      %p258 = por %p256, %p257
      %p259 = scmp.ne.s32.totalorder %s250, %s251
      %p260 = scmp.eq.s32.totalorder %s30, 0
      %p261 = por %p259, %p260
      %p262 = scmp.ne.s32.totalorder %s250, %s251
      %p263 = scmp.eq.s32.totalorder %s31, 1
      %p264 = por %p262, %p263
      %p266 = scmp.ne.s32.totalorder %s251, %s265
      %p267 = scmp.eq.s32.totalorder %s31, 0
      %p268 = por %p266, %p267
      %s270 = sadd.s32 %s269, 1
      %p273 = scmp.eq.s32.totalorder %s25, 1
      %p274 = scmp.ne.s32.totalorder %s269, %s271
      %p275 = scmp.eq.s32.totalorder %s25, 0
      %p276 = por %p274, %p275
      %p277 = scmp.ne.s32.totalorder %s269, %s271
      %p278 = scmp.eq.s32.totalorder %s30, 1
      %p279 = por %p277, %p278
      %p280 = scmp.ne.s32.totalorder %s271, %s272
      %p281 = scmp.eq.s32.totalorder %s30, 0
      %p282 = por %p280, %p281
      %p283 = scmp.ne.s32.totalorder %s271, %s272
      %p284 = scmp.eq.s32.totalorder %s31, 1
      %p285 = por %p283, %p284
      %p287 = scmp.ne.s32.totalorder %s272, %s286
      %p288 = scmp.eq.s32.totalorder %s31, 0
      %p289 = por %p287, %p288
      %s291 = sadd.s32 %s290, 1
      %p294 = scmp.eq.s32.totalorder %s25, 1
      %p295 = scmp.ne.s32.totalorder %s290, %s292
      %p296 = scmp.eq.s32.totalorder %s25, 0
      %p297 = por %p295, %p296
      %p298 = scmp.ne.s32.totalorder %s290, %s292
      %p299 = scmp.eq.s32.totalorder %s30, 1
      %p300 = por %p298, %p299
      %p301 = scmp.ne.s32.totalorder %s292, %s293
      %p302 = scmp.eq.s32.totalorder %s30, 0
      %p303 = por %p301, %p302
      %p304 = scmp.ne.s32.totalorder %s292, %s293
      %p305 = scmp.eq.s32.totalorder %s31, 1
      %p306 = por %p304, %p305
      %p308 = scmp.ne.s32.totalorder %s293, %s307
      %p309 = scmp.eq.s32.totalorder %s31, 0
      %p310 = por %p308, %p309
      %s312 = sadd.s32 %s311, 1
      %p315 = scmp.eq.s32.totalorder %s25, 1
      %p316 = scmp.ne.s32.totalorder %s311, %s313
      %p317 = scmp.eq.s32.totalorder %s25, 0
      %p318 = por %p316, %p317
      %p319 = scmp.ne.s32.totalorder %s311, %s313
      %p320 = scmp.eq.s32.totalorder %s30, 1
      %p321 = por %p319, %p320
      %p322 = scmp.ne.s32.totalorder %s313, %s314
      %p323 = scmp.eq.s32.totalorder %s30, 0
      %p324 = por %p322, %p323
      %p325 = scmp.ne.s32.totalorder %s313, %s314
      %p326 = scmp.eq.s32.totalorder %s31, 1
      %p327 = por %p325, %p326
      %p329 = scmp.ne.s32.totalorder %s314, %s328
      %p330 = scmp.eq.s32.totalorder %s31, 0
      %p331 = por %p329, %p330
      %s332 = ssub.s32 %s25, %s32
      %p333 = scmp.eq.s32.totalorder %s332, 0
      %s335 = sadd.s32 %s334, 1
      %s336 = scalar_select %p333, %s334, %s335
      %p339 = pneg %p333
      %p340 = scmp.eq.s32.totalorder %s25, 1
      %p341 = por %p339, %p340
      %p342 = scmp.ne.s32.totalorder %s334, %s337
      %p343 = scmp.eq.s32.totalorder %s25, 0
      %p344 = por %p342, %p343
      %p345 = scmp.ne.s32.totalorder %s334, %s337
      %p346 = scmp.eq.s32.totalorder %s30, 1
      %p347 = por %p345, %p346
      %p348 = scmp.ne.s32.totalorder %s337, %s338
      %p349 = scmp.eq.s32.totalorder %s30, 0
      %p350 = por %p348, %p349
      %p351 = scmp.ne.s32.totalorder %s337, %s338
      %p352 = scmp.eq.s32.totalorder %s31, 1
      %p353 = por %p351, %p352
      %p355 = scmp.ne.s32.totalorder %s338, %s354
      %p356 = scmp.eq.s32.totalorder %s31, 0
      %p357 = por %p355, %p356
      %p358 = scmp.le.s32.totalorder 1, %s25
      %p359 = scmp.lt.s32.totalorder %s25, 3
      %p360 = pnand %p358, %p359
      %p361 = pneg %p360
      // Predicated region
      $region9: #{tpu_custom_call.1} parent=5 // pred_check
        _
      $region10: #{tpu_custom_call.1} parent=5 // pred_check_branch
        %363 = sbr.rel (%p360) target = $region12
      $region11: #{tpu_custom_call.1} parent=5 // pred_region
        %s364 = ssub.s32 %s25, 1
        // Predicated region
        $region13: #{tpu_custom_call.1} parent=11 // pred_check
          %p365 = pneg %p72
        $region14: #{tpu_custom_call.1} parent=11 // pred_check_branch
          %367 = sbr.rel (%p365) target = $region16
        $region15: #{tpu_custom_call.1} parent=11 // pred_region
          _
        $region16: #{tpu_custom_call.1} parent=11 // pred_fallthru
          _
        // Predicated region
        $region17: #{tpu_custom_call.1} parent=11 // pred_check
          %p368 = pneg %p93
        $region18: #{tpu_custom_call.1} parent=11 // pred_check_branch
          %370 = sbr.rel (%p368) target = $region20
        $region19: #{tpu_custom_call.1} parent=11 // pred_region
          _
        $region20: #{tpu_custom_call.1} parent=11 // pred_fallthru
          _
        // Predicated region
        $region21: #{tpu_custom_call.1} parent=11 // pred_check
          %p371 = pneg %p114
        $region22: #{tpu_custom_call.1} parent=11 // pred_check_branch
          %373 = sbr.rel (%p371) target = $region24
        $region23: #{tpu_custom_call.1} parent=11 // pred_region
          %s375 = ssub.s32 18432, 18432
          %376 = vsyncadd [#allocation7], %s375
          %s377 = sshll.u32 [#allocation6], 4
          %s378 = int_to_ptr.vmem [resolvable:$true] %s377
          %383 = dma.hbm_to_vmem [thread:$0]  %s3, 18432, %s378, [#allocation7], 128, 128, 8
        $region24: #{tpu_custom_call.1} parent=11 // pred_fallthru
          _
        // Predicated region
        $region25: #{tpu_custom_call.1} parent=11 // pred_check
          %p384 = pneg %p135
        $region26: #{tpu_custom_call.1} parent=11 // pred_check_branch
          %386 = sbr.rel (%p384) target = $region28
        $region27: #{tpu_custom_call.1} parent=11 // pred_region
          _
        $region28: #{tpu_custom_call.1} parent=11 // pred_fallthru
          _
        // Predicated region
        $region29: #{tpu_custom_call.1} parent=11 // pred_check
          %p387 = pneg %p156
        $region30: #{tpu_custom_call.1} parent=11 // pred_check_branch
          %389 = sbr.rel (%p387) target = $region32
        $region31: #{tpu_custom_call.1} parent=11 // pred_region
          %s391 = ssub.s32 8192, 8192
          %392 = vsyncadd [#allocation9], %s391
          %s393 = sshll.u32 [#allocation8], 4
          %s394 = int_to_ptr.vmem [resolvable:$true] %s393
          %399 = dma.hbm_to_vmem [thread:$0]  %s5, 8192, %s394, [#allocation9], 256, 256, 16
        $region32: #{tpu_custom_call.1} parent=11 // pred_fallthru
          _
        // Predicated region
        $region33: #{tpu_custom_call.1} parent=11 // pred_check
          %p400 = pneg %p177
        $region34: #{tpu_custom_call.1} parent=11 // pred_check_branch
          %402 = sbr.rel (%p400) target = $region36
        $region35: #{tpu_custom_call.1} parent=11 // pred_region
          %s404 = ssub.s32 20480, 20480
          %405 = vsyncadd [#allocation9], %s404
          %s406 = sshll.u32 [#allocation10], 4
          %s407 = int_to_ptr.vmem [resolvable:$true] %s406
          %412 = dma.hbm_to_vmem [thread:$0]  %s6, 20480, %s407, [#allocation9], 128, 128, 8
        $region36: #{tpu_custom_call.1} parent=11 // pred_fallthru
          _
        // Predicated region
        $region37: #{tpu_custom_call.1} parent=11 // pred_check
          %p413 = pneg %p198
        $region38: #{tpu_custom_call.1} parent=11 // pred_check_branch
          %415 = sbr.rel (%p413) target = $region40
        $region39: #{tpu_custom_call.1} parent=11 // pred_region
          _
        $region40: #{tpu_custom_call.1} parent=11 // pred_fallthru
          _
        // Predicated region
        $region41: #{tpu_custom_call.1} parent=11 // pred_check
          %p416 = pneg %p219
        $region42: #{tpu_custom_call.1} parent=11 // pred_check_branch
          %418 = sbr.rel (%p416) target = $region44
        $region43: #{tpu_custom_call.1} parent=11 // pred_region
          %s420 = ssub.s32 8192, 8192
          %421 = vsyncadd [#allocation12], %s420
          %s422 = sshll.u32 [#allocation11], 4
          %s423 = int_to_ptr.vmem [resolvable:$true] %s422
          %428 = dma.hbm_to_vmem [thread:$0]  %s8, 8192, %s423, [#allocation12], 256, 256, 16
        $region44: #{tpu_custom_call.1} parent=11 // pred_fallthru
          _
        // Predicated region
        $region45: #{tpu_custom_call.1} parent=11 // pred_check
          %p429 = pneg %p240
        $region46: #{tpu_custom_call.1} parent=11 // pred_check_branch
          %431 = sbr.rel (%p429) target = $region48
        $region47: #{tpu_custom_call.1} parent=11 // pred_region
          _
        $region48: #{tpu_custom_call.1} parent=11 // pred_fallthru
          _
        // Predicated region
        $region49: #{tpu_custom_call.1} parent=11 // pred_check
          %p432 = pneg %p261
        $region50: #{tpu_custom_call.1} parent=11 // pred_check_branch
          %434 = sbr.rel (%p432) target = $region52
        $region51: #{tpu_custom_call.1} parent=11 // pred_region
          _
        $region52: #{tpu_custom_call.1} parent=11 // pred_fallthru
          _
        // Predicated region
        $region53: #{tpu_custom_call.1} parent=11 // pred_check
          %p435 = pneg %p282
        $region54: #{tpu_custom_call.1} parent=11 // pred_check_branch
          %437 = sbr.rel (%p435) target = $region56
        $region55: #{tpu_custom_call.1} parent=11 // pred_region
          %s439 = ssub.s32 8192, 8192
          %440 = vsyncadd [#allocation12], %s439
          %s441 = sshll.u32 [#allocation13], 4
          %s442 = int_to_ptr.vmem [resolvable:$true] %s441
          %447 = dma.hbm_to_vmem [thread:$0]  %s11, 8192, %s442, [#allocation12], 256, 256, 16
        $region56: #{tpu_custom_call.1} parent=11 // pred_fallthru
          _
        // Predicated region
        $region57: #{tpu_custom_call.1} parent=11 // pred_check
          %p448 = pneg %p303
        $region58: #{tpu_custom_call.1} parent=11 // pred_check_branch
          %450 = sbr.rel (%p448) target = $region60
        $region59: #{tpu_custom_call.1} parent=11 // pred_region
          _
        $region60: #{tpu_custom_call.1} parent=11 // pred_fallthru
          _
        // Predicated region
        $region61: #{tpu_custom_call.1} parent=11 // pred_check
          %p451 = pneg %p324
        $region62: #{tpu_custom_call.1} parent=11 // pred_check_branch
          %453 = sbr.rel (%p451) target = $region64
        $region63: #{tpu_custom_call.1} parent=11 // pred_region
          _
        $region64: #{tpu_custom_call.1} parent=11 // pred_fallthru
          _
      $region12: #{tpu_custom_call.1} parent=5 // pred_fallthru
        _
      %p454 = scmp.lt.s32.totalorder %s25, 2
      // Predicated region
      $region65: #{tpu_custom_call.1} parent=5 // pred_check
        %p455 = pneg %p454
      $region66: #{tpu_custom_call.1} parent=5 // pred_check_branch
        %457 = sbr.rel (%p455) target = $region68
      $region67: #{tpu_custom_call.1} parent=5 // pred_region
        // Predicated region
        $region69: #{tpu_custom_call.1} parent=67 // pred_check
          %p458 = pneg %p45
        $region70: #{tpu_custom_call.1} parent=67 // pred_check_branch
          %460 = sbr.rel (%p458) target = $region72
        $region71: #{tpu_custom_call.1} parent=67 // pred_region
          %p461 = scmp.lt.s32.totalorder %s25, 1
          %s462 = scalar_select %p461, %s25, 1
          %s463 = smul.addr %s462, 12
          %s464 = smul.addr %s463, 8
          %s465 = scalar_lea.vmem %s0, %s464
        $region72: #{tpu_custom_call.1} parent=67 // pred_fallthru
          _
      $region68: #{tpu_custom_call.1} parent=5 // pred_fallthru
        _
      %p466 = scmp.le.s32.totalorder 1, %s25
      %p467 = scmp.lt.s32.totalorder %s25, 3
      %p468 = pnand %p466, %p467
      %p469 = pneg %p468
      // Predicated region
      $region73: #{tpu_custom_call.1} parent=5 // pred_check
        _
      $region74: #{tpu_custom_call.1} parent=5 // pred_check_branch
        %471 = sbr.rel (%p468) target = $region76
      $region75: #{tpu_custom_call.1} parent=5 // pred_region
        %s472 = ssub.s32 %s25, 1
        // Predicated region
        $region77: #{tpu_custom_call.1} parent=75 // pred_check
          %p473 = pneg %p114
        $region78: #{tpu_custom_call.1} parent=75 // pred_check_branch
          %475 = sbr.rel (%p473) target = $region80
        $region79: #{tpu_custom_call.1} parent=75 // pred_region
          %476 = dma.done [#allocation7], 18432
        $region80: #{tpu_custom_call.1} parent=75 // pred_fallthru
          _
        // Predicated region
        $region81: #{tpu_custom_call.1} parent=75 // pred_check
          %p477 = pneg %p156
        $region82: #{tpu_custom_call.1} parent=75 // pred_check_branch
          %479 = sbr.rel (%p477) target = $region84
        $region83: #{tpu_custom_call.1} parent=75 // pred_region
          %480 = dma.done [#allocation9], 8192
        $region84: #{tpu_custom_call.1} parent=75 // pred_fallthru
          _
        // Predicated region
        $region85: #{tpu_custom_call.1} parent=75 // pred_check
          %p481 = pneg %p177
        $region86: #{tpu_custom_call.1} parent=75 // pred_check_branch
          %483 = sbr.rel (%p481) target = $region88
        $region87: #{tpu_custom_call.1} parent=75 // pred_region
          %484 = dma.done [#allocation9], 20480
        $region88: #{tpu_custom_call.1} parent=75 // pred_fallthru
          _
        // Predicated region
        $region89: #{tpu_custom_call.1} parent=75 // pred_check
          %p485 = pneg %p219
        $region90: #{tpu_custom_call.1} parent=75 // pred_check_branch
          %487 = sbr.rel (%p485) target = $region92
        $region91: #{tpu_custom_call.1} parent=75 // pred_region
          %488 = dma.done [#allocation12], 8192
        $region92: #{tpu_custom_call.1} parent=75 // pred_fallthru
          _
        // Predicated region
        $region93: #{tpu_custom_call.1} parent=75 // pred_check
          %p489 = pneg %p282
        $region94: #{tpu_custom_call.1} parent=75 // pred_check_branch
          %491 = sbr.rel (%p489) target = $region96
        $region95: #{tpu_custom_call.1} parent=75 // pred_region
          %492 = dma.done [#allocation12], 8192
        $region96: #{tpu_custom_call.1} parent=75 // pred_fallthru
          _
        %p493 = scmp.lt.s32.totalorder %s30, 1
        %s494 = scalar_select %p493, %s30, 1
        %s495 = smul.addr %s494, 12
        %s496 = smul.addr %s495, 8
        %s497 = scalar_lea.vmem %s0, %s496
        %p498 = pneg %p51
        %p499 = pneg %p48
        %p500 = pneg %p72
        %p501 = pneg %p69
        %p502 = pneg %p93
        %p503 = pneg %p90
        %p504 = pneg %p114
        %p505 = pneg %p111
        %p506 = pneg %p135
        %p507 = pneg %p132
        %p508 = pneg %p156
        %p509 = pneg %p153
        %p510 = pneg %p177
        %p511 = pneg %p174
        %p512 = pneg %p198
        %p513 = pneg %p195
        %p514 = pneg %p219
        %p515 = pneg %p216
        %p516 = pneg %p240
        %p517 = pneg %p237
        %p518 = pneg %p261
        %p519 = pneg %p258
        %p520 = pneg %p282
        %p521 = pneg %p279
        %p522 = pneg %p303
        %p523 = pneg %p300
        %p524 = pneg %p324
        %p525 = pneg %p321
        %p526 = pneg %p350
        %p527 = pneg %p347
        %p528 = scmp.lt.s32.totalorder %s30, 1
        %s529 = scalar_select %p528, %s30, 1
        %s530 = scalar_lea.vmem %s14, %s529
        %p531 = scmp.lt.s32.totalorder %s30, 1
        %s532 = scalar_select %p531, %s30, 1
        %s533 = smul.addr %s532, 12
        %s534 = smul.addr %s533, 8
        %s535 = scalar_lea.vmem %s0, %s534
        %p536 = scmp.lt.s32.totalorder %s30, 1
        %s537 = scalar_select %p536, %s30, 1
        %s538 = scalar_lea.vmem %s14, %s537
        %540 = vst [vmem:[#allocation2] sm:$0xff] 0.0
        %541 = vst [vmem:[#allocation2 + $0x8] sm:$0xff] 0.0
        %vm542 = vcmask 261120
        %543 = vst.msk [vmem:[#allocation2 + $0x10] sm:$0xff] %vm542, 0.0
        %544 = vst [vmem:[#allocation2 + $0x18] sm:$0x1] 0.0
        %545 = vst [vmem:[#allocation2 + $0x20] sm:$0x1] 0.0
        %vm546 = vcmask 253952
        %547 = vst.msk [vmem:[#allocation2 + $0x28] sm:$0x1] %vm546, 0.0
        %548 = vst [vmem:[#allocation2 + $0x30] sm:$0xff] 0.0
        %549 = vst [vmem:[#allocation2 + $0x38] sm:$0xff] 0.0
        %550 = vst.msk [vmem:[#allocation2 + $0x40] sm:$0xff] %vm542, 0.0
        %551 = vst [vmem:[#allocation2 + $0x48] sm:$0x1] 0.0
        %552 = vst [vmem:[#allocation2 + $0x50] sm:$0x1] 0.0
        %553 = vst.msk [vmem:[#allocation2 + $0x58] sm:$0x1] %vm546, 0.0
        %554 = vst [vmem:[#allocation3] sm:$0x1f] 0.0
        %555 = vst [vmem:[#allocation3 + $0x8] sm:$0x1f] 0.0
        %vm556 = vcmask 520192
        %557 = vst.msk [vmem:[#allocation3 + $0x10] sm:$0x1f] %vm556, 0.0
        %558 = vst [vmem:[#allocation3 + $0x18] sm:$0x1f] 0.0
        %559 = vst [vmem:[#allocation3 + $0x20] sm:$0x1f] 0.0
        %560 = vst.msk [vmem:[#allocation3 + $0x28] sm:$0x1f] %vm556, 0.0
        %561 = vst [vmem:[#allocation4] sm:$0x77] 0.0
        %562 = vst [vmem:[#allocation4 + $0x8] sm:$0x7] 0.0
        %563 = vst [vmem:[#allocation4 + $0xc] sm:$0x77] 0.0
        %564 = vst [vmem:[#allocation4 + $0x14] sm:$0x7] 0.0
        %v565 = vld [vmem:[%s535] sm:$0xff]
        %v566 = vld [vmem:[%s535 + $0x8] sm:$0xff]
        %v567 = vld [vmem:[%s535 + $0x10] sm:$0xff]
        %v568 = vld [vmem:[%s535 + $0x18] sm:$0xff]
        %v569 = vpack.c.bf16 %v567, %v565
        %v570 = vpack.c.bf16 %v568, %v566
        %v571 = vld [vmem:[%s1] sm:$0xff]
        %v572 = vld [vmem:[%s1 + $0x8] sm:$0xff]
        %v573 = vld [vmem:[%s1 + $0x10] sm:$0xff]
        %v574 = vld [vmem:[%s1 + $0x18] sm:$0xff]
        %v575 = vld [vmem:[%s1 + $0x20] sm:$0xff]
        %v576 = vld [vmem:[%s1 + $0x28] sm:$0xff]
        %v577 = vld [vmem:[%s1 + $0x30] sm:$0xff]
        %v578 = vld [vmem:[%s1 + $0x38] sm:$0xff]
        %v579 = vld [vmem:[%s1 + $0x40] sm:$0xff]
        %v580 = vld [vmem:[%s1 + $0x48] sm:$0xff]
        %v581 = vld [vmem:[%s1 + $0x50] sm:$0xff]
        %v582 = vld [vmem:[%s1 + $0x58] sm:$0xff]
        %v583 = vld [vmem:[%s1 + $0x60] sm:$0xff]
        %v584 = vld [vmem:[%s1 + $0x68] sm:$0xff]
        %v585 = vld [vmem:[%s1 + $0x70] sm:$0xff]
        %v586 = vld [vmem:[%s1 + $0x78] sm:$0xff]
        %v587 = vld [vmem:[%s1 + $0x80] sm:$0xff]
        %v588 = vld [vmem:[%s1 + $0x88] sm:$0xff]
        %v589 = vld [vmem:[%s1 + $0x90] sm:$0xff]
        %v590 = vld [vmem:[%s1 + $0x98] sm:$0xff]
        %v591 = vld [vmem:[%s1 + $0xa0] sm:$0xff]
        %v592 = vld [vmem:[%s1 + $0xa8] sm:$0x11]
        %s593 = scalar_lea.vmem %s535, 48
        %v594 = vld [vmem:[%s593] sm:$0xff]
        %v595 = vld [vmem:[%s593 + $0x8] sm:$0xff]
        %v596 = vld [vmem:[%s593 + $0x10] sm:$0xff]
        %v597 = vld [vmem:[%s593 + $0x18] sm:$0xff]
        %v598 = vpack.c.bf16 %v596, %v594
        %v599 = vpack.c.bf16 %v597, %v595
        %s600 = scalar_lea.vmem %s1, 176
        %v601 = vld [vmem:[%s600] sm:$0xff]
        %v602 = vld [vmem:[%s600 + $0x8] sm:$0xff]
        %v603 = vld [vmem:[%s600 + $0x10] sm:$0xff]
        %v604 = vld [vmem:[%s600 + $0x18] sm:$0xff]
        %v605 = vld [vmem:[%s600 + $0x20] sm:$0xff]
        %v606 = vld [vmem:[%s600 + $0x28] sm:$0xff]
        %v607 = vld [vmem:[%s600 + $0x30] sm:$0xff]
        %v608 = vld [vmem:[%s600 + $0x38] sm:$0xff]
        %v609 = vld [vmem:[%s600 + $0x40] sm:$0xff]
        %v610 = vld [vmem:[%s600 + $0x48] sm:$0xff]
        %v611 = vld [vmem:[%s600 + $0x50] sm:$0xff]
        %v612 = vld [vmem:[%s600 + $0x58] sm:$0xff]
        %v613 = vld [vmem:[%s600 + $0x60] sm:$0xff]
        %v614 = vld [vmem:[%s600 + $0x68] sm:$0xff]
        %v615 = vld [vmem:[%s600 + $0x70] sm:$0xff]
        %v616 = vld [vmem:[%s600 + $0x78] sm:$0xff]
        %v617 = vld [vmem:[%s600 + $0x80] sm:$0xff]
        %v618 = vld [vmem:[%s600 + $0x88] sm:$0xff]
        %v619 = vld [vmem:[%s600 + $0x90] sm:$0xff]
        %v620 = vld [vmem:[%s600 + $0x98] sm:$0xff]
        %v621 = vld [vmem:[%s600 + $0xa0] sm:$0xff]
        %v622 = vld [vmem:[%s600 + $0xa8] sm:$0x11]
        %v645 = vunpack.c.l.b16 %v601
        %v646 = vunpack.c.h.b16 %v601
        %v647 = vunpack.c.l.b16 %v602
        %v648 = vunpack.c.h.b16 %v602
        %v649 = vunpack.c.l.b16 %v603
        %v650 = vunpack.c.h.b16 %v603
        %v651 = vunpack.c.l.b16 %v604
        %v652 = vunpack.c.h.b16 %v604
        %v653 = vunpack.c.l.b16 %v605
        %v654 = vunpack.c.h.b16 %v605
        %v655 = vunpack.c.l.b16 %v606
        %v656 = vunpack.c.h.b16 %v606
        %v657 = vunpack.c.l.b16 %v607
        %v658 = vunpack.c.h.b16 %v607
        %v659 = vunpack.c.l.b16 %v608
        %v660 = vunpack.c.h.b16 %v608
        %v661 = vunpack.c.l.b16 %v609
        %v662 = vunpack.c.h.b16 %v609
        %v663 = vunpack.c.l.b16 %v610
        %v664 = vunpack.c.h.b16 %v610
        %v665 = vunpack.c.l.b16 %v611
        %v666 = vunpack.c.h.b16 %v611
        %v667 = vunpack.c.l.b16 %v612
        %v668 = vunpack.c.h.b16 %v612
        %v669 = vunpack.c.l.b16 %v613
        %v670 = vunpack.c.h.b16 %v613
        %v671 = vunpack.c.l.b16 %v614
        %v672 = vunpack.c.h.b16 %v614
        %v673 = vunpack.c.l.b16 %v615
        %v674 = vunpack.c.h.b16 %v615
        %v675 = vunpack.c.l.b16 %v616
        %v676 = vunpack.c.h.b16 %v616
        %v677 = vunpack.c.l.b16 %v617
        %v678 = vunpack.c.h.b16 %v617
        %v679 = vunpack.c.l.b16 %v618
        %v680 = vunpack.c.h.b16 %v618
        %v681 = vunpack.c.l.b16 %v619
        %v682 = vunpack.c.h.b16 %v619
        %v683 = vunpack.c.l.b16 %v620
        %v684 = vunpack.c.h.b16 %v620
        %v685 = vunpack.c.l.b16 %v621
        %v686 = vunpack.c.h.b16 %v621
        %v687 = vunpack.c.l.b16 %v622
        %v688 = vunpack.c.h.b16 %v622
        %v689 = vpack.c.b16 %v647, %v645
        %v690 = vpack.c.b16 %v648, %v646
        %v691 = vpack.c.b16 %v651, %v649
        %v692 = vpack.c.b16 %v652, %v650
        %v693 = vpack.c.b16 %v655, %v653
        %v694 = vpack.c.b16 %v656, %v654
        %v695 = vpack.c.b16 %v659, %v657
        %v696 = vpack.c.b16 %v660, %v658
        %v697 = vpack.c.b16 %v663, %v661
        %v698 = vpack.c.b16 %v664, %v662
        %v699 = vpack.c.b16 %v667, %v665
        %v700 = vpack.c.b16 %v668, %v666
        %v701 = vpack.c.b16 %v671, %v669
        %v702 = vpack.c.b16 %v672, %v670
        %v703 = vpack.c.b16 %v675, %v673
        %v704 = vpack.c.b16 %v676, %v674
        %v705 = vpack.c.b16 %v679, %v677
        %v706 = vpack.c.b16 %v680, %v678
        %v707 = vpack.c.b16 %v683, %v681
        %v708 = vpack.c.b16 %v684, %v682
        %v709 = vpack.c.b16 %v687, %v685
        %v710 = vpack.c.b16 %v688, %v686
        %vm731 = vcmask 343040
        %v733 = vsel %vm731, %v599, 0
        %vm735 = vcmask 1044480
        %v737 = vsel %vm735, %v709, 0
        %v740 = vsel %vm735, %v710, 0
        %742 = vmatprep.subr.bf16.mxu0 %v690
        %743 = vmatpush1.bf16.msra.mxu0 %v689
        %744 = vmatprep.subr.bf16.mxu0 %v692
        %745 = vmatpush1.bf16.msra.mxu0 %v691
        %746 = vmatprep.subr.bf16.mxu0 %v694
        %747 = vmatpush1.bf16.msra.mxu0 %v693
        %748 = vmatprep.subr.bf16.mxu0 %v696
        %749 = vmatpush1.bf16.msra.mxu0 %v695
        %750 = vmatprep.subr.bf16.mxu0 %v698
        %751 = vmatpush1.bf16.msra.mxu0 %v697
        %752 = vmatprep.subr.bf16.mxu0 %v700
        %753 = vmatpush1.bf16.msra.mxu0 %v699
        %754 = vmatprep.subr.bf16.mxu0 %v702
        %755 = vmatpush1.bf16.msra.mxu0 %v701
        %756 = vmatprep.subr.bf16.mxu0 %v704
        %757 = vmatpush1.bf16.msra.mxu0 %v703
        %758 = vmatprep.subr.bf16.mxu0 %v706
        %759 = vmatpush1.bf16.msra.mxu0 %v705
        %760 = vmatprep.subr.bf16.mxu0 %v708
        %761 = vmatpush1.bf16.msra.mxu0 %v707
        %762 = vmatprep.subr.bf16.mxu0 %v740
        %763 = vmatpush1.bf16.msra.mxu0 %v737
        %764 = vmatprep.subr.bf16.mxu0 0
        %765 = vmatpush1.bf16.msra.mxu0 0
        %766 = vmatprep.subr.bf16.mxu0 0
        %767 = vmatpush1.bf16.msra.mxu0 0
        %768 = vmatprep.subr.bf16.mxu0 0
        %769 = vmatpush1.bf16.msra.mxu0 0
        %770 = vmatprep.subr.bf16.mxu0 0
        %771 = vmatpush1.bf16.msra.mxu0 0
        %772 = vmatprep.subr.bf16.mxu0 0
        %773 = vmatpush1.bf16.msra.mxu0 0
        %774 = vmatprep.mubr.bf16.mxu0 %v733
        %775 = vmatmul.mubr.bf16.gmra.mrb[0].mxu0 %v598
        %v776 = vpop.f32.mrb[0].mxu0
        %v777 = vadd.f32 0.0, %v776
        %v778 = vpop.f32.mrb[0].mxu0
        %v779 = vadd.f32 0.0, %v778
        %v780 = vpop.f32.mrb[0].mxu0
        %v781 = vadd.f32 0.0, %v780
        %v782 = vpop.f32.mrb[0].mxu0
        %v783 = vadd.f32 0.0, %v782
        %784 = vdwg.mxu0
        %v807 = vunpack.c.l.b16 %v571
        %v808 = vunpack.c.h.b16 %v571
        %v809 = vunpack.c.l.b16 %v572
        %v810 = vunpack.c.h.b16 %v572
        %v811 = vunpack.c.l.b16 %v573
        %v812 = vunpack.c.h.b16 %v573
        %v813 = vunpack.c.l.b16 %v574
        %v814 = vunpack.c.h.b16 %v574
        %v815 = vunpack.c.l.b16 %v575
        %v816 = vunpack.c.h.b16 %v575
        %v817 = vunpack.c.l.b16 %v576
        %v818 = vunpack.c.h.b16 %v576
        %v819 = vunpack.c.l.b16 %v577
        %v820 = vunpack.c.h.b16 %v577
        %v821 = vunpack.c.l.b16 %v578
        %v822 = vunpack.c.h.b16 %v578
        %v823 = vunpack.c.l.b16 %v579
        %v824 = vunpack.c.h.b16 %v579
        %v825 = vunpack.c.l.b16 %v580
        %v826 = vunpack.c.h.b16 %v580
        %v827 = vunpack.c.l.b16 %v581
        %v828 = vunpack.c.h.b16 %v581
        %v829 = vunpack.c.l.b16 %v582
        %v830 = vunpack.c.h.b16 %v582
        %v831 = vunpack.c.l.b16 %v583
        %v832 = vunpack.c.h.b16 %v583
        %v833 = vunpack.c.l.b16 %v584
        %v834 = vunpack.c.h.b16 %v584
        %v835 = vunpack.c.l.b16 %v585
        %v836 = vunpack.c.h.b16 %v585
        %v837 = vunpack.c.l.b16 %v586
        %v838 = vunpack.c.h.b16 %v586
        %v839 = vunpack.c.l.b16 %v587
        %v840 = vunpack.c.h.b16 %v587
        %v841 = vunpack.c.l.b16 %v588
        %v842 = vunpack.c.h.b16 %v588
        %v843 = vunpack.c.l.b16 %v589
        %v844 = vunpack.c.h.b16 %v589
        %v845 = vunpack.c.l.b16 %v590
        %v846 = vunpack.c.h.b16 %v590
        %v847 = vunpack.c.l.b16 %v591
        %v848 = vunpack.c.h.b16 %v591
        %v849 = vunpack.c.l.b16 %v592
        %v850 = vunpack.c.h.b16 %v592
        %v851 = vpack.c.b16 %v809, %v807
        %v852 = vpack.c.b16 %v810, %v808
        %v853 = vpack.c.b16 %v813, %v811
        %v854 = vpack.c.b16 %v814, %v812
        %v855 = vpack.c.b16 %v817, %v815
        %v856 = vpack.c.b16 %v818, %v816
        %v857 = vpack.c.b16 %v821, %v819
        %v858 = vpack.c.b16 %v822, %v820
        %v859 = vpack.c.b16 %v825, %v823
        %v860 = vpack.c.b16 %v826, %v824
        %v861 = vpack.c.b16 %v829, %v827
        %v862 = vpack.c.b16 %v830, %v828
        %v863 = vpack.c.b16 %v833, %v831
        %v864 = vpack.c.b16 %v834, %v832
        %v865 = vpack.c.b16 %v837, %v835
        %v866 = vpack.c.b16 %v838, %v836
        %v867 = vpack.c.b16 %v841, %v839
        %v868 = vpack.c.b16 %v842, %v840
        %v869 = vpack.c.b16 %v845, %v843
        %v870 = vpack.c.b16 %v846, %v844
        %v871 = vpack.c.b16 %v849, %v847
        %v872 = vpack.c.b16 %v850, %v848
        %v894 = vsel %vm731, %v570, 0
        %v897 = vsel %vm735, %v871, 0
        %v900 = vsel %vm735, %v872, 0
        %902 = vmatprep.subr.bf16.mxu0 %v852
        %903 = vmatpush1.bf16.msra.mxu0 %v851
        %904 = vmatprep.subr.bf16.mxu0 %v854
        %905 = vmatpush1.bf16.msra.mxu0 %v853
        %906 = vmatprep.subr.bf16.mxu0 %v856
        %907 = vmatpush1.bf16.msra.mxu0 %v855
        %908 = vmatprep.subr.bf16.mxu0 %v858
        %909 = vmatpush1.bf16.msra.mxu0 %v857
        %910 = vmatprep.subr.bf16.mxu0 %v860
        %911 = vmatpush1.bf16.msra.mxu0 %v859
        %912 = vmatprep.subr.bf16.mxu0 %v862
        %913 = vmatpush1.bf16.msra.mxu0 %v861
        %914 = vmatprep.subr.bf16.mxu0 %v864
        %915 = vmatpush1.bf16.msra.mxu0 %v863
        %916 = vmatprep.subr.bf16.mxu0 %v866
        %917 = vmatpush1.bf16.msra.mxu0 %v865
        %918 = vmatprep.subr.bf16.mxu0 %v868
        %919 = vmatpush1.bf16.msra.mxu0 %v867
        %920 = vmatprep.subr.bf16.mxu0 %v870
        %921 = vmatpush1.bf16.msra.mxu0 %v869
        %922 = vmatprep.subr.bf16.mxu0 %v900
        %923 = vmatpush1.bf16.msra.mxu0 %v897
        %924 = vmatprep.subr.bf16.mxu0 0
        %925 = vmatpush1.bf16.msra.mxu0 0
        %926 = vmatprep.subr.bf16.mxu0 0
        %927 = vmatpush1.bf16.msra.mxu0 0
        %928 = vmatprep.subr.bf16.mxu0 0
        %929 = vmatpush1.bf16.msra.mxu0 0
        %930 = vmatprep.subr.bf16.mxu0 0
        %931 = vmatpush1.bf16.msra.mxu0 0
        %932 = vmatprep.subr.bf16.mxu0 0
        %933 = vmatpush1.bf16.msra.mxu0 0
        %934 = vmatprep.mubr.bf16.mxu0 %v894
        %935 = vmatmul.mubr.bf16.gmra.mrb[0].mxu0 %v569
        %v936 = vpop.f32.mrb[0].mxu0
        %v937 = vadd.f32 %v777, %v936
        %v938 = vpop.f32.mrb[0].mxu0
        %v939 = vadd.f32 %v779, %v938
        %v940 = vpop.f32.mrb[0].mxu0
        %v941 = vadd.f32 %v781, %v940
        %v942 = vpop.f32.mrb[0].mxu0
        %v943 = vadd.f32 %v783, %v942
        %944 = vdwg.mxu0
        %v945 = vld [vmem:[%s535] sm:$0xfe]
        %v946 = vld [vmem:[%s535 + $0x8] sm:$0xfe]
        %v947 = vld [vmem:[%s535 + $0x10] sm:$0xff]
        %v948 = vld [vmem:[%s535 + $0x18] sm:$0xff]
        %v949 = vld [vmem:[%s535 + $0x20] sm:$0x1]
        %v950 = vld [vmem:[%s535 + $0x28] sm:$0x1]
        %v951 = vpack.c.bf16 %v947, %v945
        %v952 = vpack.c.bf16 %v948, %v946
        %v953 = vpack.c.bf16 %v949, %v949
        %v954 = vpack.c.bf16 %v950, %v950
        %s955 = scalar_lea.vmem %s1, 352
        %v956 = vld [vmem:[%s955] sm:$0xff]
        %v957 = vld [vmem:[%s955 + $0x8] sm:$0xff]
        %v958 = vld [vmem:[%s955 + $0x10] sm:$0xff]
        %v959 = vld [vmem:[%s955 + $0x18] sm:$0xff]
        %v960 = vld [vmem:[%s955 + $0x20] sm:$0xff]
        %v961 = vld [vmem:[%s955 + $0x28] sm:$0xff]
        %v962 = vld [vmem:[%s955 + $0x30] sm:$0xff]
        %v963 = vld [vmem:[%s955 + $0x38] sm:$0xff]
        %v964 = vld [vmem:[%s955 + $0x40] sm:$0xff]
        %v965 = vld [vmem:[%s955 + $0x48] sm:$0xff]
        %v966 = vld [vmem:[%s955 + $0x50] sm:$0xff]
        %v967 = vld [vmem:[%s955 + $0x58] sm:$0xff]
        %v968 = vld [vmem:[%s955 + $0x60] sm:$0xff]
        %v969 = vld [vmem:[%s955 + $0x68] sm:$0xff]
        %v970 = vld [vmem:[%s955 + $0x70] sm:$0xff]
        %v971 = vld [vmem:[%s955 + $0x78] sm:$0xff]
        %v972 = vld [vmem:[%s955 + $0x80] sm:$0xff]
        %v973 = vld [vmem:[%s955 + $0x88] sm:$0xff]
        %v974 = vld [vmem:[%s955 + $0x90] sm:$0xff]
        %v975 = vld [vmem:[%s955 + $0x98] sm:$0xff]
        %v976 = vld [vmem:[%s955 + $0xa0] sm:$0xff]
        %v977 = vld [vmem:[%s955 + $0xa8] sm:$0x11]
        %vm978 = vsmask.f32 7424
        %v980 = vshrl.u32 %v951, 16
        %v982 = vshll.u32 %v951, 16
        %v984 = vrot.slane %v982, 1
        %v985 = vor.u32 %v980, %v984
        %v987 = vshll.u32 %v953, 16
        %v989 = vrot.slane %v987, 1
        %v990 = vsel %vm978, %v985, %v989
        %v992 = vshrl.u32 %v952, 16
        %v994 = vshll.u32 %v952, 16
        %v996 = vrot.slane %v994, 1
        %v997 = vor.u32 %v992, %v996
        %v999 = vshll.u32 %v954, 16
        %v1001 = vrot.slane %v999, 1
        %v1002 = vsel %vm978, %v997, %v1001
        %v1026 = vunpack.c.l.b16 %v956
        %v1027 = vunpack.c.h.b16 %v956
        %v1028 = vunpack.c.l.b16 %v957
        %v1029 = vunpack.c.h.b16 %v957
        %v1030 = vunpack.c.l.b16 %v958
        %v1031 = vunpack.c.h.b16 %v958
        %v1032 = vunpack.c.l.b16 %v959
        %v1033 = vunpack.c.h.b16 %v959
        %v1034 = vunpack.c.l.b16 %v960
        %v1035 = vunpack.c.h.b16 %v960
        %v1036 = vunpack.c.l.b16 %v961
        %v1037 = vunpack.c.h.b16 %v961
        %v1038 = vunpack.c.l.b16 %v962
        %v1039 = vunpack.c.h.b16 %v962
        %v1040 = vunpack.c.l.b16 %v963
        %v1041 = vunpack.c.h.b16 %v963
        %v1042 = vunpack.c.l.b16 %v964
        %v1043 = vunpack.c.h.b16 %v964
        %v1044 = vunpack.c.l.b16 %v965
        %v1045 = vunpack.c.h.b16 %v965
        %v1046 = vunpack.c.l.b16 %v966
        %v1047 = vunpack.c.h.b16 %v966
        %v1048 = vunpack.c.l.b16 %v967
        %v1049 = vunpack.c.h.b16 %v967
        %v1050 = vunpack.c.l.b16 %v968
        %v1051 = vunpack.c.h.b16 %v968
        %v1052 = vunpack.c.l.b16 %v969
        %v1053 = vunpack.c.h.b16 %v969
        %v1054 = vunpack.c.l.b16 %v970
        %v1055 = vunpack.c.h.b16 %v970
        %v1056 = vunpack.c.l.b16 %v971
        %v1057 = vunpack.c.h.b16 %v971
        %v1058 = vunpack.c.l.b16 %v972
        %v1059 = vunpack.c.h.b16 %v972
        %v1060 = vunpack.c.l.b16 %v973
        %v1061 = vunpack.c.h.b16 %v973
        %v1062 = vunpack.c.l.b16 %v974
        %v1063 = vunpack.c.h.b16 %v974
        %v1064 = vunpack.c.l.b16 %v975
        %v1065 = vunpack.c.h.b16 %v975
        %v1066 = vunpack.c.l.b16 %v976
        %v1067 = vunpack.c.h.b16 %v976
        %v1068 = vunpack.c.l.b16 %v977
        %v1069 = vunpack.c.h.b16 %v977
        %v1070 = vpack.c.b16 %v1028, %v1026
        %v1071 = vpack.c.b16 %v1029, %v1027
        %v1072 = vpack.c.b16 %v1032, %v1030
        %v1073 = vpack.c.b16 %v1033, %v1031
        %v1074 = vpack.c.b16 %v1036, %v1034
        %v1075 = vpack.c.b16 %v1037, %v1035
        %v1076 = vpack.c.b16 %v1040, %v1038
        %v1077 = vpack.c.b16 %v1041, %v1039
        %v1078 = vpack.c.b16 %v1044, %v1042
        %v1079 = vpack.c.b16 %v1045, %v1043
        %v1080 = vpack.c.b16 %v1048, %v1046
        %v1081 = vpack.c.b16 %v1049, %v1047
        %v1082 = vpack.c.b16 %v1052, %v1050
        %v1083 = vpack.c.b16 %v1053, %v1051
        %v1084 = vpack.c.b16 %v1056, %v1054
        %v1085 = vpack.c.b16 %v1057, %v1055
        %v1086 = vpack.c.b16 %v1060, %v1058
        %v1087 = vpack.c.b16 %v1061, %v1059
        %v1088 = vpack.c.b16 %v1064, %v1062
        %v1089 = vpack.c.b16 %v1065, %v1063
        %v1090 = vpack.c.b16 %v1068, %v1066
        %v1091 = vpack.c.b16 %v1069, %v1067
        %v1113 = vsel %vm731, %v1002, 0
        %v1116 = vsel %vm735, %v1090, 0
        %v1119 = vsel %vm735, %v1091, 0
        %1121 = vmatprep.subr.bf16.mxu0 %v1071
        %1122 = vmatpush1.bf16.msra.mxu0 %v1070
        %1123 = vmatprep.subr.bf16.mxu0 %v1073
        %1124 = vmatpush1.bf16.msra.mxu0 %v1072
        %1125 = vmatprep.subr.bf16.mxu0 %v1075
        %1126 = vmatpush1.bf16.msra.mxu0 %v1074
        %1127 = vmatprep.subr.bf16.mxu0 %v1077
        %1128 = vmatpush1.bf16.msra.mxu0 %v1076
        %1129 = vmatprep.subr.bf16.mxu0 %v1079
        %1130 = vmatpush1.bf16.msra.mxu0 %v1078
        %1131 = vmatprep.subr.bf16.mxu0 %v1081
        %1132 = vmatpush1.bf16.msra.mxu0 %v1080
        %1133 = vmatprep.subr.bf16.mxu0 %v1083
        %1134 = vmatpush1.bf16.msra.mxu0 %v1082
        %1135 = vmatprep.subr.bf16.mxu0 %v1085
        %1136 = vmatpush1.bf16.msra.mxu0 %v1084
        %1137 = vmatprep.subr.bf16.mxu0 %v1087
        %1138 = vmatpush1.bf16.msra.mxu0 %v1086
        %1139 = vmatprep.subr.bf16.mxu0 %v1089
        %1140 = vmatpush1.bf16.msra.mxu0 %v1088
        %1141 = vmatprep.subr.bf16.mxu0 %v1119
        %1142 = vmatpush1.bf16.msra.mxu0 %v1116
        %1143 = vmatprep.subr.bf16.mxu0 0
        %1144 = vmatpush1.bf16.msra.mxu0 0
        %1145 = vmatprep.subr.bf16.mxu0 0
        %1146 = vmatpush1.bf16.msra.mxu0 0
        %1147 = vmatprep.subr.bf16.mxu0 0
        %1148 = vmatpush1.bf16.msra.mxu0 0
        %1149 = vmatprep.subr.bf16.mxu0 0
        %1150 = vmatpush1.bf16.msra.mxu0 0
        %1151 = vmatprep.subr.bf16.mxu0 0
        %1152 = vmatpush1.bf16.msra.mxu0 0
        %1153 = vmatprep.mubr.bf16.mxu0 %v1113
        %1154 = vmatmul.mubr.bf16.gmra.mrb[0].mxu0 %v990
        %v1155 = vpop.f32.mrb[0].mxu0
        %v1156 = vadd.f32 0.0, %v1155
        %v1157 = vpop.f32.mrb[0].mxu0
        %v1158 = vadd.f32 0.0, %v1157
        %v1159 = vpop.f32.mrb[0].mxu0
        %v1160 = vadd.f32 0.0, %v1159
        %v1161 = vpop.f32.mrb[0].mxu0
        %v1162 = vadd.f32 0.0, %v1161
        %1163 = vdwg.mxu0
        %v1164 = vadd.f32 %v937, %v1156
        %v1165 = vadd.f32 %v939, %v1158
        %v1166 = vadd.f32 %v941, %v1160
        %v1167 = vadd.f32 %v943, %v1162
        %v1168 = vld [vmem:[%s593] sm:$0xfe]
        %v1169 = vld [vmem:[%s593 + $0x8] sm:$0xfe]
        %v1170 = vld [vmem:[%s593 + $0x10] sm:$0xff]
        %v1171 = vld [vmem:[%s593 + $0x18] sm:$0xff]
        %v1172 = vld [vmem:[%s593 + $0x20] sm:$0x1]
        %v1173 = vld [vmem:[%s593 + $0x28] sm:$0x1]
        %v1174 = vpack.c.bf16 %v1170, %v1168
        %v1175 = vpack.c.bf16 %v1171, %v1169
        %v1176 = vpack.c.bf16 %v1172, %v1172
        %v1177 = vpack.c.bf16 %v1173, %v1173
        %s1178 = scalar_lea.vmem %s1, 528
        %v1179 = vld [vmem:[%s1178] sm:$0xff]
        %v1180 = vld [vmem:[%s1178 + $0x8] sm:$0xff]
        %v1181 = vld [vmem:[%s1178 + $0x10] sm:$0xff]
        %v1182 = vld [vmem:[%s1178 + $0x18] sm:$0xff]
        %v1183 = vld [vmem:[%s1178 + $0x20] sm:$0xff]
        %v1184 = vld [vmem:[%s1178 + $0x28] sm:$0xff]
        %v1185 = vld [vmem:[%s1178 + $0x30] sm:$0xff]
        %v1186 = vld [vmem:[%s1178 + $0x38] sm:$0xff]
        %v1187 = vld [vmem:[%s1178 + $0x40] sm:$0xff]
        %v1188 = vld [vmem:[%s1178 + $0x48] sm:$0xff]
        %v1189 = vld [vmem:[%s1178 + $0x50] sm:$0xff]
        %v1190 = vld [vmem:[%s1178 + $0x58] sm:$0xff]
        %v1191 = vld [vmem:[%s1178 + $0x60] sm:$0xff]
        %v1192 = vld [vmem:[%s1178 + $0x68] sm:$0xff]
        %v1193 = vld [vmem:[%s1178 + $0x70] sm:$0xff]
        %v1194 = vld [vmem:[%s1178 + $0x78] sm:$0xff]
        %v1195 = vld [vmem:[%s1178 + $0x80] sm:$0xff]
        %v1196 = vld [vmem:[%s1178 + $0x88] sm:$0xff]
        %v1197 = vld [vmem:[%s1178 + $0x90] sm:$0xff]
        %v1198 = vld [vmem:[%s1178 + $0x98] sm:$0xff]
        %v1199 = vld [vmem:[%s1178 + $0xa0] sm:$0xff]
        %v1200 = vld [vmem:[%s1178 + $0xa8] sm:$0x11]
        %v1202 = vshrl.u32 %v1174, 16
        %v1204 = vshll.u32 %v1174, 16
        %v1206 = vrot.slane %v1204, 1
        %v1207 = vor.u32 %v1202, %v1206
        %v1209 = vshll.u32 %v1176, 16
        %v1211 = vrot.slane %v1209, 1
        %v1212 = vsel %vm978, %v1207, %v1211
        %v1214 = vshrl.u32 %v1175, 16
        %v1216 = vshll.u32 %v1175, 16
        %v1218 = vrot.slane %v1216, 1
        %v1219 = vor.u32 %v1214, %v1218
        %v1221 = vshll.u32 %v1177, 16
        %v1223 = vrot.slane %v1221, 1
        %v1224 = vsel %vm978, %v1219, %v1223
        %v1248 = vunpack.c.l.b16 %v1179
        %v1249 = vunpack.c.h.b16 %v1179
        %v1250 = vunpack.c.l.b16 %v1180
        %v1251 = vunpack.c.h.b16 %v1180
        %v1252 = vunpack.c.l.b16 %v1181
        %v1253 = vunpack.c.h.b16 %v1181
        %v1254 = vunpack.c.l.b16 %v1182
        %v1255 = vunpack.c.h.b16 %v1182
        %v1256 = vunpack.c.l.b16 %v1183
        %v1257 = vunpack.c.h.b16 %v1183
        %v1258 = vunpack.c.l.b16 %v1184
        %v1259 = vunpack.c.h.b16 %v1184
        %v1260 = vunpack.c.l.b16 %v1185
        %v1261 = vunpack.c.h.b16 %v1185
        %v1262 = vunpack.c.l.b16 %v1186
        %v1263 = vunpack.c.h.b16 %v1186
        %v1264 = vunpack.c.l.b16 %v1187
        %v1265 = vunpack.c.h.b16 %v1187
        %v1266 = vunpack.c.l.b16 %v1188
        %v1267 = vunpack.c.h.b16 %v1188
        %v1268 = vunpack.c.l.b16 %v1189
        %v1269 = vunpack.c.h.b16 %v1189
        %v1270 = vunpack.c.l.b16 %v1190
        %v1271 = vunpack.c.h.b16 %v1190
        %v1272 = vunpack.c.l.b16 %v1191
        %v1273 = vunpack.c.h.b16 %v1191
        %v1274 = vunpack.c.l.b16 %v1192
        %v1275 = vunpack.c.h.b16 %v1192
        %v1276 = vunpack.c.l.b16 %v1193
        %v1277 = vunpack.c.h.b16 %v1193
        %v1278 = vunpack.c.l.b16 %v1194
        %v1279 = vunpack.c.h.b16 %v1194
        %v1280 = vunpack.c.l.b16 %v1195
        %v1281 = vunpack.c.h.b16 %v1195
        %v1282 = vunpack.c.l.b16 %v1196
        %v1283 = vunpack.c.h.b16 %v1196
        %v1284 = vunpack.c.l.b16 %v1197
        %v1285 = vunpack.c.h.b16 %v1197
        %v1286 = vunpack.c.l.b16 %v1198
        %v1287 = vunpack.c.h.b16 %v1198
        %v1288 = vunpack.c.l.b16 %v1199
        %v1289 = vunpack.c.h.b16 %v1199
        %v1290 = vunpack.c.l.b16 %v1200
        %v1291 = vunpack.c.h.b16 %v1200
        %v1292 = vpack.c.b16 %v1250, %v1248
        %v1293 = vpack.c.b16 %v1251, %v1249
        %v1294 = vpack.c.b16 %v1254, %v1252
        %v1295 = vpack.c.b16 %v1255, %v1253
        %v1296 = vpack.c.b16 %v1258, %v1256
        %v1297 = vpack.c.b16 %v1259, %v1257
        %v1298 = vpack.c.b16 %v1262, %v1260
        %v1299 = vpack.c.b16 %v1263, %v1261
        %v1300 = vpack.c.b16 %v1266, %v1264
        %v1301 = vpack.c.b16 %v1267, %v1265
        %v1302 = vpack.c.b16 %v1270, %v1268
        %v1303 = vpack.c.b16 %v1271, %v1269
        %v1304 = vpack.c.b16 %v1274, %v1272
        %v1305 = vpack.c.b16 %v1275, %v1273
        %v1306 = vpack.c.b16 %v1278, %v1276
        %v1307 = vpack.c.b16 %v1279, %v1277
        %v1308 = vpack.c.b16 %v1282, %v1280
        %v1309 = vpack.c.b16 %v1283, %v1281
        %v1310 = vpack.c.b16 %v1286, %v1284
        %v1311 = vpack.c.b16 %v1287, %v1285
        %v1312 = vpack.c.b16 %v1290, %v1288
        %v1313 = vpack.c.b16 %v1291, %v1289
        %v1335 = vsel %vm731, %v1224, 0
        %v1338 = vsel %vm735, %v1312, 0
        %v1341 = vsel %vm735, %v1313, 0
        %1343 = vmatprep.subr.bf16.mxu0 %v1293
        %1344 = vmatpush1.bf16.msra.mxu0 %v1292
        %1345 = vmatprep.subr.bf16.mxu0 %v1295
        %1346 = vmatpush1.bf16.msra.mxu0 %v1294
        %1347 = vmatprep.subr.bf16.mxu0 %v1297
        %1348 = vmatpush1.bf16.msra.mxu0 %v1296
        %1349 = vmatprep.subr.bf16.mxu0 %v1299
        %1350 = vmatpush1.bf16.msra.mxu0 %v1298
        %1351 = vmatprep.subr.bf16.mxu0 %v1301
        %1352 = vmatpush1.bf16.msra.mxu0 %v1300
        %1353 = vmatprep.subr.bf16.mxu0 %v1303
        %1354 = vmatpush1.bf16.msra.mxu0 %v1302
        %1355 = vmatprep.subr.bf16.mxu0 %v1305
        %1356 = vmatpush1.bf16.msra.mxu0 %v1304
        %1357 = vmatprep.subr.bf16.mxu0 %v1307
        %1358 = vmatpush1.bf16.msra.mxu0 %v1306
        %1359 = vmatprep.subr.bf16.mxu0 %v1309
        %1360 = vmatpush1.bf16.msra.mxu0 %v1308
        %1361 = vmatprep.subr.bf16.mxu0 %v1311
        %1362 = vmatpush1.bf16.msra.mxu0 %v1310
        %1363 = vmatprep.subr.bf16.mxu0 %v1341
        %1364 = vmatpush1.bf16.msra.mxu0 %v1338
        %1365 = vmatprep.subr.bf16.mxu0 0
        %1366 = vmatpush1.bf16.msra.mxu0 0
        %1367 = vmatprep.subr.bf16.mxu0 0
        %1368 = vmatpush1.bf16.msra.mxu0 0
        %1369 = vmatprep.subr.bf16.mxu0 0
        %1370 = vmatpush1.bf16.msra.mxu0 0
        %1371 = vmatprep.subr.bf16.mxu0 0
        %1372 = vmatpush1.bf16.msra.mxu0 0
        %1373 = vmatprep.subr.bf16.mxu0 0
        %1374 = vmatpush1.bf16.msra.mxu0 0
        %1375 = vmatprep.mubr.bf16.mxu0 %v1335
        %1376 = vmatmul.mubr.bf16.gmra.mrb[0].mxu0 %v1212
        %v1377 = vpop.f32.mrb[0].mxu0
        %v1378 = vadd.f32 0.0, %v1377
        %v1379 = vpop.f32.mrb[0].mxu0
        %v1380 = vadd.f32 0.0, %v1379
        %v1381 = vpop.f32.mrb[0].mxu0
        %v1382 = vadd.f32 0.0, %v1381
        %v1383 = vpop.f32.mrb[0].mxu0
        %v1384 = vadd.f32 0.0, %v1383
        %1385 = vdwg.mxu0
        %v1386 = vadd.f32 %v1164, %v1378
        %v1387 = vadd.f32 %v1165, %v1380
        %v1388 = vadd.f32 %v1166, %v1382
        %v1389 = vadd.f32 %v1167, %v1384
        %v1390 = vld [vmem:[%s2] sm:$0x3]
        %v1392 = vlaneseq
        %v1393 = vshrl.u32 %v1392, 7
        %v1394 = vsub.s32 0, %v1393
        %v1395 = vrot.slane %v1390, %v1394
        %v1396 = vlaneseq
        %v1397 = vshrl.u32 %v1396, 7
        %v1398 = vsub.s32 1, %v1397
        %v1399 = vrot.slane %v1390, %v1398
        %v1402 = vadd.f32 %v1386, %v1395
        %v1403 = vadd.f32 %v1387, %v1399
        %v1404 = vadd.f32 %v1388, %v1395
        %v1405 = vadd.f32 %v1389, %v1399
        %vm1406 = vcmp.ge.f32.partialorder %v1402, 0.0
        %vm1407 = vcmp.ge.f32.partialorder %v1403, 0.0
        %vm1408 = vcmp.ge.f32.partialorder %v1404, 0.0
        %vm1409 = vcmp.ge.f32.partialorder %v1405, 0.0
        %v1410 = vmul.f32 %v1402, 0.2
        %v1411 = vmul.f32 %v1403, 0.2
        %v1412 = vmul.f32 %v1404, 0.2
        %v1413 = vmul.f32 %v1405, 0.2
        %v1414 = vsel %vm1406, %v1402, %v1410
        %v1415 = vsel %vm1407, %v1403, %v1411
        %v1416 = vsel %vm1408, %v1404, %v1412
        %v1417 = vsel %vm1409, %v1405, %v1413
        %v1420 = vcombine.low %v1414, %v1415
        %v1422 = vunpack.c.l.s4 1966171168
        %v1423 = vunpack.c.0.s8 %v1422
        %v1424 = vlaneseq
        %v1425 = vshrl.u32 %v1424, 7
        %v1426 = vsub.s32 %v1423, %v1425
        %v1427 = vrot.slane %v1420, %v1426
        %v1429 = vunpack.c.l.s4 1966171168
        %v1430 = vunpack.c.0.s8 %v1429
        %v1431 = vlaneseq
        %v1432 = vshrl.u32 %v1431, 7
        %v1433 = vsub.s32 %v1430, %v1432
        %v1434 = vrot.slane %v1427, %v1433
        %1435 = vrot.lane.b32.xlu0 %v1434, 16
        %v1436 = vpop.permute.xlu0 %1435
        %v1437 = vrot.slane %v1436, 7
        %vm1438 = vcmask 130048
        %v1439 = vsel %vm1438, %v1437, %v1436
        %s1441 = scalar_lea.vmem [#allocation2], 48
        %v1442 = vlaneseq
        %vm1443 = vcmp.ge.s32.totalorder %v1442, 16
        %vm1444 = vcmp.lt.s32.totalorder %v1442, 272
        %vm1445 = vmand %vm1443, %vm1444
        %1446 = vst.msk [vmem:[%s1441] ss:$8 sm:$0x7] %vm1445, %v1439
        %1447 = vst.msk [vmem:[%s1441] ss:$8 sm:$0x0] %vm1445, %v1439
        %v1448 = vcombine.high %v1427, %v1427
        %v1450 = vunpack.c.l.s4 1966171168
        %v1451 = vunpack.c.0.s8 %v1450
        %v1452 = vlaneseq
        %v1453 = vshrl.u32 %v1452, 7
        %v1454 = vsub.s32 %v1451, %v1453
        %v1455 = vrot.slane %v1448, %v1454
        %1456 = vrot.lane.b32.xlu0 %v1455, 16
        %v1457 = vpop.permute.xlu0 %1456
        %v1458 = vrot.slane %v1457, 7
        %v1459 = vsel %vm1438, %v1458, %v1457
        %s1461 = scalar_lea.vmem [#allocation2], 1
        %1462 = vst.msk [vmem:[%s1461] ss:$8 sm:$0x7] %vm1445, %v1459
        %1463 = vst.msk [vmem:[%s1461] ss:$8 sm:$0x0] %vm1445, %v1459
        %v1464 = vcombine.high %v1434, %v1434
        %1465 = vrot.lane.b32.xlu0 %v1464, 16
        %v1466 = vpop.permute.xlu0 %1465
        %v1467 = vrot.slane %v1466, 7
        %v1468 = vsel %vm1438, %v1467, %v1466
        %s1470 = scalar_lea.vmem %s1441, 1 [#allocation2]
        %1471 = vst.msk [vmem:[%s1470] ss:$8 sm:$0x7] %vm1445, %v1468
        %1472 = vst.msk [vmem:[%s1470] ss:$8 sm:$0x0] %vm1445, %v1468
        %v1473 = vcombine.high %v1455, %v1455
        %1474 = vrot.lane.b32.xlu0 %v1473, 16
        %v1475 = vpop.permute.xlu0 %1474
        %v1476 = vrot.slane %v1475, 7
        %v1477 = vsel %vm1438, %v1476, %v1475
        %s1479 = scalar_lea.vmem [#allocation2], 2
        %1480 = vst.msk [vmem:[%s1479] ss:$8 sm:$0x7] %vm1445, %v1477
        %1481 = vst.msk [vmem:[%s1479] ss:$8 sm:$0x0] %vm1445, %v1477
        %v1482 = vcombine.high %v1414, %v1415
        %v1484 = vunpack.c.l.s4 1966171168
        %v1485 = vunpack.c.0.s8 %v1484
        %v1486 = vlaneseq
        %v1487 = vshrl.u32 %v1486, 7
        %v1488 = vsub.s32 %v1485, %v1487
        %v1489 = vrot.slane %v1482, %v1488
        %v1491 = vunpack.c.l.s4 1966171168
        %v1492 = vunpack.c.0.s8 %v1491
        %v1493 = vlaneseq
        %v1494 = vshrl.u32 %v1493, 7
        %v1495 = vsub.s32 %v1492, %v1494
        %v1496 = vrot.slane %v1489, %v1495
        %1497 = vrot.lane.b32.xlu0 %v1496, 16
        %v1498 = vpop.permute.xlu0 %1497
        %v1499 = vrot.slane %v1498, 7
        %v1500 = vsel %vm1438, %v1499, %v1498
        %s1502 = scalar_lea.vmem %s1441, 2 [#allocation2]
        %1503 = vst.msk [vmem:[%s1502] ss:$8 sm:$0x7] %vm1445, %v1500
        %1504 = vst.msk [vmem:[%s1502] ss:$8 sm:$0x0] %vm1445, %v1500
        %v1505 = vcombine.high %v1489, %v1489
        %v1507 = vunpack.c.l.s4 1966171168
        %v1508 = vunpack.c.0.s8 %v1507
        %v1509 = vlaneseq
        %v1510 = vshrl.u32 %v1509, 7
        %v1511 = vsub.s32 %v1508, %v1510
        %v1512 = vrot.slane %v1505, %v1511
        %1513 = vrot.lane.b32.xlu0 %v1512, 16
        %v1514 = vpop.permute.xlu0 %1513
        %v1515 = vrot.slane %v1514, 7
        %v1516 = vsel %vm1438, %v1515, %v1514
        %s1518 = scalar_lea.vmem [#allocation2], 3
        %1519 = vst.msk [vmem:[%s1518] ss:$8 sm:$0x7] %vm1445, %v1516
        %1520 = vst.msk [vmem:[%s1518] ss:$8 sm:$0x0] %vm1445, %v1516
        %v1521 = vcombine.high %v1496, %v1496
        %1522 = vrot.lane.b32.xlu0 %v1521, 16
        %v1523 = vpop.permute.xlu0 %1522
        %v1524 = vrot.slane %v1523, 7
        %v1525 = vsel %vm1438, %v1524, %v1523
        %s1527 = scalar_lea.vmem %s1441, 3 [#allocation2]
        %1528 = vst.msk [vmem:[%s1527] ss:$8 sm:$0x7] %vm1445, %v1525
        %1529 = vst.msk [vmem:[%s1527] ss:$8 sm:$0x0] %vm1445, %v1525
        %v1530 = vcombine.high %v1512, %v1512
        %1531 = vrot.lane.b32.xlu0 %v1530, 16
        %v1532 = vpop.permute.xlu0 %1531
        %v1533 = vrot.slane %v1532, 7
        %v1534 = vsel %vm1438, %v1533, %v1532
        %s1536 = scalar_lea.vmem [#allocation2], 4
        %1537 = vst.msk [vmem:[%s1536] ss:$8 sm:$0x7] %vm1445, %v1534
        %1538 = vst.msk [vmem:[%s1536] ss:$8 sm:$0x0] %vm1445, %v1534
        %v1541 = vcombine.low %v1416, %v1417
        %v1543 = vunpack.c.l.s4 1966171168
        %v1544 = vunpack.c.0.s8 %v1543
        %v1545 = vlaneseq
        %v1546 = vshrl.u32 %v1545, 7
        %v1547 = vsub.s32 %v1544, %v1546
        %v1548 = vrot.slane %v1541, %v1547
        %v1550 = vunpack.c.l.s4 1966171168
        %v1551 = vunpack.c.0.s8 %v1550
        %v1552 = vlaneseq
        %v1553 = vshrl.u32 %v1552, 7
        %v1554 = vsub.s32 %v1551, %v1553
        %v1555 = vrot.slane %v1548, %v1554
        %1556 = vrot.lane.b32.xlu0 %v1555, 16
        %v1557 = vpop.permute.xlu0 %1556
        %v1558 = vrot.slane %v1557, 7
        %v1559 = vsel %vm1438, %v1558, %v1557
        %s1561 = scalar_lea.vmem %s1441, 4 [#allocation2]
        %1562 = vst.msk [vmem:[%s1561] ss:$8 sm:$0x7] %vm1445, %v1559
        %1563 = vst.msk [vmem:[%s1561] ss:$8 sm:$0x0] %vm1445, %v1559
        %v1564 = vcombine.high %v1548, %v1548
        %v1566 = vunpack.c.l.s4 1966171168
        %v1567 = vunpack.c.0.s8 %v1566
        %v1568 = vlaneseq
        %v1569 = vshrl.u32 %v1568, 7
        %v1570 = vsub.s32 %v1567, %v1569
        %v1571 = vrot.slane %v1564, %v1570
        %1572 = vrot.lane.b32.xlu0 %v1571, 16
        %v1573 = vpop.permute.xlu0 %1572
        %v1574 = vrot.slane %v1573, 7
        %v1575 = vsel %vm1438, %v1574, %v1573
        %s1577 = scalar_lea.vmem [#allocation2], 5
        %1578 = vst.msk [vmem:[%s1577] ss:$8 sm:$0x7] %vm1445, %v1575
        %1579 = vst.msk [vmem:[%s1577] ss:$8 sm:$0x0] %vm1445, %v1575
        %v1580 = vcombine.high %v1555, %v1555
        %1581 = vrot.lane.b32.xlu0 %v1580, 16
        %v1582 = vpop.permute.xlu0 %1581
        %v1583 = vrot.slane %v1582, 7
        %v1584 = vsel %vm1438, %v1583, %v1582
        %s1586 = scalar_lea.vmem %s1441, 5 [#allocation2]
        %1587 = vst.msk [vmem:[%s1586] ss:$8 sm:$0x7] %vm1445, %v1584
        %1588 = vst.msk [vmem:[%s1586] ss:$8 sm:$0x0] %vm1445, %v1584
        %v1589 = vcombine.high %v1571, %v1571
        %1590 = vrot.lane.b32.xlu0 %v1589, 16
        %v1591 = vpop.permute.xlu0 %1590
        %v1592 = vrot.slane %v1591, 7
        %v1593 = vsel %vm1438, %v1592, %v1591
        %s1595 = scalar_lea.vmem [#allocation2], 6
        %1596 = vst.msk [vmem:[%s1595] ss:$8 sm:$0x7] %vm1445, %v1593
        %1597 = vst.msk [vmem:[%s1595] ss:$8 sm:$0x0] %vm1445, %v1593
        %v1598 = vcombine.high %v1416, %v1417
        %v1600 = vunpack.c.l.s4 1966171168
        %v1601 = vunpack.c.0.s8 %v1600
        %v1602 = vlaneseq
        %v1603 = vshrl.u32 %v1602, 7
        %v1604 = vsub.s32 %v1601, %v1603
        %v1605 = vrot.slane %v1598, %v1604
        %v1607 = vunpack.c.l.s4 1966171168
        %v1608 = vunpack.c.0.s8 %v1607
        %v1609 = vlaneseq
        %v1610 = vshrl.u32 %v1609, 7
        %v1611 = vsub.s32 %v1608, %v1610
        %v1612 = vrot.slane %v1605, %v1611
        %1613 = vrot.lane.b32.xlu0 %v1612, 16
        %v1614 = vpop.permute.xlu0 %1613
        %v1615 = vrot.slane %v1614, 7
        %v1616 = vsel %vm1438, %v1615, %v1614
        %s1618 = scalar_lea.vmem %s1441, 6 [#allocation2]
        %1619 = vst.msk [vmem:[%s1618] ss:$8 sm:$0x7] %vm1445, %v1616
        %1620 = vst.msk [vmem:[%s1618] ss:$8 sm:$0x0] %vm1445, %v1616
        %v1621 = vcombine.high %v1605, %v1605
        %v1623 = vunpack.c.l.s4 1966171168
        %v1624 = vunpack.c.0.s8 %v1623
        %v1625 = vlaneseq
        %v1626 = vshrl.u32 %v1625, 7
        %v1627 = vsub.s32 %v1624, %v1626
        %v1628 = vrot.slane %v1621, %v1627
        %1629 = vrot.lane.b32.xlu0 %v1628, 16
        %v1630 = vpop.permute.xlu0 %1629
        %v1631 = vrot.slane %v1630, 7
        %v1632 = vsel %vm1438, %v1631, %v1630
        %s1634 = scalar_lea.vmem [#allocation2], 7
        %1635 = vst.msk [vmem:[%s1634] ss:$8 sm:$0x7] %vm1445, %v1632
        %1636 = vst.msk [vmem:[%s1634] ss:$8 sm:$0x0] %vm1445, %v1632
        %v1637 = vcombine.high %v1612, %v1612
        %1638 = vrot.lane.b32.xlu0 %v1637, 16
        %v1639 = vpop.permute.xlu0 %1638
        %v1640 = vrot.slane %v1639, 7
        %v1641 = vsel %vm1438, %v1640, %v1639
        %s1643 = scalar_lea.vmem %s1441, 7 [#allocation2]
        %1644 = vst.msk [vmem:[%s1643] ss:$8 sm:$0x7] %vm1445, %v1641
        %1645 = vst.msk [vmem:[%s1643] ss:$8 sm:$0x0] %vm1445, %v1641
        %v1646 = vcombine.high %v1628, %v1628
        %1647 = vrot.lane.b32.xlu0 %v1646, 16
        %v1648 = vpop.permute.xlu0 %1647
        %v1649 = vrot.slane %v1648, 7
        %v1650 = vsel %vm1438, %v1649, %v1648
        %s1652 = scalar_lea.vmem [#allocation2], 24
        %1653 = vst.msk [vmem:[%s1652] ss:$8 sm:$0x7] %vm1445, %v1650
        %1654 = vst.msk [vmem:[%s1652] ss:$8 sm:$0x0] %vm1445, %v1650
        %v1655 = vld [vmem:[#allocation2] sm:$0xff]
        %v1656 = vld [vmem:[#allocation2 + $0x8] sm:$0xff]
        %v1657 = vld [vmem:[#allocation2 + $0x10] sm:$0xff]
        %v1658 = vpack.c.bf16 %v1655, %v1655
        %v1659 = vpack.c.bf16 %v1656, %v1656
        %v1660 = vpack.c.bf16 %v1657, %v1657
        %v1661 = vld [vmem:[#allocation6] sm:$0xff]
        %v1662 = vld [vmem:[#allocation6 + $0x8] sm:$0xff]
        %v1663 = vld [vmem:[#allocation6 + $0x10] sm:$0xff]
        %v1664 = vld [vmem:[#allocation6 + $0x18] sm:$0xff]
        %v1665 = vld [vmem:[#allocation6 + $0x20] sm:$0xff]
        %v1666 = vld [vmem:[#allocation6 + $0x28] sm:$0xff]
        %v1667 = vld [vmem:[#allocation6 + $0x30] sm:$0xff]
        %v1668 = vld [vmem:[#allocation6 + $0x38] sm:$0xff]
        %v1669 = vld [vmem:[#allocation6 + $0x40] sm:$0xff]
        %v1670 = vld [vmem:[#allocation6 + $0x48] sm:$0xff]
        %v1671 = vld [vmem:[#allocation6 + $0x50] sm:$0xff]
        %v1672 = vld [vmem:[#allocation6 + $0x58] sm:$0xff]
        %v1673 = vld [vmem:[#allocation6 + $0x60] sm:$0xff]
        %v1674 = vld [vmem:[#allocation6 + $0x68] sm:$0xff]
        %v1675 = vld [vmem:[#allocation6 + $0x70] sm:$0xff]
        %v1676 = vld [vmem:[#allocation6 + $0x78] sm:$0xff]
        %v1677 = vld [vmem:[#allocation6 + $0x80] sm:$0xff]
        %v1678 = vld [vmem:[#allocation6 + $0x88] sm:$0xff]
        %v1679 = vld [vmem:[#allocation6 + $0x90] sm:$0xff]
        %v1680 = vld [vmem:[#allocation6 + $0x98] sm:$0xff]
        %v1681 = vld [vmem:[#allocation6 + $0xa0] sm:$0xff]
        %v1682 = vld [vmem:[#allocation6 + $0xa8] sm:$0xff]
        %v1683 = vld [vmem:[#allocation6 + $0xb0] sm:$0xff]
        %v1684 = vld [vmem:[#allocation6 + $0xb8] sm:$0xff]
        %v1685 = vld [vmem:[#allocation6 + $0xc0] sm:$0xff]
        %v1686 = vld [vmem:[#allocation6 + $0xc8] sm:$0xff]
        %v1687 = vld [vmem:[#allocation6 + $0xd0] sm:$0xff]
        %v1688 = vld [vmem:[#allocation6 + $0xd8] sm:$0xff]
        %v1689 = vld [vmem:[#allocation6 + $0xe0] sm:$0xff]
        %v1690 = vld [vmem:[#allocation6 + $0xe8] sm:$0xff]
        %v1691 = vld [vmem:[#allocation6 + $0xf0] sm:$0xff]
        %v1692 = vld [vmem:[#allocation6 + $0xf8] sm:$0xff]
        %v1693 = vld [vmem:[#allocation6 + $0x100] sm:$0xff]
        %v1694 = vld [vmem:[#allocation6 + $0x108] sm:$0xff]
        %v1695 = vld [vmem:[#allocation6 + $0x110] sm:$0xff]
        %v1696 = vld [vmem:[#allocation6 + $0x118] sm:$0xff]
        %v1697 = vld [vmem:[%s1441] sm:$0xff]
        %v1698 = vld [vmem:[%s1441 + $0x8] sm:$0xff]
        %v1699 = vld [vmem:[%s1441 + $0x10] sm:$0xff]
        %v1700 = vpack.c.bf16 %v1697, %v1697
        %v1701 = vpack.c.bf16 %v1698, %v1698
        %v1702 = vpack.c.bf16 %v1699, %v1699
        %s1703 = scalar_lea.vmem [#allocation6], 288
        %v1704 = vld [vmem:[%s1703] sm:$0xff]
        %v1705 = vld [vmem:[%s1703 + $0x8] sm:$0xff]
        %v1706 = vld [vmem:[%s1703 + $0x10] sm:$0xff]
        %v1707 = vld [vmem:[%s1703 + $0x18] sm:$0xff]
        %v1708 = vld [vmem:[%s1703 + $0x20] sm:$0xff]
        %v1709 = vld [vmem:[%s1703 + $0x28] sm:$0xff]
        %v1710 = vld [vmem:[%s1703 + $0x30] sm:$0xff]
        %v1711 = vld [vmem:[%s1703 + $0x38] sm:$0xff]
        %v1712 = vld [vmem:[%s1703 + $0x40] sm:$0xff]
        %v1713 = vld [vmem:[%s1703 + $0x48] sm:$0xff]
        %v1714 = vld [vmem:[%s1703 + $0x50] sm:$0xff]
        %v1715 = vld [vmem:[%s1703 + $0x58] sm:$0xff]
        %v1716 = vld [vmem:[%s1703 + $0x60] sm:$0xff]
        %v1717 = vld [vmem:[%s1703 + $0x68] sm:$0xff]
        %v1718 = vld [vmem:[%s1703 + $0x70] sm:$0xff]
        %v1719 = vld [vmem:[%s1703 + $0x78] sm:$0xff]
        %v1720 = vld [vmem:[%s1703 + $0x80] sm:$0xff]
        %v1721 = vld [vmem:[%s1703 + $0x88] sm:$0xff]
        %v1722 = vld [vmem:[%s1703 + $0x90] sm:$0xff]
        %v1723 = vld [vmem:[%s1703 + $0x98] sm:$0xff]
        %v1724 = vld [vmem:[%s1703 + $0xa0] sm:$0xff]
        %v1725 = vld [vmem:[%s1703 + $0xa8] sm:$0xff]
        %v1726 = vld [vmem:[%s1703 + $0xb0] sm:$0xff]
        %v1727 = vld [vmem:[%s1703 + $0xb8] sm:$0xff]
        %v1728 = vld [vmem:[%s1703 + $0xc0] sm:$0xff]
        %v1729 = vld [vmem:[%s1703 + $0xc8] sm:$0xff]
        %v1730 = vld [vmem:[%s1703 + $0xd0] sm:$0xff]
        %v1731 = vld [vmem:[%s1703 + $0xd8] sm:$0xff]
        %v1732 = vld [vmem:[%s1703 + $0xe0] sm:$0xff]
        %v1733 = vld [vmem:[%s1703 + $0xe8] sm:$0xff]
        %v1734 = vld [vmem:[%s1703 + $0xf0] sm:$0xff]
        %v1735 = vld [vmem:[%s1703 + $0xf8] sm:$0xff]
        %v1736 = vld [vmem:[%s1703 + $0x100] sm:$0xff]
        %v1737 = vld [vmem:[%s1703 + $0x108] sm:$0xff]
        %v1738 = vld [vmem:[%s1703 + $0x110] sm:$0xff]
        %v1739 = vld [vmem:[%s1703 + $0x118] sm:$0xff]
        %v1776 = vunpack.c.l.b16 %v1704
        %v1777 = vunpack.c.h.b16 %v1704
        %v1778 = vunpack.c.l.b16 %v1705
        %v1779 = vunpack.c.h.b16 %v1705
        %v1780 = vunpack.c.l.b16 %v1706
        %v1781 = vunpack.c.h.b16 %v1706
        %v1782 = vunpack.c.l.b16 %v1707
        %v1783 = vunpack.c.h.b16 %v1707
        %v1784 = vunpack.c.l.b16 %v1708
        %v1785 = vunpack.c.h.b16 %v1708
        %v1786 = vunpack.c.l.b16 %v1709
        %v1787 = vunpack.c.h.b16 %v1709
        %v1788 = vunpack.c.l.b16 %v1710
        %v1789 = vunpack.c.h.b16 %v1710
        %v1790 = vunpack.c.l.b16 %v1711
        %v1791 = vunpack.c.h.b16 %v1711
        %v1792 = vunpack.c.l.b16 %v1712
        %v1793 = vunpack.c.h.b16 %v1712
        %v1794 = vunpack.c.l.b16 %v1713
        %v1795 = vunpack.c.h.b16 %v1713
        %v1796 = vunpack.c.l.b16 %v1714
        %v1797 = vunpack.c.h.b16 %v1714
        %v1798 = vunpack.c.l.b16 %v1715
        %v1799 = vunpack.c.h.b16 %v1715
        %v1800 = vunpack.c.l.b16 %v1716
        %v1801 = vunpack.c.h.b16 %v1716
        %v1802 = vunpack.c.l.b16 %v1717
        %v1803 = vunpack.c.h.b16 %v1717
        %v1804 = vunpack.c.l.b16 %v1718
        %v1805 = vunpack.c.h.b16 %v1718
        %v1806 = vunpack.c.l.b16 %v1719
        %v1807 = vunpack.c.h.b16 %v1719
        %v1808 = vunpack.c.l.b16 %v1720
        %v1809 = vunpack.c.h.b16 %v1720
        %v1810 = vunpack.c.l.b16 %v1721
        %v1811 = vunpack.c.h.b16 %v1721
        %v1812 = vunpack.c.l.b16 %v1722
        %v1813 = vunpack.c.h.b16 %v1722
        %v1814 = vunpack.c.l.b16 %v1723
        %v1815 = vunpack.c.h.b16 %v1723
        %v1816 = vunpack.c.l.b16 %v1724
        %v1817 = vunpack.c.h.b16 %v1724
        %v1818 = vunpack.c.l.b16 %v1725
        %v1819 = vunpack.c.h.b16 %v1725
        %v1820 = vunpack.c.l.b16 %v1726
        %v1821 = vunpack.c.h.b16 %v1726
        %v1822 = vunpack.c.l.b16 %v1727
        %v1823 = vunpack.c.h.b16 %v1727
        %v1824 = vunpack.c.l.b16 %v1728
        %v1825 = vunpack.c.h.b16 %v1728
        %v1826 = vunpack.c.l.b16 %v1729
        %v1827 = vunpack.c.h.b16 %v1729
        %v1828 = vunpack.c.l.b16 %v1730
        %v1829 = vunpack.c.h.b16 %v1730
        %v1830 = vunpack.c.l.b16 %v1731
        %v1831 = vunpack.c.h.b16 %v1731
        %v1832 = vunpack.c.l.b16 %v1732
        %v1833 = vunpack.c.h.b16 %v1732
        %v1834 = vunpack.c.l.b16 %v1733
        %v1835 = vunpack.c.h.b16 %v1733
        %v1836 = vunpack.c.l.b16 %v1734
        %v1837 = vunpack.c.h.b16 %v1734
        %v1838 = vunpack.c.l.b16 %v1735
        %v1839 = vunpack.c.h.b16 %v1735
        %v1840 = vunpack.c.l.b16 %v1736
        %v1841 = vunpack.c.h.b16 %v1736
        %v1842 = vunpack.c.l.b16 %v1737
        %v1843 = vunpack.c.h.b16 %v1737
        %v1844 = vunpack.c.l.b16 %v1738
        %v1845 = vunpack.c.h.b16 %v1738
        %v1846 = vunpack.c.l.b16 %v1739
        %v1847 = vunpack.c.h.b16 %v1739
        %v1848 = vpack.c.b16 %v1778, %v1776
        %v1849 = vpack.c.b16 %v1779, %v1777
        %v1850 = vpack.c.b16 %v1782, %v1780
        %v1851 = vpack.c.b16 %v1783, %v1781
        %v1852 = vpack.c.b16 %v1786, %v1784
        %v1853 = vpack.c.b16 %v1787, %v1785
        %v1854 = vpack.c.b16 %v1790, %v1788
        %v1855 = vpack.c.b16 %v1791, %v1789
        %v1856 = vpack.c.b16 %v1794, %v1792
        %v1857 = vpack.c.b16 %v1795, %v1793
        %v1858 = vpack.c.b16 %v1798, %v1796
        %v1859 = vpack.c.b16 %v1799, %v1797
        %v1860 = vpack.c.b16 %v1802, %v1800
        %v1861 = vpack.c.b16 %v1803, %v1801
        %v1862 = vpack.c.b16 %v1806, %v1804
        %v1863 = vpack.c.b16 %v1807, %v1805
        %v1864 = vpack.c.b16 %v1810, %v1808
        %v1865 = vpack.c.b16 %v1811, %v1809
        %v1866 = vpack.c.b16 %v1814, %v1812
        %v1867 = vpack.c.b16 %v1815, %v1813
        %v1868 = vpack.c.b16 %v1818, %v1816
        %v1869 = vpack.c.b16 %v1819, %v1817
        %v1870 = vpack.c.b16 %v1822, %v1820
        %v1871 = vpack.c.b16 %v1823, %v1821
        %v1872 = vpack.c.b16 %v1826, %v1824
        %v1873 = vpack.c.b16 %v1827, %v1825
        %v1874 = vpack.c.b16 %v1830, %v1828
        %v1875 = vpack.c.b16 %v1831, %v1829
        %v1876 = vpack.c.b16 %v1834, %v1832
        %v1877 = vpack.c.b16 %v1835, %v1833
        %v1878 = vpack.c.b16 %v1838, %v1836
        %v1879 = vpack.c.b16 %v1839, %v1837
        %v1880 = vpack.c.b16 %v1842, %v1840
        %v1881 = vpack.c.b16 %v1843, %v1841
        %v1882 = vpack.c.b16 %v1846, %v1844
        %v1883 = vpack.c.b16 %v1847, %v1845
        %v1921 = vsel %vm542, %v1702, 0
        %1923 = vmatprep.subr.bf16.mxu0 %v1849
        %1924 = vmatpush1.bf16.msra.mxu0 %v1848
        %1925 = vmatprep.subr.bf16.mxu0 %v1851
        %1926 = vmatpush1.bf16.msra.mxu0 %v1850
        %1927 = vmatprep.subr.bf16.mxu0 %v1853
        %1928 = vmatpush1.bf16.msra.mxu0 %v1852
        %1929 = vmatprep.subr.bf16.mxu0 %v1855
        %1930 = vmatpush1.bf16.msra.mxu0 %v1854
        %1931 = vmatprep.subr.bf16.mxu0 %v1857
        %1932 = vmatpush1.bf16.msra.mxu0 %v1856
        %1933 = vmatprep.subr.bf16.mxu0 %v1859
        %1934 = vmatpush1.bf16.msra.mxu0 %v1858
        %1935 = vmatprep.subr.bf16.mxu0 %v1861
        %1936 = vmatpush1.bf16.msra.mxu0 %v1860
        %1937 = vmatprep.subr.bf16.mxu0 %v1863
        %1938 = vmatpush1.bf16.msra.mxu0 %v1862
        %1939 = vmatprep.subr.bf16.mxu0 %v1865
        %1940 = vmatpush1.bf16.msra.mxu0 %v1864
        %1941 = vmatprep.subr.bf16.mxu0 %v1867
        %1942 = vmatpush1.bf16.msra.mxu0 %v1866
        %1943 = vmatprep.subr.bf16.mxu0 %v1869
        %1944 = vmatpush1.bf16.msra.mxu0 %v1868
        %1945 = vmatprep.subr.bf16.mxu0 %v1871
        %1946 = vmatpush1.bf16.msra.mxu0 %v1870
        %1947 = vmatprep.subr.bf16.mxu0 %v1873
        %1948 = vmatpush1.bf16.msra.mxu0 %v1872
        %1949 = vmatprep.subr.bf16.mxu0 %v1875
        %1950 = vmatpush1.bf16.msra.mxu0 %v1874
        %1951 = vmatprep.subr.bf16.mxu0 %v1877
        %1952 = vmatpush1.bf16.msra.mxu0 %v1876
        %1953 = vmatprep.subr.bf16.mxu0 %v1879
        %1954 = vmatpush1.bf16.msra.mxu0 %v1878
        %1955 = vmatprep.mubr.bf16.mxu0 %v1701
        %1956 = vmatmul.mubr.bf16.gmra.mrb[0].mxu0 %v1700
        %v1957 = vpop.f32.mrb[0].mxu0
        %v1958 = vadd.f32 0.0, %v1957
        %v1959 = vpop.f32.mrb[0].mxu0
        %v1960 = vadd.f32 0.0, %v1959
        %v1961 = vpop.f32.mrb[0].mxu0
        %v1962 = vpop.f32.mrb[0].mxu0
        %1963 = vdwg.mxu0
        %1964 = vmatprep.subr.bf16.mxu0 %v1881
        %1965 = vmatpush1.bf16.msra.mxu0 %v1880
        %1966 = vmatprep.subr.bf16.mxu0 %v1883
        %1967 = vmatpush1.bf16.msra.mxu0 %v1882
        %1968 = vmatprep.subr.bf16.mxu0 0
        %1969 = vmatpush1.bf16.msra.mxu0 0
        %1970 = vmatprep.subr.bf16.mxu0 0
        %1971 = vmatpush1.bf16.msra.mxu0 0
        %1972 = vmatprep.subr.bf16.mxu0 0
        %1973 = vmatpush1.bf16.msra.mxu0 0
        %1974 = vmatprep.subr.bf16.mxu0 0
        %1975 = vmatpush1.bf16.msra.mxu0 0
        %1976 = vmatprep.subr.bf16.mxu0 0
        %1977 = vmatpush1.bf16.msra.mxu0 0
        %1978 = vmatprep.subr.bf16.mxu0 0
        %1979 = vmatpush1.bf16.msra.mxu0 0
        %1980 = vmatprep.subr.bf16.mxu0 0
        %1981 = vmatpush1.bf16.msra.mxu0 0
        %1982 = vmatprep.subr.bf16.mxu0 0
        %1983 = vmatpush1.bf16.msra.mxu0 0
        %1984 = vmatprep.subr.bf16.mxu0 0
        %1985 = vmatpush1.bf16.msra.mxu0 0
        %1986 = vmatprep.subr.bf16.mxu0 0
        %1987 = vmatpush1.bf16.msra.mxu0 0
        %1988 = vmatprep.subr.bf16.mxu0 0
        %1989 = vmatpush1.bf16.msra.mxu0 0
        %1990 = vmatprep.subr.bf16.mxu0 0
        %1991 = vmatpush1.bf16.msra.mxu0 0
        %1992 = vmatprep.subr.bf16.mxu0 0
        %1993 = vmatpush1.bf16.msra.mxu0 0
        %1994 = vmatprep.subr.bf16.mxu0 0
        %1995 = vmatpush1.bf16.msra.mxu0 0
        %1996 = vmatprep.mubr.bf16.mxu0 0
        %1997 = vmatmul.mubr.bf16.gmra.mrb[0].mxu0 %v1921
        %v1998 = vpop.f32.mrb[0].mxu0
        %v1999 = vadd.f32 %v1958, %v1998
        %v2000 = vpop.f32.mrb[0].mxu0
        %v2001 = vadd.f32 %v1960, %v2000
        %v2002 = vpop.f32.mrb[0].mxu0
        %v2003 = vpop.f32.mrb[0].mxu0
        %2004 = vdwg.mxu0
        %v2041 = vunpack.c.l.b16 %v1661
        %v2042 = vunpack.c.h.b16 %v1661
        %v2043 = vunpack.c.l.b16 %v1662
        %v2044 = vunpack.c.h.b16 %v1662
        %v2045 = vunpack.c.l.b16 %v1663
        %v2046 = vunpack.c.h.b16 %v1663
        %v2047 = vunpack.c.l.b16 %v1664
        %v2048 = vunpack.c.h.b16 %v1664
        %v2049 = vunpack.c.l.b16 %v1665
        %v2050 = vunpack.c.h.b16 %v1665
        %v2051 = vunpack.c.l.b16 %v1666
        %v2052 = vunpack.c.h.b16 %v1666
        %v2053 = vunpack.c.l.b16 %v1667
        %v2054 = vunpack.c.h.b16 %v1667
        %v2055 = vunpack.c.l.b16 %v1668
        %v2056 = vunpack.c.h.b16 %v1668
        %v2057 = vunpack.c.l.b16 %v1669
        %v2058 = vunpack.c.h.b16 %v1669
        %v2059 = vunpack.c.l.b16 %v1670
        %v2060 = vunpack.c.h.b16 %v1670
        %v2061 = vunpack.c.l.b16 %v1671
        %v2062 = vunpack.c.h.b16 %v1671
        %v2063 = vunpack.c.l.b16 %v1672
        %v2064 = vunpack.c.h.b16 %v1672
        %v2065 = vunpack.c.l.b16 %v1673
        %v2066 = vunpack.c.h.b16 %v1673
        %v2067 = vunpack.c.l.b16 %v1674
        %v2068 = vunpack.c.h.b16 %v1674
        %v2069 = vunpack.c.l.b16 %v1675
        %v2070 = vunpack.c.h.b16 %v1675
        %v2071 = vunpack.c.l.b16 %v1676
        %v2072 = vunpack.c.h.b16 %v1676
        %v2073 = vunpack.c.l.b16 %v1677
        %v2074 = vunpack.c.h.b16 %v1677
        %v2075 = vunpack.c.l.b16 %v1678
        %v2076 = vunpack.c.h.b16 %v1678
        %v2077 = vunpack.c.l.b16 %v1679
        %v2078 = vunpack.c.h.b16 %v1679
        %v2079 = vunpack.c.l.b16 %v1680
        %v2080 = vunpack.c.h.b16 %v1680
        %v2081 = vunpack.c.l.b16 %v1681
        %v2082 = vunpack.c.h.b16 %v1681
        %v2083 = vunpack.c.l.b16 %v1682
        %v2084 = vunpack.c.h.b16 %v1682
        %v2085 = vunpack.c.l.b16 %v1683
        %v2086 = vunpack.c.h.b16 %v1683
        %v2087 = vunpack.c.l.b16 %v1684
        %v2088 = vunpack.c.h.b16 %v1684
        %v2089 = vunpack.c.l.b16 %v1685
        %v2090 = vunpack.c.h.b16 %v1685
        %v2091 = vunpack.c.l.b16 %v1686
        %v2092 = vunpack.c.h.b16 %v1686
        %v2093 = vunpack.c.l.b16 %v1687
        %v2094 = vunpack.c.h.b16 %v1687
        %v2095 = vunpack.c.l.b16 %v1688
        %v2096 = vunpack.c.h.b16 %v1688
        %v2097 = vunpack.c.l.b16 %v1689
        %v2098 = vunpack.c.h.b16 %v1689
        %v2099 = vunpack.c.l.b16 %v1690
        %v2100 = vunpack.c.h.b16 %v1690
        %v2101 = vunpack.c.l.b16 %v1691
        %v2102 = vunpack.c.h.b16 %v1691
        %v2103 = vunpack.c.l.b16 %v1692
        %v2104 = vunpack.c.h.b16 %v1692
        %v2105 = vunpack.c.l.b16 %v1693
        %v2106 = vunpack.c.h.b16 %v1693
        %v2107 = vunpack.c.l.b16 %v1694
        %v2108 = vunpack.c.h.b16 %v1694
        %v2109 = vunpack.c.l.b16 %v1695
        %v2110 = vunpack.c.h.b16 %v1695
        %v2111 = vunpack.c.l.b16 %v1696
        %v2112 = vunpack.c.h.b16 %v1696
        %v2113 = vpack.c.b16 %v2043, %v2041
        %v2114 = vpack.c.b16 %v2044, %v2042
        %v2115 = vpack.c.b16 %v2047, %v2045
        %v2116 = vpack.c.b16 %v2048, %v2046
        %v2117 = vpack.c.b16 %v2051, %v2049
        %v2118 = vpack.c.b16 %v2052, %v2050
        %v2119 = vpack.c.b16 %v2055, %v2053
        %v2120 = vpack.c.b16 %v2056, %v2054
        %v2121 = vpack.c.b16 %v2059, %v2057
        %v2122 = vpack.c.b16 %v2060, %v2058
        %v2123 = vpack.c.b16 %v2063, %v2061
        %v2124 = vpack.c.b16 %v2064, %v2062
        %v2125 = vpack.c.b16 %v2067, %v2065
        %v2126 = vpack.c.b16 %v2068, %v2066
        %v2127 = vpack.c.b16 %v2071, %v2069
        %v2128 = vpack.c.b16 %v2072, %v2070
        %v2129 = vpack.c.b16 %v2075, %v2073
        %v2130 = vpack.c.b16 %v2076, %v2074
        %v2131 = vpack.c.b16 %v2079, %v2077
        %v2132 = vpack.c.b16 %v2080, %v2078
        %v2133 = vpack.c.b16 %v2083, %v2081
        %v2134 = vpack.c.b16 %v2084, %v2082
        %v2135 = vpack.c.b16 %v2087, %v2085
        %v2136 = vpack.c.b16 %v2088, %v2086
        %v2137 = vpack.c.b16 %v2091, %v2089
        %v2138 = vpack.c.b16 %v2092, %v2090
        %v2139 = vpack.c.b16 %v2095, %v2093
        %v2140 = vpack.c.b16 %v2096, %v2094
        %v2141 = vpack.c.b16 %v2099, %v2097
        %v2142 = vpack.c.b16 %v2100, %v2098
        %v2143 = vpack.c.b16 %v2103, %v2101
        %v2144 = vpack.c.b16 %v2104, %v2102
        %v2145 = vpack.c.b16 %v2107, %v2105
        %v2146 = vpack.c.b16 %v2108, %v2106
        %v2147 = vpack.c.b16 %v2111, %v2109
        %v2148 = vpack.c.b16 %v2112, %v2110
        %v2186 = vsel %vm542, %v1660, 0
        %2188 = vmatprep.subr.bf16.mxu0 %v2114
        %2189 = vmatpush1.bf16.msra.mxu0 %v2113
        %2190 = vmatprep.subr.bf16.mxu0 %v2116
        %2191 = vmatpush1.bf16.msra.mxu0 %v2115
        %2192 = vmatprep.subr.bf16.mxu0 %v2118
        %2193 = vmatpush1.bf16.msra.mxu0 %v2117
        %2194 = vmatprep.subr.bf16.mxu0 %v2120
        %2195 = vmatpush1.bf16.msra.mxu0 %v2119
        %2196 = vmatprep.subr.bf16.mxu0 %v2122
        %2197 = vmatpush1.bf16.msra.mxu0 %v2121
        %2198 = vmatprep.subr.bf16.mxu0 %v2124
        %2199 = vmatpush1.bf16.msra.mxu0 %v2123
        %2200 = vmatprep.subr.bf16.mxu0 %v2126
        %2201 = vmatpush1.bf16.msra.mxu0 %v2125
        %2202 = vmatprep.subr.bf16.mxu0 %v2128
        %2203 = vmatpush1.bf16.msra.mxu0 %v2127
        %2204 = vmatprep.subr.bf16.mxu0 %v2130
        %2205 = vmatpush1.bf16.msra.mxu0 %v2129
        %2206 = vmatprep.subr.bf16.mxu0 %v2132
        %2207 = vmatpush1.bf16.msra.mxu0 %v2131
        %2208 = vmatprep.subr.bf16.mxu0 %v2134
        %2209 = vmatpush1.bf16.msra.mxu0 %v2133
        %2210 = vmatprep.subr.bf16.mxu0 %v2136
        %2211 = vmatpush1.bf16.msra.mxu0 %v2135
        %2212 = vmatprep.subr.bf16.mxu0 %v2138
        %2213 = vmatpush1.bf16.msra.mxu0 %v2137
        %2214 = vmatprep.subr.bf16.mxu0 %v2140
        %2215 = vmatpush1.bf16.msra.mxu0 %v2139
        %2216 = vmatprep.subr.bf16.mxu0 %v2142
        %2217 = vmatpush1.bf16.msra.mxu0 %v2141
        %2218 = vmatprep.subr.bf16.mxu0 %v2144
        %2219 = vmatpush1.bf16.msra.mxu0 %v2143
        %2220 = vmatprep.mubr.bf16.mxu0 %v1659
        %2221 = vmatmul.mubr.bf16.gmra.mrb[0].mxu0 %v1658
        %v2222 = vpop.f32.mrb[0].mxu0
        %v2223 = vadd.f32 %v1999, %v2222
        %v2224 = vpop.f32.mrb[0].mxu0
        %v2225 = vadd.f32 %v2001, %v2224
        %v2226 = vpop.f32.mrb[0].mxu0
        %v2227 = vpop.f32.mrb[0].mxu0
        %2228 = vdwg.mxu0
        %2229 = vmatprep.subr.bf16.mxu0 %v2146
        %2230 = vmatpush1.bf16.msra.mxu0 %v2145
        %2231 = vmatprep.subr.bf16.mxu0 %v2148
        %2232 = vmatpush1.bf16.msra.mxu0 %v2147
        %2233 = vmatprep.subr.bf16.mxu0 0
        %2234 = vmatpush1.bf16.msra.mxu0 0
        %2235 = vmatprep.subr.bf16.mxu0 0
        %2236 = vmatpush1.bf16.msra.mxu0 0
        %2237 = vmatprep.subr.bf16.mxu0 0
        %2238 = vmatpush1.bf16.msra.mxu0 0
        %2239 = vmatprep.subr.bf16.mxu0 0
        %2240 = vmatpush1.bf16.msra.mxu0 0
        %2241 = vmatprep.subr.bf16.mxu0 0
        %2242 = vmatpush1.bf16.msra.mxu0 0
        %2243 = vmatprep.subr.bf16.mxu0 0
        %2244 = vmatpush1.bf16.msra.mxu0 0
        %2245 = vmatprep.subr.bf16.mxu0 0
        %2246 = vmatpush1.bf16.msra.mxu0 0
        %2247 = vmatprep.subr.bf16.mxu0 0
        %2248 = vmatpush1.bf16.msra.mxu0 0
        %2249 = vmatprep.subr.bf16.mxu0 0
        %2250 = vmatpush1.bf16.msra.mxu0 0
        %2251 = vmatprep.subr.bf16.mxu0 0
        %2252 = vmatpush1.bf16.msra.mxu0 0
        %2253 = vmatprep.subr.bf16.mxu0 0
        %2254 = vmatpush1.bf16.msra.mxu0 0
        %2255 = vmatprep.subr.bf16.mxu0 0
        %2256 = vmatpush1.bf16.msra.mxu0 0
        %2257 = vmatprep.subr.bf16.mxu0 0
        %2258 = vmatpush1.bf16.msra.mxu0 0
        %2259 = vmatprep.subr.bf16.mxu0 0
        %2260 = vmatpush1.bf16.msra.mxu0 0
        %2261 = vmatprep.mubr.bf16.mxu0 0
        %2262 = vmatmul.mubr.bf16.gmra.mrb[0].mxu0 %v2186
        %v2263 = vpop.f32.mrb[0].mxu0
        %v2264 = vadd.f32 %v2223, %v2263
        %v2265 = vpop.f32.mrb[0].mxu0
        %v2266 = vadd.f32 %v2225, %v2265
        %v2267 = vpop.f32.mrb[0].mxu0
        %v2268 = vpop.f32.mrb[0].mxu0
        %2269 = vdwg.mxu0
        %v2270 = vld [vmem:[#allocation2] sm:$0xfe]
        %v2271 = vld [vmem:[#allocation2 + $0x8] sm:$0xfe]
        %v2272 = vld [vmem:[#allocation2 + $0x10] sm:$0xfe]
        %v2273 = vld [vmem:[#allocation2 + $0x18] sm:$0x1]
        %v2274 = vld [vmem:[#allocation2 + $0x20] sm:$0x1]
        %v2275 = vld [vmem:[#allocation2 + $0x28] sm:$0x1]
        %v2276 = vpack.c.bf16 %v2273, %v2270
        %v2277 = vpack.c.bf16 %v2274, %v2271
        %v2278 = vpack.c.bf16 %v2275, %v2272
        %s2279 = scalar_lea.vmem [#allocation6], 576
        %v2280 = vld [vmem:[%s2279] sm:$0xff]
        %v2281 = vld [vmem:[%s2279 + $0x8] sm:$0xff]
        %v2282 = vld [vmem:[%s2279 + $0x10] sm:$0xff]
        %v2283 = vld [vmem:[%s2279 + $0x18] sm:$0xff]
        %v2284 = vld [vmem:[%s2279 + $0x20] sm:$0xff]
        %v2285 = vld [vmem:[%s2279 + $0x28] sm:$0xff]
        %v2286 = vld [vmem:[%s2279 + $0x30] sm:$0xff]
        %v2287 = vld [vmem:[%s2279 + $0x38] sm:$0xff]
        %v2288 = vld [vmem:[%s2279 + $0x40] sm:$0xff]
        %v2289 = vld [vmem:[%s2279 + $0x48] sm:$0xff]
        %v2290 = vld [vmem:[%s2279 + $0x50] sm:$0xff]
        %v2291 = vld [vmem:[%s2279 + $0x58] sm:$0xff]
        %v2292 = vld [vmem:[%s2279 + $0x60] sm:$0xff]
        %v2293 = vld [vmem:[%s2279 + $0x68] sm:$0xff]
        %v2294 = vld [vmem:[%s2279 + $0x70] sm:$0xff]
        %v2295 = vld [vmem:[%s2279 + $0x78] sm:$0xff]
        %v2296 = vld [vmem:[%s2279 + $0x80] sm:$0xff]
        %v2297 = vld [vmem:[%s2279 + $0x88] sm:$0xff]
        %v2298 = vld [vmem:[%s2279 + $0x90] sm:$0xff]
        %v2299 = vld [vmem:[%s2279 + $0x98] sm:$0xff]
        %v2300 = vld [vmem:[%s2279 + $0xa0] sm:$0xff]
        %v2301 = vld [vmem:[%s2279 + $0xa8] sm:$0xff]
        %v2302 = vld [vmem:[%s2279 + $0xb0] sm:$0xff]
        %v2303 = vld [vmem:[%s2279 + $0xb8] sm:$0xff]
        %v2304 = vld [vmem:[%s2279 + $0xc0] sm:$0xff]
        %v2305 = vld [vmem:[%s2279 + $0xc8] sm:$0xff]
        %v2306 = vld [vmem:[%s2279 + $0xd0] sm:$0xff]
        %v2307 = vld [vmem:[%s2279 + $0xd8] sm:$0xff]
        %v2308 = vld [vmem:[%s2279 + $0xe0] sm:$0xff]
        %v2309 = vld [vmem:[%s2279 + $0xe8] sm:$0xff]
        %v2310 = vld [vmem:[%s2279 + $0xf0] sm:$0xff]
        %v2311 = vld [vmem:[%s2279 + $0xf8] sm:$0xff]
        %v2312 = vld [vmem:[%s2279 + $0x100] sm:$0xff]
        %v2313 = vld [vmem:[%s2279 + $0x108] sm:$0xff]
        %v2314 = vld [vmem:[%s2279 + $0x110] sm:$0xff]
        %v2315 = vld [vmem:[%s2279 + $0x118] sm:$0xff]
        %v2317 = vshrl.u32 %v2276, 16
        %v2319 = vshll.u32 %v2276, 16
        %v2321 = vrot.slane %v2319, 1
        %v2322 = vor.u32 %v2317, %v2321
        %v2324 = vshrl.u32 %v2277, 16
        %v2326 = vshll.u32 %v2277, 16
        %v2328 = vrot.slane %v2326, 1
        %v2329 = vor.u32 %v2324, %v2328
        %v2331 = vshrl.u32 %v2278, 16
        %v2333 = vshll.u32 %v2278, 16
        %v2335 = vrot.slane %v2333, 1
        %v2336 = vor.u32 %v2331, %v2335
        %v2375 = vunpack.c.l.b16 %v2280
        %v2376 = vunpack.c.h.b16 %v2280
        %v2377 = vunpack.c.l.b16 %v2281
        %v2378 = vunpack.c.h.b16 %v2281
        %v2379 = vunpack.c.l.b16 %v2282
        %v2380 = vunpack.c.h.b16 %v2282
        %v2381 = vunpack.c.l.b16 %v2283
        %v2382 = vunpack.c.h.b16 %v2283
        %v2383 = vunpack.c.l.b16 %v2284
        %v2384 = vunpack.c.h.b16 %v2284
        %v2385 = vunpack.c.l.b16 %v2285
        %v2386 = vunpack.c.h.b16 %v2285
        %v2387 = vunpack.c.l.b16 %v2286
        %v2388 = vunpack.c.h.b16 %v2286
        %v2389 = vunpack.c.l.b16 %v2287
        %v2390 = vunpack.c.h.b16 %v2287
        %v2391 = vunpack.c.l.b16 %v2288
        %v2392 = vunpack.c.h.b16 %v2288
        %v2393 = vunpack.c.l.b16 %v2289
        %v2394 = vunpack.c.h.b16 %v2289
        %v2395 = vunpack.c.l.b16 %v2290
        %v2396 = vunpack.c.h.b16 %v2290
        %v2397 = vunpack.c.l.b16 %v2291
        %v2398 = vunpack.c.h.b16 %v2291
        %v2399 = vunpack.c.l.b16 %v2292
        %v2400 = vunpack.c.h.b16 %v2292
        %v2401 = vunpack.c.l.b16 %v2293
        %v2402 = vunpack.c.h.b16 %v2293
        %v2403 = vunpack.c.l.b16 %v2294
        %v2404 = vunpack.c.h.b16 %v2294
        %v2405 = vunpack.c.l.b16 %v2295
        %v2406 = vunpack.c.h.b16 %v2295
        %v2407 = vunpack.c.l.b16 %v2296
        %v2408 = vunpack.c.h.b16 %v2296
        %v2409 = vunpack.c.l.b16 %v2297
        %v2410 = vunpack.c.h.b16 %v2297
        %v2411 = vunpack.c.l.b16 %v2298
        %v2412 = vunpack.c.h.b16 %v2298
        %v2413 = vunpack.c.l.b16 %v2299
        %v2414 = vunpack.c.h.b16 %v2299
        %v2415 = vunpack.c.l.b16 %v2300
        %v2416 = vunpack.c.h.b16 %v2300
        %v2417 = vunpack.c.l.b16 %v2301
        %v2418 = vunpack.c.h.b16 %v2301
        %v2419 = vunpack.c.l.b16 %v2302
        %v2420 = vunpack.c.h.b16 %v2302
        %v2421 = vunpack.c.l.b16 %v2303
        %v2422 = vunpack.c.h.b16 %v2303
        %v2423 = vunpack.c.l.b16 %v2304
        %v2424 = vunpack.c.h.b16 %v2304
        %v2425 = vunpack.c.l.b16 %v2305
        %v2426 = vunpack.c.h.b16 %v2305
        %v2427 = vunpack.c.l.b16 %v2306
        %v2428 = vunpack.c.h.b16 %v2306
        %v2429 = vunpack.c.l.b16 %v2307
        %v2430 = vunpack.c.h.b16 %v2307
        %v2431 = vunpack.c.l.b16 %v2308
        %v2432 = vunpack.c.h.b16 %v2308
        %v2433 = vunpack.c.l.b16 %v2309
        %v2434 = vunpack.c.h.b16 %v2309
        %v2435 = vunpack.c.l.b16 %v2310
        %v2436 = vunpack.c.h.b16 %v2310
        %v2437 = vunpack.c.l.b16 %v2311
        %v2438 = vunpack.c.h.b16 %v2311
        %v2439 = vunpack.c.l.b16 %v2312
        %v2440 = vunpack.c.h.b16 %v2312
        %v2441 = vunpack.c.l.b16 %v2313
        %v2442 = vunpack.c.h.b16 %v2313
        %v2443 = vunpack.c.l.b16 %v2314
        %v2444 = vunpack.c.h.b16 %v2314
        %v2445 = vunpack.c.l.b16 %v2315
        %v2446 = vunpack.c.h.b16 %v2315
        %v2447 = vpack.c.b16 %v2377, %v2375
        %v2448 = vpack.c.b16 %v2378, %v2376
        %v2449 = vpack.c.b16 %v2381, %v2379
        %v2450 = vpack.c.b16 %v2382, %v2380
        %v2451 = vpack.c.b16 %v2385, %v2383
        %v2452 = vpack.c.b16 %v2386, %v2384
        %v2453 = vpack.c.b16 %v2389, %v2387
        %v2454 = vpack.c.b16 %v2390, %v2388
        %v2455 = vpack.c.b16 %v2393, %v2391
        %v2456 = vpack.c.b16 %v2394, %v2392
        %v2457 = vpack.c.b16 %v2397, %v2395
        %v2458 = vpack.c.b16 %v2398, %v2396
        %v2459 = vpack.c.b16 %v2401, %v2399
        %v2460 = vpack.c.b16 %v2402, %v2400
        %v2461 = vpack.c.b16 %v2405, %v2403
        %v2462 = vpack.c.b16 %v2406, %v2404
        %v2463 = vpack.c.b16 %v2409, %v2407
        %v2464 = vpack.c.b16 %v2410, %v2408
        %v2465 = vpack.c.b16 %v2413, %v2411
        %v2466 = vpack.c.b16 %v2414, %v2412
        %v2467 = vpack.c.b16 %v2417, %v2415
        %v2468 = vpack.c.b16 %v2418, %v2416
        %v2469 = vpack.c.b16 %v2421, %v2419
        %v2470 = vpack.c.b16 %v2422, %v2420
        %v2471 = vpack.c.b16 %v2425, %v2423
        %v2472 = vpack.c.b16 %v2426, %v2424
        %v2473 = vpack.c.b16 %v2429, %v2427
        %v2474 = vpack.c.b16 %v2430, %v2428
        %v2475 = vpack.c.b16 %v2433, %v2431
        %v2476 = vpack.c.b16 %v2434, %v2432
        %v2477 = vpack.c.b16 %v2437, %v2435
        %v2478 = vpack.c.b16 %v2438, %v2436
        %v2479 = vpack.c.b16 %v2441, %v2439
        %v2480 = vpack.c.b16 %v2442, %v2440
        %v2481 = vpack.c.b16 %v2445, %v2443
        %v2482 = vpack.c.b16 %v2446, %v2444
        %v2520 = vsel %vm542, %v2336, 0
        %2522 = vmatprep.subr.bf16.mxu0 %v2448
        %2523 = vmatpush1.bf16.msra.mxu0 %v2447
        %2524 = vmatprep.subr.bf16.mxu0 %v2450
        %2525 = vmatpush1.bf16.msra.mxu0 %v2449
        %2526 = vmatprep.subr.bf16.mxu0 %v2452
        %2527 = vmatpush1.bf16.msra.mxu0 %v2451
        %2528 = vmatprep.subr.bf16.mxu0 %v2454
        %2529 = vmatpush1.bf16.msra.mxu0 %v2453
        %2530 = vmatprep.subr.bf16.mxu0 %v2456
        %2531 = vmatpush1.bf16.msra.mxu0 %v2455
        %2532 = vmatprep.subr.bf16.mxu0 %v2458
        %2533 = vmatpush1.bf16.msra.mxu0 %v2457
        %2534 = vmatprep.subr.bf16.mxu0 %v2460
        %2535 = vmatpush1.bf16.msra.mxu0 %v2459
        %2536 = vmatprep.subr.bf16.mxu0 %v2462
        %2537 = vmatpush1.bf16.msra.mxu0 %v2461
        %2538 = vmatprep.subr.bf16.mxu0 %v2464
        %2539 = vmatpush1.bf16.msra.mxu0 %v2463
        %2540 = vmatprep.subr.bf16.mxu0 %v2466
        %2541 = vmatpush1.bf16.msra.mxu0 %v2465
        %2542 = vmatprep.subr.bf16.mxu0 %v2468
        %2543 = vmatpush1.bf16.msra.mxu0 %v2467
        %2544 = vmatprep.subr.bf16.mxu0 %v2470
        %2545 = vmatpush1.bf16.msra.mxu0 %v2469
        %2546 = vmatprep.subr.bf16.mxu0 %v2472
        %2547 = vmatpush1.bf16.msra.mxu0 %v2471
        %2548 = vmatprep.subr.bf16.mxu0 %v2474
        %2549 = vmatpush1.bf16.msra.mxu0 %v2473
        %2550 = vmatprep.subr.bf16.mxu0 %v2476
        %2551 = vmatpush1.bf16.msra.mxu0 %v2475
        %2552 = vmatprep.subr.bf16.mxu0 %v2478
        %2553 = vmatpush1.bf16.msra.mxu0 %v2477
        %2554 = vmatprep.mubr.bf16.mxu0 %v2329
        %2555 = vmatmul.mubr.bf16.gmra.mrb[0].mxu0 %v2322
        %v2556 = vpop.f32.mrb[0].mxu0
        %v2557 = vadd.f32 0.0, %v2556
        %v2558 = vpop.f32.mrb[0].mxu0
        %v2559 = vadd.f32 0.0, %v2558
        %v2560 = vpop.f32.mrb[0].mxu0
        %v2561 = vpop.f32.mrb[0].mxu0
        %2562 = vdwg.mxu0
        %2563 = vmatprep.subr.bf16.mxu0 %v2480
        %2564 = vmatpush1.bf16.msra.mxu0 %v2479
        %2565 = vmatprep.subr.bf16.mxu0 %v2482
        %2566 = vmatpush1.bf16.msra.mxu0 %v2481
        %2567 = vmatprep.subr.bf16.mxu0 0
        %2568 = vmatpush1.bf16.msra.mxu0 0
        %2569 = vmatprep.subr.bf16.mxu0 0
        %2570 = vmatpush1.bf16.msra.mxu0 0
        %2571 = vmatprep.subr.bf16.mxu0 0
        %2572 = vmatpush1.bf16.msra.mxu0 0
        %2573 = vmatprep.subr.bf16.mxu0 0
        %2574 = vmatpush1.bf16.msra.mxu0 0
        %2575 = vmatprep.subr.bf16.mxu0 0
        %2576 = vmatpush1.bf16.msra.mxu0 0
        %2577 = vmatprep.subr.bf16.mxu0 0
        %2578 = vmatpush1.bf16.msra.mxu0 0
        %2579 = vmatprep.subr.bf16.mxu0 0
        %2580 = vmatpush1.bf16.msra.mxu0 0
        %2581 = vmatprep.subr.bf16.mxu0 0
        %2582 = vmatpush1.bf16.msra.mxu0 0
        %2583 = vmatprep.subr.bf16.mxu0 0
        %2584 = vmatpush1.bf16.msra.mxu0 0
        %2585 = vmatprep.subr.bf16.mxu0 0
        %2586 = vmatpush1.bf16.msra.mxu0 0
        %2587 = vmatprep.subr.bf16.mxu0 0
        %2588 = vmatpush1.bf16.msra.mxu0 0
        %2589 = vmatprep.subr.bf16.mxu0 0
        %2590 = vmatpush1.bf16.msra.mxu0 0
        %2591 = vmatprep.subr.bf16.mxu0 0
        %2592 = vmatpush1.bf16.msra.mxu0 0
        %2593 = vmatprep.subr.bf16.mxu0 0
        %2594 = vmatpush1.bf16.msra.mxu0 0
        %2595 = vmatprep.mubr.bf16.mxu0 0
        %2596 = vmatmul.mubr.bf16.gmra.mrb[0].mxu0 %v2520
        %v2597 = vpop.f32.mrb[0].mxu0
        %v2598 = vadd.f32 %v2557, %v2597
        %v2599 = vpop.f32.mrb[0].mxu0
        %v2600 = vadd.f32 %v2559, %v2599
        %v2601 = vpop.f32.mrb[0].mxu0
        %v2602 = vpop.f32.mrb[0].mxu0
        %2603 = vdwg.mxu0
        %v2604 = vadd.f32 %v2264, %v2598
        %v2605 = vadd.f32 %v2266, %v2600
        %v2606 = vld [vmem:[%s1441] sm:$0xfe]
        %v2607 = vld [vmem:[%s1441 + $0x8] sm:$0xfe]
        %v2608 = vld [vmem:[%s1441 + $0x10] sm:$0xfe]
        %v2609 = vld [vmem:[%s1441 + $0x18] sm:$0x1]
        %v2610 = vld [vmem:[%s1441 + $0x20] sm:$0x1]
        %v2611 = vld [vmem:[%s1441 + $0x28] sm:$0x1]
        %v2612 = vpack.c.bf16 %v2609, %v2606
        %v2613 = vpack.c.bf16 %v2610, %v2607
        %v2614 = vpack.c.bf16 %v2611, %v2608
        %s2615 = scalar_lea.vmem [#allocation6], 864
        %v2616 = vld [vmem:[%s2615] sm:$0xff]
        %v2617 = vld [vmem:[%s2615 + $0x8] sm:$0xff]
        %v2618 = vld [vmem:[%s2615 + $0x10] sm:$0xff]
        %v2619 = vld [vmem:[%s2615 + $0x18] sm:$0xff]
        %v2620 = vld [vmem:[%s2615 + $0x20] sm:$0xff]
        %v2621 = vld [vmem:[%s2615 + $0x28] sm:$0xff]
        %v2622 = vld [vmem:[%s2615 + $0x30] sm:$0xff]
        %v2623 = vld [vmem:[%s2615 + $0x38] sm:$0xff]
        %v2624 = vld [vmem:[%s2615 + $0x40] sm:$0xff]
        %v2625 = vld [vmem:[%s2615 + $0x48] sm:$0xff]
        %v2626 = vld [vmem:[%s2615 + $0x50] sm:$0xff]
        %v2627 = vld [vmem:[%s2615 + $0x58] sm:$0xff]
        %v2628 = vld [vmem:[%s2615 + $0x60] sm:$0xff]
        %v2629 = vld [vmem:[%s2615 + $0x68] sm:$0xff]
        %v2630 = vld [vmem:[%s2615 + $0x70] sm:$0xff]
        %v2631 = vld [vmem:[%s2615 + $0x78] sm:$0xff]
        %v2632 = vld [vmem:[%s2615 + $0x80] sm:$0xff]
        %v2633 = vld [vmem:[%s2615 + $0x88] sm:$0xff]
        %v2634 = vld [vmem:[%s2615 + $0x90] sm:$0xff]
        %v2635 = vld [vmem:[%s2615 + $0x98] sm:$0xff]
        %v2636 = vld [vmem:[%s2615 + $0xa0] sm:$0xff]
        %v2637 = vld [vmem:[%s2615 + $0xa8] sm:$0xff]
        %v2638 = vld [vmem:[%s2615 + $0xb0] sm:$0xff]
        %v2639 = vld [vmem:[%s2615 + $0xb8] sm:$0xff]
        %v2640 = vld [vmem:[%s2615 + $0xc0] sm:$0xff]
        %v2641 = vld [vmem:[%s2615 + $0xc8] sm:$0xff]
        %v2642 = vld [vmem:[%s2615 + $0xd0] sm:$0xff]
        %v2643 = vld [vmem:[%s2615 + $0xd8] sm:$0xff]
        %v2644 = vld [vmem:[%s2615 + $0xe0] sm:$0xff]
        %v2645 = vld [vmem:[%s2615 + $0xe8] sm:$0xff]
        %v2646 = vld [vmem:[%s2615 + $0xf0] sm:$0xff]
        %v2647 = vld [vmem:[%s2615 + $0xf8] sm:$0xff]
        %v2648 = vld [vmem:[%s2615 + $0x100] sm:$0xff]
        %v2649 = vld [vmem:[%s2615 + $0x108] sm:$0xff]
        %v2650 = vld [vmem:[%s2615 + $0x110] sm:$0xff]
        %v2651 = vld [vmem:[%s2615 + $0x118] sm:$0xff]
        %v2653 = vshrl.u32 %v2612, 16
        %v2655 = vshll.u32 %v2612, 16
        %v2657 = vrot.slane %v2655, 1
        %v2658 = vor.u32 %v2653, %v2657
        %v2660 = vshrl.u32 %v2613, 16
        %v2662 = vshll.u32 %v2613, 16
        %v2664 = vrot.slane %v2662, 1
        %v2665 = vor.u32 %v2660, %v2664
        %v2667 = vshrl.u32 %v2614, 16
        %v2669 = vshll.u32 %v2614, 16
        %v2671 = vrot.slane %v2669, 1
        %v2672 = vor.u32 %v2667, %v2671
        %v2711 = vunpack.c.l.b16 %v2616
        %v2712 = vunpack.c.h.b16 %v2616
        %v2713 = vunpack.c.l.b16 %v2617
        %v2714 = vunpack.c.h.b16 %v2617
        %v2715 = vunpack.c.l.b16 %v2618
        %v2716 = vunpack.c.h.b16 %v2618
        %v2717 = vunpack.c.l.b16 %v2619
        %v2718 = vunpack.c.h.b16 %v2619
        %v2719 = vunpack.c.l.b16 %v2620
        %v2720 = vunpack.c.h.b16 %v2620
        %v2721 = vunpack.c.l.b16 %v2621
        %v2722 = vunpack.c.h.b16 %v2621
        %v2723 = vunpack.c.l.b16 %v2622
        %v2724 = vunpack.c.h.b16 %v2622
        %v2725 = vunpack.c.l.b16 %v2623
        %v2726 = vunpack.c.h.b16 %v2623
        %v2727 = vunpack.c.l.b16 %v2624
        %v2728 = vunpack.c.h.b16 %v2624
        %v2729 = vunpack.c.l.b16 %v2625
        %v2730 = vunpack.c.h.b16 %v2625
        %v2731 = vunpack.c.l.b16 %v2626
        %v2732 = vunpack.c.h.b16 %v2626
        %v2733 = vunpack.c.l.b16 %v2627
        %v2734 = vunpack.c.h.b16 %v2627
        %v2735 = vunpack.c.l.b16 %v2628
        %v2736 = vunpack.c.h.b16 %v2628
        %v2737 = vunpack.c.l.b16 %v2629
        %v2738 = vunpack.c.h.b16 %v2629
        %v2739 = vunpack.c.l.b16 %v2630
        %v2740 = vunpack.c.h.b16 %v2630
        %v2741 = vunpack.c.l.b16 %v2631
        %v2742 = vunpack.c.h.b16 %v2631
        %v2743 = vunpack.c.l.b16 %v2632
        %v2744 = vunpack.c.h.b16 %v2632
        %v2745 = vunpack.c.l.b16 %v2633
        %v2746 = vunpack.c.h.b16 %v2633
        %v2747 = vunpack.c.l.b16 %v2634
        %v2748 = vunpack.c.h.b16 %v2634
        %v2749 = vunpack.c.l.b16 %v2635
        %v2750 = vunpack.c.h.b16 %v2635
        %v2751 = vunpack.c.l.b16 %v2636
        %v2752 = vunpack.c.h.b16 %v2636
        %v2753 = vunpack.c.l.b16 %v2637
        %v2754 = vunpack.c.h.b16 %v2637
        %v2755 = vunpack.c.l.b16 %v2638
        %v2756 = vunpack.c.h.b16 %v2638
        %v2757 = vunpack.c.l.b16 %v2639
        %v2758 = vunpack.c.h.b16 %v2639
        %v2759 = vunpack.c.l.b16 %v2640
        %v2760 = vunpack.c.h.b16 %v2640
        %v2761 = vunpack.c.l.b16 %v2641
        %v2762 = vunpack.c.h.b16 %v2641
        %v2763 = vunpack.c.l.b16 %v2642
        %v2764 = vunpack.c.h.b16 %v2642
        %v2765 = vunpack.c.l.b16 %v2643
        %v2766 = vunpack.c.h.b16 %v2643
        %v2767 = vunpack.c.l.b16 %v2644
        %v2768 = vunpack.c.h.b16 %v2644
        %v2769 = vunpack.c.l.b16 %v2645
        %v2770 = vunpack.c.h.b16 %v2645
        %v2771 = vunpack.c.l.b16 %v2646
        %v2772 = vunpack.c.h.b16 %v2646
        %v2773 = vunpack.c.l.b16 %v2647
        %v2774 = vunpack.c.h.b16 %v2647
        %v2775 = vunpack.c.l.b16 %v2648
        %v2776 = vunpack.c.h.b16 %v2648
        %v2777 = vunpack.c.l.b16 %v2649
        %v2778 = vunpack.c.h.b16 %v2649
        %v2779 = vunpack.c.l.b16 %v2650
        %v2780 = vunpack.c.h.b16 %v2650
        %v2781 = vunpack.c.l.b16 %v2651
        %v2782 = vunpack.c.h.b16 %v2651
        %v2783 = vpack.c.b16 %v2713, %v2711
        %v2784 = vpack.c.b16 %v2714, %v2712
        %v2785 = vpack.c.b16 %v2717, %v2715
        %v2786 = vpack.c.b16 %v2718, %v2716
        %v2787 = vpack.c.b16 %v2721, %v2719
        %v2788 = vpack.c.b16 %v2722, %v2720
        %v2789 = vpack.c.b16 %v2725, %v2723
        %v2790 = vpack.c.b16 %v2726, %v2724
        %v2791 = vpack.c.b16 %v2729, %v2727
        %v2792 = vpack.c.b16 %v2730, %v2728
        %v2793 = vpack.c.b16 %v2733, %v2731
        %v2794 = vpack.c.b16 %v2734, %v2732
        %v2795 = vpack.c.b16 %v2737, %v2735
        %v2796 = vpack.c.b16 %v2738, %v2736
        %v2797 = vpack.c.b16 %v2741, %v2739
        %v2798 = vpack.c.b16 %v2742, %v2740
        %v2799 = vpack.c.b16 %v2745, %v2743
        %v2800 = vpack.c.b16 %v2746, %v2744
        %v2801 = vpack.c.b16 %v2749, %v2747
        %v2802 = vpack.c.b16 %v2750, %v2748
        %v2803 = vpack.c.b16 %v2753, %v2751
        %v2804 = vpack.c.b16 %v2754, %v2752
        %v2805 = vpack.c.b16 %v2757, %v2755
        %v2806 = vpack.c.b16 %v2758, %v2756
        %v2807 = vpack.c.b16 %v2761, %v2759
        %v2808 = vpack.c.b16 %v2762, %v2760
        %v2809 = vpack.c.b16 %v2765, %v2763
        %v2810 = vpack.c.b16 %v2766, %v2764
        %v2811 = vpack.c.b16 %v2769, %v2767
        %v2812 = vpack.c.b16 %v2770, %v2768
        %v2813 = vpack.c.b16 %v2773, %v2771
        %v2814 = vpack.c.b16 %v2774, %v2772
        %v2815 = vpack.c.b16 %v2777, %v2775
        %v2816 = vpack.c.b16 %v2778, %v2776
        %v2817 = vpack.c.b16 %v2781, %v2779
        %v2818 = vpack.c.b16 %v2782, %v2780
        %v2856 = vsel %vm542, %v2672, 0
        %2858 = vmatprep.subr.bf16.mxu0 %v2784
        %2859 = vmatpush1.bf16.msra.mxu0 %v2783
        %2860 = vmatprep.subr.bf16.mxu0 %v2786
        %2861 = vmatpush1.bf16.msra.mxu0 %v2785
        %2862 = vmatprep.subr.bf16.mxu0 %v2788
        %2863 = vmatpush1.bf16.msra.mxu0 %v2787
        %2864 = vmatprep.subr.bf16.mxu0 %v2790
        %2865 = vmatpush1.bf16.msra.mxu0 %v2789
        %2866 = vmatprep.subr.bf16.mxu0 %v2792
        %2867 = vmatpush1.bf16.msra.mxu0 %v2791
        %2868 = vmatprep.subr.bf16.mxu0 %v2794
        %2869 = vmatpush1.bf16.msra.mxu0 %v2793
        %2870 = vmatprep.subr.bf16.mxu0 %v2796
        %2871 = vmatpush1.bf16.msra.mxu0 %v2795
        %2872 = vmatprep.subr.bf16.mxu0 %v2798
        %2873 = vmatpush1.bf16.msra.mxu0 %v2797
        %2874 = vmatprep.subr.bf16.mxu0 %v2800
        %2875 = vmatpush1.bf16.msra.mxu0 %v2799
        %2876 = vmatprep.subr.bf16.mxu0 %v2802
        %2877 = vmatpush1.bf16.msra.mxu0 %v2801
        %2878 = vmatprep.subr.bf16.mxu0 %v2804
        %2879 = vmatpush1.bf16.msra.mxu0 %v2803
        %2880 = vmatprep.subr.bf16.mxu0 %v2806
        %2881 = vmatpush1.bf16.msra.mxu0 %v2805
        %2882 = vmatprep.subr.bf16.mxu0 %v2808
        %2883 = vmatpush1.bf16.msra.mxu0 %v2807
        %2884 = vmatprep.subr.bf16.mxu0 %v2810
        %2885 = vmatpush1.bf16.msra.mxu0 %v2809
        %2886 = vmatprep.subr.bf16.mxu0 %v2812
        %2887 = vmatpush1.bf16.msra.mxu0 %v2811
        %2888 = vmatprep.subr.bf16.mxu0 %v2814
        %2889 = vmatpush1.bf16.msra.mxu0 %v2813
        %2890 = vmatprep.mubr.bf16.mxu0 %v2665
        %2891 = vmatmul.mubr.bf16.gmra.mrb[0].mxu0 %v2658
        %v2892 = vpop.f32.mrb[0].mxu0
        %v2893 = vadd.f32 0.0, %v2892
        %v2894 = vpop.f32.mrb[0].mxu0
        %v2895 = vadd.f32 0.0, %v2894
        %v2896 = vpop.f32.mrb[0].mxu0
        %v2897 = vpop.f32.mrb[0].mxu0
        %2898 = vdwg.mxu0
        %2899 = vmatprep.subr.bf16.mxu0 %v2816
        %2900 = vmatpush1.bf16.msra.mxu0 %v2815
        %2901 = vmatprep.subr.bf16.mxu0 %v2818
        %2902 = vmatpush1.bf16.msra.mxu0 %v2817
        %2903 = vmatprep.subr.bf16.mxu0 0
        %2904 = vmatpush1.bf16.msra.mxu0 0
        %2905 = vmatprep.subr.bf16.mxu0 0
        %2906 = vmatpush1.bf16.msra.mxu0 0
        %2907 = vmatprep.subr.bf16.mxu0 0
        %2908 = vmatpush1.bf16.msra.mxu0 0
        %2909 = vmatprep.subr.bf16.mxu0 0
        %2910 = vmatpush1.bf16.msra.mxu0 0
        %2911 = vmatprep.subr.bf16.mxu0 0
        %2912 = vmatpush1.bf16.msra.mxu0 0
        %2913 = vmatprep.subr.bf16.mxu0 0
        %2914 = vmatpush1.bf16.msra.mxu0 0
        %2915 = vmatprep.subr.bf16.mxu0 0
        %2916 = vmatpush1.bf16.msra.mxu0 0
        %2917 = vmatprep.subr.bf16.mxu0 0
        %2918 = vmatpush1.bf16.msra.mxu0 0
        %2919 = vmatprep.subr.bf16.mxu0 0
        %2920 = vmatpush1.bf16.msra.mxu0 0
        %2921 = vmatprep.subr.bf16.mxu0 0
        %2922 = vmatpush1.bf16.msra.mxu0 0
        %2923 = vmatprep.subr.bf16.mxu0 0
        %2924 = vmatpush1.bf16.msra.mxu0 0
        %2925 = vmatprep.subr.bf16.mxu0 0
        %2926 = vmatpush1.bf16.msra.mxu0 0
        %2927 = vmatprep.subr.bf16.mxu0 0
        %2928 = vmatpush1.bf16.msra.mxu0 0
        %2929 = vmatprep.subr.bf16.mxu0 0
        %2930 = vmatpush1.bf16.msra.mxu0 0
        %2931 = vmatprep.mubr.bf16.mxu0 0
        %2932 = vmatmul.mubr.bf16.gmra.mrb[0].mxu0 %v2856
        %v2933 = vpop.f32.mrb[0].mxu0
        %v2934 = vadd.f32 %v2893, %v2933
        %v2935 = vpop.f32.mrb[0].mxu0
        %v2936 = vadd.f32 %v2895, %v2935
        %v2937 = vpop.f32.mrb[0].mxu0
        %v2938 = vpop.f32.mrb[0].mxu0
        %2939 = vdwg.mxu0
        %v2940 = vadd.f32 %v2604, %v2934
        %v2941 = vadd.f32 %v2605, %v2936
        %v2942 = vld [vmem:[%s4] sm:$0x3]
        %v2944 = vlaneseq
        %v2945 = vshrl.u32 %v2944, 7
        %v2946 = vsub.s32 0, %v2945
        %v2947 = vrot.slane %v2942, %v2946
        %v2948 = vlaneseq
        %v2949 = vshrl.u32 %v2948, 7
        %v2950 = vsub.s32 1, %v2949
        %v2951 = vrot.slane %v2942, %v2950
        %v2954 = vadd.f32 %v2940, %v2947
        %v2955 = vadd.f32 %v2941, %v2951
        %v2956 = vrot.slane %v2954, 4
        %v2957 = vadd.f32 %v2954, %v2956
        %v2958 = vrot.slane %v2957, 2
        %v2959 = vadd.f32 %v2957, %v2958
        %v2960 = vrot.slane %v2959, 1
        %v2961 = vadd.f32 %v2959, %v2960
        %v2962 = vrot.slane %v2955, 4
        %v2963 = vadd.f32 %v2955, %v2962
        %v2964 = vrot.slane %v2963, 2
        %v2965 = vadd.f32 %v2963, %v2964
        %v2966 = vrot.slane %v2965, 1
        %v2967 = vadd.f32 %v2965, %v2966
        %v2968 = vmul.f32 %v2954, %v2954
        %v2969 = vmul.f32 %v2955, %v2955
        %v2970 = vrot.slane %v2968, 4
        %v2971 = vadd.f32 %v2968, %v2970
        %v2972 = vrot.slane %v2971, 2
        %v2973 = vadd.f32 %v2971, %v2972
        %v2974 = vrot.slane %v2973, 1
        %v2975 = vadd.f32 %v2973, %v2974
        %v2976 = vrot.slane %v2969, 4
        %v2977 = vadd.f32 %v2969, %v2976
        %v2978 = vrot.slane %v2977, 2
        %v2979 = vadd.f32 %v2977, %v2978
        %v2980 = vrot.slane %v2979, 1
        %v2981 = vadd.f32 %v2979, %v2980
        %v2982 = vld [vmem:[#allocation8] sm:$0xff]
        %v2983 = vld [vmem:[#allocation8 + $0x8] sm:$0xff]
        %v2984 = vld [vmem:[#allocation8 + $0x10] sm:$0xff]
        %v2985 = vld [vmem:[#allocation8 + $0x18] sm:$0xff]
        %v2986 = vld [vmem:[#allocation8 + $0x20] sm:$0xff]
        %v2987 = vld [vmem:[#allocation8 + $0x28] sm:$0xff]
        %v2988 = vld [vmem:[#allocation8 + $0x30] sm:$0xff]
        %v2989 = vld [vmem:[#allocation8 + $0x38] sm:$0xff]
        %v2990 = vld [vmem:[#allocation8 + $0x40] sm:$0xff]
        %v2991 = vld [vmem:[#allocation8 + $0x48] sm:$0xff]
        %v2992 = vld [vmem:[#allocation8 + $0x50] sm:$0xff]
        %v2993 = vld [vmem:[#allocation8 + $0x58] sm:$0xff]
        %v2994 = vld [vmem:[#allocation8 + $0x60] sm:$0xff]
        %v2995 = vld [vmem:[#allocation8 + $0x68] sm:$0xff]
        %v2996 = vld [vmem:[#allocation8 + $0x70] sm:$0xff]
        %v2997 = vld [vmem:[#allocation8 + $0x78] sm:$0xff]
        %v2998 = vld [vmem:[#allocation8 + $0x80] sm:$0xff]
        %v2999 = vld [vmem:[#allocation8 + $0x88] sm:$0xff]
        %v3000 = vld [vmem:[#allocation8 + $0x90] sm:$0xff]
        %v3001 = vld [vmem:[#allocation8 + $0x98] sm:$0xff]
        %v3002 = vld [vmem:[#allocation8 + $0xa0] sm:$0xff]
        %v3003 = vld [vmem:[#allocation8 + $0xa8] sm:$0xff]
        %v3004 = vld [vmem:[#allocation8 + $0xb0] sm:$0xff]
        %v3005 = vld [vmem:[#allocation8 + $0xb8] sm:$0xff]
        %v3006 = vld [vmem:[#allocation8 + $0xc0] sm:$0xff]
        %v3007 = vld [vmem:[#allocation8 + $0xc8] sm:$0xff]
        %v3008 = vld [vmem:[#allocation8 + $0xd0] sm:$0xff]
        %v3009 = vld [vmem:[#allocation8 + $0xd8] sm:$0xff]
        %v3010 = vld [vmem:[#allocation8 + $0xe0] sm:$0xff]
        %v3011 = vld [vmem:[#allocation8 + $0xe8] sm:$0xff]
        %v3012 = vld [vmem:[#allocation8 + $0xf0] sm:$0xff]
        %v3013 = vld [vmem:[#allocation8 + $0xf8] sm:$0xff]
        %v3014 = vld [vmem:[#allocation8 + $0x100] sm:$0xff]
        %v3015 = vld [vmem:[#allocation8 + $0x108] sm:$0xff]
        %v3016 = vld [vmem:[#allocation8 + $0x110] sm:$0xff]
        %v3017 = vld [vmem:[#allocation8 + $0x118] sm:$0xff]
        %v3018 = vld [vmem:[#allocation8 + $0x120] sm:$0xff]
        %v3019 = vld [vmem:[#allocation8 + $0x128] sm:$0xff]
        %v3020 = vld [vmem:[#allocation8 + $0x130] sm:$0xff]
        %v3021 = vld [vmem:[#allocation8 + $0x138] sm:$0xff]
        %v3022 = vld [vmem:[#allocation8 + $0x140] sm:$0xff]
        %v3023 = vld [vmem:[#allocation8 + $0x148] sm:$0xff]
        %v3024 = vld [vmem:[#allocation8 + $0x150] sm:$0xff]
        %v3025 = vld [vmem:[#allocation8 + $0x158] sm:$0xff]
        %v3026 = vld [vmem:[#allocation8 + $0x160] sm:$0xff]
        %v3027 = vld [vmem:[#allocation8 + $0x168] sm:$0xff]
        %v3028 = vld [vmem:[#allocation8 + $0x170] sm:$0xff]
        %v3029 = vld [vmem:[#allocation8 + $0x178] sm:$0xff]
        %v3030 = vld [vmem:[#allocation8 + $0x180] sm:$0xff]
        %v3031 = vld [vmem:[#allocation8 + $0x188] sm:$0xff]
        %v3032 = vld [vmem:[#allocation8 + $0x190] sm:$0xff]
        %v3033 = vld [vmem:[#allocation8 + $0x198] sm:$0xff]
        %v3034 = vld [vmem:[#allocation8 + $0x1a0] sm:$0xff]
        %v3035 = vld [vmem:[#allocation8 + $0x1a8] sm:$0xff]
        %v3036 = vld [vmem:[#allocation8 + $0x1b0] sm:$0xff]
        %v3037 = vld [vmem:[#allocation8 + $0x1b8] sm:$0xff]
        %v3038 = vld [vmem:[#allocation8 + $0x1c0] sm:$0xff]
        %v3039 = vld [vmem:[#allocation8 + $0x1c8] sm:$0xff]
        %v3040 = vld [vmem:[#allocation8 + $0x1d0] sm:$0xff]
        %v3041 = vld [vmem:[#allocation8 + $0x1d8] sm:$0xff]
        %v3042 = vld [vmem:[#allocation8 + $0x1e0] sm:$0xff]
        %v3043 = vld [vmem:[#allocation8 + $0x1e8] sm:$0xff]
        %v3044 = vld [vmem:[#allocation8 + $0x1f0] sm:$0xff]
        %v3045 = vld [vmem:[#allocation8 + $0x1f8] sm:$0xff]
        %3046 = vmatprep.subr.mxu0 %v2983
        %3047 = vmatpush1.msra.mxu0 %v2982
        %3048 = vmatprep.subr.mxu0 %v2985
        %3049 = vmatpush1.msra.mxu0 %v2984
        %3050 = vmatprep.subr.mxu0 %v2987
        %3051 = vmatpush1.msra.mxu0 %v2986
        %3052 = vmatprep.subr.mxu0 %v2989
        %3053 = vmatpush1.msra.mxu0 %v2988
        %3054 = vmatprep.subr.mxu0 %v2991
        %3055 = vmatpush1.msra.mxu0 %v2990
        %3056 = vmatprep.subr.mxu0 %v2993
        %3057 = vmatpush1.msra.mxu0 %v2992
        %3058 = vmatprep.subr.mxu0 %v2995
        %3059 = vmatpush1.msra.mxu0 %v2994
        %3060 = vmatprep.subr.mxu0 %v2997
        %3061 = vmatpush1.msra.mxu0 %v2996
        %3062 = vmatprep.subr.mxu0 %v2999
        %3063 = vmatpush1.msra.mxu0 %v2998
        %3064 = vmatprep.subr.mxu0 %v3001
        %3065 = vmatpush1.msra.mxu0 %v3000
        %3066 = vmatprep.subr.mxu0 %v3003
        %3067 = vmatpush1.msra.mxu0 %v3002
        %3068 = vmatprep.subr.mxu0 %v3005
        %3069 = vmatpush1.msra.mxu0 %v3004
        %3070 = vmatprep.subr.mxu0 %v3007
        %3071 = vmatpush1.msra.mxu0 %v3006
        %3072 = vmatprep.subr.mxu0 %v3009
        %3073 = vmatpush1.msra.mxu0 %v3008
        %3074 = vmatprep.subr.mxu0 %v3011
        %3075 = vmatpush1.msra.mxu0 %v3010
        %3076 = vmatprep.subr.mxu0 %v3013
        %3077 = vmatpush1.msra.mxu0 %v3012
        %3078 = vmatprep.subr.mxu0 %v3015
        %3079 = vmatpush1.msra.mxu0 %v3014
        %3080 = vmatprep.subr.mxu0 %v3017
        %3081 = vmatpush1.msra.mxu0 %v3016
        %3082 = vmatprep.subr.mxu0 %v3019
        %3083 = vmatpush1.msra.mxu0 %v3018
        %3084 = vmatprep.subr.mxu0 %v3021
        %3085 = vmatpush1.msra.mxu0 %v3020
        %3086 = vmatprep.subr.mxu0 %v3023
        %3087 = vmatpush1.msra.mxu0 %v3022
        %3088 = vmatprep.subr.mxu0 %v3025
        %3089 = vmatpush1.msra.mxu0 %v3024
        %3090 = vmatprep.subr.mxu0 %v3027
        %3091 = vmatpush1.msra.mxu0 %v3026
        %3092 = vmatprep.subr.mxu0 %v3029
        %3093 = vmatpush1.msra.mxu0 %v3028
        %3094 = vmatprep.subr.mxu0 %v3031
        %3095 = vmatpush1.msra.mxu0 %v3030
        %3096 = vmatprep.subr.mxu0 %v3033
        %3097 = vmatpush1.msra.mxu0 %v3032
        %3098 = vmatprep.subr.mxu0 %v3035
        %3099 = vmatpush1.msra.mxu0 %v3034
        %3100 = vmatprep.subr.mxu0 %v3037
        %3101 = vmatpush1.msra.mxu0 %v3036
        %3102 = vmatprep.subr.mxu0 %v3039
        %3103 = vmatpush1.msra.mxu0 %v3038
        %3104 = vmatprep.subr.mxu0 %v3041
        %3105 = vmatpush1.msra.mxu0 %v3040
        %3106 = vmatprep.subr.mxu0 %v3043
        %3107 = vmatpush1.msra.mxu0 %v3042
        %3108 = vmatprep.subr.mxu0 %v3045
        %3109 = vmatpush1.msra.mxu0 %v3044
        %3110 = vmatprep.mubr.f32.mxu0 %v2967
        %3111 = vmatmul.mubr.f32.gmra.mrb[0].mxu0 %v2961
        %v3112 = vpop.f32.mrb[0].mxu0
        %v3113 = vadd.f32 0.0, %v3112
        %v3114 = vpop.f32.mrb[0].mxu0
        %v3115 = vadd.f32 0.0, %v3114
        %3116 = vdwg.mxu0
        %3117 = vmatprep.subr.mxu0 %v2983
        %3118 = vmatpush1.msra.mxu0 %v2982
        %3119 = vmatprep.subr.mxu0 %v2985
        %3120 = vmatpush1.msra.mxu0 %v2984
        %3121 = vmatprep.subr.mxu0 %v2987
        %3122 = vmatpush1.msra.mxu0 %v2986
        %3123 = vmatprep.subr.mxu0 %v2989
        %3124 = vmatpush1.msra.mxu0 %v2988
        %3125 = vmatprep.subr.mxu0 %v2991
        %3126 = vmatpush1.msra.mxu0 %v2990
        %3127 = vmatprep.subr.mxu0 %v2993
        %3128 = vmatpush1.msra.mxu0 %v2992
        %3129 = vmatprep.subr.mxu0 %v2995
        %3130 = vmatpush1.msra.mxu0 %v2994
        %3131 = vmatprep.subr.mxu0 %v2997
        %3132 = vmatpush1.msra.mxu0 %v2996
        %3133 = vmatprep.subr.mxu0 %v2999
        %3134 = vmatpush1.msra.mxu0 %v2998
        %3135 = vmatprep.subr.mxu0 %v3001
        %3136 = vmatpush1.msra.mxu0 %v3000
        %3137 = vmatprep.subr.mxu0 %v3003
        %3138 = vmatpush1.msra.mxu0 %v3002
        %3139 = vmatprep.subr.mxu0 %v3005
        %3140 = vmatpush1.msra.mxu0 %v3004
        %3141 = vmatprep.subr.mxu0 %v3007
        %3142 = vmatpush1.msra.mxu0 %v3006
        %3143 = vmatprep.subr.mxu0 %v3009
        %3144 = vmatpush1.msra.mxu0 %v3008
        %3145 = vmatprep.subr.mxu0 %v3011
        %3146 = vmatpush1.msra.mxu0 %v3010
        %3147 = vmatprep.subr.mxu0 %v3013
        %3148 = vmatpush1.msra.mxu0 %v3012
        %3149 = vmatprep.subr.mxu0 %v3015
        %3150 = vmatpush1.msra.mxu0 %v3014
        %3151 = vmatprep.subr.mxu0 %v3017
        %3152 = vmatpush1.msra.mxu0 %v3016
        %3153 = vmatprep.subr.mxu0 %v3019
        %3154 = vmatpush1.msra.mxu0 %v3018
        %3155 = vmatprep.subr.mxu0 %v3021
        %3156 = vmatpush1.msra.mxu0 %v3020
        %3157 = vmatprep.subr.mxu0 %v3023
        %3158 = vmatpush1.msra.mxu0 %v3022
        %3159 = vmatprep.subr.mxu0 %v3025
        %3160 = vmatpush1.msra.mxu0 %v3024
        %3161 = vmatprep.subr.mxu0 %v3027
        %3162 = vmatpush1.msra.mxu0 %v3026
        %3163 = vmatprep.subr.mxu0 %v3029
        %3164 = vmatpush1.msra.mxu0 %v3028
        %3165 = vmatprep.subr.mxu0 %v3031
        %3166 = vmatpush1.msra.mxu0 %v3030
        %3167 = vmatprep.subr.mxu0 %v3033
        %3168 = vmatpush1.msra.mxu0 %v3032
        %3169 = vmatprep.subr.mxu0 %v3035
        %3170 = vmatpush1.msra.mxu0 %v3034
        %3171 = vmatprep.subr.mxu0 %v3037
        %3172 = vmatpush1.msra.mxu0 %v3036
        %3173 = vmatprep.subr.mxu0 %v3039
        %3174 = vmatpush1.msra.mxu0 %v3038
        %3175 = vmatprep.subr.mxu0 %v3041
        %3176 = vmatpush1.msra.mxu0 %v3040
        %3177 = vmatprep.subr.mxu0 %v3043
        %3178 = vmatpush1.msra.mxu0 %v3042
        %3179 = vmatprep.subr.mxu0 %v3045
        %3180 = vmatpush1.msra.mxu0 %v3044
        %3181 = vmatprep.mubr.f32.mxu0 %v2981
        %3182 = vmatmul.mubr.f32.gmra.mrb[0].mxu0 %v2975
        %v3183 = vpop.f32.mrb[0].mxu0
        %v3184 = vadd.f32 0.0, %v3183
        %v3185 = vpop.f32.mrb[0].mxu0
        %v3186 = vadd.f32 0.0, %v3185
        %3187 = vdwg.mxu0
        %v3188 = vmul.f32 %v3113, %v3113
        %v3189 = vmul.f32 %v3115, %v3115
        %v3190 = vsub.f32 %v3184, %v3188
        %v3191 = vsub.f32 %v3186, %v3189
        %v3192 = vlaneseq
        %v3193 = vshrl.u32 %v3192, 7
        %v3194 = vsub.s32 0, %v3193
        %v3195 = vrot.slane %v3113, %v3194
        %v3196 = vlaneseq
        %v3197 = vshrl.u32 %v3196, 7
        %v3198 = vsub.s32 0, %v3197
        %v3199 = vrot.slane %v3115, %v3198
        %v3200 = vsub.f32 %v2954, %v3195
        %v3201 = vsub.f32 %v2955, %v3199
        %v3202 = vadd.f32 %v3190, 1e-05
        %v3203 = vadd.f32 %v3191, 1e-05
        %v3204 = vrsqrt.pop %v3202
        %v3205 = vrsqrt.pop %v3203
        %v3206 = vlaneseq
        %v3207 = vshrl.u32 %v3206, 7
        %v3208 = vsub.s32 0, %v3207
        %v3209 = vrot.slane %v3204, %v3208
        %v3210 = vlaneseq
        %v3211 = vshrl.u32 %v3210, 7
        %v3212 = vsub.s32 0, %v3211
        %v3213 = vrot.slane %v3205, %v3212
        %v3214 = vmul.f32 %v3200, %v3209
        %v3215 = vmul.f32 %v3201, %v3213
        %vm3216 = vcmp.ge.f32.partialorder %v3214, 0.0
        %vm3217 = vcmp.ge.f32.partialorder %v3215, 0.0
        %v3218 = vmul.f32 %v3214, 0.2
        %v3219 = vmul.f32 %v3215, 0.2
        %v3220 = vsel %vm3216, %v3214, %v3218
        %v3221 = vsel %vm3217, %v3215, %v3219
        %v3224 = vcombine.low %v3220, %v3221
        %v3226 = vunpack.c.l.s4 1966171168
        %v3227 = vunpack.c.0.s8 %v3226
        %v3228 = vlaneseq
        %v3229 = vshrl.u32 %v3228, 7
        %v3230 = vsub.s32 %v3227, %v3229
        %v3231 = vrot.slane %v3224, %v3230
        %v3233 = vunpack.c.l.s4 1966171168
        %v3234 = vunpack.c.0.s8 %v3233
        %v3235 = vlaneseq
        %v3236 = vshrl.u32 %v3235, 7
        %v3237 = vsub.s32 %v3234, %v3236
        %v3238 = vrot.slane %v3231, %v3237
        %3239 = vrot.lane.b32.xlu0 %v3238, 32
        %v3240 = vpop.permute.xlu0 %3239
        %v3241 = vrot.slane %v3240, 7
        %v3242 = vsel %vm542, %v3241, %v3240
        %s3244 = scalar_lea.vmem [#allocation3], 24
        %vm3245 = vcmp.ge.s32.totalorder %v1442, 32
        %vm3246 = vcmp.lt.s32.totalorder %v1442, 288
        %vm3247 = vmand %vm3245, %vm3246
        %3248 = vst.msk [vmem:[%s3244] ss:$8 sm:$0x7] %vm3247, %v3242
        %3249 = vst.msk [vmem:[%s3244] ss:$8 sm:$0x0] %vm3247, %v3242
        %v3250 = vcombine.high %v3231, %v3231
        %v3252 = vunpack.c.l.s4 1966171168
        %v3253 = vunpack.c.0.s8 %v3252
        %v3254 = vlaneseq
        %v3255 = vshrl.u32 %v3254, 7
        %v3256 = vsub.s32 %v3253, %v3255
        %v3257 = vrot.slane %v3250, %v3256
        %3258 = vrot.lane.b32.xlu0 %v3257, 32
        %v3259 = vpop.permute.xlu0 %3258
        %v3260 = vrot.slane %v3259, 7
        %v3261 = vsel %vm542, %v3260, %v3259
        %s3263 = scalar_lea.vmem [#allocation3], 1
        %3264 = vst.msk [vmem:[%s3263] ss:$8 sm:$0x7] %vm3247, %v3261
        %3265 = vst.msk [vmem:[%s3263] ss:$8 sm:$0x0] %vm3247, %v3261
        %v3266 = vcombine.high %v3238, %v3238
        %3267 = vrot.lane.b32.xlu0 %v3266, 32
        %v3268 = vpop.permute.xlu0 %3267
        %v3269 = vrot.slane %v3268, 7
        %v3270 = vsel %vm542, %v3269, %v3268
        %s3272 = scalar_lea.vmem %s3244, 1 [#allocation3]
        %3273 = vst.msk [vmem:[%s3272] ss:$8 sm:$0x7] %vm3247, %v3270
        %3274 = vst.msk [vmem:[%s3272] ss:$8 sm:$0x0] %vm3247, %v3270
        %v3275 = vcombine.high %v3257, %v3257
        %3276 = vrot.lane.b32.xlu0 %v3275, 32
        %v3277 = vpop.permute.xlu0 %3276
        %v3278 = vrot.slane %v3277, 7
        %v3279 = vsel %vm542, %v3278, %v3277
        %s3281 = scalar_lea.vmem [#allocation3], 2
        %3282 = vst.msk [vmem:[%s3281] ss:$8 sm:$0x7] %vm3247, %v3279
        %3283 = vst.msk [vmem:[%s3281] ss:$8 sm:$0x0] %vm3247, %v3279
        %v3284 = vcombine.high %v3220, %v3221
        %v3286 = vunpack.c.l.s4 1966171168
        %v3287 = vunpack.c.0.s8 %v3286
        %v3288 = vlaneseq
        %v3289 = vshrl.u32 %v3288, 7
        %v3290 = vsub.s32 %v3287, %v3289
        %v3291 = vrot.slane %v3284, %v3290
        %v3293 = vunpack.c.l.s4 1966171168
        %v3294 = vunpack.c.0.s8 %v3293
        %v3295 = vlaneseq
        %v3296 = vshrl.u32 %v3295, 7
        %v3297 = vsub.s32 %v3294, %v3296
        %v3298 = vrot.slane %v3291, %v3297
        %3299 = vrot.lane.b32.xlu0 %v3298, 32
        %v3300 = vpop.permute.xlu0 %3299
        %v3301 = vrot.slane %v3300, 7
        %v3302 = vsel %vm542, %v3301, %v3300
        %s3304 = scalar_lea.vmem %s3244, 2 [#allocation3]
        %3305 = vst.msk [vmem:[%s3304] ss:$8 sm:$0x7] %vm3247, %v3302
        %3306 = vst.msk [vmem:[%s3304] ss:$8 sm:$0x0] %vm3247, %v3302
        %v3307 = vcombine.high %v3291, %v3291
        %v3309 = vunpack.c.l.s4 1966171168
        %v3310 = vunpack.c.0.s8 %v3309
        %v3311 = vlaneseq
        %v3312 = vshrl.u32 %v3311, 7
        %v3313 = vsub.s32 %v3310, %v3312
        %v3314 = vrot.slane %v3307, %v3313
        %3315 = vrot.lane.b32.xlu0 %v3314, 32
        %v3316 = vpop.permute.xlu0 %3315
        %v3317 = vrot.slane %v3316, 7
        %v3318 = vsel %vm542, %v3317, %v3316
        %s3320 = scalar_lea.vmem [#allocation3], 3
        %3321 = vst.msk [vmem:[%s3320] ss:$8 sm:$0x7] %vm3247, %v3318
        %3322 = vst.msk [vmem:[%s3320] ss:$8 sm:$0x0] %vm3247, %v3318
        %v3323 = vcombine.high %v3298, %v3298
        %3324 = vrot.lane.b32.xlu0 %v3323, 32
        %v3325 = vpop.permute.xlu0 %3324
        %v3326 = vrot.slane %v3325, 7
        %v3327 = vsel %vm542, %v3326, %v3325
        %s3329 = scalar_lea.vmem %s3244, 3 [#allocation3]
        %3330 = vst.msk [vmem:[%s3329] ss:$8 sm:$0x7] %vm3247, %v3327
        %3331 = vst.msk [vmem:[%s3329] ss:$8 sm:$0x0] %vm3247, %v3327
        %v3332 = vcombine.high %v3314, %v3314
        %3333 = vrot.lane.b32.xlu0 %v3332, 32
        %v3334 = vpop.permute.xlu0 %3333
        %v3335 = vrot.slane %v3334, 7
        %v3336 = vsel %vm542, %v3335, %v3334
        %s3338 = scalar_lea.vmem [#allocation3], 4
        %3339 = vst.msk [vmem:[%s3338] ss:$8 sm:$0x7] %vm3247, %v3336
        %3340 = vst.msk [vmem:[%s3338] ss:$8 sm:$0x0] %vm3247, %v3336
        %v3341 = vld [vmem:[#allocation3] sm:$0xf]
        %v3342 = vld [vmem:[#allocation3 + $0x8] sm:$0xf]
        %v3343 = vld [vmem:[#allocation3 + $0x10] sm:$0xf]
        %v3344 = vpack.c.bf16 %v3341, %v3341
        %v3345 = vpack.c.bf16 %v3342, %v3342
        %v3346 = vpack.c.bf16 %v3343, %v3343
        %v3347 = vld [vmem:[#allocation10] sm:$0xff]
        %v3348 = vld [vmem:[#allocation10 + $0x8] sm:$0xff]
        %v3349 = vld [vmem:[#allocation10 + $0x10] sm:$0xff]
        %v3350 = vld [vmem:[#allocation10 + $0x18] sm:$0xff]
        %v3351 = vld [vmem:[#allocation10 + $0x20] sm:$0xff]
        %v3352 = vld [vmem:[#allocation10 + $0x28] sm:$0xff]
        %v3353 = vld [vmem:[#allocation10 + $0x30] sm:$0xff]
        %v3354 = vld [vmem:[#allocation10 + $0x38] sm:$0xff]
        %v3355 = vld [vmem:[#allocation10 + $0x40] sm:$0xff]
        %v3356 = vld [vmem:[#allocation10 + $0x48] sm:$0xff]
        %v3357 = vld [vmem:[#allocation10 + $0x50] sm:$0xff]
        %v3358 = vld [vmem:[#allocation10 + $0x58] sm:$0xff]
        %v3359 = vld [vmem:[#allocation10 + $0x60] sm:$0xff]
        %v3360 = vld [vmem:[#allocation10 + $0x68] sm:$0xff]
        %v3361 = vld [vmem:[#allocation10 + $0x70] sm:$0xff]
        %v3362 = vld [vmem:[#allocation10 + $0x78] sm:$0xff]
        %v3363 = vld [vmem:[#allocation10 + $0x80] sm:$0xff]
        %v3364 = vld [vmem:[#allocation10 + $0x88] sm:$0xff]
        %v3365 = vld [vmem:[#allocation10 + $0x90] sm:$0xff]
        %v3366 = vld [vmem:[#allocation10 + $0x98] sm:$0xff]
        %v3367 = vld [vmem:[#allocation10 + $0xa0] sm:$0xff]
        %v3368 = vld [vmem:[#allocation10 + $0xa8] sm:$0xff]
        %v3369 = vld [vmem:[#allocation10 + $0xb0] sm:$0xff]
        %v3370 = vld [vmem:[#allocation10 + $0xb8] sm:$0xff]
        %v3371 = vld [vmem:[#allocation10 + $0xc0] sm:$0xff]
        %v3372 = vld [vmem:[#allocation10 + $0xc8] sm:$0xff]
        %v3373 = vld [vmem:[#allocation10 + $0xd0] sm:$0xff]
        %v3374 = vld [vmem:[#allocation10 + $0xd8] sm:$0xff]
        %v3375 = vld [vmem:[#allocation10 + $0xe0] sm:$0xff]
        %v3376 = vld [vmem:[#allocation10 + $0xe8] sm:$0xff]
        %v3377 = vld [vmem:[#allocation10 + $0xf0] sm:$0xff]
        %v3378 = vld [vmem:[#allocation10 + $0xf8] sm:$0xff]
        %v3379 = vld [vmem:[#allocation10 + $0x100] sm:$0xff]
        %v3380 = vld [vmem:[#allocation10 + $0x108] sm:$0xff]
        %v3381 = vld [vmem:[#allocation10 + $0x110] sm:$0xff]
        %v3382 = vld [vmem:[#allocation10 + $0x118] sm:$0xff]
        %v3383 = vld [vmem:[#allocation10 + $0x120] sm:$0xff]
        %v3384 = vld [vmem:[#allocation10 + $0x128] sm:$0xff]
        %v3385 = vld [vmem:[#allocation10 + $0x130] sm:$0xff]
        %v3386 = vld [vmem:[#allocation10 + $0x138] sm:$0xff]
        %v3387 = vld [vmem:[%s3244] sm:$0xf]
        %v3388 = vld [vmem:[%s3244 + $0x8] sm:$0xf]
        %v3389 = vld [vmem:[%s3244 + $0x10] sm:$0xf]
        %v3390 = vpack.c.bf16 %v3387, %v3387
        %v3391 = vpack.c.bf16 %v3388, %v3388
        %v3392 = vpack.c.bf16 %v3389, %v3389
        %s3393 = scalar_lea.vmem [#allocation10], 320
        %v3394 = vld [vmem:[%s3393] sm:$0xff]
        %v3395 = vld [vmem:[%s3393 + $0x8] sm:$0xff]
        %v3396 = vld [vmem:[%s3393 + $0x10] sm:$0xff]
        %v3397 = vld [vmem:[%s3393 + $0x18] sm:$0xff]
        %v3398 = vld [vmem:[%s3393 + $0x20] sm:$0xff]
        %v3399 = vld [vmem:[%s3393 + $0x28] sm:$0xff]
        %v3400 = vld [vmem:[%s3393 + $0x30] sm:$0xff]
        %v3401 = vld [vmem:[%s3393 + $0x38] sm:$0xff]
        %v3402 = vld [vmem:[%s3393 + $0x40] sm:$0xff]
        %v3403 = vld [vmem:[%s3393 + $0x48] sm:$0xff]
        %v3404 = vld [vmem:[%s3393 + $0x50] sm:$0xff]
        %v3405 = vld [vmem:[%s3393 + $0x58] sm:$0xff]
        %v3406 = vld [vmem:[%s3393 + $0x60] sm:$0xff]
        %v3407 = vld [vmem:[%s3393 + $0x68] sm:$0xff]
        %v3408 = vld [vmem:[%s3393 + $0x70] sm:$0xff]
        %v3409 = vld [vmem:[%s3393 + $0x78] sm:$0xff]
        %v3410 = vld [vmem:[%s3393 + $0x80] sm:$0xff]
        %v3411 = vld [vmem:[%s3393 + $0x88] sm:$0xff]
        %v3412 = vld [vmem:[%s3393 + $0x90] sm:$0xff]
        %v3413 = vld [vmem:[%s3393 + $0x98] sm:$0xff]
        %v3414 = vld [vmem:[%s3393 + $0xa0] sm:$0xff]
        %v3415 = vld [vmem:[%s3393 + $0xa8] sm:$0xff]
        %v3416 = vld [vmem:[%s3393 + $0xb0] sm:$0xff]
        %v3417 = vld [vmem:[%s3393 + $0xb8] sm:$0xff]
        %v3418 = vld [vmem:[%s3393 + $0xc0] sm:$0xff]
        %v3419 = vld [vmem:[%s3393 + $0xc8] sm:$0xff]
        %v3420 = vld [vmem:[%s3393 + $0xd0] sm:$0xff]
        %v3421 = vld [vmem:[%s3393 + $0xd8] sm:$0xff]
        %v3422 = vld [vmem:[%s3393 + $0xe0] sm:$0xff]
        %v3423 = vld [vmem:[%s3393 + $0xe8] sm:$0xff]
        %v3424 = vld [vmem:[%s3393 + $0xf0] sm:$0xff]
        %v3425 = vld [vmem:[%s3393 + $0xf8] sm:$0xff]
        %v3426 = vld [vmem:[%s3393 + $0x100] sm:$0xff]
        %v3427 = vld [vmem:[%s3393 + $0x108] sm:$0xff]
        %v3428 = vld [vmem:[%s3393 + $0x110] sm:$0xff]
        %v3429 = vld [vmem:[%s3393 + $0x118] sm:$0xff]
        %v3430 = vld [vmem:[%s3393 + $0x120] sm:$0xff]
        %v3431 = vld [vmem:[%s3393 + $0x128] sm:$0xff]
        %v3432 = vld [vmem:[%s3393 + $0x130] sm:$0xff]
        %v3433 = vld [vmem:[%s3393 + $0x138] sm:$0xff]
        %v3474 = vunpack.c.l.b16 %v3394
        %v3475 = vunpack.c.h.b16 %v3394
        %v3476 = vunpack.c.l.b16 %v3395
        %v3477 = vunpack.c.h.b16 %v3395
        %v3478 = vunpack.c.l.b16 %v3396
        %v3479 = vunpack.c.h.b16 %v3396
        %v3480 = vunpack.c.l.b16 %v3397
        %v3481 = vunpack.c.h.b16 %v3397
        %v3482 = vunpack.c.l.b16 %v3398
        %v3483 = vunpack.c.h.b16 %v3398
        %v3484 = vunpack.c.l.b16 %v3399
        %v3485 = vunpack.c.h.b16 %v3399
        %v3486 = vunpack.c.l.b16 %v3400
        %v3487 = vunpack.c.h.b16 %v3400
        %v3488 = vunpack.c.l.b16 %v3401
        %v3489 = vunpack.c.h.b16 %v3401
        %v3490 = vunpack.c.l.b16 %v3402
        %v3491 = vunpack.c.h.b16 %v3402
        %v3492 = vunpack.c.l.b16 %v3403
        %v3493 = vunpack.c.h.b16 %v3403
        %v3494 = vunpack.c.l.b16 %v3404
        %v3495 = vunpack.c.h.b16 %v3404
        %v3496 = vunpack.c.l.b16 %v3405
        %v3497 = vunpack.c.h.b16 %v3405
        %v3498 = vunpack.c.l.b16 %v3406
        %v3499 = vunpack.c.h.b16 %v3406
        %v3500 = vunpack.c.l.b16 %v3407
        %v3501 = vunpack.c.h.b16 %v3407
        %v3502 = vunpack.c.l.b16 %v3408
        %v3503 = vunpack.c.h.b16 %v3408
        %v3504 = vunpack.c.l.b16 %v3409
        %v3505 = vunpack.c.h.b16 %v3409
        %v3506 = vunpack.c.l.b16 %v3410
        %v3507 = vunpack.c.h.b16 %v3410
        %v3508 = vunpack.c.l.b16 %v3411
        %v3509 = vunpack.c.h.b16 %v3411
        %v3510 = vunpack.c.l.b16 %v3412
        %v3511 = vunpack.c.h.b16 %v3412
        %v3512 = vunpack.c.l.b16 %v3413
        %v3513 = vunpack.c.h.b16 %v3413
        %v3514 = vunpack.c.l.b16 %v3414
        %v3515 = vunpack.c.h.b16 %v3414
        %v3516 = vunpack.c.l.b16 %v3415
        %v3517 = vunpack.c.h.b16 %v3415
        %v3518 = vunpack.c.l.b16 %v3416
        %v3519 = vunpack.c.h.b16 %v3416
        %v3520 = vunpack.c.l.b16 %v3417
        %v3521 = vunpack.c.h.b16 %v3417
        %v3522 = vunpack.c.l.b16 %v3418
        %v3523 = vunpack.c.h.b16 %v3418
        %v3524 = vunpack.c.l.b16 %v3419
        %v3525 = vunpack.c.h.b16 %v3419
        %v3526 = vunpack.c.l.b16 %v3420
        %v3527 = vunpack.c.h.b16 %v3420
        %v3528 = vunpack.c.l.b16 %v3421
        %v3529 = vunpack.c.h.b16 %v3421
        %v3530 = vunpack.c.l.b16 %v3422
        %v3531 = vunpack.c.h.b16 %v3422
        %v3532 = vunpack.c.l.b16 %v3423
        %v3533 = vunpack.c.h.b16 %v3423
        %v3534 = vunpack.c.l.b16 %v3424
        %v3535 = vunpack.c.h.b16 %v3424
        %v3536 = vunpack.c.l.b16 %v3425
        %v3537 = vunpack.c.h.b16 %v3425
        %v3538 = vunpack.c.l.b16 %v3426
        %v3539 = vunpack.c.h.b16 %v3426
        %v3540 = vunpack.c.l.b16 %v3427
        %v3541 = vunpack.c.h.b16 %v3427
        %v3542 = vunpack.c.l.b16 %v3428
        %v3543 = vunpack.c.h.b16 %v3428
        %v3544 = vunpack.c.l.b16 %v3429
        %v3545 = vunpack.c.h.b16 %v3429
        %v3546 = vunpack.c.l.b16 %v3430
        %v3547 = vunpack.c.h.b16 %v3430
        %v3548 = vunpack.c.l.b16 %v3431
        %v3549 = vunpack.c.h.b16 %v3431
        %v3550 = vunpack.c.l.b16 %v3432
        %v3551 = vunpack.c.h.b16 %v3432
        %v3552 = vunpack.c.l.b16 %v3433
        %v3553 = vunpack.c.h.b16 %v3433
        %v3554 = vpack.c.b16 %v3476, %v3474
        %v3555 = vpack.c.b16 %v3477, %v3475
        %v3556 = vpack.c.b16 %v3480, %v3478
        %v3557 = vpack.c.b16 %v3481, %v3479
        %v3558 = vpack.c.b16 %v3484, %v3482
        %v3559 = vpack.c.b16 %v3485, %v3483
        %v3560 = vpack.c.b16 %v3488, %v3486
        %v3561 = vpack.c.b16 %v3489, %v3487
        %v3562 = vpack.c.b16 %v3492, %v3490
        %v3563 = vpack.c.b16 %v3493, %v3491
        %v3564 = vpack.c.b16 %v3496, %v3494
        %v3565 = vpack.c.b16 %v3497, %v3495
        %v3566 = vpack.c.b16 %v3500, %v3498
        %v3567 = vpack.c.b16 %v3501, %v3499
        %v3568 = vpack.c.b16 %v3504, %v3502
        %v3569 = vpack.c.b16 %v3505, %v3503
        %v3570 = vpack.c.b16 %v3508, %v3506
        %v3571 = vpack.c.b16 %v3509, %v3507
        %v3572 = vpack.c.b16 %v3512, %v3510
        %v3573 = vpack.c.b16 %v3513, %v3511
        %v3574 = vpack.c.b16 %v3516, %v3514
        %v3575 = vpack.c.b16 %v3517, %v3515
        %v3576 = vpack.c.b16 %v3520, %v3518
        %v3577 = vpack.c.b16 %v3521, %v3519
        %v3578 = vpack.c.b16 %v3524, %v3522
        %v3579 = vpack.c.b16 %v3525, %v3523
        %v3580 = vpack.c.b16 %v3528, %v3526
        %v3581 = vpack.c.b16 %v3529, %v3527
        %v3582 = vpack.c.b16 %v3532, %v3530
        %v3583 = vpack.c.b16 %v3533, %v3531
        %v3584 = vpack.c.b16 %v3536, %v3534
        %v3585 = vpack.c.b16 %v3537, %v3535
        %v3586 = vpack.c.b16 %v3540, %v3538
        %v3587 = vpack.c.b16 %v3541, %v3539
        %v3588 = vpack.c.b16 %v3544, %v3542
        %v3589 = vpack.c.b16 %v3545, %v3543
        %v3590 = vpack.c.b16 %v3548, %v3546
        %v3591 = vpack.c.b16 %v3549, %v3547
        %v3592 = vpack.c.b16 %v3552, %v3550
        %v3593 = vpack.c.b16 %v3553, %v3551
        %vm3634 = vcmask 523264
        %v3636 = vsel %vm3634, %v3392, 0
        %3638 = vmatprep.subr.bf16.mxu0 %v3555
        %3639 = vmatpush1.bf16.msra.mxu0 %v3554
        %3640 = vmatprep.subr.bf16.mxu0 %v3557
        %3641 = vmatpush1.bf16.msra.mxu0 %v3556
        %3642 = vmatprep.subr.bf16.mxu0 %v3559
        %3643 = vmatpush1.bf16.msra.mxu0 %v3558
        %3644 = vmatprep.subr.bf16.mxu0 %v3561
        %3645 = vmatpush1.bf16.msra.mxu0 %v3560
        %3646 = vmatprep.subr.bf16.mxu0 %v3563
        %3647 = vmatpush1.bf16.msra.mxu0 %v3562
        %3648 = vmatprep.subr.bf16.mxu0 %v3565
        %3649 = vmatpush1.bf16.msra.mxu0 %v3564
        %3650 = vmatprep.subr.bf16.mxu0 %v3567
        %3651 = vmatpush1.bf16.msra.mxu0 %v3566
        %3652 = vmatprep.subr.bf16.mxu0 %v3569
        %3653 = vmatpush1.bf16.msra.mxu0 %v3568
        %3654 = vmatprep.subr.bf16.mxu0 %v3571
        %3655 = vmatpush1.bf16.msra.mxu0 %v3570
        %3656 = vmatprep.subr.bf16.mxu0 %v3573
        %3657 = vmatpush1.bf16.msra.mxu0 %v3572
        %3658 = vmatprep.subr.bf16.mxu0 %v3575
        %3659 = vmatpush1.bf16.msra.mxu0 %v3574
        %3660 = vmatprep.subr.bf16.mxu0 %v3577
        %3661 = vmatpush1.bf16.msra.mxu0 %v3576
        %3662 = vmatprep.subr.bf16.mxu0 %v3579
        %3663 = vmatpush1.bf16.msra.mxu0 %v3578
        %3664 = vmatprep.subr.bf16.mxu0 %v3581
        %3665 = vmatpush1.bf16.msra.mxu0 %v3580
        %3666 = vmatprep.subr.bf16.mxu0 %v3583
        %3667 = vmatpush1.bf16.msra.mxu0 %v3582
        %3668 = vmatprep.subr.bf16.mxu0 %v3585
        %3669 = vmatpush1.bf16.msra.mxu0 %v3584
        %3670 = vmatprep.mubr.bf16.mxu0 %v3391
        %3671 = vmatmul.mubr.bf16.gmra.mrb[0].mxu0 %v3390
        %v3672 = vpop.f32.mrb[0].mxu0
        %v3673 = vadd.f32 0.0, %v3672
        %v3674 = vpop.f32.mrb[0].mxu0
        %v3675 = vadd.f32 0.0, %v3674
        %v3676 = vpop.f32.mrb[0].mxu0
        %v3677 = vpop.f32.mrb[0].mxu0
        %3678 = vdwg.mxu0
        %3679 = vmatprep.subr.bf16.mxu0 %v3587
        %3680 = vmatpush1.bf16.msra.mxu0 %v3586
        %3681 = vmatprep.subr.bf16.mxu0 %v3589
        %3682 = vmatpush1.bf16.msra.mxu0 %v3588
        %3683 = vmatprep.subr.bf16.mxu0 %v3591
        %3684 = vmatpush1.bf16.msra.mxu0 %v3590
        %3685 = vmatprep.subr.bf16.mxu0 %v3593
        %3686 = vmatpush1.bf16.msra.mxu0 %v3592
        %3687 = vmatprep.subr.bf16.mxu0 0
        %3688 = vmatpush1.bf16.msra.mxu0 0
        %3689 = vmatprep.subr.bf16.mxu0 0
        %3690 = vmatpush1.bf16.msra.mxu0 0
        %3691 = vmatprep.subr.bf16.mxu0 0
        %3692 = vmatpush1.bf16.msra.mxu0 0
        %3693 = vmatprep.subr.bf16.mxu0 0
        %3694 = vmatpush1.bf16.msra.mxu0 0
        %3695 = vmatprep.subr.bf16.mxu0 0
        %3696 = vmatpush1.bf16.msra.mxu0 0
        %3697 = vmatprep.subr.bf16.mxu0 0
        %3698 = vmatpush1.bf16.msra.mxu0 0
        %3699 = vmatprep.subr.bf16.mxu0 0
        %3700 = vmatpush1.bf16.msra.mxu0 0
        %3701 = vmatprep.subr.bf16.mxu0 0
        %3702 = vmatpush1.bf16.msra.mxu0 0
        %3703 = vmatprep.subr.bf16.mxu0 0
        %3704 = vmatpush1.bf16.msra.mxu0 0
        %3705 = vmatprep.subr.bf16.mxu0 0
        %3706 = vmatpush1.bf16.msra.mxu0 0
        %3707 = vmatprep.subr.bf16.mxu0 0
        %3708 = vmatpush1.bf16.msra.mxu0 0
        %3709 = vmatprep.subr.bf16.mxu0 0
        %3710 = vmatpush1.bf16.msra.mxu0 0
        %3711 = vmatprep.mubr.bf16.mxu0 0
        %3712 = vmatmul.mubr.bf16.gmra.mrb[0].mxu0 %v3636
        %v3713 = vpop.f32.mrb[0].mxu0
        %v3714 = vadd.f32 %v3673, %v3713
        %v3715 = vpop.f32.mrb[0].mxu0
        %v3716 = vadd.f32 %v3675, %v3715
        %v3717 = vpop.f32.mrb[0].mxu0
        %v3718 = vpop.f32.mrb[0].mxu0
        %3719 = vdwg.mxu0
        %v3760 = vunpack.c.l.b16 %v3347
        %v3761 = vunpack.c.h.b16 %v3347
        %v3762 = vunpack.c.l.b16 %v3348
        %v3763 = vunpack.c.h.b16 %v3348
        %v3764 = vunpack.c.l.b16 %v3349
        %v3765 = vunpack.c.h.b16 %v3349
        %v3766 = vunpack.c.l.b16 %v3350
        %v3767 = vunpack.c.h.b16 %v3350
        %v3768 = vunpack.c.l.b16 %v3351
        %v3769 = vunpack.c.h.b16 %v3351
        %v3770 = vunpack.c.l.b16 %v3352
        %v3771 = vunpack.c.h.b16 %v3352
        %v3772 = vunpack.c.l.b16 %v3353
        %v3773 = vunpack.c.h.b16 %v3353
        %v3774 = vunpack.c.l.b16 %v3354
        %v3775 = vunpack.c.h.b16 %v3354
        %v3776 = vunpack.c.l.b16 %v3355
        %v3777 = vunpack.c.h.b16 %v3355
        %v3778 = vunpack.c.l.b16 %v3356
        %v3779 = vunpack.c.h.b16 %v3356
        %v3780 = vunpack.c.l.b16 %v3357
        %v3781 = vunpack.c.h.b16 %v3357
        %v3782 = vunpack.c.l.b16 %v3358
        %v3783 = vunpack.c.h.b16 %v3358
        %v3784 = vunpack.c.l.b16 %v3359
        %v3785 = vunpack.c.h.b16 %v3359
        %v3786 = vunpack.c.l.b16 %v3360
        %v3787 = vunpack.c.h.b16 %v3360
        %v3788 = vunpack.c.l.b16 %v3361
        %v3789 = vunpack.c.h.b16 %v3361
        %v3790 = vunpack.c.l.b16 %v3362
        %v3791 = vunpack.c.h.b16 %v3362
        %v3792 = vunpack.c.l.b16 %v3363
        %v3793 = vunpack.c.h.b16 %v3363
        %v3794 = vunpack.c.l.b16 %v3364
        %v3795 = vunpack.c.h.b16 %v3364
        %v3796 = vunpack.c.l.b16 %v3365
        %v3797 = vunpack.c.h.b16 %v3365
        %v3798 = vunpack.c.l.b16 %v3366
        %v3799 = vunpack.c.h.b16 %v3366
        %v3800 = vunpack.c.l.b16 %v3367
        %v3801 = vunpack.c.h.b16 %v3367
        %v3802 = vunpack.c.l.b16 %v3368
        %v3803 = vunpack.c.h.b16 %v3368
        %v3804 = vunpack.c.l.b16 %v3369
        %v3805 = vunpack.c.h.b16 %v3369
        %v3806 = vunpack.c.l.b16 %v3370
        %v3807 = vunpack.c.h.b16 %v3370
        %v3808 = vunpack.c.l.b16 %v3371
        %v3809 = vunpack.c.h.b16 %v3371
        %v3810 = vunpack.c.l.b16 %v3372
        %v3811 = vunpack.c.h.b16 %v3372
        %v3812 = vunpack.c.l.b16 %v3373
        %v3813 = vunpack.c.h.b16 %v3373
        %v3814 = vunpack.c.l.b16 %v3374
        %v3815 = vunpack.c.h.b16 %v3374
        %v3816 = vunpack.c.l.b16 %v3375
        %v3817 = vunpack.c.h.b16 %v3375
        %v3818 = vunpack.c.l.b16 %v3376
        %v3819 = vunpack.c.h.b16 %v3376
        %v3820 = vunpack.c.l.b16 %v3377
        %v3821 = vunpack.c.h.b16 %v3377
        %v3822 = vunpack.c.l.b16 %v3378
        %v3823 = vunpack.c.h.b16 %v3378
        %v3824 = vunpack.c.l.b16 %v3379
        %v3825 = vunpack.c.h.b16 %v3379
        %v3826 = vunpack.c.l.b16 %v3380
        %v3827 = vunpack.c.h.b16 %v3380
        %v3828 = vunpack.c.l.b16 %v3381
        %v3829 = vunpack.c.h.b16 %v3381
        %v3830 = vunpack.c.l.b16 %v3382
        %v3831 = vunpack.c.h.b16 %v3382
        %v3832 = vunpack.c.l.b16 %v3383
        %v3833 = vunpack.c.h.b16 %v3383
        %v3834 = vunpack.c.l.b16 %v3384
        %v3835 = vunpack.c.h.b16 %v3384
        %v3836 = vunpack.c.l.b16 %v3385
        %v3837 = vunpack.c.h.b16 %v3385
        %v3838 = vunpack.c.l.b16 %v3386
        %v3839 = vunpack.c.h.b16 %v3386
        %v3840 = vpack.c.b16 %v3762, %v3760
        %v3841 = vpack.c.b16 %v3763, %v3761
        %v3842 = vpack.c.b16 %v3766, %v3764
        %v3843 = vpack.c.b16 %v3767, %v3765
        %v3844 = vpack.c.b16 %v3770, %v3768
        %v3845 = vpack.c.b16 %v3771, %v3769
        %v3846 = vpack.c.b16 %v3774, %v3772
        %v3847 = vpack.c.b16 %v3775, %v3773
        %v3848 = vpack.c.b16 %v3778, %v3776
        %v3849 = vpack.c.b16 %v3779, %v3777
        %v3850 = vpack.c.b16 %v3782, %v3780
        %v3851 = vpack.c.b16 %v3783, %v3781
        %v3852 = vpack.c.b16 %v3786, %v3784
        %v3853 = vpack.c.b16 %v3787, %v3785
        %v3854 = vpack.c.b16 %v3790, %v3788
        %v3855 = vpack.c.b16 %v3791, %v3789
        %v3856 = vpack.c.b16 %v3794, %v3792
        %v3857 = vpack.c.b16 %v3795, %v3793
        %v3858 = vpack.c.b16 %v3798, %v3796
        %v3859 = vpack.c.b16 %v3799, %v3797
        %v3860 = vpack.c.b16 %v3802, %v3800
        %v3861 = vpack.c.b16 %v3803, %v3801
        %v3862 = vpack.c.b16 %v3806, %v3804
        %v3863 = vpack.c.b16 %v3807, %v3805
        %v3864 = vpack.c.b16 %v3810, %v3808
        %v3865 = vpack.c.b16 %v3811, %v3809
        %v3866 = vpack.c.b16 %v3814, %v3812
        %v3867 = vpack.c.b16 %v3815, %v3813
        %v3868 = vpack.c.b16 %v3818, %v3816
        %v3869 = vpack.c.b16 %v3819, %v3817
        %v3870 = vpack.c.b16 %v3822, %v3820
        %v3871 = vpack.c.b16 %v3823, %v3821
        %v3872 = vpack.c.b16 %v3826, %v3824
        %v3873 = vpack.c.b16 %v3827, %v3825
        %v3874 = vpack.c.b16 %v3830, %v3828
        %v3875 = vpack.c.b16 %v3831, %v3829
        %v3876 = vpack.c.b16 %v3834, %v3832
        %v3877 = vpack.c.b16 %v3835, %v3833
        %v3878 = vpack.c.b16 %v3838, %v3836
        %v3879 = vpack.c.b16 %v3839, %v3837
        %v3921 = vsel %vm3634, %v3346, 0
        %3923 = vmatprep.subr.bf16.mxu0 %v3841
        %3924 = vmatpush1.bf16.msra.mxu0 %v3840
        %3925 = vmatprep.subr.bf16.mxu0 %v3843
        %3926 = vmatpush1.bf16.msra.mxu0 %v3842
        %3927 = vmatprep.subr.bf16.mxu0 %v3845
        %3928 = vmatpush1.bf16.msra.mxu0 %v3844
        %3929 = vmatprep.subr.bf16.mxu0 %v3847
        %3930 = vmatpush1.bf16.msra.mxu0 %v3846
        %3931 = vmatprep.subr.bf16.mxu0 %v3849
        %3932 = vmatpush1.bf16.msra.mxu0 %v3848
        %3933 = vmatprep.subr.bf16.mxu0 %v3851
        %3934 = vmatpush1.bf16.msra.mxu0 %v3850
        %3935 = vmatprep.subr.bf16.mxu0 %v3853
        %3936 = vmatpush1.bf16.msra.mxu0 %v3852
        %3937 = vmatprep.subr.bf16.mxu0 %v3855
        %3938 = vmatpush1.bf16.msra.mxu0 %v3854
        %3939 = vmatprep.subr.bf16.mxu0 %v3857
        %3940 = vmatpush1.bf16.msra.mxu0 %v3856
        %3941 = vmatprep.subr.bf16.mxu0 %v3859
        %3942 = vmatpush1.bf16.msra.mxu0 %v3858
        %3943 = vmatprep.subr.bf16.mxu0 %v3861
        %3944 = vmatpush1.bf16.msra.mxu0 %v3860
        %3945 = vmatprep.subr.bf16.mxu0 %v3863
        %3946 = vmatpush1.bf16.msra.mxu0 %v3862
        %3947 = vmatprep.subr.bf16.mxu0 %v3865
        %3948 = vmatpush1.bf16.msra.mxu0 %v3864
        %3949 = vmatprep.subr.bf16.mxu0 %v3867
        %3950 = vmatpush1.bf16.msra.mxu0 %v3866
        %3951 = vmatprep.subr.bf16.mxu0 %v3869
        %3952 = vmatpush1.bf16.msra.mxu0 %v3868
        %3953 = vmatprep.subr.bf16.mxu0 %v3871
        %3954 = vmatpush1.bf16.msra.mxu0 %v3870
        %3955 = vmatprep.mubr.bf16.mxu0 %v3345
        %3956 = vmatmul.mubr.bf16.gmra.mrb[0].mxu0 %v3344
        %v3957 = vpop.f32.mrb[0].mxu0
        %v3958 = vadd.f32 %v3714, %v3957
        %v3959 = vpop.f32.mrb[0].mxu0
        %v3960 = vadd.f32 %v3716, %v3959
        %v3961 = vpop.f32.mrb[0].mxu0
        %v3962 = vpop.f32.mrb[0].mxu0
        %3963 = vdwg.mxu0
        %3964 = vmatprep.subr.bf16.mxu0 %v3873
        %3965 = vmatpush1.bf16.msra.mxu0 %v3872
        %3966 = vmatprep.subr.bf16.mxu0 %v3875
        %3967 = vmatpush1.bf16.msra.mxu0 %v3874
        %3968 = vmatprep.subr.bf16.mxu0 %v3877
        %3969 = vmatpush1.bf16.msra.mxu0 %v3876
        %3970 = vmatprep.subr.bf16.mxu0 %v3879
        %3971 = vmatpush1.bf16.msra.mxu0 %v3878
        %3972 = vmatprep.subr.bf16.mxu0 0
        %3973 = vmatpush1.bf16.msra.mxu0 0
        %3974 = vmatprep.subr.bf16.mxu0 0
        %3975 = vmatpush1.bf16.msra.mxu0 0
        %3976 = vmatprep.subr.bf16.mxu0 0
        %3977 = vmatpush1.bf16.msra.mxu0 0
        %3978 = vmatprep.subr.bf16.mxu0 0
        %3979 = vmatpush1.bf16.msra.mxu0 0
        %3980 = vmatprep.subr.bf16.mxu0 0
        %3981 = vmatpush1.bf16.msra.mxu0 0
        %3982 = vmatprep.subr.bf16.mxu0 0
        %3983 = vmatpush1.bf16.msra.mxu0 0
        %3984 = vmatprep.subr.bf16.mxu0 0
        %3985 = vmatpush1.bf16.msra.mxu0 0
        %3986 = vmatprep.subr.bf16.mxu0 0
        %3987 = vmatpush1.bf16.msra.mxu0 0
        %3988 = vmatprep.subr.bf16.mxu0 0
        %3989 = vmatpush1.bf16.msra.mxu0 0
        %3990 = vmatprep.subr.bf16.mxu0 0
        %3991 = vmatpush1.bf16.msra.mxu0 0
        %3992 = vmatprep.subr.bf16.mxu0 0
        %3993 = vmatpush1.bf16.msra.mxu0 0
        %3994 = vmatprep.subr.bf16.mxu0 0
        %3995 = vmatpush1.bf16.msra.mxu0 0
        %3996 = vmatprep.mubr.bf16.mxu0 0
        %3997 = vmatmul.mubr.bf16.gmra.mrb[0].mxu0 %v3921
        %v3998 = vpop.f32.mrb[0].mxu0
        %v3999 = vadd.f32 %v3958, %v3998
        %v4000 = vpop.f32.mrb[0].mxu0
        %v4001 = vadd.f32 %v3960, %v4000
        %v4002 = vpop.f32.mrb[0].mxu0
        %v4003 = vpop.f32.mrb[0].mxu0
        %4004 = vdwg.mxu0
        %v4005 = vld [vmem:[#allocation3] sm:$0x1e]
        %v4006 = vld [vmem:[#allocation3 + $0x8] sm:$0x1e]
        %v4007 = vld [vmem:[#allocation3 + $0x10] sm:$0x1e]
        %v4008 = vpack.c.bf16 %v4005, %v4005
        %v4009 = vpack.c.bf16 %v4006, %v4006
        %v4010 = vpack.c.bf16 %v4007, %v4007
        %s4011 = scalar_lea.vmem [#allocation10], 640
        %v4012 = vld [vmem:[%s4011] sm:$0xff]
        %v4013 = vld [vmem:[%s4011 + $0x8] sm:$0xff]
        %v4014 = vld [vmem:[%s4011 + $0x10] sm:$0xff]
        %v4015 = vld [vmem:[%s4011 + $0x18] sm:$0xff]
        %v4016 = vld [vmem:[%s4011 + $0x20] sm:$0xff]
        %v4017 = vld [vmem:[%s4011 + $0x28] sm:$0xff]
        %v4018 = vld [vmem:[%s4011 + $0x30] sm:$0xff]
        %v4019 = vld [vmem:[%s4011 + $0x38] sm:$0xff]
        %v4020 = vld [vmem:[%s4011 + $0x40] sm:$0xff]
        %v4021 = vld [vmem:[%s4011 + $0x48] sm:$0xff]
        %v4022 = vld [vmem:[%s4011 + $0x50] sm:$0xff]
        %v4023 = vld [vmem:[%s4011 + $0x58] sm:$0xff]
        %v4024 = vld [vmem:[%s4011 + $0x60] sm:$0xff]
        %v4025 = vld [vmem:[%s4011 + $0x68] sm:$0xff]
        %v4026 = vld [vmem:[%s4011 + $0x70] sm:$0xff]
        %v4027 = vld [vmem:[%s4011 + $0x78] sm:$0xff]
        %v4028 = vld [vmem:[%s4011 + $0x80] sm:$0xff]
        %v4029 = vld [vmem:[%s4011 + $0x88] sm:$0xff]
        %v4030 = vld [vmem:[%s4011 + $0x90] sm:$0xff]
        %v4031 = vld [vmem:[%s4011 + $0x98] sm:$0xff]
        %v4032 = vld [vmem:[%s4011 + $0xa0] sm:$0xff]
        %v4033 = vld [vmem:[%s4011 + $0xa8] sm:$0xff]
        %v4034 = vld [vmem:[%s4011 + $0xb0] sm:$0xff]
        %v4035 = vld [vmem:[%s4011 + $0xb8] sm:$0xff]
        %v4036 = vld [vmem:[%s4011 + $0xc0] sm:$0xff]
        %v4037 = vld [vmem:[%s4011 + $0xc8] sm:$0xff]
        %v4038 = vld [vmem:[%s4011 + $0xd0] sm:$0xff]
        %v4039 = vld [vmem:[%s4011 + $0xd8] sm:$0xff]
        %v4040 = vld [vmem:[%s4011 + $0xe0] sm:$0xff]
        %v4041 = vld [vmem:[%s4011 + $0xe8] sm:$0xff]
        %v4042 = vld [vmem:[%s4011 + $0xf0] sm:$0xff]
        %v4043 = vld [vmem:[%s4011 + $0xf8] sm:$0xff]
        %v4044 = vld [vmem:[%s4011 + $0x100] sm:$0xff]
        %v4045 = vld [vmem:[%s4011 + $0x108] sm:$0xff]
        %v4046 = vld [vmem:[%s4011 + $0x110] sm:$0xff]
        %v4047 = vld [vmem:[%s4011 + $0x118] sm:$0xff]
        %v4048 = vld [vmem:[%s4011 + $0x120] sm:$0xff]
        %v4049 = vld [vmem:[%s4011 + $0x128] sm:$0xff]
        %v4050 = vld [vmem:[%s4011 + $0x130] sm:$0xff]
        %v4051 = vld [vmem:[%s4011 + $0x138] sm:$0xff]
        %v4053 = vshrl.u32 %v4008, 16
        %v4055 = vshll.u32 %v4008, 16
        %v4057 = vrot.slane %v4055, 1
        %v4058 = vor.u32 %v4053, %v4057
        %v4060 = vshrl.u32 %v4009, 16
        %v4062 = vshll.u32 %v4009, 16
        %v4064 = vrot.slane %v4062, 1
        %v4065 = vor.u32 %v4060, %v4064
        %v4067 = vshrl.u32 %v4010, 16
        %v4069 = vshll.u32 %v4010, 16
        %v4071 = vrot.slane %v4069, 1
        %v4072 = vor.u32 %v4067, %v4071
        %v4115 = vunpack.c.l.b16 %v4012
        %v4116 = vunpack.c.h.b16 %v4012
        %v4117 = vunpack.c.l.b16 %v4013
        %v4118 = vunpack.c.h.b16 %v4013
        %v4119 = vunpack.c.l.b16 %v4014
        %v4120 = vunpack.c.h.b16 %v4014
        %v4121 = vunpack.c.l.b16 %v4015
        %v4122 = vunpack.c.h.b16 %v4015
        %v4123 = vunpack.c.l.b16 %v4016
        %v4124 = vunpack.c.h.b16 %v4016
        %v4125 = vunpack.c.l.b16 %v4017
        %v4126 = vunpack.c.h.b16 %v4017
        %v4127 = vunpack.c.l.b16 %v4018
        %v4128 = vunpack.c.h.b16 %v4018
        %v4129 = vunpack.c.l.b16 %v4019
        %v4130 = vunpack.c.h.b16 %v4019
        %v4131 = vunpack.c.l.b16 %v4020
        %v4132 = vunpack.c.h.b16 %v4020
        %v4133 = vunpack.c.l.b16 %v4021
        %v4134 = vunpack.c.h.b16 %v4021
        %v4135 = vunpack.c.l.b16 %v4022
        %v4136 = vunpack.c.h.b16 %v4022
        %v4137 = vunpack.c.l.b16 %v4023
        %v4138 = vunpack.c.h.b16 %v4023
        %v4139 = vunpack.c.l.b16 %v4024
        %v4140 = vunpack.c.h.b16 %v4024
        %v4141 = vunpack.c.l.b16 %v4025
        %v4142 = vunpack.c.h.b16 %v4025
        %v4143 = vunpack.c.l.b16 %v4026
        %v4144 = vunpack.c.h.b16 %v4026
        %v4145 = vunpack.c.l.b16 %v4027
        %v4146 = vunpack.c.h.b16 %v4027
        %v4147 = vunpack.c.l.b16 %v4028
        %v4148 = vunpack.c.h.b16 %v4028
        %v4149 = vunpack.c.l.b16 %v4029
        %v4150 = vunpack.c.h.b16 %v4029
        %v4151 = vunpack.c.l.b16 %v4030
        %v4152 = vunpack.c.h.b16 %v4030
        %v4153 = vunpack.c.l.b16 %v4031
        %v4154 = vunpack.c.h.b16 %v4031
        %v4155 = vunpack.c.l.b16 %v4032
        %v4156 = vunpack.c.h.b16 %v4032
        %v4157 = vunpack.c.l.b16 %v4033
        %v4158 = vunpack.c.h.b16 %v4033
        %v4159 = vunpack.c.l.b16 %v4034
        %v4160 = vunpack.c.h.b16 %v4034
        %v4161 = vunpack.c.l.b16 %v4035
        %v4162 = vunpack.c.h.b16 %v4035
        %v4163 = vunpack.c.l.b16 %v4036
        %v4164 = vunpack.c.h.b16 %v4036
        %v4165 = vunpack.c.l.b16 %v4037
        %v4166 = vunpack.c.h.b16 %v4037
        %v4167 = vunpack.c.l.b16 %v4038
        %v4168 = vunpack.c.h.b16 %v4038
        %v4169 = vunpack.c.l.b16 %v4039
        %v4170 = vunpack.c.h.b16 %v4039
        %v4171 = vunpack.c.l.b16 %v4040
        %v4172 = vunpack.c.h.b16 %v4040
        %v4173 = vunpack.c.l.b16 %v4041
        %v4174 = vunpack.c.h.b16 %v4041
        %v4175 = vunpack.c.l.b16 %v4042
        %v4176 = vunpack.c.h.b16 %v4042
        %v4177 = vunpack.c.l.b16 %v4043
        %v4178 = vunpack.c.h.b16 %v4043
        %v4179 = vunpack.c.l.b16 %v4044
        %v4180 = vunpack.c.h.b16 %v4044
        %v4181 = vunpack.c.l.b16 %v4045
        %v4182 = vunpack.c.h.b16 %v4045
        %v4183 = vunpack.c.l.b16 %v4046
        %v4184 = vunpack.c.h.b16 %v4046
        %v4185 = vunpack.c.l.b16 %v4047
        %v4186 = vunpack.c.h.b16 %v4047
        %v4187 = vunpack.c.l.b16 %v4048
        %v4188 = vunpack.c.h.b16 %v4048
        %v4189 = vunpack.c.l.b16 %v4049
        %v4190 = vunpack.c.h.b16 %v4049
        %v4191 = vunpack.c.l.b16 %v4050
        %v4192 = vunpack.c.h.b16 %v4050
        %v4193 = vunpack.c.l.b16 %v4051
        %v4194 = vunpack.c.h.b16 %v4051
        %v4195 = vpack.c.b16 %v4117, %v4115
        %v4196 = vpack.c.b16 %v4118, %v4116
        %v4197 = vpack.c.b16 %v4121, %v4119
        %v4198 = vpack.c.b16 %v4122, %v4120
        %v4199 = vpack.c.b16 %v4125, %v4123
        %v4200 = vpack.c.b16 %v4126, %v4124
        %v4201 = vpack.c.b16 %v4129, %v4127
        %v4202 = vpack.c.b16 %v4130, %v4128
        %v4203 = vpack.c.b16 %v4133, %v4131
        %v4204 = vpack.c.b16 %v4134, %v4132
        %v4205 = vpack.c.b16 %v4137, %v4135
        %v4206 = vpack.c.b16 %v4138, %v4136
        %v4207 = vpack.c.b16 %v4141, %v4139
        %v4208 = vpack.c.b16 %v4142, %v4140
        %v4209 = vpack.c.b16 %v4145, %v4143
        %v4210 = vpack.c.b16 %v4146, %v4144
        %v4211 = vpack.c.b16 %v4149, %v4147
        %v4212 = vpack.c.b16 %v4150, %v4148
        %v4213 = vpack.c.b16 %v4153, %v4151
        %v4214 = vpack.c.b16 %v4154, %v4152
        %v4215 = vpack.c.b16 %v4157, %v4155
        %v4216 = vpack.c.b16 %v4158, %v4156
        %v4217 = vpack.c.b16 %v4161, %v4159
        %v4218 = vpack.c.b16 %v4162, %v4160
        %v4219 = vpack.c.b16 %v4165, %v4163
        %v4220 = vpack.c.b16 %v4166, %v4164
        %v4221 = vpack.c.b16 %v4169, %v4167
        %v4222 = vpack.c.b16 %v4170, %v4168
        %v4223 = vpack.c.b16 %v4173, %v4171
        %v4224 = vpack.c.b16 %v4174, %v4172
        %v4225 = vpack.c.b16 %v4177, %v4175
        %v4226 = vpack.c.b16 %v4178, %v4176
        %v4227 = vpack.c.b16 %v4181, %v4179
        %v4228 = vpack.c.b16 %v4182, %v4180
        %v4229 = vpack.c.b16 %v4185, %v4183
        %v4230 = vpack.c.b16 %v4186, %v4184
        %v4231 = vpack.c.b16 %v4189, %v4187
        %v4232 = vpack.c.b16 %v4190, %v4188
        %v4233 = vpack.c.b16 %v4193, %v4191
        %v4234 = vpack.c.b16 %v4194, %v4192
        %v4276 = vsel %vm3634, %v4072, 0
        %4278 = vmatprep.subr.bf16.mxu0 %v4196
        %4279 = vmatpush1.bf16.msra.mxu0 %v4195
        %4280 = vmatprep.subr.bf16.mxu0 %v4198
        %4281 = vmatpush1.bf16.msra.mxu0 %v4197
        %4282 = vmatprep.subr.bf16.mxu0 %v4200
        %4283 = vmatpush1.bf16.msra.mxu0 %v4199
        %4284 = vmatprep.subr.bf16.mxu0 %v4202
        %4285 = vmatpush1.bf16.msra.mxu0 %v4201
        %4286 = vmatprep.subr.bf16.mxu0 %v4204
        %4287 = vmatpush1.bf16.msra.mxu0 %v4203
        %4288 = vmatprep.subr.bf16.mxu0 %v4206
        %4289 = vmatpush1.bf16.msra.mxu0 %v4205
        %4290 = vmatprep.subr.bf16.mxu0 %v4208
        %4291 = vmatpush1.bf16.msra.mxu0 %v4207
        %4292 = vmatprep.subr.bf16.mxu0 %v4210
        %4293 = vmatpush1.bf16.msra.mxu0 %v4209
        %4294 = vmatprep.subr.bf16.mxu0 %v4212
        %4295 = vmatpush1.bf16.msra.mxu0 %v4211
        %4296 = vmatprep.subr.bf16.mxu0 %v4214
        %4297 = vmatpush1.bf16.msra.mxu0 %v4213
        %4298 = vmatprep.subr.bf16.mxu0 %v4216
        %4299 = vmatpush1.bf16.msra.mxu0 %v4215
        %4300 = vmatprep.subr.bf16.mxu0 %v4218
        %4301 = vmatpush1.bf16.msra.mxu0 %v4217
        %4302 = vmatprep.subr.bf16.mxu0 %v4220
        %4303 = vmatpush1.bf16.msra.mxu0 %v4219
        %4304 = vmatprep.subr.bf16.mxu0 %v4222
        %4305 = vmatpush1.bf16.msra.mxu0 %v4221
        %4306 = vmatprep.subr.bf16.mxu0 %v4224
        %4307 = vmatpush1.bf16.msra.mxu0 %v4223
        %4308 = vmatprep.subr.bf16.mxu0 %v4226
        %4309 = vmatpush1.bf16.msra.mxu0 %v4225
        %4310 = vmatprep.mubr.bf16.mxu0 %v4065
        %4311 = vmatmul.mubr.bf16.gmra.mrb[0].mxu0 %v4058
        %v4312 = vpop.f32.mrb[0].mxu0
        %v4313 = vadd.f32 0.0, %v4312
        %v4314 = vpop.f32.mrb[0].mxu0
        %v4315 = vadd.f32 0.0, %v4314
        %v4316 = vpop.f32.mrb[0].mxu0
        %v4317 = vpop.f32.mrb[0].mxu0
        %4318 = vdwg.mxu0
        %4319 = vmatprep.subr.bf16.mxu0 %v4228
        %4320 = vmatpush1.bf16.msra.mxu0 %v4227
        %4321 = vmatprep.subr.bf16.mxu0 %v4230
        %4322 = vmatpush1.bf16.msra.mxu0 %v4229
        %4323 = vmatprep.subr.bf16.mxu0 %v4232
        %4324 = vmatpush1.bf16.msra.mxu0 %v4231
        %4325 = vmatprep.subr.bf16.mxu0 %v4234
        %4326 = vmatpush1.bf16.msra.mxu0 %v4233
        %4327 = vmatprep.subr.bf16.mxu0 0
        %4328 = vmatpush1.bf16.msra.mxu0 0
        %4329 = vmatprep.subr.bf16.mxu0 0
        %4330 = vmatpush1.bf16.msra.mxu0 0
        %4331 = vmatprep.subr.bf16.mxu0 0
        %4332 = vmatpush1.bf16.msra.mxu0 0
        %4333 = vmatprep.subr.bf16.mxu0 0
        %4334 = vmatpush1.bf16.msra.mxu0 0
        %4335 = vmatprep.subr.bf16.mxu0 0
        %4336 = vmatpush1.bf16.msra.mxu0 0
        %4337 = vmatprep.subr.bf16.mxu0 0
        %4338 = vmatpush1.bf16.msra.mxu0 0
        %4339 = vmatprep.subr.bf16.mxu0 0
        %4340 = vmatpush1.bf16.msra.mxu0 0
        %4341 = vmatprep.subr.bf16.mxu0 0
        %4342 = vmatpush1.bf16.msra.mxu0 0
        %4343 = vmatprep.subr.bf16.mxu0 0
        %4344 = vmatpush1.bf16.msra.mxu0 0
        %4345 = vmatprep.subr.bf16.mxu0 0
        %4346 = vmatpush1.bf16.msra.mxu0 0
        %4347 = vmatprep.subr.bf16.mxu0 0
        %4348 = vmatpush1.bf16.msra.mxu0 0
        %4349 = vmatprep.subr.bf16.mxu0 0
        %4350 = vmatpush1.bf16.msra.mxu0 0
        %4351 = vmatprep.mubr.bf16.mxu0 0
        %4352 = vmatmul.mubr.bf16.gmra.mrb[0].mxu0 %v4276
        %v4353 = vpop.f32.mrb[0].mxu0
        %v4354 = vadd.f32 %v4313, %v4353
        %v4355 = vpop.f32.mrb[0].mxu0
        %v4356 = vadd.f32 %v4315, %v4355
        %v4357 = vpop.f32.mrb[0].mxu0
        %v4358 = vpop.f32.mrb[0].mxu0
        %4359 = vdwg.mxu0
        %v4360 = vadd.f32 %v3999, %v4354
        %v4361 = vadd.f32 %v4001, %v4356
        %v4362 = vld [vmem:[%s3244] sm:$0x1e]
        %v4363 = vld [vmem:[%s3244 + $0x8] sm:$0x1e]
        %v4364 = vld [vmem:[%s3244 + $0x10] sm:$0x1e]
        %v4365 = vpack.c.bf16 %v4362, %v4362
        %v4366 = vpack.c.bf16 %v4363, %v4363
        %v4367 = vpack.c.bf16 %v4364, %v4364
        %s4368 = scalar_lea.vmem [#allocation10], 960
        %v4369 = vld [vmem:[%s4368] sm:$0xff]
        %v4370 = vld [vmem:[%s4368 + $0x8] sm:$0xff]
        %v4371 = vld [vmem:[%s4368 + $0x10] sm:$0xff]
        %v4372 = vld [vmem:[%s4368 + $0x18] sm:$0xff]
        %v4373 = vld [vmem:[%s4368 + $0x20] sm:$0xff]
        %v4374 = vld [vmem:[%s4368 + $0x28] sm:$0xff]
        %v4375 = vld [vmem:[%s4368 + $0x30] sm:$0xff]
        %v4376 = vld [vmem:[%s4368 + $0x38] sm:$0xff]
        %v4377 = vld [vmem:[%s4368 + $0x40] sm:$0xff]
        %v4378 = vld [vmem:[%s4368 + $0x48] sm:$0xff]
        %v4379 = vld [vmem:[%s4368 + $0x50] sm:$0xff]
        %v4380 = vld [vmem:[%s4368 + $0x58] sm:$0xff]
        %v4381 = vld [vmem:[%s4368 + $0x60] sm:$0xff]
        %v4382 = vld [vmem:[%s4368 + $0x68] sm:$0xff]
        %v4383 = vld [vmem:[%s4368 + $0x70] sm:$0xff]
        %v4384 = vld [vmem:[%s4368 + $0x78] sm:$0xff]
        %v4385 = vld [vmem:[%s4368 + $0x80] sm:$0xff]
        %v4386 = vld [vmem:[%s4368 + $0x88] sm:$0xff]
        %v4387 = vld [vmem:[%s4368 + $0x90] sm:$0xff]
        %v4388 = vld [vmem:[%s4368 + $0x98] sm:$0xff]
        %v4389 = vld [vmem:[%s4368 + $0xa0] sm:$0xff]
        %v4390 = vld [vmem:[%s4368 + $0xa8] sm:$0xff]
        %v4391 = vld [vmem:[%s4368 + $0xb0] sm:$0xff]
        %v4392 = vld [vmem:[%s4368 + $0xb8] sm:$0xff]
        %v4393 = vld [vmem:[%s4368 + $0xc0] sm:$0xff]
        %v4394 = vld [vmem:[%s4368 + $0xc8] sm:$0xff]
        %v4395 = vld [vmem:[%s4368 + $0xd0] sm:$0xff]
        %v4396 = vld [vmem:[%s4368 + $0xd8] sm:$0xff]
        %v4397 = vld [vmem:[%s4368 + $0xe0] sm:$0xff]
        %v4398 = vld [vmem:[%s4368 + $0xe8] sm:$0xff]
        %v4399 = vld [vmem:[%s4368 + $0xf0] sm:$0xff]
        %v4400 = vld [vmem:[%s4368 + $0xf8] sm:$0xff]
        %v4401 = vld [vmem:[%s4368 + $0x100] sm:$0xff]
        %v4402 = vld [vmem:[%s4368 + $0x108] sm:$0xff]
        %v4403 = vld [vmem:[%s4368 + $0x110] sm:$0xff]
        %v4404 = vld [vmem:[%s4368 + $0x118] sm:$0xff]
        %v4405 = vld [vmem:[%s4368 + $0x120] sm:$0xff]
        %v4406 = vld [vmem:[%s4368 + $0x128] sm:$0xff]
        %v4407 = vld [vmem:[%s4368 + $0x130] sm:$0xff]
        %v4408 = vld [vmem:[%s4368 + $0x138] sm:$0xff]
        %v4410 = vshrl.u32 %v4365, 16
        %v4412 = vshll.u32 %v4365, 16
        %v4414 = vrot.slane %v4412, 1
        %v4415 = vor.u32 %v4410, %v4414
        %v4417 = vshrl.u32 %v4366, 16
        %v4419 = vshll.u32 %v4366, 16
        %v4421 = vrot.slane %v4419, 1
        %v4422 = vor.u32 %v4417, %v4421
        %v4424 = vshrl.u32 %v4367, 16
        %v4426 = vshll.u32 %v4367, 16
        %v4428 = vrot.slane %v4426, 1
        %v4429 = vor.u32 %v4424, %v4428
        %v4472 = vunpack.c.l.b16 %v4369
        %v4473 = vunpack.c.h.b16 %v4369
        %v4474 = vunpack.c.l.b16 %v4370
        %v4475 = vunpack.c.h.b16 %v4370
        %v4476 = vunpack.c.l.b16 %v4371
        %v4477 = vunpack.c.h.b16 %v4371
        %v4478 = vunpack.c.l.b16 %v4372
        %v4479 = vunpack.c.h.b16 %v4372
        %v4480 = vunpack.c.l.b16 %v4373
        %v4481 = vunpack.c.h.b16 %v4373
        %v4482 = vunpack.c.l.b16 %v4374
        %v4483 = vunpack.c.h.b16 %v4374
        %v4484 = vunpack.c.l.b16 %v4375
        %v4485 = vunpack.c.h.b16 %v4375
        %v4486 = vunpack.c.l.b16 %v4376
        %v4487 = vunpack.c.h.b16 %v4376
        %v4488 = vunpack.c.l.b16 %v4377
        %v4489 = vunpack.c.h.b16 %v4377
        %v4490 = vunpack.c.l.b16 %v4378
        %v4491 = vunpack.c.h.b16 %v4378
        %v4492 = vunpack.c.l.b16 %v4379
        %v4493 = vunpack.c.h.b16 %v4379
        %v4494 = vunpack.c.l.b16 %v4380
        %v4495 = vunpack.c.h.b16 %v4380
        %v4496 = vunpack.c.l.b16 %v4381
        %v4497 = vunpack.c.h.b16 %v4381
        %v4498 = vunpack.c.l.b16 %v4382
        %v4499 = vunpack.c.h.b16 %v4382
        %v4500 = vunpack.c.l.b16 %v4383
        %v4501 = vunpack.c.h.b16 %v4383
        %v4502 = vunpack.c.l.b16 %v4384
        %v4503 = vunpack.c.h.b16 %v4384
        %v4504 = vunpack.c.l.b16 %v4385
        %v4505 = vunpack.c.h.b16 %v4385
        %v4506 = vunpack.c.l.b16 %v4386
        %v4507 = vunpack.c.h.b16 %v4386
        %v4508 = vunpack.c.l.b16 %v4387
        %v4509 = vunpack.c.h.b16 %v4387
        %v4510 = vunpack.c.l.b16 %v4388
        %v4511 = vunpack.c.h.b16 %v4388
        %v4512 = vunpack.c.l.b16 %v4389
        %v4513 = vunpack.c.h.b16 %v4389
        %v4514 = vunpack.c.l.b16 %v4390
        %v4515 = vunpack.c.h.b16 %v4390
        %v4516 = vunpack.c.l.b16 %v4391
        %v4517 = vunpack.c.h.b16 %v4391
        %v4518 = vunpack.c.l.b16 %v4392
        %v4519 = vunpack.c.h.b16 %v4392
        %v4520 = vunpack.c.l.b16 %v4393
        %v4521 = vunpack.c.h.b16 %v4393
        %v4522 = vunpack.c.l.b16 %v4394
        %v4523 = vunpack.c.h.b16 %v4394
        %v4524 = vunpack.c.l.b16 %v4395
        %v4525 = vunpack.c.h.b16 %v4395
        %v4526 = vunpack.c.l.b16 %v4396
        %v4527 = vunpack.c.h.b16 %v4396
        %v4528 = vunpack.c.l.b16 %v4397
        %v4529 = vunpack.c.h.b16 %v4397
        %v4530 = vunpack.c.l.b16 %v4398
        %v4531 = vunpack.c.h.b16 %v4398
        %v4532 = vunpack.c.l.b16 %v4399
        %v4533 = vunpack.c.h.b16 %v4399
        %v4534 = vunpack.c.l.b16 %v4400
        %v4535 = vunpack.c.h.b16 %v4400
        %v4536 = vunpack.c.l.b16 %v4401
        %v4537 = vunpack.c.h.b16 %v4401
        %v4538 = vunpack.c.l.b16 %v4402
        %v4539 = vunpack.c.h.b16 %v4402
        %v4540 = vunpack.c.l.b16 %v4403
        %v4541 = vunpack.c.h.b16 %v4403
        %v4542 = vunpack.c.l.b16 %v4404
        %v4543 = vunpack.c.h.b16 %v4404
        %v4544 = vunpack.c.l.b16 %v4405
        %v4545 = vunpack.c.h.b16 %v4405
        %v4546 = vunpack.c.l.b16 %v4406
        %v4547 = vunpack.c.h.b16 %v4406
        %v4548 = vunpack.c.l.b16 %v4407
        %v4549 = vunpack.c.h.b16 %v4407
        %v4550 = vunpack.c.l.b16 %v4408
        %v4551 = vunpack.c.h.b16 %v4408
        %v4552 = vpack.c.b16 %v4474, %v4472
        %v4553 = vpack.c.b16 %v4475, %v4473
        %v4554 = vpack.c.b16 %v4478, %v4476
        %v4555 = vpack.c.b16 %v4479, %v4477
        %v4556 = vpack.c.b16 %v4482, %v4480
        %v4557 = vpack.c.b16 %v4483, %v4481
        %v4558 = vpack.c.b16 %v4486, %v4484
        %v4559 = vpack.c.b16 %v4487, %v4485
        %v4560 = vpack.c.b16 %v4490, %v4488
        %v4561 = vpack.c.b16 %v4491, %v4489
        %v4562 = vpack.c.b16 %v4494, %v4492
        %v4563 = vpack.c.b16 %v4495, %v4493
        %v4564 = vpack.c.b16 %v4498, %v4496
        %v4565 = vpack.c.b16 %v4499, %v4497
        %v4566 = vpack.c.b16 %v4502, %v4500
        %v4567 = vpack.c.b16 %v4503, %v4501
        %v4568 = vpack.c.b16 %v4506, %v4504
        %v4569 = vpack.c.b16 %v4507, %v4505
        %v4570 = vpack.c.b16 %v4510, %v4508
        %v4571 = vpack.c.b16 %v4511, %v4509
        %v4572 = vpack.c.b16 %v4514, %v4512
        %v4573 = vpack.c.b16 %v4515, %v4513
        %v4574 = vpack.c.b16 %v4518, %v4516
        %v4575 = vpack.c.b16 %v4519, %v4517
        %v4576 = vpack.c.b16 %v4522, %v4520
        %v4577 = vpack.c.b16 %v4523, %v4521
        %v4578 = vpack.c.b16 %v4526, %v4524
        %v4579 = vpack.c.b16 %v4527, %v4525
        %v4580 = vpack.c.b16 %v4530, %v4528
        %v4581 = vpack.c.b16 %v4531, %v4529
        %v4582 = vpack.c.b16 %v4534, %v4532
        %v4583 = vpack.c.b16 %v4535, %v4533
        %v4584 = vpack.c.b16 %v4538, %v4536
        %v4585 = vpack.c.b16 %v4539, %v4537
        %v4586 = vpack.c.b16 %v4542, %v4540
        %v4587 = vpack.c.b16 %v4543, %v4541
        %v4588 = vpack.c.b16 %v4546, %v4544
        %v4589 = vpack.c.b16 %v4547, %v4545
        %v4590 = vpack.c.b16 %v4550, %v4548
        %v4591 = vpack.c.b16 %v4551, %v4549
        %v4633 = vsel %vm3634, %v4429, 0
        %4635 = vmatprep.subr.bf16.mxu0 %v4553
        %4636 = vmatpush1.bf16.msra.mxu0 %v4552
        %4637 = vmatprep.subr.bf16.mxu0 %v4555
        %4638 = vmatpush1.bf16.msra.mxu0 %v4554
        %4639 = vmatprep.subr.bf16.mxu0 %v4557
        %4640 = vmatpush1.bf16.msra.mxu0 %v4556
        %4641 = vmatprep.subr.bf16.mxu0 %v4559
        %4642 = vmatpush1.bf16.msra.mxu0 %v4558
        %4643 = vmatprep.subr.bf16.mxu0 %v4561
        %4644 = vmatpush1.bf16.msra.mxu0 %v4560
        %4645 = vmatprep.subr.bf16.mxu0 %v4563
        %4646 = vmatpush1.bf16.msra.mxu0 %v4562
        %4647 = vmatprep.subr.bf16.mxu0 %v4565
        %4648 = vmatpush1.bf16.msra.mxu0 %v4564
        %4649 = vmatprep.subr.bf16.mxu0 %v4567
        %4650 = vmatpush1.bf16.msra.mxu0 %v4566
        %4651 = vmatprep.subr.bf16.mxu0 %v4569
        %4652 = vmatpush1.bf16.msra.mxu0 %v4568
        %4653 = vmatprep.subr.bf16.mxu0 %v4571
        %4654 = vmatpush1.bf16.msra.mxu0 %v4570
        %4655 = vmatprep.subr.bf16.mxu0 %v4573
        %4656 = vmatpush1.bf16.msra.mxu0 %v4572
        %4657 = vmatprep.subr.bf16.mxu0 %v4575
        %4658 = vmatpush1.bf16.msra.mxu0 %v4574
        %4659 = vmatprep.subr.bf16.mxu0 %v4577
        %4660 = vmatpush1.bf16.msra.mxu0 %v4576
        %4661 = vmatprep.subr.bf16.mxu0 %v4579
        %4662 = vmatpush1.bf16.msra.mxu0 %v4578
        %4663 = vmatprep.subr.bf16.mxu0 %v4581
        %4664 = vmatpush1.bf16.msra.mxu0 %v4580
        %4665 = vmatprep.subr.bf16.mxu0 %v4583
        %4666 = vmatpush1.bf16.msra.mxu0 %v4582
        %4667 = vmatprep.mubr.bf16.mxu0 %v4422
        %4668 = vmatmul.mubr.bf16.gmra.mrb[0].mxu0 %v4415
        %v4669 = vpop.f32.mrb[0].mxu0
        %v4670 = vadd.f32 0.0, %v4669
        %v4671 = vpop.f32.mrb[0].mxu0
        %v4672 = vadd.f32 0.0, %v4671
        %v4673 = vpop.f32.mrb[0].mxu0
        %v4674 = vpop.f32.mrb[0].mxu0
        %4675 = vdwg.mxu0
        %4676 = vmatprep.subr.bf16.mxu0 %v4585
        %4677 = vmatpush1.bf16.msra.mxu0 %v4584
        %4678 = vmatprep.subr.bf16.mxu0 %v4587
        %4679 = vmatpush1.bf16.msra.mxu0 %v4586
        %4680 = vmatprep.subr.bf16.mxu0 %v4589
        %4681 = vmatpush1.bf16.msra.mxu0 %v4588
        %4682 = vmatprep.subr.bf16.mxu0 %v4591
        %4683 = vmatpush1.bf16.msra.mxu0 %v4590
        %4684 = vmatprep.subr.bf16.mxu0 0
        %4685 = vmatpush1.bf16.msra.mxu0 0
        %4686 = vmatprep.subr.bf16.mxu0 0
        %4687 = vmatpush1.bf16.msra.mxu0 0
        %4688 = vmatprep.subr.bf16.mxu0 0
        %4689 = vmatpush1.bf16.msra.mxu0 0
        %4690 = vmatprep.subr.bf16.mxu0 0
        %4691 = vmatpush1.bf16.msra.mxu0 0
        %4692 = vmatprep.subr.bf16.mxu0 0
        %4693 = vmatpush1.bf16.msra.mxu0 0
        %4694 = vmatprep.subr.bf16.mxu0 0
        %4695 = vmatpush1.bf16.msra.mxu0 0
        %4696 = vmatprep.subr.bf16.mxu0 0
        %4697 = vmatpush1.bf16.msra.mxu0 0
        %4698 = vmatprep.subr.bf16.mxu0 0
        %4699 = vmatpush1.bf16.msra.mxu0 0
        %4700 = vmatprep.subr.bf16.mxu0 0
        %4701 = vmatpush1.bf16.msra.mxu0 0
        %4702 = vmatprep.subr.bf16.mxu0 0
        %4703 = vmatpush1.bf16.msra.mxu0 0
        %4704 = vmatprep.subr.bf16.mxu0 0
        %4705 = vmatpush1.bf16.msra.mxu0 0
        %4706 = vmatprep.subr.bf16.mxu0 0
        %4707 = vmatpush1.bf16.msra.mxu0 0
        %4708 = vmatprep.mubr.bf16.mxu0 0
        %4709 = vmatmul.mubr.bf16.gmra.mrb[0].mxu0 %v4633
        %v4710 = vpop.f32.mrb[0].mxu0
        %v4711 = vadd.f32 %v4670, %v4710
        %v4712 = vpop.f32.mrb[0].mxu0
        %v4713 = vadd.f32 %v4672, %v4712
        %v4714 = vpop.f32.mrb[0].mxu0
        %v4715 = vpop.f32.mrb[0].mxu0
        %4716 = vdwg.mxu0
        %v4717 = vadd.f32 %v4360, %v4711
        %v4718 = vadd.f32 %v4361, %v4713
        %v4719 = vld [vmem:[%s7] sm:$0x3]
        %v4721 = vlaneseq
        %v4722 = vshrl.u32 %v4721, 7
        %v4723 = vsub.s32 0, %v4722
        %v4724 = vrot.slane %v4719, %v4723
        %v4725 = vlaneseq
        %v4726 = vshrl.u32 %v4725, 7
        %v4727 = vsub.s32 1, %v4726
        %v4728 = vrot.slane %v4719, %v4727
        %v4731 = vadd.f32 %v4717, %v4724
        %v4732 = vadd.f32 %v4718, %v4728
        %vm4733 = vcmask 1043456
        %v4734 = vsel %vm4733, %v4731, 0.0
        %v4735 = vrot.slane %v4734, 4
        %v4736 = vadd.f32 %v4734, %v4735
        %v4737 = vrot.slane %v4736, 2
        %v4738 = vadd.f32 %v4736, %v4737
        %v4739 = vrot.slane %v4738, 1
        %v4740 = vadd.f32 %v4738, %v4739
        %v4741 = vsel %vm4733, %v4732, 0.0
        %v4742 = vrot.slane %v4741, 4
        %v4743 = vadd.f32 %v4741, %v4742
        %v4744 = vrot.slane %v4743, 2
        %v4745 = vadd.f32 %v4743, %v4744
        %v4746 = vrot.slane %v4745, 1
        %v4747 = vadd.f32 %v4745, %v4746
        %v4748 = vmul.f32 %v4731, %v4731
        %v4749 = vmul.f32 %v4732, %v4732
        %v4750 = vsel %vm4733, %v4748, 0.0
        %v4751 = vrot.slane %v4750, 4
        %v4752 = vadd.f32 %v4750, %v4751
        %v4753 = vrot.slane %v4752, 2
        %v4754 = vadd.f32 %v4752, %v4753
        %v4755 = vrot.slane %v4754, 1
        %v4756 = vadd.f32 %v4754, %v4755
        %v4757 = vsel %vm4733, %v4749, 0.0
        %v4758 = vrot.slane %v4757, 4
        %v4759 = vadd.f32 %v4757, %v4758
        %v4760 = vrot.slane %v4759, 2
        %v4761 = vadd.f32 %v4759, %v4760
        %v4762 = vrot.slane %v4761, 1
        %v4763 = vadd.f32 %v4761, %v4762
        %v4764 = vld [vmem:[#allocation11] sm:$0xff]
        %v4765 = vld [vmem:[#allocation11 + $0x8] sm:$0xff]
        %v4766 = vld [vmem:[#allocation11 + $0x10] sm:$0xff]
        %v4767 = vld [vmem:[#allocation11 + $0x18] sm:$0xff]
        %v4768 = vld [vmem:[#allocation11 + $0x20] sm:$0xff]
        %v4769 = vld [vmem:[#allocation11 + $0x28] sm:$0xff]
        %v4770 = vld [vmem:[#allocation11 + $0x30] sm:$0xff]
        %v4771 = vld [vmem:[#allocation11 + $0x38] sm:$0xff]
        %v4772 = vld [vmem:[#allocation11 + $0x40] sm:$0xff]
        %v4773 = vld [vmem:[#allocation11 + $0x48] sm:$0xff]
        %v4774 = vld [vmem:[#allocation11 + $0x50] sm:$0xff]
        %v4775 = vld [vmem:[#allocation11 + $0x58] sm:$0xff]
        %v4776 = vld [vmem:[#allocation11 + $0x60] sm:$0xff]
        %v4777 = vld [vmem:[#allocation11 + $0x68] sm:$0xff]
        %v4778 = vld [vmem:[#allocation11 + $0x70] sm:$0xff]
        %v4779 = vld [vmem:[#allocation11 + $0x78] sm:$0xff]
        %v4780 = vld [vmem:[#allocation11 + $0x80] sm:$0xff]
        %v4781 = vld [vmem:[#allocation11 + $0x88] sm:$0xff]
        %v4782 = vld [vmem:[#allocation11 + $0x90] sm:$0xff]
        %v4783 = vld [vmem:[#allocation11 + $0x98] sm:$0xff]
        %v4784 = vld [vmem:[#allocation11 + $0xa0] sm:$0xff]
        %v4785 = vld [vmem:[#allocation11 + $0xa8] sm:$0xff]
        %v4786 = vld [vmem:[#allocation11 + $0xb0] sm:$0xff]
        %v4787 = vld [vmem:[#allocation11 + $0xb8] sm:$0xff]
        %v4788 = vld [vmem:[#allocation11 + $0xc0] sm:$0xff]
        %v4789 = vld [vmem:[#allocation11 + $0xc8] sm:$0xff]
        %v4790 = vld [vmem:[#allocation11 + $0xd0] sm:$0xff]
        %v4791 = vld [vmem:[#allocation11 + $0xd8] sm:$0xff]
        %v4792 = vld [vmem:[#allocation11 + $0xe0] sm:$0xff]
        %v4793 = vld [vmem:[#allocation11 + $0xe8] sm:$0xff]
        %v4794 = vld [vmem:[#allocation11 + $0xf0] sm:$0xff]
        %v4795 = vld [vmem:[#allocation11 + $0xf8] sm:$0xff]
        %v4796 = vld [vmem:[#allocation11 + $0x100] sm:$0xff]
        %v4797 = vld [vmem:[#allocation11 + $0x108] sm:$0xff]
        %v4798 = vld [vmem:[#allocation11 + $0x110] sm:$0xff]
        %v4799 = vld [vmem:[#allocation11 + $0x118] sm:$0xff]
        %v4800 = vld [vmem:[#allocation11 + $0x120] sm:$0xff]
        %v4801 = vld [vmem:[#allocation11 + $0x128] sm:$0xff]
        %v4802 = vld [vmem:[#allocation11 + $0x130] sm:$0xff]
        %v4803 = vld [vmem:[#allocation11 + $0x138] sm:$0xff]
        %v4804 = vld [vmem:[#allocation11 + $0x140] sm:$0xff]
        %v4805 = vld [vmem:[#allocation11 + $0x148] sm:$0xff]
        %v4806 = vld [vmem:[#allocation11 + $0x150] sm:$0xff]
        %v4807 = vld [vmem:[#allocation11 + $0x158] sm:$0xff]
        %v4808 = vld [vmem:[#allocation11 + $0x160] sm:$0xff]
        %v4809 = vld [vmem:[#allocation11 + $0x168] sm:$0xff]
        %v4810 = vld [vmem:[#allocation11 + $0x170] sm:$0xff]
        %v4811 = vld [vmem:[#allocation11 + $0x178] sm:$0xff]
        %v4812 = vld [vmem:[#allocation11 + $0x180] sm:$0xff]
        %v4813 = vld [vmem:[#allocation11 + $0x188] sm:$0xff]
        %v4814 = vld [vmem:[#allocation11 + $0x190] sm:$0xff]
        %v4815 = vld [vmem:[#allocation11 + $0x198] sm:$0xff]
        %v4816 = vld [vmem:[#allocation11 + $0x1a0] sm:$0xff]
        %v4817 = vld [vmem:[#allocation11 + $0x1a8] sm:$0xff]
        %v4818 = vld [vmem:[#allocation11 + $0x1b0] sm:$0xff]
        %v4819 = vld [vmem:[#allocation11 + $0x1b8] sm:$0xff]
        %v4820 = vld [vmem:[#allocation11 + $0x1c0] sm:$0xff]
        %v4821 = vld [vmem:[#allocation11 + $0x1c8] sm:$0xff]
        %v4822 = vld [vmem:[#allocation11 + $0x1d0] sm:$0xff]
        %v4823 = vld [vmem:[#allocation11 + $0x1d8] sm:$0xff]
        %v4824 = vld [vmem:[#allocation11 + $0x1e0] sm:$0xff]
        %v4825 = vld [vmem:[#allocation11 + $0x1e8] sm:$0xff]
        %v4826 = vld [vmem:[#allocation11 + $0x1f0] sm:$0xff]
        %v4827 = vld [vmem:[#allocation11 + $0x1f8] sm:$0xff]
        %4828 = vmatprep.subr.mxu0 %v4765
        %4829 = vmatpush1.msra.mxu0 %v4764
        %4830 = vmatprep.subr.mxu0 %v4767
        %4831 = vmatpush1.msra.mxu0 %v4766
        %4832 = vmatprep.subr.mxu0 %v4769
        %4833 = vmatpush1.msra.mxu0 %v4768
        %4834 = vmatprep.subr.mxu0 %v4771
        %4835 = vmatpush1.msra.mxu0 %v4770
        %4836 = vmatprep.subr.mxu0 %v4773
        %4837 = vmatpush1.msra.mxu0 %v4772
        %4838 = vmatprep.subr.mxu0 %v4775
        %4839 = vmatpush1.msra.mxu0 %v4774
        %4840 = vmatprep.subr.mxu0 %v4777
        %4841 = vmatpush1.msra.mxu0 %v4776
        %4842 = vmatprep.subr.mxu0 %v4779
        %4843 = vmatpush1.msra.mxu0 %v4778
        %4844 = vmatprep.subr.mxu0 %v4781
        %4845 = vmatpush1.msra.mxu0 %v4780
        %4846 = vmatprep.subr.mxu0 %v4783
        %4847 = vmatpush1.msra.mxu0 %v4782
        %4848 = vmatprep.subr.mxu0 %v4785
        %4849 = vmatpush1.msra.mxu0 %v4784
        %4850 = vmatprep.subr.mxu0 %v4787
        %4851 = vmatpush1.msra.mxu0 %v4786
        %4852 = vmatprep.subr.mxu0 %v4789
        %4853 = vmatpush1.msra.mxu0 %v4788
        %4854 = vmatprep.subr.mxu0 %v4791
        %4855 = vmatpush1.msra.mxu0 %v4790
        %4856 = vmatprep.subr.mxu0 %v4793
        %4857 = vmatpush1.msra.mxu0 %v4792
        %4858 = vmatprep.subr.mxu0 %v4795
        %4859 = vmatpush1.msra.mxu0 %v4794
        %4860 = vmatprep.subr.mxu0 %v4797
        %4861 = vmatpush1.msra.mxu0 %v4796
        %4862 = vmatprep.subr.mxu0 %v4799
        %4863 = vmatpush1.msra.mxu0 %v4798
        %4864 = vmatprep.subr.mxu0 %v4801
        %4865 = vmatpush1.msra.mxu0 %v4800
        %4866 = vmatprep.subr.mxu0 %v4803
        %4867 = vmatpush1.msra.mxu0 %v4802
        %4868 = vmatprep.subr.mxu0 %v4805
        %4869 = vmatpush1.msra.mxu0 %v4804
        %4870 = vmatprep.subr.mxu0 %v4807
        %4871 = vmatpush1.msra.mxu0 %v4806
        %4872 = vmatprep.subr.mxu0 %v4809
        %4873 = vmatpush1.msra.mxu0 %v4808
        %4874 = vmatprep.subr.mxu0 %v4811
        %4875 = vmatpush1.msra.mxu0 %v4810
        %4876 = vmatprep.subr.mxu0 %v4813
        %4877 = vmatpush1.msra.mxu0 %v4812
        %4878 = vmatprep.subr.mxu0 %v4815
        %4879 = vmatpush1.msra.mxu0 %v4814
        %4880 = vmatprep.subr.mxu0 %v4817
        %4881 = vmatpush1.msra.mxu0 %v4816
        %4882 = vmatprep.subr.mxu0 %v4819
        %4883 = vmatpush1.msra.mxu0 %v4818
        %4884 = vmatprep.subr.mxu0 %v4821
        %4885 = vmatpush1.msra.mxu0 %v4820
        %4886 = vmatprep.subr.mxu0 %v4823
        %4887 = vmatpush1.msra.mxu0 %v4822
        %4888 = vmatprep.subr.mxu0 %v4825
        %4889 = vmatpush1.msra.mxu0 %v4824
        %4890 = vmatprep.subr.mxu0 %v4827
        %4891 = vmatpush1.msra.mxu0 %v4826
        %4892 = vmatprep.mubr.f32.mxu0 %v4747
        %4893 = vmatmul.mubr.f32.gmra.mrb[0].mxu0 %v4740
        %v4894 = vpop.f32.mrb[0].mxu0
        %v4895 = vadd.f32 0.0, %v4894
        %v4896 = vpop.f32.mrb[0].mxu0
        %v4897 = vadd.f32 0.0, %v4896
        %4898 = vdwg.mxu0
        %4899 = vmatprep.subr.mxu0 %v4765
        %4900 = vmatpush1.msra.mxu0 %v4764
        %4901 = vmatprep.subr.mxu0 %v4767
        %4902 = vmatpush1.msra.mxu0 %v4766
        %4903 = vmatprep.subr.mxu0 %v4769
        %4904 = vmatpush1.msra.mxu0 %v4768
        %4905 = vmatprep.subr.mxu0 %v4771
        %4906 = vmatpush1.msra.mxu0 %v4770
        %4907 = vmatprep.subr.mxu0 %v4773
        %4908 = vmatpush1.msra.mxu0 %v4772
        %4909 = vmatprep.subr.mxu0 %v4775
        %4910 = vmatpush1.msra.mxu0 %v4774
        %4911 = vmatprep.subr.mxu0 %v4777
        %4912 = vmatpush1.msra.mxu0 %v4776
        %4913 = vmatprep.subr.mxu0 %v4779
        %4914 = vmatpush1.msra.mxu0 %v4778
        %4915 = vmatprep.subr.mxu0 %v4781
        %4916 = vmatpush1.msra.mxu0 %v4780
        %4917 = vmatprep.subr.mxu0 %v4783
        %4918 = vmatpush1.msra.mxu0 %v4782
        %4919 = vmatprep.subr.mxu0 %v4785
        %4920 = vmatpush1.msra.mxu0 %v4784
        %4921 = vmatprep.subr.mxu0 %v4787
        %4922 = vmatpush1.msra.mxu0 %v4786
        %4923 = vmatprep.subr.mxu0 %v4789
        %4924 = vmatpush1.msra.mxu0 %v4788
        %4925 = vmatprep.subr.mxu0 %v4791
        %4926 = vmatpush1.msra.mxu0 %v4790
        %4927 = vmatprep.subr.mxu0 %v4793
        %4928 = vmatpush1.msra.mxu0 %v4792
        %4929 = vmatprep.subr.mxu0 %v4795
        %4930 = vmatpush1.msra.mxu0 %v4794
        %4931 = vmatprep.subr.mxu0 %v4797
        %4932 = vmatpush1.msra.mxu0 %v4796
        %4933 = vmatprep.subr.mxu0 %v4799
        %4934 = vmatpush1.msra.mxu0 %v4798
        %4935 = vmatprep.subr.mxu0 %v4801
        %4936 = vmatpush1.msra.mxu0 %v4800
        %4937 = vmatprep.subr.mxu0 %v4803
        %4938 = vmatpush1.msra.mxu0 %v4802
        %4939 = vmatprep.subr.mxu0 %v4805
        %4940 = vmatpush1.msra.mxu0 %v4804
        %4941 = vmatprep.subr.mxu0 %v4807
        %4942 = vmatpush1.msra.mxu0 %v4806
        %4943 = vmatprep.subr.mxu0 %v4809
        %4944 = vmatpush1.msra.mxu0 %v4808
        %4945 = vmatprep.subr.mxu0 %v4811
        %4946 = vmatpush1.msra.mxu0 %v4810
        %4947 = vmatprep.subr.mxu0 %v4813
        %4948 = vmatpush1.msra.mxu0 %v4812
        %4949 = vmatprep.subr.mxu0 %v4815
        %4950 = vmatpush1.msra.mxu0 %v4814
        %4951 = vmatprep.subr.mxu0 %v4817
        %4952 = vmatpush1.msra.mxu0 %v4816
        %4953 = vmatprep.subr.mxu0 %v4819
        %4954 = vmatpush1.msra.mxu0 %v4818
        %4955 = vmatprep.subr.mxu0 %v4821
        %4956 = vmatpush1.msra.mxu0 %v4820
        %4957 = vmatprep.subr.mxu0 %v4823
        %4958 = vmatpush1.msra.mxu0 %v4822
        %4959 = vmatprep.subr.mxu0 %v4825
        %4960 = vmatpush1.msra.mxu0 %v4824
        %4961 = vmatprep.subr.mxu0 %v4827
        %4962 = vmatpush1.msra.mxu0 %v4826
        %4963 = vmatprep.mubr.f32.mxu0 %v4763
        %4964 = vmatmul.mubr.f32.gmra.mrb[0].mxu0 %v4756
        %v4965 = vpop.f32.mrb[0].mxu0
        %v4966 = vadd.f32 0.0, %v4965
        %v4967 = vpop.f32.mrb[0].mxu0
        %v4968 = vadd.f32 0.0, %v4967
        %4969 = vdwg.mxu0
        %v4970 = vmul.f32 %v4895, %v4895
        %v4971 = vmul.f32 %v4897, %v4897
        %v4972 = vsub.f32 %v4966, %v4970
        %v4973 = vsub.f32 %v4968, %v4971
        %v4974 = vlaneseq
        %v4975 = vshrl.u32 %v4974, 7
        %v4976 = vsub.s32 0, %v4975
        %v4977 = vrot.slane %v4895, %v4976
        %v4978 = vlaneseq
        %v4979 = vshrl.u32 %v4978, 7
        %v4980 = vsub.s32 0, %v4979
        %v4981 = vrot.slane %v4897, %v4980
        %v4982 = vsub.f32 %v4731, %v4977
        %v4983 = vsub.f32 %v4732, %v4981
        %v4984 = vadd.f32 %v4972, 1e-05
        %v4985 = vadd.f32 %v4973, 1e-05
        %v4986 = vrsqrt.pop %v4984
        %v4987 = vrsqrt.pop %v4985
        %v4988 = vlaneseq
        %v4989 = vshrl.u32 %v4988, 7
        %v4990 = vsub.s32 0, %v4989
        %v4991 = vrot.slane %v4986, %v4990
        %v4992 = vlaneseq
        %v4993 = vshrl.u32 %v4992, 7
        %v4994 = vsub.s32 0, %v4993
        %v4995 = vrot.slane %v4987, %v4994
        %v4996 = vmul.f32 %v4982, %v4991
        %v4997 = vmul.f32 %v4983, %v4995
        %vm4998 = vcmp.ge.f32.partialorder %v4996, 0.0
        %vm4999 = vcmp.ge.f32.partialorder %v4997, 0.0
        %v5000 = vmul.f32 %v4996, 0.2
        %v5001 = vmul.f32 %v4997, 0.2
        %v5002 = vsel %vm4998, %v4996, %v5000
        %v5003 = vsel %vm4999, %v4997, %v5001
        %v5006 = vcombine.low %v5002, %v5003
        %v5008 = vunpack.c.l.s4 1966171168
        %v5009 = vunpack.c.0.s8 %v5008
        %v5010 = vlaneseq
        %v5011 = vshrl.u32 %v5010, 7
        %v5012 = vsub.s32 %v5009, %v5011
        %v5013 = vrot.slane %v5006, %v5012
        %v5015 = vunpack.c.l.s4 1966171168
        %v5016 = vunpack.c.0.s8 %v5015
        %v5017 = vlaneseq
        %v5018 = vshrl.u32 %v5017, 7
        %v5019 = vsub.s32 %v5016, %v5018
        %v5020 = vrot.slane %v5013, %v5019
        %5021 = vrot.lane.b32.xlu0 %v5020, 64
        %v5022 = vpop.permute.xlu0 %5021
        %v5023 = vrot.slane %v5022, 7
        %v5024 = vsel %vm3634, %v5023, %v5022
        %s5026 = scalar_lea.vmem [#allocation4], 12
        %vm5027 = vcmp.ge.s32.totalorder %v1442, 64
        %vm5028 = vcmp.lt.s32.totalorder %v1442, 320
        %vm5029 = vmand %vm5027, %vm5028
        %5030 = vst.msk [vmem:[%s5026] ss:$4 sm:$0x7] %vm5029, %v5024
        %v5031 = vcombine.high %v5013, %v5013
        %v5033 = vunpack.c.l.s4 1966171168
        %v5034 = vunpack.c.0.s8 %v5033
        %v5035 = vlaneseq
        %v5036 = vshrl.u32 %v5035, 7
        %v5037 = vsub.s32 %v5034, %v5036
        %v5038 = vrot.slane %v5031, %v5037
        %5039 = vrot.lane.b32.xlu0 %v5038, 64
        %v5040 = vpop.permute.xlu0 %5039
        %v5041 = vrot.slane %v5040, 7
        %v5042 = vsel %vm3634, %v5041, %v5040
        %s5044 = scalar_lea.vmem [#allocation4], 1
        %5045 = vst.msk [vmem:[%s5044] ss:$4 sm:$0x7] %vm5029, %v5042
        %v5046 = vcombine.high %v5020, %v5020
        %5047 = vrot.lane.b32.xlu0 %v5046, 64
        %v5048 = vpop.permute.xlu0 %5047
        %v5049 = vrot.slane %v5048, 7
        %v5050 = vsel %vm3634, %v5049, %v5048
        %s5052 = scalar_lea.vmem %s5026, 1 [#allocation4]
        %5053 = vst.msk [vmem:[%s5052] ss:$4 sm:$0x7] %vm5029, %v5050
        %v5054 = vcombine.high %v5038, %v5038
        %5055 = vrot.lane.b32.xlu0 %v5054, 64
        %v5056 = vpop.permute.xlu0 %5055
        %v5057 = vrot.slane %v5056, 7
        %v5058 = vsel %vm3634, %v5057, %v5056
        %s5060 = scalar_lea.vmem [#allocation4], 2
        %5061 = vst.msk [vmem:[%s5060] ss:$4 sm:$0x7] %vm5029, %v5058
        %v5062 = vld [vmem:[#allocation4] sm:$0x33]
        %v5063 = vld [vmem:[#allocation4 + $0x8] sm:$0x3]
        %v5065 = vcombine.high %v5062, %v5062
        %v5067 = vpack.c.bf16 %v5062, %v5062
        %v5068 = vpack.c.bf16 %v5065, %v5065
        %v5069 = vpack.c.bf16 %v5063, %v5063
        %v5070 = vld [vmem:[%s9] sm:$0xff]
        %v5071 = vld [vmem:[%s9 + $0x8] sm:$0xff]
        %v5072 = vld [vmem:[%s9 + $0x10] sm:$0xff]
        %v5073 = vld [vmem:[%s9 + $0x18] sm:$0xff]
        %v5074 = vld [vmem:[%s9 + $0x20] sm:$0xff]
        %v5075 = vld [vmem:[%s9 + $0x28] sm:$0xff]
        %v5076 = vld [vmem:[%s9 + $0x30] sm:$0xff]
        %v5077 = vld [vmem:[%s9 + $0x38] sm:$0xff]
        %v5078 = vld [vmem:[%s9 + $0x40] sm:$0xff]
        %v5079 = vld [vmem:[%s9 + $0x48] sm:$0xff]
        %v5080 = vld [vmem:[%s9 + $0x50] sm:$0xff]
        %v5081 = vld [vmem:[%s9 + $0x58] sm:$0xff]
        %v5082 = vld [vmem:[%s9 + $0x60] sm:$0xff]
        %v5083 = vld [vmem:[%s9 + $0x68] sm:$0xff]
        %v5084 = vld [vmem:[%s9 + $0x70] sm:$0xff]
        %v5085 = vld [vmem:[%s9 + $0x78] sm:$0xff]
        %v5086 = vld [vmem:[%s9 + $0x80] sm:$0xff]
        %v5087 = vld [vmem:[%s9 + $0x88] sm:$0xff]
        %v5088 = vld [vmem:[%s9 + $0x90] sm:$0xff]
        %v5089 = vld [vmem:[%s9 + $0x98] sm:$0xff]
        %v5090 = vld [vmem:[%s9 + $0xa0] sm:$0xff]
        %v5091 = vld [vmem:[%s9 + $0xa8] sm:$0xff]
        %v5092 = vld [vmem:[%s9 + $0xb0] sm:$0xff]
        %v5093 = vld [vmem:[%s9 + $0xb8] sm:$0xff]
        %v5094 = vld [vmem:[%s9 + $0xc0] sm:$0xff]
        %v5095 = vld [vmem:[%s9 + $0xc8] sm:$0xff]
        %v5096 = vld [vmem:[%s9 + $0xd0] sm:$0xff]
        %v5097 = vld [vmem:[%s9 + $0xd8] sm:$0xff]
        %v5098 = vld [vmem:[%s9 + $0xe0] sm:$0xff]
        %v5099 = vld [vmem:[%s9 + $0xe8] sm:$0xff]
        %v5100 = vld [vmem:[%s9 + $0xf0] sm:$0xff]
        %v5101 = vld [vmem:[%s9 + $0xf8] sm:$0xff]
        %v5102 = vld [vmem:[%s9 + $0x100] sm:$0xff]
        %v5103 = vld [vmem:[%s9 + $0x108] sm:$0xff]
        %v5104 = vld [vmem:[%s9 + $0x110] sm:$0xff]
        %v5105 = vld [vmem:[%s9 + $0x118] sm:$0xff]
        %v5106 = vld [vmem:[%s9 + $0x120] sm:$0xff]
        %v5107 = vld [vmem:[%s9 + $0x128] sm:$0xff]
        %v5108 = vld [vmem:[%s9 + $0x130] sm:$0xff]
        %v5109 = vld [vmem:[%s9 + $0x138] sm:$0xff]
        %v5110 = vld [vmem:[%s9 + $0x140] sm:$0xff]
        %v5111 = vld [vmem:[%s9 + $0x148] sm:$0xff]
        %v5112 = vld [vmem:[%s9 + $0x150] sm:$0xff]
        %v5113 = vld [vmem:[%s9 + $0x158] sm:$0xff]
        %v5114 = vld [vmem:[%s9 + $0x160] sm:$0xff]
        %v5115 = vld [vmem:[%s9 + $0x168] sm:$0xff]
        %v5116 = vld [vmem:[%s9 + $0x170] sm:$0xff]
        %v5117 = vld [vmem:[%s9 + $0x178] sm:$0xff]
        %v5118 = vld [vmem:[%s5026] sm:$0x33]
        %v5119 = vld [vmem:[%s5026 + $0x8] sm:$0x3]
        %v5121 = vcombine.high %v5118, %v5118
        %v5123 = vpack.c.bf16 %v5118, %v5118
        %v5124 = vpack.c.bf16 %v5121, %v5121
        %v5125 = vpack.c.bf16 %v5119, %v5119
        %s5126 = scalar_lea.vmem %s9, 384
        %v5127 = vld [vmem:[%s5126] sm:$0xff]
        %v5128 = vld [vmem:[%s5126 + $0x8] sm:$0xff]
        %v5129 = vld [vmem:[%s5126 + $0x10] sm:$0xff]
        %v5130 = vld [vmem:[%s5126 + $0x18] sm:$0xff]
        %v5131 = vld [vmem:[%s5126 + $0x20] sm:$0xff]
        %v5132 = vld [vmem:[%s5126 + $0x28] sm:$0xff]
        %v5133 = vld [vmem:[%s5126 + $0x30] sm:$0xff]
        %v5134 = vld [vmem:[%s5126 + $0x38] sm:$0xff]
        %v5135 = vld [vmem:[%s5126 + $0x40] sm:$0xff]
        %v5136 = vld [vmem:[%s5126 + $0x48] sm:$0xff]
        %v5137 = vld [vmem:[%s5126 + $0x50] sm:$0xff]
        %v5138 = vld [vmem:[%s5126 + $0x58] sm:$0xff]
        %v5139 = vld [vmem:[%s5126 + $0x60] sm:$0xff]
        %v5140 = vld [vmem:[%s5126 + $0x68] sm:$0xff]
        %v5141 = vld [vmem:[%s5126 + $0x70] sm:$0xff]
        %v5142 = vld [vmem:[%s5126 + $0x78] sm:$0xff]
        %v5143 = vld [vmem:[%s5126 + $0x80] sm:$0xff]
        %v5144 = vld [vmem:[%s5126 + $0x88] sm:$0xff]
        %v5145 = vld [vmem:[%s5126 + $0x90] sm:$0xff]
        %v5146 = vld [vmem:[%s5126 + $0x98] sm:$0xff]
        %v5147 = vld [vmem:[%s5126 + $0xa0] sm:$0xff]
        %v5148 = vld [vmem:[%s5126 + $0xa8] sm:$0xff]
        %v5149 = vld [vmem:[%s5126 + $0xb0] sm:$0xff]
        %v5150 = vld [vmem:[%s5126 + $0xb8] sm:$0xff]
        %v5151 = vld [vmem:[%s5126 + $0xc0] sm:$0xff]
        %v5152 = vld [vmem:[%s5126 + $0xc8] sm:$0xff]
        %v5153 = vld [vmem:[%s5126 + $0xd0] sm:$0xff]
        %v5154 = vld [vmem:[%s5126 + $0xd8] sm:$0xff]
        %v5155 = vld [vmem:[%s5126 + $0xe0] sm:$0xff]
        %v5156 = vld [vmem:[%s5126 + $0xe8] sm:$0xff]
        %v5157 = vld [vmem:[%s5126 + $0xf0] sm:$0xff]
        %v5158 = vld [vmem:[%s5126 + $0xf8] sm:$0xff]
        %v5159 = vld [vmem:[%s5126 + $0x100] sm:$0xff]
        %v5160 = vld [vmem:[%s5126 + $0x108] sm:$0xff]
        %v5161 = vld [vmem:[%s5126 + $0x110] sm:$0xff]
        %v5162 = vld [vmem:[%s5126 + $0x118] sm:$0xff]
        %v5163 = vld [vmem:[%s5126 + $0x120] sm:$0xff]
        %v5164 = vld [vmem:[%s5126 + $0x128] sm:$0xff]
        %v5165 = vld [vmem:[%s5126 + $0x130] sm:$0xff]
        %v5166 = vld [vmem:[%s5126 + $0x138] sm:$0xff]
        %v5167 = vld [vmem:[%s5126 + $0x140] sm:$0xff]
        %v5168 = vld [vmem:[%s5126 + $0x148] sm:$0xff]
        %v5169 = vld [vmem:[%s5126 + $0x150] sm:$0xff]
        %v5170 = vld [vmem:[%s5126 + $0x158] sm:$0xff]
        %v5171 = vld [vmem:[%s5126 + $0x160] sm:$0xff]
        %v5172 = vld [vmem:[%s5126 + $0x168] sm:$0xff]
        %v5173 = vld [vmem:[%s5126 + $0x170] sm:$0xff]
        %v5174 = vld [vmem:[%s5126 + $0x178] sm:$0xff]
        %v5223 = vunpack.c.l.b16 %v5127
        %v5224 = vunpack.c.h.b16 %v5127
        %v5225 = vunpack.c.l.b16 %v5128
        %v5226 = vunpack.c.h.b16 %v5128
        %v5227 = vunpack.c.l.b16 %v5129
        %v5228 = vunpack.c.h.b16 %v5129
        %v5229 = vunpack.c.l.b16 %v5130
        %v5230 = vunpack.c.h.b16 %v5130
        %v5231 = vunpack.c.l.b16 %v5131
        %v5232 = vunpack.c.h.b16 %v5131
        %v5233 = vunpack.c.l.b16 %v5132
        %v5234 = vunpack.c.h.b16 %v5132
        %v5235 = vunpack.c.l.b16 %v5133
        %v5236 = vunpack.c.h.b16 %v5133
        %v5237 = vunpack.c.l.b16 %v5134
        %v5238 = vunpack.c.h.b16 %v5134
        %v5239 = vunpack.c.l.b16 %v5135
        %v5240 = vunpack.c.h.b16 %v5135
        %v5241 = vunpack.c.l.b16 %v5136
        %v5242 = vunpack.c.h.b16 %v5136
        %v5243 = vunpack.c.l.b16 %v5137
        %v5244 = vunpack.c.h.b16 %v5137
        %v5245 = vunpack.c.l.b16 %v5138
        %v5246 = vunpack.c.h.b16 %v5138
        %v5247 = vunpack.c.l.b16 %v5139
        %v5248 = vunpack.c.h.b16 %v5139
        %v5249 = vunpack.c.l.b16 %v5140
        %v5250 = vunpack.c.h.b16 %v5140
        %v5251 = vunpack.c.l.b16 %v5141
        %v5252 = vunpack.c.h.b16 %v5141
        %v5253 = vunpack.c.l.b16 %v5142
        %v5254 = vunpack.c.h.b16 %v5142
        %v5255 = vunpack.c.l.b16 %v5143
        %v5256 = vunpack.c.h.b16 %v5143
        %v5257 = vunpack.c.l.b16 %v5144
        %v5258 = vunpack.c.h.b16 %v5144
        %v5259 = vunpack.c.l.b16 %v5145
        %v5260 = vunpack.c.h.b16 %v5145
        %v5261 = vunpack.c.l.b16 %v5146
        %v5262 = vunpack.c.h.b16 %v5146
        %v5263 = vunpack.c.l.b16 %v5147
        %v5264 = vunpack.c.h.b16 %v5147
        %v5265 = vunpack.c.l.b16 %v5148
        %v5266 = vunpack.c.h.b16 %v5148
        %v5267 = vunpack.c.l.b16 %v5149
        %v5268 = vunpack.c.h.b16 %v5149
        %v5269 = vunpack.c.l.b16 %v5150
        %v5270 = vunpack.c.h.b16 %v5150
        %v5271 = vunpack.c.l.b16 %v5151
        %v5272 = vunpack.c.h.b16 %v5151
        %v5273 = vunpack.c.l.b16 %v5152
        %v5274 = vunpack.c.h.b16 %v5152
        %v5275 = vunpack.c.l.b16 %v5153
        %v5276 = vunpack.c.h.b16 %v5153
        %v5277 = vunpack.c.l.b16 %v5154
        %v5278 = vunpack.c.h.b16 %v5154
        %v5279 = vunpack.c.l.b16 %v5155
        %v5280 = vunpack.c.h.b16 %v5155
        %v5281 = vunpack.c.l.b16 %v5156
        %v5282 = vunpack.c.h.b16 %v5156
        %v5283 = vunpack.c.l.b16 %v5157
        %v5284 = vunpack.c.h.b16 %v5157
        %v5285 = vunpack.c.l.b16 %v5158
        %v5286 = vunpack.c.h.b16 %v5158
        %v5287 = vunpack.c.l.b16 %v5159
        %v5288 = vunpack.c.h.b16 %v5159
        %v5289 = vunpack.c.l.b16 %v5160
        %v5290 = vunpack.c.h.b16 %v5160
        %v5291 = vunpack.c.l.b16 %v5161
        %v5292 = vunpack.c.h.b16 %v5161
        %v5293 = vunpack.c.l.b16 %v5162
        %v5294 = vunpack.c.h.b16 %v5162
        %v5295 = vunpack.c.l.b16 %v5163
        %v5296 = vunpack.c.h.b16 %v5163
        %v5297 = vunpack.c.l.b16 %v5164
        %v5298 = vunpack.c.h.b16 %v5164
        %v5299 = vunpack.c.l.b16 %v5165
        %v5300 = vunpack.c.h.b16 %v5165
        %v5301 = vunpack.c.l.b16 %v5166
        %v5302 = vunpack.c.h.b16 %v5166
        %v5303 = vunpack.c.l.b16 %v5167
        %v5304 = vunpack.c.h.b16 %v5167
        %v5305 = vunpack.c.l.b16 %v5168
        %v5306 = vunpack.c.h.b16 %v5168
        %v5307 = vunpack.c.l.b16 %v5169
        %v5308 = vunpack.c.h.b16 %v5169
        %v5309 = vunpack.c.l.b16 %v5170
        %v5310 = vunpack.c.h.b16 %v5170
        %v5311 = vunpack.c.l.b16 %v5171
        %v5312 = vunpack.c.h.b16 %v5171
        %v5313 = vunpack.c.l.b16 %v5172
        %v5314 = vunpack.c.h.b16 %v5172
        %v5315 = vunpack.c.l.b16 %v5173
        %v5316 = vunpack.c.h.b16 %v5173
        %v5317 = vunpack.c.l.b16 %v5174
        %v5318 = vunpack.c.h.b16 %v5174
        %v5319 = vpack.c.b16 %v5225, %v5223
        %v5320 = vpack.c.b16 %v5226, %v5224
        %v5321 = vpack.c.b16 %v5229, %v5227
        %v5322 = vpack.c.b16 %v5230, %v5228
        %v5323 = vpack.c.b16 %v5233, %v5231
        %v5324 = vpack.c.b16 %v5234, %v5232
        %v5325 = vpack.c.b16 %v5237, %v5235
        %v5326 = vpack.c.b16 %v5238, %v5236
        %v5327 = vpack.c.b16 %v5241, %v5239
        %v5328 = vpack.c.b16 %v5242, %v5240
        %v5329 = vpack.c.b16 %v5245, %v5243
        %v5330 = vpack.c.b16 %v5246, %v5244
        %v5331 = vpack.c.b16 %v5249, %v5247
        %v5332 = vpack.c.b16 %v5250, %v5248
        %v5333 = vpack.c.b16 %v5253, %v5251
        %v5334 = vpack.c.b16 %v5254, %v5252
        %v5335 = vpack.c.b16 %v5257, %v5255
        %v5336 = vpack.c.b16 %v5258, %v5256
        %v5337 = vpack.c.b16 %v5261, %v5259
        %v5338 = vpack.c.b16 %v5262, %v5260
        %v5339 = vpack.c.b16 %v5265, %v5263
        %v5340 = vpack.c.b16 %v5266, %v5264
        %v5341 = vpack.c.b16 %v5269, %v5267
        %v5342 = vpack.c.b16 %v5270, %v5268
        %v5343 = vpack.c.b16 %v5273, %v5271
        %v5344 = vpack.c.b16 %v5274, %v5272
        %v5345 = vpack.c.b16 %v5277, %v5275
        %v5346 = vpack.c.b16 %v5278, %v5276
        %v5347 = vpack.c.b16 %v5281, %v5279
        %v5348 = vpack.c.b16 %v5282, %v5280
        %v5349 = vpack.c.b16 %v5285, %v5283
        %v5350 = vpack.c.b16 %v5286, %v5284
        %v5351 = vpack.c.b16 %v5289, %v5287
        %v5352 = vpack.c.b16 %v5290, %v5288
        %v5353 = vpack.c.b16 %v5293, %v5291
        %v5354 = vpack.c.b16 %v5294, %v5292
        %v5355 = vpack.c.b16 %v5297, %v5295
        %v5356 = vpack.c.b16 %v5298, %v5296
        %v5357 = vpack.c.b16 %v5301, %v5299
        %v5358 = vpack.c.b16 %v5302, %v5300
        %v5359 = vpack.c.b16 %v5305, %v5303
        %v5360 = vpack.c.b16 %v5306, %v5304
        %v5361 = vpack.c.b16 %v5309, %v5307
        %v5362 = vpack.c.b16 %v5310, %v5308
        %v5363 = vpack.c.b16 %v5313, %v5311
        %v5364 = vpack.c.b16 %v5314, %v5312
        %v5365 = vpack.c.b16 %v5317, %v5315
        %v5366 = vpack.c.b16 %v5318, %v5316
        %5415 = vmatprep.subr.bf16.mxu0 %v5320
        %5416 = vmatpush1.bf16.msra.mxu0 %v5319
        %5417 = vmatprep.subr.bf16.mxu0 %v5322
        %5418 = vmatpush1.bf16.msra.mxu0 %v5321
        %5419 = vmatprep.subr.bf16.mxu0 %v5324
        %5420 = vmatpush1.bf16.msra.mxu0 %v5323
        %5421 = vmatprep.subr.bf16.mxu0 %v5326
        %5422 = vmatpush1.bf16.msra.mxu0 %v5325
        %5423 = vmatprep.subr.bf16.mxu0 %v5328
        %5424 = vmatpush1.bf16.msra.mxu0 %v5327
        %5425 = vmatprep.subr.bf16.mxu0 %v5330
        %5426 = vmatpush1.bf16.msra.mxu0 %v5329
        %5427 = vmatprep.subr.bf16.mxu0 %v5332
        %5428 = vmatpush1.bf16.msra.mxu0 %v5331
        %5429 = vmatprep.subr.bf16.mxu0 %v5334
        %5430 = vmatpush1.bf16.msra.mxu0 %v5333
        %5431 = vmatprep.subr.bf16.mxu0 %v5336
        %5432 = vmatpush1.bf16.msra.mxu0 %v5335
        %5433 = vmatprep.subr.bf16.mxu0 %v5338
        %5434 = vmatpush1.bf16.msra.mxu0 %v5337
        %5435 = vmatprep.subr.bf16.mxu0 %v5340
        %5436 = vmatpush1.bf16.msra.mxu0 %v5339
        %5437 = vmatprep.subr.bf16.mxu0 %v5342
        %5438 = vmatpush1.bf16.msra.mxu0 %v5341
        %5439 = vmatprep.subr.bf16.mxu0 %v5344
        %5440 = vmatpush1.bf16.msra.mxu0 %v5343
        %5441 = vmatprep.subr.bf16.mxu0 %v5346
        %5442 = vmatpush1.bf16.msra.mxu0 %v5345
        %5443 = vmatprep.subr.bf16.mxu0 %v5348
        %5444 = vmatpush1.bf16.msra.mxu0 %v5347
        %5445 = vmatprep.subr.bf16.mxu0 %v5350
        %5446 = vmatpush1.bf16.msra.mxu0 %v5349
        %5447 = vmatprep.mubr.bf16.mxu0 %v5124
        %5448 = vmatmul.mubr.bf16.gmra.mrb[0].mxu0 %v5123
        %v5449 = vpop.f32.mrb[0].mxu0
        %v5450 = vadd.f32 0.0, %v5449
        %v5451 = vpop.f32.mrb[0].mxu0
        %v5452 = vadd.f32 0.0, %v5451
        %v5453 = vpop.f32.mrb[0].mxu0
        %v5454 = vpop.f32.mrb[0].mxu0
        %5455 = vdwg.mxu0
        %5456 = vmatprep.subr.bf16.mxu0 %v5352
        %5457 = vmatpush1.bf16.msra.mxu0 %v5351
        %5458 = vmatprep.subr.bf16.mxu0 %v5354
        %5459 = vmatpush1.bf16.msra.mxu0 %v5353
        %5460 = vmatprep.subr.bf16.mxu0 %v5356
        %5461 = vmatpush1.bf16.msra.mxu0 %v5355
        %5462 = vmatprep.subr.bf16.mxu0 %v5358
        %5463 = vmatpush1.bf16.msra.mxu0 %v5357
        %5464 = vmatprep.subr.bf16.mxu0 %v5360
        %5465 = vmatpush1.bf16.msra.mxu0 %v5359
        %5466 = vmatprep.subr.bf16.mxu0 %v5362
        %5467 = vmatpush1.bf16.msra.mxu0 %v5361
        %5468 = vmatprep.subr.bf16.mxu0 %v5364
        %5469 = vmatpush1.bf16.msra.mxu0 %v5363
        %5470 = vmatprep.subr.bf16.mxu0 %v5366
        %5471 = vmatpush1.bf16.msra.mxu0 %v5365
        %5472 = vmatprep.subr.bf16.mxu0 0
        %5473 = vmatpush1.bf16.msra.mxu0 0
        %5474 = vmatprep.subr.bf16.mxu0 0
        %5475 = vmatpush1.bf16.msra.mxu0 0
        %5476 = vmatprep.subr.bf16.mxu0 0
        %5477 = vmatpush1.bf16.msra.mxu0 0
        %5478 = vmatprep.subr.bf16.mxu0 0
        %5479 = vmatpush1.bf16.msra.mxu0 0
        %5480 = vmatprep.subr.bf16.mxu0 0
        %5481 = vmatpush1.bf16.msra.mxu0 0
        %5482 = vmatprep.subr.bf16.mxu0 0
        %5483 = vmatpush1.bf16.msra.mxu0 0
        %5484 = vmatprep.subr.bf16.mxu0 0
        %5485 = vmatpush1.bf16.msra.mxu0 0
        %5486 = vmatprep.subr.bf16.mxu0 0
        %5487 = vmatpush1.bf16.msra.mxu0 0
        %5488 = vmatprep.mubr.bf16.mxu0 0
        %5489 = vmatmul.mubr.bf16.gmra.mrb[0].mxu0 %v5125
        %v5490 = vpop.f32.mrb[0].mxu0
        %v5491 = vadd.f32 %v5450, %v5490
        %v5492 = vpop.f32.mrb[0].mxu0
        %v5493 = vadd.f32 %v5452, %v5492
        %v5494 = vpop.f32.mrb[0].mxu0
        %v5495 = vpop.f32.mrb[0].mxu0
        %5496 = vdwg.mxu0
        %v5545 = vunpack.c.l.b16 %v5070
        %v5546 = vunpack.c.h.b16 %v5070
        %v5547 = vunpack.c.l.b16 %v5071
        %v5548 = vunpack.c.h.b16 %v5071
        %v5549 = vunpack.c.l.b16 %v5072
        %v5550 = vunpack.c.h.b16 %v5072
        %v5551 = vunpack.c.l.b16 %v5073
        %v5552 = vunpack.c.h.b16 %v5073
        %v5553 = vunpack.c.l.b16 %v5074
        %v5554 = vunpack.c.h.b16 %v5074
        %v5555 = vunpack.c.l.b16 %v5075
        %v5556 = vunpack.c.h.b16 %v5075
        %v5557 = vunpack.c.l.b16 %v5076
        %v5558 = vunpack.c.h.b16 %v5076
        %v5559 = vunpack.c.l.b16 %v5077
        %v5560 = vunpack.c.h.b16 %v5077
        %v5561 = vunpack.c.l.b16 %v5078
        %v5562 = vunpack.c.h.b16 %v5078
        %v5563 = vunpack.c.l.b16 %v5079
        %v5564 = vunpack.c.h.b16 %v5079
        %v5565 = vunpack.c.l.b16 %v5080
        %v5566 = vunpack.c.h.b16 %v5080
        %v5567 = vunpack.c.l.b16 %v5081
        %v5568 = vunpack.c.h.b16 %v5081
        %v5569 = vunpack.c.l.b16 %v5082
        %v5570 = vunpack.c.h.b16 %v5082
        %v5571 = vunpack.c.l.b16 %v5083
        %v5572 = vunpack.c.h.b16 %v5083
        %v5573 = vunpack.c.l.b16 %v5084
        %v5574 = vunpack.c.h.b16 %v5084
        %v5575 = vunpack.c.l.b16 %v5085
        %v5576 = vunpack.c.h.b16 %v5085
        %v5577 = vunpack.c.l.b16 %v5086
        %v5578 = vunpack.c.h.b16 %v5086
        %v5579 = vunpack.c.l.b16 %v5087
        %v5580 = vunpack.c.h.b16 %v5087
        %v5581 = vunpack.c.l.b16 %v5088
        %v5582 = vunpack.c.h.b16 %v5088
        %v5583 = vunpack.c.l.b16 %v5089
        %v5584 = vunpack.c.h.b16 %v5089
        %v5585 = vunpack.c.l.b16 %v5090
        %v5586 = vunpack.c.h.b16 %v5090
        %v5587 = vunpack.c.l.b16 %v5091
        %v5588 = vunpack.c.h.b16 %v5091
        %v5589 = vunpack.c.l.b16 %v5092
        %v5590 = vunpack.c.h.b16 %v5092
        %v5591 = vunpack.c.l.b16 %v5093
        %v5592 = vunpack.c.h.b16 %v5093
        %v5593 = vunpack.c.l.b16 %v5094
        %v5594 = vunpack.c.h.b16 %v5094
        %v5595 = vunpack.c.l.b16 %v5095
        %v5596 = vunpack.c.h.b16 %v5095
        %v5597 = vunpack.c.l.b16 %v5096
        %v5598 = vunpack.c.h.b16 %v5096
        %v5599 = vunpack.c.l.b16 %v5097
        %v5600 = vunpack.c.h.b16 %v5097
        %v5601 = vunpack.c.l.b16 %v5098
        %v5602 = vunpack.c.h.b16 %v5098
        %v5603 = vunpack.c.l.b16 %v5099
        %v5604 = vunpack.c.h.b16 %v5099
        %v5605 = vunpack.c.l.b16 %v5100
        %v5606 = vunpack.c.h.b16 %v5100
        %v5607 = vunpack.c.l.b16 %v5101
        %v5608 = vunpack.c.h.b16 %v5101
        %v5609 = vunpack.c.l.b16 %v5102
        %v5610 = vunpack.c.h.b16 %v5102
        %v5611 = vunpack.c.l.b16 %v5103
        %v5612 = vunpack.c.h.b16 %v5103
        %v5613 = vunpack.c.l.b16 %v5104
        %v5614 = vunpack.c.h.b16 %v5104
        %v5615 = vunpack.c.l.b16 %v5105
        %v5616 = vunpack.c.h.b16 %v5105
        %v5617 = vunpack.c.l.b16 %v5106
        %v5618 = vunpack.c.h.b16 %v5106
        %v5619 = vunpack.c.l.b16 %v5107
        %v5620 = vunpack.c.h.b16 %v5107
        %v5621 = vunpack.c.l.b16 %v5108
        %v5622 = vunpack.c.h.b16 %v5108
        %v5623 = vunpack.c.l.b16 %v5109
        %v5624 = vunpack.c.h.b16 %v5109
        %v5625 = vunpack.c.l.b16 %v5110
        %v5626 = vunpack.c.h.b16 %v5110
        %v5627 = vunpack.c.l.b16 %v5111
        %v5628 = vunpack.c.h.b16 %v5111
        %v5629 = vunpack.c.l.b16 %v5112
        %v5630 = vunpack.c.h.b16 %v5112
        %v5631 = vunpack.c.l.b16 %v5113
        %v5632 = vunpack.c.h.b16 %v5113
        %v5633 = vunpack.c.l.b16 %v5114
        %v5634 = vunpack.c.h.b16 %v5114
        %v5635 = vunpack.c.l.b16 %v5115
        %v5636 = vunpack.c.h.b16 %v5115
        %v5637 = vunpack.c.l.b16 %v5116
        %v5638 = vunpack.c.h.b16 %v5116
        %v5639 = vunpack.c.l.b16 %v5117
        %v5640 = vunpack.c.h.b16 %v5117
        %v5641 = vpack.c.b16 %v5547, %v5545
        %v5642 = vpack.c.b16 %v5548, %v5546
        %v5643 = vpack.c.b16 %v5551, %v5549
        %v5644 = vpack.c.b16 %v5552, %v5550
        %v5645 = vpack.c.b16 %v5555, %v5553
        %v5646 = vpack.c.b16 %v5556, %v5554
        %v5647 = vpack.c.b16 %v5559, %v5557
        %v5648 = vpack.c.b16 %v5560, %v5558
        %v5649 = vpack.c.b16 %v5563, %v5561
        %v5650 = vpack.c.b16 %v5564, %v5562
        %v5651 = vpack.c.b16 %v5567, %v5565
        %v5652 = vpack.c.b16 %v5568, %v5566
        %v5653 = vpack.c.b16 %v5571, %v5569
        %v5654 = vpack.c.b16 %v5572, %v5570
        %v5655 = vpack.c.b16 %v5575, %v5573
        %v5656 = vpack.c.b16 %v5576, %v5574
        %v5657 = vpack.c.b16 %v5579, %v5577
        %v5658 = vpack.c.b16 %v5580, %v5578
        %v5659 = vpack.c.b16 %v5583, %v5581
        %v5660 = vpack.c.b16 %v5584, %v5582
        %v5661 = vpack.c.b16 %v5587, %v5585
        %v5662 = vpack.c.b16 %v5588, %v5586
        %v5663 = vpack.c.b16 %v5591, %v5589
        %v5664 = vpack.c.b16 %v5592, %v5590
        %v5665 = vpack.c.b16 %v5595, %v5593
        %v5666 = vpack.c.b16 %v5596, %v5594
        %v5667 = vpack.c.b16 %v5599, %v5597
        %v5668 = vpack.c.b16 %v5600, %v5598
        %v5669 = vpack.c.b16 %v5603, %v5601
        %v5670 = vpack.c.b16 %v5604, %v5602
        %v5671 = vpack.c.b16 %v5607, %v5605
        %v5672 = vpack.c.b16 %v5608, %v5606
        %v5673 = vpack.c.b16 %v5611, %v5609
        %v5674 = vpack.c.b16 %v5612, %v5610
        %v5675 = vpack.c.b16 %v5615, %v5613
        %v5676 = vpack.c.b16 %v5616, %v5614
        %v5677 = vpack.c.b16 %v5619, %v5617
        %v5678 = vpack.c.b16 %v5620, %v5618
        %v5679 = vpack.c.b16 %v5623, %v5621
        %v5680 = vpack.c.b16 %v5624, %v5622
        %v5681 = vpack.c.b16 %v5627, %v5625
        %v5682 = vpack.c.b16 %v5628, %v5626
        %v5683 = vpack.c.b16 %v5631, %v5629
        %v5684 = vpack.c.b16 %v5632, %v5630
        %v5685 = vpack.c.b16 %v5635, %v5633
        %v5686 = vpack.c.b16 %v5636, %v5634
        %v5687 = vpack.c.b16 %v5639, %v5637
        %v5688 = vpack.c.b16 %v5640, %v5638
        %5737 = vmatprep.subr.bf16.mxu0 %v5642
        %5738 = vmatpush1.bf16.msra.mxu0 %v5641
        %5739 = vmatprep.subr.bf16.mxu0 %v5644
        %5740 = vmatpush1.bf16.msra.mxu0 %v5643
        %5741 = vmatprep.subr.bf16.mxu0 %v5646
        %5742 = vmatpush1.bf16.msra.mxu0 %v5645
        %5743 = vmatprep.subr.bf16.mxu0 %v5648
        %5744 = vmatpush1.bf16.msra.mxu0 %v5647
        %5745 = vmatprep.subr.bf16.mxu0 %v5650
        %5746 = vmatpush1.bf16.msra.mxu0 %v5649
        %5747 = vmatprep.subr.bf16.mxu0 %v5652
        %5748 = vmatpush1.bf16.msra.mxu0 %v5651
        %5749 = vmatprep.subr.bf16.mxu0 %v5654
        %5750 = vmatpush1.bf16.msra.mxu0 %v5653
        %5751 = vmatprep.subr.bf16.mxu0 %v5656
        %5752 = vmatpush1.bf16.msra.mxu0 %v5655
        %5753 = vmatprep.subr.bf16.mxu0 %v5658
        %5754 = vmatpush1.bf16.msra.mxu0 %v5657
        %5755 = vmatprep.subr.bf16.mxu0 %v5660
        %5756 = vmatpush1.bf16.msra.mxu0 %v5659
        %5757 = vmatprep.subr.bf16.mxu0 %v5662
        %5758 = vmatpush1.bf16.msra.mxu0 %v5661
        %5759 = vmatprep.subr.bf16.mxu0 %v5664
        %5760 = vmatpush1.bf16.msra.mxu0 %v5663
        %5761 = vmatprep.subr.bf16.mxu0 %v5666
        %5762 = vmatpush1.bf16.msra.mxu0 %v5665
        %5763 = vmatprep.subr.bf16.mxu0 %v5668
        %5764 = vmatpush1.bf16.msra.mxu0 %v5667
        %5765 = vmatprep.subr.bf16.mxu0 %v5670
        %5766 = vmatpush1.bf16.msra.mxu0 %v5669
        %5767 = vmatprep.subr.bf16.mxu0 %v5672
        %5768 = vmatpush1.bf16.msra.mxu0 %v5671
        %5769 = vmatprep.mubr.bf16.mxu0 %v5068
        %5770 = vmatmul.mubr.bf16.gmra.mrb[0].mxu0 %v5067
        %v5771 = vpop.f32.mrb[0].mxu0
        %v5772 = vadd.f32 %v5491, %v5771
        %v5773 = vpop.f32.mrb[0].mxu0
        %v5774 = vadd.f32 %v5493, %v5773
        %v5775 = vpop.f32.mrb[0].mxu0
        %v5776 = vpop.f32.mrb[0].mxu0
        %5777 = vdwg.mxu0
        %5778 = vmatprep.subr.bf16.mxu0 %v5674
        %5779 = vmatpush1.bf16.msra.mxu0 %v5673
        %5780 = vmatprep.subr.bf16.mxu0 %v5676
        %5781 = vmatpush1.bf16.msra.mxu0 %v5675
        %5782 = vmatprep.subr.bf16.mxu0 %v5678
        %5783 = vmatpush1.bf16.msra.mxu0 %v5677
        %5784 = vmatprep.subr.bf16.mxu0 %v5680
        %5785 = vmatpush1.bf16.msra.mxu0 %v5679
        %5786 = vmatprep.subr.bf16.mxu0 %v5682
        %5787 = vmatpush1.bf16.msra.mxu0 %v5681
        %5788 = vmatprep.subr.bf16.mxu0 %v5684
        %5789 = vmatpush1.bf16.msra.mxu0 %v5683
        %5790 = vmatprep.subr.bf16.mxu0 %v5686
        %5791 = vmatpush1.bf16.msra.mxu0 %v5685
        %5792 = vmatprep.subr.bf16.mxu0 %v5688
        %5793 = vmatpush1.bf16.msra.mxu0 %v5687
        %5794 = vmatprep.subr.bf16.mxu0 0
        %5795 = vmatpush1.bf16.msra.mxu0 0
        %5796 = vmatprep.subr.bf16.mxu0 0
        %5797 = vmatpush1.bf16.msra.mxu0 0
        %5798 = vmatprep.subr.bf16.mxu0 0
        %5799 = vmatpush1.bf16.msra.mxu0 0
        %5800 = vmatprep.subr.bf16.mxu0 0
        %5801 = vmatpush1.bf16.msra.mxu0 0
        %5802 = vmatprep.subr.bf16.mxu0 0
        %5803 = vmatpush1.bf16.msra.mxu0 0
        %5804 = vmatprep.subr.bf16.mxu0 0
        %5805 = vmatpush1.bf16.msra.mxu0 0
        %5806 = vmatprep.subr.bf16.mxu0 0
        %5807 = vmatpush1.bf16.msra.mxu0 0
        %5808 = vmatprep.subr.bf16.mxu0 0
        %5809 = vmatpush1.bf16.msra.mxu0 0
        %5810 = vmatprep.mubr.bf16.mxu0 0
        %5811 = vmatmul.mubr.bf16.gmra.mrb[0].mxu0 %v5069
        %v5812 = vpop.f32.mrb[0].mxu0
        %v5813 = vadd.f32 %v5772, %v5812
        %v5814 = vpop.f32.mrb[0].mxu0
        %v5815 = vadd.f32 %v5774, %v5814
        %v5816 = vpop.f32.mrb[0].mxu0
        %v5817 = vpop.f32.mrb[0].mxu0
        %5818 = vdwg.mxu0
        %v5819 = vld [vmem:[#allocation4] sm:$0x66]
        %v5820 = vld [vmem:[#allocation4 + $0x8] sm:$0x6]
        %v5822 = vcombine.high %v5819, %v5819
        %v5824 = vpack.c.bf16 %v5819, %v5819
        %v5825 = vpack.c.bf16 %v5822, %v5822
        %v5826 = vpack.c.bf16 %v5820, %v5820
        %s5827 = scalar_lea.vmem %s9, 768
        %v5828 = vld [vmem:[%s5827] sm:$0xff]
        %v5829 = vld [vmem:[%s5827 + $0x8] sm:$0xff]
        %v5830 = vld [vmem:[%s5827 + $0x10] sm:$0xff]
        %v5831 = vld [vmem:[%s5827 + $0x18] sm:$0xff]
        %v5832 = vld [vmem:[%s5827 + $0x20] sm:$0xff]
        %v5833 = vld [vmem:[%s5827 + $0x28] sm:$0xff]
        %v5834 = vld [vmem:[%s5827 + $0x30] sm:$0xff]
        %v5835 = vld [vmem:[%s5827 + $0x38] sm:$0xff]
        %v5836 = vld [vmem:[%s5827 + $0x40] sm:$0xff]
        %v5837 = vld [vmem:[%s5827 + $0x48] sm:$0xff]
        %v5838 = vld [vmem:[%s5827 + $0x50] sm:$0xff]
        %v5839 = vld [vmem:[%s5827 + $0x58] sm:$0xff]
        %v5840 = vld [vmem:[%s5827 + $0x60] sm:$0xff]
        %v5841 = vld [vmem:[%s5827 + $0x68] sm:$0xff]
        %v5842 = vld [vmem:[%s5827 + $0x70] sm:$0xff]
        %v5843 = vld [vmem:[%s5827 + $0x78] sm:$0xff]
        %v5844 = vld [vmem:[%s5827 + $0x80] sm:$0xff]
        %v5845 = vld [vmem:[%s5827 + $0x88] sm:$0xff]
        %v5846 = vld [vmem:[%s5827 + $0x90] sm:$0xff]
        %v5847 = vld [vmem:[%s5827 + $0x98] sm:$0xff]
        %v5848 = vld [vmem:[%s5827 + $0xa0] sm:$0xff]
        %v5849 = vld [vmem:[%s5827 + $0xa8] sm:$0xff]
        %v5850 = vld [vmem:[%s5827 + $0xb0] sm:$0xff]
        %v5851 = vld [vmem:[%s5827 + $0xb8] sm:$0xff]
        %v5852 = vld [vmem:[%s5827 + $0xc0] sm:$0xff]
        %v5853 = vld [vmem:[%s5827 + $0xc8] sm:$0xff]
        %v5854 = vld [vmem:[%s5827 + $0xd0] sm:$0xff]
        %v5855 = vld [vmem:[%s5827 + $0xd8] sm:$0xff]
        %v5856 = vld [vmem:[%s5827 + $0xe0] sm:$0xff]
        %v5857 = vld [vmem:[%s5827 + $0xe8] sm:$0xff]
        %v5858 = vld [vmem:[%s5827 + $0xf0] sm:$0xff]
        %v5859 = vld [vmem:[%s5827 + $0xf8] sm:$0xff]
        %v5860 = vld [vmem:[%s5827 + $0x100] sm:$0xff]
        %v5861 = vld [vmem:[%s5827 + $0x108] sm:$0xff]
        %v5862 = vld [vmem:[%s5827 + $0x110] sm:$0xff]
        %v5863 = vld [vmem:[%s5827 + $0x118] sm:$0xff]
        %v5864 = vld [vmem:[%s5827 + $0x120] sm:$0xff]
        %v5865 = vld [vmem:[%s5827 + $0x128] sm:$0xff]
        %v5866 = vld [vmem:[%s5827 + $0x130] sm:$0xff]
        %v5867 = vld [vmem:[%s5827 + $0x138] sm:$0xff]
        %v5868 = vld [vmem:[%s5827 + $0x140] sm:$0xff]
        %v5869 = vld [vmem:[%s5827 + $0x148] sm:$0xff]
        %v5870 = vld [vmem:[%s5827 + $0x150] sm:$0xff]
        %v5871 = vld [vmem:[%s5827 + $0x158] sm:$0xff]
        %v5872 = vld [vmem:[%s5827 + $0x160] sm:$0xff]
        %v5873 = vld [vmem:[%s5827 + $0x168] sm:$0xff]
        %v5874 = vld [vmem:[%s5827 + $0x170] sm:$0xff]
        %v5875 = vld [vmem:[%s5827 + $0x178] sm:$0xff]
        %v5877 = vshrl.u32 %v5824, 16
        %v5879 = vshll.u32 %v5824, 16
        %v5881 = vrot.slane %v5879, 1
        %v5882 = vor.u32 %v5877, %v5881
        %v5884 = vshrl.u32 %v5825, 16
        %v5886 = vshll.u32 %v5825, 16
        %v5888 = vrot.slane %v5886, 1
        %v5889 = vor.u32 %v5884, %v5888
        %v5891 = vshrl.u32 %v5826, 16
        %v5893 = vshll.u32 %v5826, 16
        %v5895 = vrot.slane %v5893, 1
        %v5896 = vor.u32 %v5891, %v5895
        %v5948 = vunpack.c.l.b16 %v5828
        %v5949 = vunpack.c.h.b16 %v5828
        %v5950 = vunpack.c.l.b16 %v5829
        %v5951 = vunpack.c.h.b16 %v5829
        %v5952 = vunpack.c.l.b16 %v5830
        %v5953 = vunpack.c.h.b16 %v5830
        %v5954 = vunpack.c.l.b16 %v5831
        %v5955 = vunpack.c.h.b16 %v5831
        %v5956 = vunpack.c.l.b16 %v5832
        %v5957 = vunpack.c.h.b16 %v5832
        %v5958 = vunpack.c.l.b16 %v5833
        %v5959 = vunpack.c.h.b16 %v5833
        %v5960 = vunpack.c.l.b16 %v5834
        %v5961 = vunpack.c.h.b16 %v5834
        %v5962 = vunpack.c.l.b16 %v5835
        %v5963 = vunpack.c.h.b16 %v5835
        %v5964 = vunpack.c.l.b16 %v5836
        %v5965 = vunpack.c.h.b16 %v5836
        %v5966 = vunpack.c.l.b16 %v5837
        %v5967 = vunpack.c.h.b16 %v5837
        %v5968 = vunpack.c.l.b16 %v5838
        %v5969 = vunpack.c.h.b16 %v5838
        %v5970 = vunpack.c.l.b16 %v5839
        %v5971 = vunpack.c.h.b16 %v5839
        %v5972 = vunpack.c.l.b16 %v5840
        %v5973 = vunpack.c.h.b16 %v5840
        %v5974 = vunpack.c.l.b16 %v5841
        %v5975 = vunpack.c.h.b16 %v5841
        %v5976 = vunpack.c.l.b16 %v5842
        %v5977 = vunpack.c.h.b16 %v5842
        %v5978 = vunpack.c.l.b16 %v5843
        %v5979 = vunpack.c.h.b16 %v5843
        %v5980 = vunpack.c.l.b16 %v5844
        %v5981 = vunpack.c.h.b16 %v5844
        %v5982 = vunpack.c.l.b16 %v5845
        %v5983 = vunpack.c.h.b16 %v5845
        %v5984 = vunpack.c.l.b16 %v5846
        %v5985 = vunpack.c.h.b16 %v5846
        %v5986 = vunpack.c.l.b16 %v5847
        %v5987 = vunpack.c.h.b16 %v5847
        %v5988 = vunpack.c.l.b16 %v5848
        %v5989 = vunpack.c.h.b16 %v5848
        %v5990 = vunpack.c.l.b16 %v5849
        %v5991 = vunpack.c.h.b16 %v5849
        %v5992 = vunpack.c.l.b16 %v5850
        %v5993 = vunpack.c.h.b16 %v5850
        %v5994 = vunpack.c.l.b16 %v5851
        %v5995 = vunpack.c.h.b16 %v5851
        %v5996 = vunpack.c.l.b16 %v5852
        %v5997 = vunpack.c.h.b16 %v5852
        %v5998 = vunpack.c.l.b16 %v5853
        %v5999 = vunpack.c.h.b16 %v5853
        %v6000 = vunpack.c.l.b16 %v5854
        %v6001 = vunpack.c.h.b16 %v5854
        %v6002 = vunpack.c.l.b16 %v5855
        %v6003 = vunpack.c.h.b16 %v5855
        %v6004 = vunpack.c.l.b16 %v5856
        %v6005 = vunpack.c.h.b16 %v5856
        %v6006 = vunpack.c.l.b16 %v5857
        %v6007 = vunpack.c.h.b16 %v5857
        %v6008 = vunpack.c.l.b16 %v5858
        %v6009 = vunpack.c.h.b16 %v5858
        %v6010 = vunpack.c.l.b16 %v5859
        %v6011 = vunpack.c.h.b16 %v5859
        %v6012 = vunpack.c.l.b16 %v5860
        %v6013 = vunpack.c.h.b16 %v5860
        %v6014 = vunpack.c.l.b16 %v5861
        %v6015 = vunpack.c.h.b16 %v5861
        %v6016 = vunpack.c.l.b16 %v5862
        %v6017 = vunpack.c.h.b16 %v5862
        %v6018 = vunpack.c.l.b16 %v5863
        %v6019 = vunpack.c.h.b16 %v5863
        %v6020 = vunpack.c.l.b16 %v5864
        %v6021 = vunpack.c.h.b16 %v5864
        %v6022 = vunpack.c.l.b16 %v5865
        %v6023 = vunpack.c.h.b16 %v5865
        %v6024 = vunpack.c.l.b16 %v5866
        %v6025 = vunpack.c.h.b16 %v5866
        %v6026 = vunpack.c.l.b16 %v5867
        %v6027 = vunpack.c.h.b16 %v5867
        %v6028 = vunpack.c.l.b16 %v5868
        %v6029 = vunpack.c.h.b16 %v5868
        %v6030 = vunpack.c.l.b16 %v5869
        %v6031 = vunpack.c.h.b16 %v5869
        %v6032 = vunpack.c.l.b16 %v5870
        %v6033 = vunpack.c.h.b16 %v5870
        %v6034 = vunpack.c.l.b16 %v5871
        %v6035 = vunpack.c.h.b16 %v5871
        %v6036 = vunpack.c.l.b16 %v5872
        %v6037 = vunpack.c.h.b16 %v5872
        %v6038 = vunpack.c.l.b16 %v5873
        %v6039 = vunpack.c.h.b16 %v5873
        %v6040 = vunpack.c.l.b16 %v5874
        %v6041 = vunpack.c.h.b16 %v5874
        %v6042 = vunpack.c.l.b16 %v5875
        %v6043 = vunpack.c.h.b16 %v5875
        %v6044 = vpack.c.b16 %v5950, %v5948
        %v6045 = vpack.c.b16 %v5951, %v5949
        %v6046 = vpack.c.b16 %v5954, %v5952
        %v6047 = vpack.c.b16 %v5955, %v5953
        %v6048 = vpack.c.b16 %v5958, %v5956
        %v6049 = vpack.c.b16 %v5959, %v5957
        %v6050 = vpack.c.b16 %v5962, %v5960
        %v6051 = vpack.c.b16 %v5963, %v5961
        %v6052 = vpack.c.b16 %v5966, %v5964
        %v6053 = vpack.c.b16 %v5967, %v5965
        %v6054 = vpack.c.b16 %v5970, %v5968
        %v6055 = vpack.c.b16 %v5971, %v5969
        %v6056 = vpack.c.b16 %v5974, %v5972
        %v6057 = vpack.c.b16 %v5975, %v5973
        %v6058 = vpack.c.b16 %v5978, %v5976
        %v6059 = vpack.c.b16 %v5979, %v5977
        %v6060 = vpack.c.b16 %v5982, %v5980
        %v6061 = vpack.c.b16 %v5983, %v5981
        %v6062 = vpack.c.b16 %v5986, %v5984
        %v6063 = vpack.c.b16 %v5987, %v5985
        %v6064 = vpack.c.b16 %v5990, %v5988
        %v6065 = vpack.c.b16 %v5991, %v5989
        %v6066 = vpack.c.b16 %v5994, %v5992
        %v6067 = vpack.c.b16 %v5995, %v5993
        %v6068 = vpack.c.b16 %v5998, %v5996
        %v6069 = vpack.c.b16 %v5999, %v5997
        %v6070 = vpack.c.b16 %v6002, %v6000
        %v6071 = vpack.c.b16 %v6003, %v6001
        %v6072 = vpack.c.b16 %v6006, %v6004
        %v6073 = vpack.c.b16 %v6007, %v6005
        %v6074 = vpack.c.b16 %v6010, %v6008
        %v6075 = vpack.c.b16 %v6011, %v6009
        %v6076 = vpack.c.b16 %v6014, %v6012
        %v6077 = vpack.c.b16 %v6015, %v6013
        %v6078 = vpack.c.b16 %v6018, %v6016
        %v6079 = vpack.c.b16 %v6019, %v6017
        %v6080 = vpack.c.b16 %v6022, %v6020
        %v6081 = vpack.c.b16 %v6023, %v6021
        %v6082 = vpack.c.b16 %v6026, %v6024
        %v6083 = vpack.c.b16 %v6027, %v6025
        %v6084 = vpack.c.b16 %v6030, %v6028
        %v6085 = vpack.c.b16 %v6031, %v6029
        %v6086 = vpack.c.b16 %v6034, %v6032
        %v6087 = vpack.c.b16 %v6035, %v6033
        %v6088 = vpack.c.b16 %v6038, %v6036
        %v6089 = vpack.c.b16 %v6039, %v6037
        %v6090 = vpack.c.b16 %v6042, %v6040
        %v6091 = vpack.c.b16 %v6043, %v6041
        %6140 = vmatprep.subr.bf16.mxu0 %v6045
        %6141 = vmatpush1.bf16.msra.mxu0 %v6044
        %6142 = vmatprep.subr.bf16.mxu0 %v6047
        %6143 = vmatpush1.bf16.msra.mxu0 %v6046
        %6144 = vmatprep.subr.bf16.mxu0 %v6049
        %6145 = vmatpush1.bf16.msra.mxu0 %v6048
        %6146 = vmatprep.subr.bf16.mxu0 %v6051
        %6147 = vmatpush1.bf16.msra.mxu0 %v6050
        %6148 = vmatprep.subr.bf16.mxu0 %v6053
        %6149 = vmatpush1.bf16.msra.mxu0 %v6052
        %6150 = vmatprep.subr.bf16.mxu0 %v6055
        %6151 = vmatpush1.bf16.msra.mxu0 %v6054
        %6152 = vmatprep.subr.bf16.mxu0 %v6057
        %6153 = vmatpush1.bf16.msra.mxu0 %v6056
        %6154 = vmatprep.subr.bf16.mxu0 %v6059
        %6155 = vmatpush1.bf16.msra.mxu0 %v6058
        %6156 = vmatprep.subr.bf16.mxu0 %v6061
        %6157 = vmatpush1.bf16.msra.mxu0 %v6060
        %6158 = vmatprep.subr.bf16.mxu0 %v6063
        %6159 = vmatpush1.bf16.msra.mxu0 %v6062
        %6160 = vmatprep.subr.bf16.mxu0 %v6065
        %6161 = vmatpush1.bf16.msra.mxu0 %v6064
        %6162 = vmatprep.subr.bf16.mxu0 %v6067
        %6163 = vmatpush1.bf16.msra.mxu0 %v6066
        %6164 = vmatprep.subr.bf16.mxu0 %v6069
        %6165 = vmatpush1.bf16.msra.mxu0 %v6068
        %6166 = vmatprep.subr.bf16.mxu0 %v6071
        %6167 = vmatpush1.bf16.msra.mxu0 %v6070
        %6168 = vmatprep.subr.bf16.mxu0 %v6073
        %6169 = vmatpush1.bf16.msra.mxu0 %v6072
        %6170 = vmatprep.subr.bf16.mxu0 %v6075
        %6171 = vmatpush1.bf16.msra.mxu0 %v6074
        %6172 = vmatprep.mubr.bf16.mxu0 %v5889
        %6173 = vmatmul.mubr.bf16.gmra.mrb[0].mxu0 %v5882
        %v6174 = vpop.f32.mrb[0].mxu0
        %v6175 = vadd.f32 0.0, %v6174
        %v6176 = vpop.f32.mrb[0].mxu0
        %v6177 = vadd.f32 0.0, %v6176
        %v6178 = vpop.f32.mrb[0].mxu0
        %v6179 = vpop.f32.mrb[0].mxu0
        %6180 = vdwg.mxu0
        %6181 = vmatprep.subr.bf16.mxu0 %v6077
        %6182 = vmatpush1.bf16.msra.mxu0 %v6076
        %6183 = vmatprep.subr.bf16.mxu0 %v6079
        %6184 = vmatpush1.bf16.msra.mxu0 %v6078
        %6185 = vmatprep.subr.bf16.mxu0 %v6081
        %6186 = vmatpush1.bf16.msra.mxu0 %v6080
        %6187 = vmatprep.subr.bf16.mxu0 %v6083
        %6188 = vmatpush1.bf16.msra.mxu0 %v6082
        %6189 = vmatprep.subr.bf16.mxu0 %v6085
        %6190 = vmatpush1.bf16.msra.mxu0 %v6084
        %6191 = vmatprep.subr.bf16.mxu0 %v6087
        %6192 = vmatpush1.bf16.msra.mxu0 %v6086
        %6193 = vmatprep.subr.bf16.mxu0 %v6089
        %6194 = vmatpush1.bf16.msra.mxu0 %v6088
        %6195 = vmatprep.subr.bf16.mxu0 %v6091
        %6196 = vmatpush1.bf16.msra.mxu0 %v6090
        %6197 = vmatprep.subr.bf16.mxu0 0
        %6198 = vmatpush1.bf16.msra.mxu0 0
        %6199 = vmatprep.subr.bf16.mxu0 0
        %6200 = vmatpush1.bf16.msra.mxu0 0
        %6201 = vmatprep.subr.bf16.mxu0 0
        %6202 = vmatpush1.bf16.msra.mxu0 0
        %6203 = vmatprep.subr.bf16.mxu0 0
        %6204 = vmatpush1.bf16.msra.mxu0 0
        %6205 = vmatprep.subr.bf16.mxu0 0
        %6206 = vmatpush1.bf16.msra.mxu0 0
        %6207 = vmatprep.subr.bf16.mxu0 0
        %6208 = vmatpush1.bf16.msra.mxu0 0
        %6209 = vmatprep.subr.bf16.mxu0 0
        %6210 = vmatpush1.bf16.msra.mxu0 0
        %6211 = vmatprep.subr.bf16.mxu0 0
        %6212 = vmatpush1.bf16.msra.mxu0 0
        %6213 = vmatprep.mubr.bf16.mxu0 0
        %6214 = vmatmul.mubr.bf16.gmra.mrb[0].mxu0 %v5896
        %v6215 = vpop.f32.mrb[0].mxu0
        %v6216 = vadd.f32 %v6175, %v6215
        %v6217 = vpop.f32.mrb[0].mxu0
        %v6218 = vadd.f32 %v6177, %v6217
        %v6219 = vpop.f32.mrb[0].mxu0
        %v6220 = vpop.f32.mrb[0].mxu0
        %6221 = vdwg.mxu0
        %v6222 = vadd.f32 %v5813, %v6216
        %v6223 = vadd.f32 %v5815, %v6218
        %v6224 = vld [vmem:[%s5026] sm:$0x66]
        %v6225 = vld [vmem:[%s5026 + $0x8] sm:$0x6]
        %v6227 = vcombine.high %v6224, %v6224
        %v6229 = vpack.c.bf16 %v6224, %v6224
        %v6230 = vpack.c.bf16 %v6227, %v6227
        %v6231 = vpack.c.bf16 %v6225, %v6225
        %s6232 = scalar_lea.vmem %s9, 1152
        %v6233 = vld [vmem:[%s6232] sm:$0xff]
        %v6234 = vld [vmem:[%s6232 + $0x8] sm:$0xff]
        %v6235 = vld [vmem:[%s6232 + $0x10] sm:$0xff]
        %v6236 = vld [vmem:[%s6232 + $0x18] sm:$0xff]
        %v6237 = vld [vmem:[%s6232 + $0x20] sm:$0xff]
        %v6238 = vld [vmem:[%s6232 + $0x28] sm:$0xff]
        %v6239 = vld [vmem:[%s6232 + $0x30] sm:$0xff]
        %v6240 = vld [vmem:[%s6232 + $0x38] sm:$0xff]
        %v6241 = vld [vmem:[%s6232 + $0x40] sm:$0xff]
        %v6242 = vld [vmem:[%s6232 + $0x48] sm:$0xff]
        %v6243 = vld [vmem:[%s6232 + $0x50] sm:$0xff]
        %v6244 = vld [vmem:[%s6232 + $0x58] sm:$0xff]
        %v6245 = vld [vmem:[%s6232 + $0x60] sm:$0xff]
        %v6246 = vld [vmem:[%s6232 + $0x68] sm:$0xff]
        %v6247 = vld [vmem:[%s6232 + $0x70] sm:$0xff]
        %v6248 = vld [vmem:[%s6232 + $0x78] sm:$0xff]
        %v6249 = vld [vmem:[%s6232 + $0x80] sm:$0xff]
        %v6250 = vld [vmem:[%s6232 + $0x88] sm:$0xff]
        %v6251 = vld [vmem:[%s6232 + $0x90] sm:$0xff]
        %v6252 = vld [vmem:[%s6232 + $0x98] sm:$0xff]
        %v6253 = vld [vmem:[%s6232 + $0xa0] sm:$0xff]
        %v6254 = vld [vmem:[%s6232 + $0xa8] sm:$0xff]
        %v6255 = vld [vmem:[%s6232 + $0xb0] sm:$0xff]
        %v6256 = vld [vmem:[%s6232 + $0xb8] sm:$0xff]
        %v6257 = vld [vmem:[%s6232 + $0xc0] sm:$0xff]
        %v6258 = vld [vmem:[%s6232 + $0xc8] sm:$0xff]
        %v6259 = vld [vmem:[%s6232 + $0xd0] sm:$0xff]
        %v6260 = vld [vmem:[%s6232 + $0xd8] sm:$0xff]
        %v6261 = vld [vmem:[%s6232 + $0xe0] sm:$0xff]
        %v6262 = vld [vmem:[%s6232 + $0xe8] sm:$0xff]
        %v6263 = vld [vmem:[%s6232 + $0xf0] sm:$0xff]
        %v6264 = vld [vmem:[%s6232 + $0xf8] sm:$0xff]
        %v6265 = vld [vmem:[%s6232 + $0x100] sm:$0xff]
        %v6266 = vld [vmem:[%s6232 + $0x108] sm:$0xff]
        %v6267 = vld [vmem:[%s6232 + $0x110] sm:$0xff]
        %v6268 = vld [vmem:[%s6232 + $0x118] sm:$0xff]
        %v6269 = vld [vmem:[%s6232 + $0x120] sm:$0xff]
        %v6270 = vld [vmem:[%s6232 + $0x128] sm:$0xff]
        %v6271 = vld [vmem:[%s6232 + $0x130] sm:$0xff]
        %v6272 = vld [vmem:[%s6232 + $0x138] sm:$0xff]
        %v6273 = vld [vmem:[%s6232 + $0x140] sm:$0xff]
        %v6274 = vld [vmem:[%s6232 + $0x148] sm:$0xff]
        %v6275 = vld [vmem:[%s6232 + $0x150] sm:$0xff]
        %v6276 = vld [vmem:[%s6232 + $0x158] sm:$0xff]
        %v6277 = vld [vmem:[%s6232 + $0x160] sm:$0xff]
        %v6278 = vld [vmem:[%s6232 + $0x168] sm:$0xff]
        %v6279 = vld [vmem:[%s6232 + $0x170] sm:$0xff]
        %v6280 = vld [vmem:[%s6232 + $0x178] sm:$0xff]
        %v6282 = vshrl.u32 %v6229, 16
        %v6284 = vshll.u32 %v6229, 16
        %v6286 = vrot.slane %v6284, 1
        %v6287 = vor.u32 %v6282, %v6286
        %v6289 = vshrl.u32 %v6230, 16
        %v6291 = vshll.u32 %v6230, 16
        %v6293 = vrot.slane %v6291, 1
        %v6294 = vor.u32 %v6289, %v6293
        %v6296 = vshrl.u32 %v6231, 16
        %v6298 = vshll.u32 %v6231, 16
        %v6300 = vrot.slane %v6298, 1
        %v6301 = vor.u32 %v6296, %v6300
        %v6353 = vunpack.c.l.b16 %v6233
        %v6354 = vunpack.c.h.b16 %v6233
        %v6355 = vunpack.c.l.b16 %v6234
        %v6356 = vunpack.c.h.b16 %v6234
        %v6357 = vunpack.c.l.b16 %v6235
        %v6358 = vunpack.c.h.b16 %v6235
        %v6359 = vunpack.c.l.b16 %v6236
        %v6360 = vunpack.c.h.b16 %v6236
        %v6361 = vunpack.c.l.b16 %v6237
        %v6362 = vunpack.c.h.b16 %v6237
        %v6363 = vunpack.c.l.b16 %v6238
        %v6364 = vunpack.c.h.b16 %v6238
        %v6365 = vunpack.c.l.b16 %v6239
        %v6366 = vunpack.c.h.b16 %v6239
        %v6367 = vunpack.c.l.b16 %v6240
        %v6368 = vunpack.c.h.b16 %v6240
        %v6369 = vunpack.c.l.b16 %v6241
        %v6370 = vunpack.c.h.b16 %v6241
        %v6371 = vunpack.c.l.b16 %v6242
        %v6372 = vunpack.c.h.b16 %v6242
        %v6373 = vunpack.c.l.b16 %v6243
        %v6374 = vunpack.c.h.b16 %v6243
        %v6375 = vunpack.c.l.b16 %v6244
        %v6376 = vunpack.c.h.b16 %v6244
        %v6377 = vunpack.c.l.b16 %v6245
        %v6378 = vunpack.c.h.b16 %v6245
        %v6379 = vunpack.c.l.b16 %v6246
        %v6380 = vunpack.c.h.b16 %v6246
        %v6381 = vunpack.c.l.b16 %v6247
        %v6382 = vunpack.c.h.b16 %v6247
        %v6383 = vunpack.c.l.b16 %v6248
        %v6384 = vunpack.c.h.b16 %v6248
        %v6385 = vunpack.c.l.b16 %v6249
        %v6386 = vunpack.c.h.b16 %v6249
        %v6387 = vunpack.c.l.b16 %v6250
        %v6388 = vunpack.c.h.b16 %v6250
        %v6389 = vunpack.c.l.b16 %v6251
        %v6390 = vunpack.c.h.b16 %v6251
        %v6391 = vunpack.c.l.b16 %v6252
        %v6392 = vunpack.c.h.b16 %v6252
        %v6393 = vunpack.c.l.b16 %v6253
        %v6394 = vunpack.c.h.b16 %v6253
        %v6395 = vunpack.c.l.b16 %v6254
        %v6396 = vunpack.c.h.b16 %v6254
        %v6397 = vunpack.c.l.b16 %v6255
        %v6398 = vunpack.c.h.b16 %v6255
        %v6399 = vunpack.c.l.b16 %v6256
        %v6400 = vunpack.c.h.b16 %v6256
        %v6401 = vunpack.c.l.b16 %v6257
        %v6402 = vunpack.c.h.b16 %v6257
        %v6403 = vunpack.c.l.b16 %v6258
        %v6404 = vunpack.c.h.b16 %v6258
        %v6405 = vunpack.c.l.b16 %v6259
        %v6406 = vunpack.c.h.b16 %v6259
        %v6407 = vunpack.c.l.b16 %v6260
        %v6408 = vunpack.c.h.b16 %v6260
        %v6409 = vunpack.c.l.b16 %v6261
        %v6410 = vunpack.c.h.b16 %v6261
        %v6411 = vunpack.c.l.b16 %v6262
        %v6412 = vunpack.c.h.b16 %v6262
        %v6413 = vunpack.c.l.b16 %v6263
        %v6414 = vunpack.c.h.b16 %v6263
        %v6415 = vunpack.c.l.b16 %v6264
        %v6416 = vunpack.c.h.b16 %v6264
        %v6417 = vunpack.c.l.b16 %v6265
        %v6418 = vunpack.c.h.b16 %v6265
        %v6419 = vunpack.c.l.b16 %v6266
        %v6420 = vunpack.c.h.b16 %v6266
        %v6421 = vunpack.c.l.b16 %v6267
        %v6422 = vunpack.c.h.b16 %v6267
        %v6423 = vunpack.c.l.b16 %v6268
        %v6424 = vunpack.c.h.b16 %v6268
        %v6425 = vunpack.c.l.b16 %v6269
        %v6426 = vunpack.c.h.b16 %v6269
        %v6427 = vunpack.c.l.b16 %v6270
        %v6428 = vunpack.c.h.b16 %v6270
        %v6429 = vunpack.c.l.b16 %v6271
        %v6430 = vunpack.c.h.b16 %v6271
        %v6431 = vunpack.c.l.b16 %v6272
        %v6432 = vunpack.c.h.b16 %v6272
        %v6433 = vunpack.c.l.b16 %v6273
        %v6434 = vunpack.c.h.b16 %v6273
        %v6435 = vunpack.c.l.b16 %v6274
        %v6436 = vunpack.c.h.b16 %v6274
        %v6437 = vunpack.c.l.b16 %v6275
        %v6438 = vunpack.c.h.b16 %v6275
        %v6439 = vunpack.c.l.b16 %v6276
        %v6440 = vunpack.c.h.b16 %v6276
        %v6441 = vunpack.c.l.b16 %v6277
        %v6442 = vunpack.c.h.b16 %v6277
        %v6443 = vunpack.c.l.b16 %v6278
        %v6444 = vunpack.c.h.b16 %v6278
        %v6445 = vunpack.c.l.b16 %v6279
        %v6446 = vunpack.c.h.b16 %v6279
        %v6447 = vunpack.c.l.b16 %v6280
        %v6448 = vunpack.c.h.b16 %v6280
        %v6449 = vpack.c.b16 %v6355, %v6353
        %v6450 = vpack.c.b16 %v6356, %v6354
        %v6451 = vpack.c.b16 %v6359, %v6357
        %v6452 = vpack.c.b16 %v6360, %v6358
        %v6453 = vpack.c.b16 %v6363, %v6361
        %v6454 = vpack.c.b16 %v6364, %v6362
        %v6455 = vpack.c.b16 %v6367, %v6365
        %v6456 = vpack.c.b16 %v6368, %v6366
        %v6457 = vpack.c.b16 %v6371, %v6369
        %v6458 = vpack.c.b16 %v6372, %v6370
        %v6459 = vpack.c.b16 %v6375, %v6373
        %v6460 = vpack.c.b16 %v6376, %v6374
        %v6461 = vpack.c.b16 %v6379, %v6377
        %v6462 = vpack.c.b16 %v6380, %v6378
        %v6463 = vpack.c.b16 %v6383, %v6381
        %v6464 = vpack.c.b16 %v6384, %v6382
        %v6465 = vpack.c.b16 %v6387, %v6385
        %v6466 = vpack.c.b16 %v6388, %v6386
        %v6467 = vpack.c.b16 %v6391, %v6389
        %v6468 = vpack.c.b16 %v6392, %v6390
        %v6469 = vpack.c.b16 %v6395, %v6393
        %v6470 = vpack.c.b16 %v6396, %v6394
        %v6471 = vpack.c.b16 %v6399, %v6397
        %v6472 = vpack.c.b16 %v6400, %v6398
        %v6473 = vpack.c.b16 %v6403, %v6401
        %v6474 = vpack.c.b16 %v6404, %v6402
        %v6475 = vpack.c.b16 %v6407, %v6405
        %v6476 = vpack.c.b16 %v6408, %v6406
        %v6477 = vpack.c.b16 %v6411, %v6409
        %v6478 = vpack.c.b16 %v6412, %v6410
        %v6479 = vpack.c.b16 %v6415, %v6413
        %v6480 = vpack.c.b16 %v6416, %v6414
        %v6481 = vpack.c.b16 %v6419, %v6417
        %v6482 = vpack.c.b16 %v6420, %v6418
        %v6483 = vpack.c.b16 %v6423, %v6421
        %v6484 = vpack.c.b16 %v6424, %v6422
        %v6485 = vpack.c.b16 %v6427, %v6425
        %v6486 = vpack.c.b16 %v6428, %v6426
        %v6487 = vpack.c.b16 %v6431, %v6429
        %v6488 = vpack.c.b16 %v6432, %v6430
        %v6489 = vpack.c.b16 %v6435, %v6433
        %v6490 = vpack.c.b16 %v6436, %v6434
        %v6491 = vpack.c.b16 %v6439, %v6437
        %v6492 = vpack.c.b16 %v6440, %v6438
        %v6493 = vpack.c.b16 %v6443, %v6441
        %v6494 = vpack.c.b16 %v6444, %v6442
        %v6495 = vpack.c.b16 %v6447, %v6445
        %v6496 = vpack.c.b16 %v6448, %v6446
        %6545 = vmatprep.subr.bf16.mxu0 %v6450
        %6546 = vmatpush1.bf16.msra.mxu0 %v6449
        %6547 = vmatprep.subr.bf16.mxu0 %v6452
        %6548 = vmatpush1.bf16.msra.mxu0 %v6451
        %6549 = vmatprep.subr.bf16.mxu0 %v6454
        %6550 = vmatpush1.bf16.msra.mxu0 %v6453
        %6551 = vmatprep.subr.bf16.mxu0 %v6456
        %6552 = vmatpush1.bf16.msra.mxu0 %v6455
        %6553 = vmatprep.subr.bf16.mxu0 %v6458
        %6554 = vmatpush1.bf16.msra.mxu0 %v6457
        %6555 = vmatprep.subr.bf16.mxu0 %v6460
        %6556 = vmatpush1.bf16.msra.mxu0 %v6459
        %6557 = vmatprep.subr.bf16.mxu0 %v6462
        %6558 = vmatpush1.bf16.msra.mxu0 %v6461
        %6559 = vmatprep.subr.bf16.mxu0 %v6464
        %6560 = vmatpush1.bf16.msra.mxu0 %v6463
        %6561 = vmatprep.subr.bf16.mxu0 %v6466
        %6562 = vmatpush1.bf16.msra.mxu0 %v6465
        %6563 = vmatprep.subr.bf16.mxu0 %v6468
        %6564 = vmatpush1.bf16.msra.mxu0 %v6467
        %6565 = vmatprep.subr.bf16.mxu0 %v6470
        %6566 = vmatpush1.bf16.msra.mxu0 %v6469
        %6567 = vmatprep.subr.bf16.mxu0 %v6472
        %6568 = vmatpush1.bf16.msra.mxu0 %v6471
        %6569 = vmatprep.subr.bf16.mxu0 %v6474
        %6570 = vmatpush1.bf16.msra.mxu0 %v6473
        %6571 = vmatprep.subr.bf16.mxu0 %v6476
        %6572 = vmatpush1.bf16.msra.mxu0 %v6475
        %6573 = vmatprep.subr.bf16.mxu0 %v6478
        %6574 = vmatpush1.bf16.msra.mxu0 %v6477
        %6575 = vmatprep.subr.bf16.mxu0 %v6480
        %6576 = vmatpush1.bf16.msra.mxu0 %v6479
        %6577 = vmatprep.mubr.bf16.mxu0 %v6294
        %6578 = vmatmul.mubr.bf16.gmra.mrb[0].mxu0 %v6287
        %v6579 = vpop.f32.mrb[0].mxu0
        %v6580 = vadd.f32 0.0, %v6579
        %v6581 = vpop.f32.mrb[0].mxu0
        %v6582 = vadd.f32 0.0, %v6581
        %v6583 = vpop.f32.mrb[0].mxu0
        %v6584 = vpop.f32.mrb[0].mxu0
        %6585 = vdwg.mxu0
        %6586 = vmatprep.subr.bf16.mxu0 %v6482
        %6587 = vmatpush1.bf16.msra.mxu0 %v6481
        %6588 = vmatprep.subr.bf16.mxu0 %v6484
        %6589 = vmatpush1.bf16.msra.mxu0 %v6483
        %6590 = vmatprep.subr.bf16.mxu0 %v6486
        %6591 = vmatpush1.bf16.msra.mxu0 %v6485
        %6592 = vmatprep.subr.bf16.mxu0 %v6488
        %6593 = vmatpush1.bf16.msra.mxu0 %v6487
        %6594 = vmatprep.subr.bf16.mxu0 %v6490
        %6595 = vmatpush1.bf16.msra.mxu0 %v6489
        %6596 = vmatprep.subr.bf16.mxu0 %v6492
        %6597 = vmatpush1.bf16.msra.mxu0 %v6491
        %6598 = vmatprep.subr.bf16.mxu0 %v6494
        %6599 = vmatpush1.bf16.msra.mxu0 %v6493
        %6600 = vmatprep.subr.bf16.mxu0 %v6496
        %6601 = vmatpush1.bf16.msra.mxu0 %v6495
        %6602 = vmatprep.subr.bf16.mxu0 0
        %6603 = vmatpush1.bf16.msra.mxu0 0
        %6604 = vmatprep.subr.bf16.mxu0 0
        %6605 = vmatpush1.bf16.msra.mxu0 0
        %6606 = vmatprep.subr.bf16.mxu0 0
        %6607 = vmatpush1.bf16.msra.mxu0 0
        %6608 = vmatprep.subr.bf16.mxu0 0
        %6609 = vmatpush1.bf16.msra.mxu0 0
        %6610 = vmatprep.subr.bf16.mxu0 0
        %6611 = vmatpush1.bf16.msra.mxu0 0
        %6612 = vmatprep.subr.bf16.mxu0 0
        %6613 = vmatpush1.bf16.msra.mxu0 0
        %6614 = vmatprep.subr.bf16.mxu0 0
        %6615 = vmatpush1.bf16.msra.mxu0 0
        %6616 = vmatprep.subr.bf16.mxu0 0
        %6617 = vmatpush1.bf16.msra.mxu0 0
        %6618 = vmatprep.mubr.bf16.mxu0 0
        %6619 = vmatmul.mubr.bf16.gmra.mrb[0].mxu0 %v6301
        %v6620 = vpop.f32.mrb[0].mxu0
        %v6621 = vadd.f32 %v6580, %v6620
        %v6622 = vpop.f32.mrb[0].mxu0
        %v6623 = vadd.f32 %v6582, %v6622
        %v6624 = vpop.f32.mrb[0].mxu0
        %v6625 = vpop.f32.mrb[0].mxu0
        %6626 = vdwg.mxu0
        %v6627 = vadd.f32 %v6222, %v6621
        %v6628 = vadd.f32 %v6223, %v6623
        %v6629 = vld [vmem:[%s10] sm:$0x3]
        %v6631 = vlaneseq
        %v6632 = vshrl.u32 %v6631, 7
        %v6633 = vsub.s32 0, %v6632
        %v6634 = vrot.slane %v6629, %v6633
        %v6635 = vlaneseq
        %v6636 = vshrl.u32 %v6635, 7
        %v6637 = vsub.s32 1, %v6636
        %v6638 = vrot.slane %v6629, %v6637
        %v6641 = vadd.f32 %v6627, %v6634
        %v6642 = vadd.f32 %v6628, %v6638
        %vm6643 = vcmask 1041408
        %v6644 = vsel %vm6643, %v6641, 0.0
        %v6645 = vrot.slane %v6644, 4
        %v6646 = vadd.f32 %v6644, %v6645
        %v6647 = vrot.slane %v6646, 2
        %v6648 = vadd.f32 %v6646, %v6647
        %v6649 = vrot.slane %v6648, 1
        %v6650 = vadd.f32 %v6648, %v6649
        %v6651 = vsel %vm6643, %v6642, 0.0
        %v6652 = vrot.slane %v6651, 4
        %v6653 = vadd.f32 %v6651, %v6652
        %v6654 = vrot.slane %v6653, 2
        %v6655 = vadd.f32 %v6653, %v6654
        %v6656 = vrot.slane %v6655, 1
        %v6657 = vadd.f32 %v6655, %v6656
        %v6658 = vmul.f32 %v6641, %v6641
        %v6659 = vmul.f32 %v6642, %v6642
        %v6660 = vsel %vm6643, %v6658, 0.0
        %v6661 = vrot.slane %v6660, 4
        %v6662 = vadd.f32 %v6660, %v6661
        %v6663 = vrot.slane %v6662, 2
        %v6664 = vadd.f32 %v6662, %v6663
        %v6665 = vrot.slane %v6664, 1
        %v6666 = vadd.f32 %v6664, %v6665
        %v6667 = vsel %vm6643, %v6659, 0.0
        %v6668 = vrot.slane %v6667, 4
        %v6669 = vadd.f32 %v6667, %v6668
        %v6670 = vrot.slane %v6669, 2
        %v6671 = vadd.f32 %v6669, %v6670
        %v6672 = vrot.slane %v6671, 1
        %v6673 = vadd.f32 %v6671, %v6672
        %v6674 = vld [vmem:[#allocation13] sm:$0xff]
        %v6675 = vld [vmem:[#allocation13 + $0x8] sm:$0xff]
        %v6676 = vld [vmem:[#allocation13 + $0x10] sm:$0xff]
        %v6677 = vld [vmem:[#allocation13 + $0x18] sm:$0xff]
        %v6678 = vld [vmem:[#allocation13 + $0x20] sm:$0xff]
        %v6679 = vld [vmem:[#allocation13 + $0x28] sm:$0xff]
        %v6680 = vld [vmem:[#allocation13 + $0x30] sm:$0xff]
        %v6681 = vld [vmem:[#allocation13 + $0x38] sm:$0xff]
        %v6682 = vld [vmem:[#allocation13 + $0x40] sm:$0xff]
        %v6683 = vld [vmem:[#allocation13 + $0x48] sm:$0xff]
        %v6684 = vld [vmem:[#allocation13 + $0x50] sm:$0xff]
        %v6685 = vld [vmem:[#allocation13 + $0x58] sm:$0xff]
        %v6686 = vld [vmem:[#allocation13 + $0x60] sm:$0xff]
        %v6687 = vld [vmem:[#allocation13 + $0x68] sm:$0xff]
        %v6688 = vld [vmem:[#allocation13 + $0x70] sm:$0xff]
        %v6689 = vld [vmem:[#allocation13 + $0x78] sm:$0xff]
        %v6690 = vld [vmem:[#allocation13 + $0x80] sm:$0xff]
        %v6691 = vld [vmem:[#allocation13 + $0x88] sm:$0xff]
        %v6692 = vld [vmem:[#allocation13 + $0x90] sm:$0xff]
        %v6693 = vld [vmem:[#allocation13 + $0x98] sm:$0xff]
        %v6694 = vld [vmem:[#allocation13 + $0xa0] sm:$0xff]
        %v6695 = vld [vmem:[#allocation13 + $0xa8] sm:$0xff]
        %v6696 = vld [vmem:[#allocation13 + $0xb0] sm:$0xff]
        %v6697 = vld [vmem:[#allocation13 + $0xb8] sm:$0xff]
        %v6698 = vld [vmem:[#allocation13 + $0xc0] sm:$0xff]
        %v6699 = vld [vmem:[#allocation13 + $0xc8] sm:$0xff]
        %v6700 = vld [vmem:[#allocation13 + $0xd0] sm:$0xff]
        %v6701 = vld [vmem:[#allocation13 + $0xd8] sm:$0xff]
        %v6702 = vld [vmem:[#allocation13 + $0xe0] sm:$0xff]
        %v6703 = vld [vmem:[#allocation13 + $0xe8] sm:$0xff]
        %v6704 = vld [vmem:[#allocation13 + $0xf0] sm:$0xff]
        %v6705 = vld [vmem:[#allocation13 + $0xf8] sm:$0xff]
        %v6706 = vld [vmem:[#allocation13 + $0x100] sm:$0xff]
        %v6707 = vld [vmem:[#allocation13 + $0x108] sm:$0xff]
        %v6708 = vld [vmem:[#allocation13 + $0x110] sm:$0xff]
        %v6709 = vld [vmem:[#allocation13 + $0x118] sm:$0xff]
        %v6710 = vld [vmem:[#allocation13 + $0x120] sm:$0xff]
        %v6711 = vld [vmem:[#allocation13 + $0x128] sm:$0xff]
        %v6712 = vld [vmem:[#allocation13 + $0x130] sm:$0xff]
        %v6713 = vld [vmem:[#allocation13 + $0x138] sm:$0xff]
        %v6714 = vld [vmem:[#allocation13 + $0x140] sm:$0xff]
        %v6715 = vld [vmem:[#allocation13 + $0x148] sm:$0xff]
        %v6716 = vld [vmem:[#allocation13 + $0x150] sm:$0xff]
        %v6717 = vld [vmem:[#allocation13 + $0x158] sm:$0xff]
        %v6718 = vld [vmem:[#allocation13 + $0x160] sm:$0xff]
        %v6719 = vld [vmem:[#allocation13 + $0x168] sm:$0xff]
        %v6720 = vld [vmem:[#allocation13 + $0x170] sm:$0xff]
        %v6721 = vld [vmem:[#allocation13 + $0x178] sm:$0xff]
        %v6722 = vld [vmem:[#allocation13 + $0x180] sm:$0xff]
        %v6723 = vld [vmem:[#allocation13 + $0x188] sm:$0xff]
        %v6724 = vld [vmem:[#allocation13 + $0x190] sm:$0xff]
        %v6725 = vld [vmem:[#allocation13 + $0x198] sm:$0xff]
        %v6726 = vld [vmem:[#allocation13 + $0x1a0] sm:$0xff]
        %v6727 = vld [vmem:[#allocation13 + $0x1a8] sm:$0xff]
        %v6728 = vld [vmem:[#allocation13 + $0x1b0] sm:$0xff]
        %v6729 = vld [vmem:[#allocation13 + $0x1b8] sm:$0xff]
        %v6730 = vld [vmem:[#allocation13 + $0x1c0] sm:$0xff]
        %v6731 = vld [vmem:[#allocation13 + $0x1c8] sm:$0xff]
        %v6732 = vld [vmem:[#allocation13 + $0x1d0] sm:$0xff]
        %v6733 = vld [vmem:[#allocation13 + $0x1d8] sm:$0xff]
        %v6734 = vld [vmem:[#allocation13 + $0x1e0] sm:$0xff]
        %v6735 = vld [vmem:[#allocation13 + $0x1e8] sm:$0xff]
        %v6736 = vld [vmem:[#allocation13 + $0x1f0] sm:$0xff]
        %v6737 = vld [vmem:[#allocation13 + $0x1f8] sm:$0xff]
        %6738 = vmatprep.subr.mxu0 %v6675
        %6739 = vmatpush1.msra.mxu0 %v6674
        %6740 = vmatprep.subr.mxu0 %v6677
        %6741 = vmatpush1.msra.mxu0 %v6676
        %6742 = vmatprep.subr.mxu0 %v6679
        %6743 = vmatpush1.msra.mxu0 %v6678
        %6744 = vmatprep.subr.mxu0 %v6681
        %6745 = vmatpush1.msra.mxu0 %v6680
        %6746 = vmatprep.subr.mxu0 %v6683
        %6747 = vmatpush1.msra.mxu0 %v6682
        %6748 = vmatprep.subr.mxu0 %v6685
        %6749 = vmatpush1.msra.mxu0 %v6684
        %6750 = vmatprep.subr.mxu0 %v6687
        %6751 = vmatpush1.msra.mxu0 %v6686
        %6752 = vmatprep.subr.mxu0 %v6689
        %6753 = vmatpush1.msra.mxu0 %v6688
        %6754 = vmatprep.subr.mxu0 %v6691
        %6755 = vmatpush1.msra.mxu0 %v6690
        %6756 = vmatprep.subr.mxu0 %v6693
        %6757 = vmatpush1.msra.mxu0 %v6692
        %6758 = vmatprep.subr.mxu0 %v6695
        %6759 = vmatpush1.msra.mxu0 %v6694
        %6760 = vmatprep.subr.mxu0 %v6697
        %6761 = vmatpush1.msra.mxu0 %v6696
        %6762 = vmatprep.subr.mxu0 %v6699
        %6763 = vmatpush1.msra.mxu0 %v6698
        %6764 = vmatprep.subr.mxu0 %v6701
        %6765 = vmatpush1.msra.mxu0 %v6700
        %6766 = vmatprep.subr.mxu0 %v6703
        %6767 = vmatpush1.msra.mxu0 %v6702
        %6768 = vmatprep.subr.mxu0 %v6705
        %6769 = vmatpush1.msra.mxu0 %v6704
        %6770 = vmatprep.subr.mxu0 %v6707
        %6771 = vmatpush1.msra.mxu0 %v6706
        %6772 = vmatprep.subr.mxu0 %v6709
        %6773 = vmatpush1.msra.mxu0 %v6708
        %6774 = vmatprep.subr.mxu0 %v6711
        %6775 = vmatpush1.msra.mxu0 %v6710
        %6776 = vmatprep.subr.mxu0 %v6713
        %6777 = vmatpush1.msra.mxu0 %v6712
        %6778 = vmatprep.subr.mxu0 %v6715
        %6779 = vmatpush1.msra.mxu0 %v6714
        %6780 = vmatprep.subr.mxu0 %v6717
        %6781 = vmatpush1.msra.mxu0 %v6716
        %6782 = vmatprep.subr.mxu0 %v6719
        %6783 = vmatpush1.msra.mxu0 %v6718
        %6784 = vmatprep.subr.mxu0 %v6721
        %6785 = vmatpush1.msra.mxu0 %v6720
        %6786 = vmatprep.subr.mxu0 %v6723
        %6787 = vmatpush1.msra.mxu0 %v6722
        %6788 = vmatprep.subr.mxu0 %v6725
        %6789 = vmatpush1.msra.mxu0 %v6724
        %6790 = vmatprep.subr.mxu0 %v6727
        %6791 = vmatpush1.msra.mxu0 %v6726
        %6792 = vmatprep.subr.mxu0 %v6729
        %6793 = vmatpush1.msra.mxu0 %v6728
        %6794 = vmatprep.subr.mxu0 %v6731
        %6795 = vmatpush1.msra.mxu0 %v6730
        %6796 = vmatprep.subr.mxu0 %v6733
        %6797 = vmatpush1.msra.mxu0 %v6732
        %6798 = vmatprep.subr.mxu0 %v6735
        %6799 = vmatpush1.msra.mxu0 %v6734
        %6800 = vmatprep.subr.mxu0 %v6737
        %6801 = vmatpush1.msra.mxu0 %v6736
        %6802 = vmatprep.mubr.f32.mxu0 %v6657
        %6803 = vmatmul.mubr.f32.gmra.mrb[0].mxu0 %v6650
        %v6804 = vpop.f32.mrb[0].mxu0
        %v6805 = vadd.f32 0.0, %v6804
        %v6806 = vpop.f32.mrb[0].mxu0
        %v6807 = vadd.f32 0.0, %v6806
        %6808 = vdwg.mxu0
        %6809 = vmatprep.subr.mxu0 %v6675
        %6810 = vmatpush1.msra.mxu0 %v6674
        %6811 = vmatprep.subr.mxu0 %v6677
        %6812 = vmatpush1.msra.mxu0 %v6676
        %6813 = vmatprep.subr.mxu0 %v6679
        %6814 = vmatpush1.msra.mxu0 %v6678
        %6815 = vmatprep.subr.mxu0 %v6681
        %6816 = vmatpush1.msra.mxu0 %v6680
        %6817 = vmatprep.subr.mxu0 %v6683
        %6818 = vmatpush1.msra.mxu0 %v6682
        %6819 = vmatprep.subr.mxu0 %v6685
        %6820 = vmatpush1.msra.mxu0 %v6684
        %6821 = vmatprep.subr.mxu0 %v6687
        %6822 = vmatpush1.msra.mxu0 %v6686
        %6823 = vmatprep.subr.mxu0 %v6689
        %6824 = vmatpush1.msra.mxu0 %v6688
        %6825 = vmatprep.subr.mxu0 %v6691
        %6826 = vmatpush1.msra.mxu0 %v6690
        %6827 = vmatprep.subr.mxu0 %v6693
        %6828 = vmatpush1.msra.mxu0 %v6692
        %6829 = vmatprep.subr.mxu0 %v6695
        %6830 = vmatpush1.msra.mxu0 %v6694
        %6831 = vmatprep.subr.mxu0 %v6697
        %6832 = vmatpush1.msra.mxu0 %v6696
        %6833 = vmatprep.subr.mxu0 %v6699
        %6834 = vmatpush1.msra.mxu0 %v6698
        %6835 = vmatprep.subr.mxu0 %v6701
        %6836 = vmatpush1.msra.mxu0 %v6700
        %6837 = vmatprep.subr.mxu0 %v6703
        %6838 = vmatpush1.msra.mxu0 %v6702
        %6839 = vmatprep.subr.mxu0 %v6705
        %6840 = vmatpush1.msra.mxu0 %v6704
        %6841 = vmatprep.subr.mxu0 %v6707
        %6842 = vmatpush1.msra.mxu0 %v6706
        %6843 = vmatprep.subr.mxu0 %v6709
        %6844 = vmatpush1.msra.mxu0 %v6708
        %6845 = vmatprep.subr.mxu0 %v6711
        %6846 = vmatpush1.msra.mxu0 %v6710
        %6847 = vmatprep.subr.mxu0 %v6713
        %6848 = vmatpush1.msra.mxu0 %v6712
        %6849 = vmatprep.subr.mxu0 %v6715
        %6850 = vmatpush1.msra.mxu0 %v6714
        %6851 = vmatprep.subr.mxu0 %v6717
        %6852 = vmatpush1.msra.mxu0 %v6716
        %6853 = vmatprep.subr.mxu0 %v6719
        %6854 = vmatpush1.msra.mxu0 %v6718
        %6855 = vmatprep.subr.mxu0 %v6721
        %6856 = vmatpush1.msra.mxu0 %v6720
        %6857 = vmatprep.subr.mxu0 %v6723
        %6858 = vmatpush1.msra.mxu0 %v6722
        %6859 = vmatprep.subr.mxu0 %v6725
        %6860 = vmatpush1.msra.mxu0 %v6724
        %6861 = vmatprep.subr.mxu0 %v6727
        %6862 = vmatpush1.msra.mxu0 %v6726
        %6863 = vmatprep.subr.mxu0 %v6729
        %6864 = vmatpush1.msra.mxu0 %v6728
        %6865 = vmatprep.subr.mxu0 %v6731
        %6866 = vmatpush1.msra.mxu0 %v6730
        %6867 = vmatprep.subr.mxu0 %v6733
        %6868 = vmatpush1.msra.mxu0 %v6732
        %6869 = vmatprep.subr.mxu0 %v6735
        %6870 = vmatpush1.msra.mxu0 %v6734
        %6871 = vmatprep.subr.mxu0 %v6737
        %6872 = vmatpush1.msra.mxu0 %v6736
        %6873 = vmatprep.mubr.f32.mxu0 %v6673
        %6874 = vmatmul.mubr.f32.gmra.mrb[0].mxu0 %v6666
        %v6875 = vpop.f32.mrb[0].mxu0
        %v6876 = vadd.f32 0.0, %v6875
        %v6877 = vpop.f32.mrb[0].mxu0
        %v6878 = vadd.f32 0.0, %v6877
        %6879 = vdwg.mxu0
        %v6880 = vmul.f32 %v6805, %v6805
        %v6881 = vmul.f32 %v6807, %v6807
        %v6882 = vsub.f32 %v6876, %v6880
        %v6883 = vsub.f32 %v6878, %v6881
        %v6884 = vlaneseq
        %v6885 = vshrl.u32 %v6884, 7
        %v6886 = vsub.s32 0, %v6885
        %v6887 = vrot.slane %v6805, %v6886
        %v6888 = vlaneseq
        %v6889 = vshrl.u32 %v6888, 7
        %v6890 = vsub.s32 0, %v6889
        %v6891 = vrot.slane %v6807, %v6890
        %v6892 = vsub.f32 %v6641, %v6887
        %v6893 = vsub.f32 %v6642, %v6891
        %v6894 = vadd.f32 %v6882, 1e-05
        %v6895 = vadd.f32 %v6883, 1e-05
        %v6896 = vrsqrt.pop %v6894
        %v6897 = vrsqrt.pop %v6895
        %v6898 = vlaneseq
        %v6899 = vshrl.u32 %v6898, 7
        %v6900 = vsub.s32 0, %v6899
        %v6901 = vrot.slane %v6896, %v6900
        %v6902 = vlaneseq
        %v6903 = vshrl.u32 %v6902, 7
        %v6904 = vsub.s32 0, %v6903
        %v6905 = vrot.slane %v6897, %v6904
        %v6906 = vmul.f32 %v6892, %v6901
        %v6907 = vmul.f32 %v6893, %v6905
        %vm6908 = vcmp.ge.f32.partialorder %v6906, 0.0
        %vm6909 = vcmp.ge.f32.partialorder %v6907, 0.0
        %v6910 = vmul.f32 %v6906, 0.2
        %v6911 = vmul.f32 %v6907, 0.2
        %v6912 = vsel %vm6908, %v6906, %v6910
        %v6913 = vsel %vm6909, %v6907, %v6911
        %v6914 = vsel %vm6643, %v6912, 0.0
        %v6915 = vrot.slane %v6914, 4
        %v6916 = vadd.f32 %v6914, %v6915
        %v6917 = vrot.slane %v6916, 2
        %v6918 = vadd.f32 %v6916, %v6917
        %v6919 = vrot.slane %v6918, 1
        %v6920 = vadd.f32 %v6918, %v6919
        %v6921 = vsel %vm6643, %v6913, 0.0
        %v6922 = vrot.slane %v6921, 4
        %v6923 = vadd.f32 %v6921, %v6922
        %v6924 = vrot.slane %v6923, 2
        %v6925 = vadd.f32 %v6923, %v6924
        %v6926 = vrot.slane %v6925, 1
        %v6927 = vadd.f32 %v6925, %v6926
        %v6928 = vadd.f32 %v6920, %v6927
        %v6929 = vmul.f32 %v6928, 0.25
        %v6930 = vld [vmem:[%s12] sm:$0x1]
        %v6931 = vmul.f32 %v6929, %v6930
        %vm6932 = vcmask 1040384
        %v6933 = vsel %vm6932, %v6931, 0.0
        %6934 = vadd.xlane.f32.xlu0 %v6933
        %v6935 = vpop.xlane.xlu0 %6934
        %v6936 = vld [vmem:[#allocation5] sm:$0x1]
        %v6937 = vadd.f32 %v6935, %v6936
        %vm6938 = vcmask 0
        %6939 = vst.msk [vmem:[%s538] sm:$0x1] %vm6938, %v6937
        %p6940 = scmp.lt.s32.totalorder %s30, 1
        %s6941 = scalar_select %p6940, %s30, 1
        %s6942 = scalar_lea.vmem %s14, %s6941
        // Predicated region
        $region97: #{tpu_custom_call.1} parent=75 // pred_check
          %p6943 = pneg %p347
        $region98: #{tpu_custom_call.1} parent=75 // pred_check_branch
          %6945 = sbr.rel (%p6943) target = $region100
        $region99: #{tpu_custom_call.1} parent=75 // pred_region
          _
        $region100: #{tpu_custom_call.1} parent=75 // pred_fallthru
          _
      $region76: #{tpu_custom_call.1} parent=5 // pred_fallthru
        _
      %p6946 = scmp.le.s32.totalorder 2, %s25
      // Predicated region
      $region101: #{tpu_custom_call.1} parent=5 // pred_check
        %p6947 = pneg %p6946
      $region102: #{tpu_custom_call.1} parent=5 // pred_check_branch
        %6949 = sbr.rel (%p6947) target = $region104
      $region103: #{tpu_custom_call.1} parent=5 // pred_region
        %s6950 = ssub.s32 %s25, 2
        // Predicated region
        $region105: #{tpu_custom_call.1} parent=103 // pred_check
          %p6951 = pneg %p353
        $region106: #{tpu_custom_call.1} parent=103 // pred_check_branch
          %6953 = sbr.rel (%p6951) target = $region108
        $region107: #{tpu_custom_call.1} parent=103 // pred_region
          %p6954 = scmp.lt.s32.totalorder %s31, 1
          %s6955 = scalar_select %p6954, %s31, 1
          %s6956 = scalar_lea.vmem %s14, %s6955
        $region108: #{tpu_custom_call.1} parent=103 // pred_fallthru
          _
      $region104: #{tpu_custom_call.1} parent=5 // pred_fallthru
        _
    $region6: #{tpu_custom_call.1} parent=1 // loop_footer
      %s29 = sadd.s32 1, %s25
    $region7: #{tpu_custom_call.1} parent=1 // loop_footer_branch
      %24 = sbr.rel target = $region3
    $region8: #{tpu_custom_call.1} parent=1 // loop_exit
      _
    %6957 = vsyncpa [#allocation7], 1
    %s6958 = scalar_lea.sflag [#allocation7], 1
    %6959 = vsyncpa %s6958, 1
    %6960 = vsyncpa [#allocation9], 1
    %6961 = vsyncpa [#allocation12], 1

</llo_original>
